<compile_context>
chip_gen: v7x
topology: tpu7x:2x2x1
jax: 0.10.0
libtpu: 0.0.40
codegen_flags: <defaults>
</compile_context>

<pallas_src>
import functools

import jax
import jax.numpy as jnp
from jax.experimental import pallas as pl
from jax.experimental.pallas import tpu as pltpu


def _round_up(x, m):
    return ((x + m - 1) // m) * m


# ----------------------------------------------------------------------------
# Generic tiled linear:  y = x @ w.T + b   (w in torch (P, K) layout, bf16)
# Used for (a) the hoisted layer-0 input projection and (b) the tied decoder.
# ----------------------------------------------------------------------------
def _linear_kernel(x_ref, w_ref, b_ref, o_ref):
    x = x_ref[...].astype(jnp.bfloat16)
    acc = jax.lax.dot_general(
        x, w_ref[...],
        dimension_numbers=(((1,), (1,)), ((), ())),
        preferred_element_type=jnp.float32,
    )
    o_ref[...] = acc + b_ref[...]


def linear_pallas(x, w, b, *, tm_target=256, tn_target=512):
    """x: (N, K) f32, w: (P, K) bf16, b: (P,) f32 -> (N, P) f32. K, P % 128 == 0."""
    N, K = x.shape
    P, K2 = w.shape
    assert K == K2 and K % 128 == 0 and P % 128 == 0

    tm = min(tm_target, _round_up(N, 8))
    N_p = _round_up(N, tm)
    if N_p != N:
        x = jnp.pad(x, ((0, N_p - N), (0, 0)))

    if P % tn_target == 0:
        tn = tn_target
    elif P % 256 == 0:
        tn = 256
    else:
        tn = 128

    b2 = b.reshape(1, P)
    out = pl.pallas_call(
        _linear_kernel,
        out_shape=jax.ShapeDtypeStruct((N_p, P), jnp.float32),
        grid_spec=pltpu.PrefetchScalarGridSpec(
            num_scalar_prefetch=0,
            grid=(N_p // tm, P // tn),
            in_specs=[
                pl.BlockSpec((tm, K), lambda i, j: (i, 0)),
                pl.BlockSpec((tn, K), lambda i, j: (j, 0)),
                pl.BlockSpec((1, tn), lambda i, j: (0, j)),
            ],
            out_specs=pl.BlockSpec((tm, tn), lambda i, j: (i, j)),
        ),
        compiler_params=pltpu.CompilerParams(
            dimension_semantics=("parallel", "parallel"),
        ),
    )(x, w, b2)
    return out[:N] if N_p != N else out


# ----------------------------------------------------------------------------
# Fused 3-layer LSTM recurrence.
#   grid = (batch_blocks [parallel], time_blocks [arbitrary])
#   Layer 0 consumes precomputed input gates gx0 (hoisted matmul); per step it
#   only does h0 @ W_hh0.  Layers 1/2 do one fused [x ; h] @ [W_ih ; W_hh]
#   matmul each.  h/c for all three layers persist in VMEM scratch.
# ----------------------------------------------------------------------------
def _fused_lstm_kernel(gx0_ref, whh0_ref, wcat1_ref, b1_ref, wcat2_ref, b2_ref,
                       out_ref, h0, c0, h1, c1, h2, c2):
    @pl.when(pl.program_id(1) == 0)   # first time-block of this batch block
    def _():
        h0[...] = jnp.zeros_like(h0)
        c0[...] = jnp.zeros_like(c0)
        h1[...] = jnp.zeros_like(h1)
        c1[...] = jnp.zeros_like(c1)
        h2[...] = jnp.zeros_like(h2)
        c2[...] = jnp.zeros_like(c2)

    H = h0.shape[-1]          # padded hidden (multiple of 128)
    E = h2.shape[-1]          # padded embedding-sized hidden (multiple of 128)
    tblk = gx0_ref.shape[0]
    dn = (((1,), (1,)), ((), ()))

    def cell(gates, c_prev, hd):
        # PyTorch gate order: input, forget, cell(g), output — slices are
        # 128-lane aligned because hd is a multiple of 128.
        i_g = jax.nn.sigmoid(gates[:, 0 * hd:1 * hd])
        f_g = jax.nn.sigmoid(gates[:, 1 * hd:2 * hd])
        g_g = jnp.tanh(gates[:, 2 * hd:3 * hd])
        o_g = jax.nn.sigmoid(gates[:, 3 * hd:4 * hd])
        c_new = f_g * c_prev + i_g * g_g
        h_new = o_g * jnp.tanh(c_new)
        return h_new, c_new

    def step(t, carry):
        # ---- layer 0: input gates precomputed; only recurrent matmul here.
        g0 = gx0_ref[t] + jax.lax.dot_general(
            h0[...].astype(jnp.bfloat16), whh0_ref[...], dn,
            preferred_element_type=jnp.float32)
        h0n, c0n = cell(g0, c0[...], H)
        h0[...] = h0n
        c0[...] = c0n

        # ---- layer 1: single fused matmul over [x=h0n ; h1].
        x1 = jnp.concatenate([h0n, h1[...]], axis=1).astype(jnp.bfloat16)
        g1 = jax.lax.dot_general(
            x1, wcat1_ref[...], dn,
            preferred_element_type=jnp.float32) + b1_ref[...]
        h1n, c1n = cell(g1, c1[...], H)
        h1[...] = h1n
        c1[...] = c1n

        # ---- layer 2: single fused matmul over [x=h1n ; h2].
        x2 = jnp.concatenate([h1n, h2[...]], axis=1).astype(jnp.bfloat16)
        g2 = jax.lax.dot_general(
            x2, wcat2_ref[...], dn,
            preferred_element_type=jnp.float32) + b2_ref[...]
        h2n, c2n = cell(g2, c2[...], E)
        h2[...] = h2n
        c2[...] = c2n

        out_ref[t] = h2n
        return carry

    jax.lax.fori_loop(0, tblk, step, 0, unroll=True)


def fused_lstm3(gx0, whh0, wcat1, b1, wcat2, b2, *, tblk, bblk, H_p, E_p):
    T_p, B_p, _ = gx0.shape
    grid = (B_p // bblk, T_p // tblk)
    return pl.pallas_call(
        _fused_lstm_kernel,
        out_shape=jax.ShapeDtypeStruct((T_p, B_p, E_p), jnp.float32),
        grid_spec=pltpu.PrefetchScalarGridSpec(
            num_scalar_prefetch=0,
            grid=grid,
            in_specs=[
                pl.BlockSpec((tblk, bblk, 4 * H_p), lambda b, t: (t, b, 0)),
                pl.BlockSpec((4 * H_p, H_p), lambda b, t: (0, 0)),
                pl.BlockSpec((4 * H_p, 2 * H_p), lambda b, t: (0, 0)),
                pl.BlockSpec((1, 4 * H_p), lambda b, t: (0, 0)),
                pl.BlockSpec((4 * E_p, H_p + E_p), lambda b, t: (0, 0)),
                pl.BlockSpec((1, 4 * E_p), lambda b, t: (0, 0)),
            ],
            out_specs=pl.BlockSpec((tblk, bblk, E_p), lambda b, t: (t, b, 0)),
            scratch_shapes=[
                pltpu.VMEM((bblk, H_p), jnp.float32),  # h0
                pltpu.VMEM((bblk, H_p), jnp.float32),  # c0
                pltpu.VMEM((bblk, H_p), jnp.float32),  # h1
                pltpu.VMEM((bblk, H_p), jnp.float32),  # c1
                pltpu.VMEM((bblk, E_p), jnp.float32),  # h2
                pltpu.VMEM((bblk, E_p), jnp.float32),  # c2
            ],
        ),
        compiler_params=pltpu.CompilerParams(
            # batch axis parallel (megacore / v7x 2-TC), time axis is the
            # serial recurrence.
            dimension_semantics=("parallel", "arbitrary"),
            # NOTE: at production ULMFiT sizes (H~1150, bf16-resident weights
            # ~40 MB) set vmem_limit_bytes explicitly and re-derive tiles for
            # v7x's 64 MiB VMEM; the demo fits in the scoped default.
        ),
    )(gx0, whh0, wcat1, b1, wcat2, b2)


# ----------------------------------------------------------------------------
# Full RNNModel forward: embedding -> fused 3-layer LSTM -> tied decoder.
# ----------------------------------------------------------------------------
def rnn_model_forward(tokens, params, *, tblk=8):
    """tokens: (T, B) int32 -> logits (T*B, V)."""
    T, B = tokens.shape
    emb_w = params["embedding"]               # (V, E) f32
    V, E = emb_w.shape
    H = params["rnn1"]["w_hh"].shape[1]       # middle-layer hidden size

    E_p = _round_up(E, 128)
    H_p = _round_up(H, 128)
    V_p = _round_up(V, 128)
    B_p = _round_up(B, 8)
    T_p = _round_up(T, tblk)
    if B_p >= 16:
        B_p = _round_up(B_p, 16)
        bblk = B_p // 2                       # 2 batch blocks -> 2 TCs on v7x
    else:
        bblk = B_p

    # --- pack / pad parameters (zero padding is numerically neutral) ---------
    def gate_mat(w, h, h_p, f, f_p):
        # torch layout (4h, f): pad each gate's rows and the input cols.
        return jnp.pad(
            w.reshape(4, h, f), ((0, 0), (0, h_p - h), (0, f_p - f))
        ).reshape(4 * h_p, f_p)

    def gate_vec(v, h, h_p):
        return jnp.pad(v.reshape(4, h), ((0, 0), (0, h_p - h))).reshape(4 * h_p)

    p0, p1, p2 = params["rnn0"], params["rnn1"], params["rnn2"]
    # layer 0 (E -> H): input projection hoisted, so keep W_ih0 separate.
    wih0 = gate_mat(p0["w_ih"], H, H_p, E, E_p).astype(jnp.bfloat16)
    whh0 = gate_mat(p0["w_hh"], H, H_p, H, H_p).astype(jnp.bfloat16)
    b0 = gate_vec(p0["b_ih"] + p0["b_hh"], H, H_p)       # torch b_ih + b_hh
    # layer 1 (H -> H): stack [W_ih ; W_hh] so the step is a single matmul.
    wcat1 = jnp.concatenate(
        [gate_mat(p1["w_ih"], H, H_p, H, H_p),
         gate_mat(p1["w_hh"], H, H_p, H, H_p)], axis=1).astype(jnp.bfloat16)
    b1 = gate_vec(p1["b_ih"] + p1["b_hh"], H, H_p).reshape(1, 4 * H_p)
    # layer 2 (H -> E, back to E so the decoder can tie to the embedding).
    wcat2 = jnp.concatenate(
        [gate_mat(p2["w_ih"], E, E_p, H, H_p),
         gate_mat(p2["w_hh"], E, E_p, E, E_p)], axis=1).astype(jnp.bfloat16)
    b2 = gate_vec(p2["b_ih"] + p2["b_hh"], E, E_p).reshape(1, 4 * E_p)
    # tied decoder weight == embedding; no transpose materialized.
    dec_w = jnp.pad(emb_w, ((0, V_p - V), (0, E_p - E))).astype(jnp.bfloat16)
    dec_b = jnp.pad(params["dec_bias"], (0, V_p - V))

    # --- encoder: embedding lookup (plain JAX gather) ------------------------
    emb_tbl = jnp.pad(emb_w, ((0, 0), (0, E_p - E)))
    emb = jnp.take(emb_tbl, tokens, axis=0)               # (T, B, E_p)
    emb = jnp.pad(emb, ((0, T_p - T), (0, B_p - B), (0, 0)))

    # --- layer-0 input projection: one big MXU-friendly matmul ---------------
    gx0 = linear_pallas(emb.reshape(T_p * B_p, E_p), wih0, b0)
    gx0 = gx0.reshape(T_p, B_p, 4 * H_p)

    # --- fused 3-layer LSTM recurrence ---------------------------------------
    h2 = fused_lstm3(gx0, whh0, wcat1, b1, wcat2, b2,
                     tblk=tblk, bblk=bblk, H_p=H_p, E_p=E_p)

    # --- decoder.fc1 with tied weight (= embedding) and zero bias ------------
    logits_p = linear_pallas(h2.reshape(T_p * B_p, E_p), dec_w, dec_b)
    logits = logits_p.reshape(T_p, B_p, V_p)[:T, :B, :V].reshape(T * B, V)
    return logits
    # TODO(synk): AWD-LSTM-style dropout (weight-drop / embedding dropout) has
    # no role in the deterministic eval forward and is omitted.


def init_params(key, vocab, emb_dim, hidden, initrange=0.1):
    keys = jax.random.split(key, 4)
    # encoder.embeddings.weight (tied to decoder.fc1.weight): uniform_(-r, r)
    embedding = jax.random.uniform(
        keys[0], (vocab, emb_dim), jnp.float32, -initrange, initrange)

    def lstm_params(k, f_in, h):
        k1, k2, k3, k4 = jax.random.split(k, 4)
        s = 1.0 / (h ** 0.5)
        return {
            # torch layout: (4H, in_features); biases kept separate (b_ih+b_hh
            # are summed when packing — forward-equivalent to PyTorch).
            "w_ih": jax.random.uniform(k1, (4 * h, f_in), jnp.float32, -s, s),
            "w_hh": jax.random.uniform(k2, (4 * h, h), jnp.float32, -s, s),
            "b_ih": jax.random.uniform(k3, (4 * h,), jnp.float32, -s, s),
            "b_hh": jax.random.uniform(k4, (4 * h,), jnp.float32, -s, s),
        }

    return {
        "embedding": embedding,
        "rnn0": lstm_params(keys[1], emb_dim, hidden),
        "rnn1": lstm_params(keys[2], hidden, hidden),
        "rnn2": lstm_params(keys[3], hidden, emb_dim),   # back to E for tying
        "dec_bias": jnp.zeros((vocab,), jnp.float32),    # fc1.bias.zero_()
    }


if __name__ == "__main__":
    V = 128   # vocab size
    E = 32    # embedding dim == last LSTM hidden (tied weights)
    H = 32    # intermediate LSTM hidden
    T = 8     # sequence length
    B = 2     # batch

    key = jax.random.PRNGKey(0)
    k_tok, k_par = jax.random.split(key)
    params = init_params(k_par, V, E, H)
    tokens = jax.random.randint(k_tok, (T, B), 0, V, dtype=jnp.int32)

    logits = jax.jit(functools.partial(rnn_model_forward))(tokens, params)
    logits = jax.block_until_ready(logits)
    assert logits.shape == (T * B, V)
    assert bool(jnp.all(jnp.isfinite(logits)))
    print("KERNEL_OK")
</pallas_src>

<mosaic_0001>
module attributes {stable_mosaic.version = 11 : i64} {
  func.func @_linear_kernel(%arg0: i32, %arg1: i32, %arg2: memref<64x128xf32, #tpu.memory_space<vmem>>, %arg3: memref<512x128xbf16, #tpu.memory_space<vmem>>, %arg4: memref<1x512xf32, #tpu.memory_space<vmem>>, %arg5: memref<64x512xf32, #tpu.memory_space<vmem>>) attributes {dimension_semantics = [#tpu.dimension_semantics<parallel>, #tpu.dimension_semantics<parallel>], iteration_bounds = array<i64: 1, 1>, scalar_prefetch = 0 : i64, scratch_operands = 0 : i64, tpu.core_type = #tpu.core_type<tc>, window_params = [{transform_indices = @transform_0, window_bounds = array<i64: 64, 128>}, {transform_indices = @transform_1, window_bounds = array<i64: 512, 128>}, {transform_indices = @transform_2, window_bounds = array<i64: 1, 512>}, {transform_indices = @transform_3, window_bounds = array<i64: 64, 512>}]} {
    %c0 = arith.constant 0 : index
    %c0_0 = arith.constant 0 : index
    %0 = vector.load %arg2[%c0, %c0_0] : memref<64x128xf32, #tpu.memory_space<vmem>>, vector<64x128xf32>
    %1 = arith.truncf %0 : vector<64x128xf32> to vector<64x128xbf16>
    %c0_1 = arith.constant 0 : index
    %c0_2 = arith.constant 0 : index
    %2 = vector.load %arg3[%c0_1, %c0_2] : memref<512x128xbf16, #tpu.memory_space<vmem>>, vector<512x128xbf16>
    %cst = arith.constant dense<0.000000e+00> : vector<64x512xf32>
    %3 = tpu.matmul %1, %2, %cst {dimension_numbers = #tpu.dot_dimension_numbers<[1], [1], [0], [0], [0, 0, 1, 0], [], []>} : vector<64x128xbf16>, vector<512x128xbf16>, vector<64x512xf32> -> vector<64x512xf32>
    %c0_3 = arith.constant 0 : index
    %c0_4 = arith.constant 0 : index
    %4 = vector.load %arg4[%c0_3, %c0_4] : memref<1x512xf32, #tpu.memory_space<vmem>>, vector<1x512xf32>
    %5 = vector.broadcast %4 : vector<1x512xf32> to vector<64x512xf32>
    %6 = arith.addf %3, %5 : vector<64x512xf32>
    %c0_5 = arith.constant 0 : index
    %c0_6 = arith.constant 0 : index
    %7 = vector.load %arg5[%c0_5, %c0_6] : memref<64x512xf32, #tpu.memory_space<vmem>>, vector<64x512xf32>
    tpu.vector_store %arg5[%c0_5, %c0_6], %6 {strides = array<i32>} : memref<64x512xf32, #tpu.memory_space<vmem>>, vector<64x512xf32>,
    return
  }
  func.func @transform_0(%arg0: i32, %arg1: i32) -> (i32, i32) {
    %c0_i32 = arith.constant 0 : i32
    %c0_i32_0 = arith.constant 0 : i32
    return %arg0, %c0_i32 : i32, i32
  }
  func.func @transform_1(%arg0: i32, %arg1: i32) -> (i32, i32) {
    %c0_i32 = arith.constant 0 : i32
    %c0_i32_0 = arith.constant 0 : i32
    return %arg1, %c0_i32 : i32, i32
  }
  func.func @transform_2(%arg0: i32, %arg1: i32) -> (i32, i32) {
    %c0_i32 = arith.constant 0 : i32
    %c0_i32_0 = arith.constant 0 : i32
    return %c0_i32, %arg1 : i32, i32
  }
  func.func @transform_3(%arg0: i32, %arg1: i32) -> (i32, i32) {
    %c0_i32 = arith.constant 0 : i32
    return %arg0, %arg1 : i32, i32
  }
}

module attributes {stable_mosaic.version = 11 : i64} {
  func.func @_linear_kernel(%arg0: i32, %arg1: i32, %arg2: memref<64x128xf32, #tpu.memory_space<vmem>>, %arg3: memref<128x128xbf16, #tpu.memory_space<vmem>>, %arg4: memref<1x128xf32, #tpu.memory_space<vmem>>, %arg5: memref<64x128xf32, #tpu.memory_space<vmem>>) attributes {dimension_semantics = [#tpu.dimension_semantics<parallel>, #tpu.dimension_semantics<parallel>], iteration_bounds = array<i64: 1, 1>, scalar_prefetch = 0 : i64, scratch_operands = 0 : i64, tpu.core_type = #tpu.core_type<tc>, window_params = [{transform_indices = @transform_0, window_bounds = array<i64: 64, 128>}, {transform_indices = @transform_1, window_bounds = array<i64: 128, 128>}, {transform_indices = @transform_2, window_bounds = array<i64: 1, 128>}, {transform_indices = @transform_3, window_bounds = array<i64: 64, 128>}]} {
    %c0 = arith.constant 0 : index
    %c0_0 = arith.constant 0 : index
    %0 = vector.load %arg2[%c0, %c0_0] : memref<64x128xf32, #tpu.memory_space<vmem>>, vector<64x128xf32>
    %1 = arith.truncf %0 : vector<64x128xf32> to vector<64x128xbf16>
    %c0_1 = arith.constant 0 : index
    %c0_2 = arith.constant 0 : index
    %2 = vector.load %arg3[%c0_1, %c0_2] : memref<128x128xbf16, #tpu.memory_space<vmem>>, vector<128x128xbf16>
    %cst = arith.constant dense<0.000000e+00> : vector<64x128xf32>
    %3 = tpu.matmul %1, %2, %cst {dimension_numbers = #tpu.dot_dimension_numbers<[1], [1], [0], [0], [0, 0, 1, 0], [], []>} : vector<64x128xbf16>, vector<128x128xbf16>, vector<64x128xf32> -> vector<64x128xf32>
    %c0_3 = arith.constant 0 : index
    %c0_4 = arith.constant 0 : index
    %4 = vector.load %arg4[%c0_3, %c0_4] : memref<1x128xf32, #tpu.memory_space<vmem>>, vector<1x128xf32>
    %5 = vector.broadcast %4 : vector<1x128xf32> to vector<64x128xf32>
    %6 = arith.addf %3, %5 : vector<64x128xf32>
    %c0_5 = arith.constant 0 : index
    %c0_6 = arith.constant 0 : index
    %7 = vector.load %arg5[%c0_5, %c0_6] : memref<64x128xf32, #tpu.memory_space<vmem>>, vector<64x128xf32>
    tpu.vector_store %arg5[%c0_5, %c0_6], %6 {strides = array<i32>} : memref<64x128xf32, #tpu.memory_space<vmem>>, vector<64x128xf32>,
    return
  }
  func.func @transform_0(%arg0: i32, %arg1: i32) -> (i32, i32) {
    %c0_i32 = arith.constant 0 : i32
    %c0_i32_0 = arith.constant 0 : i32
    return %arg0, %c0_i32 : i32, i32
  }
  func.func @transform_1(%arg0: i32, %arg1: i32) -> (i32, i32) {
    %c0_i32 = arith.constant 0 : i32
    %c0_i32_0 = arith.constant 0 : i32
    return %arg1, %c0_i32 : i32, i32
  }
  func.func @transform_2(%arg0: i32, %arg1: i32) -> (i32, i32) {
    %c0_i32 = arith.constant 0 : i32
    %c0_i32_0 = arith.constant 0 : i32
    return %c0_i32, %arg1 : i32, i32
  }
  func.func @transform_3(%arg0: i32, %arg1: i32) -> (i32, i32) {
    %c0_i32 = arith.constant 0 : i32
    return %arg0, %arg1 : i32, i32
  }
}

module attributes {stable_mosaic.version = 11 : i64} {
  func.func @_fused_lstm_kernel(%arg0: i32, %arg1: i32, %arg2: memref<8x8x512xf32, #tpu.memory_space<vmem>>, %arg3: memref<512x128xbf16, #tpu.memory_space<vmem>>, %arg4: memref<512x256xbf16, #tpu.memory_space<vmem>>, %arg5: memref<1x512xf32, #tpu.memory_space<vmem>>, %arg6: memref<512x256xbf16, #tpu.memory_space<vmem>>, %arg7: memref<1x512xf32, #tpu.memory_space<vmem>>, %arg8: memref<8x8x128xf32, #tpu.memory_space<vmem>>, %arg9: memref<8x128xf32, #tpu.memory_space<vmem>>, %arg10: memref<8x128xf32, #tpu.memory_space<vmem>>, %arg11: memref<8x128xf32, #tpu.memory_space<vmem>>, %arg12: memref<8x128xf32, #tpu.memory_space<vmem>>, %arg13: memref<8x128xf32, #tpu.memory_space<vmem>>, %arg14: memref<8x128xf32, #tpu.memory_space<vmem>>) attributes {dimension_semantics = [#tpu.dimension_semantics<parallel>, #tpu.dimension_semantics<arbitrary>], iteration_bounds = array<i64: 1, 1>, scalar_prefetch = 0 : i64, scratch_operands = 6 : i64, tpu.core_type = #tpu.core_type<tc>, window_params = [{transform_indices = @transform_0, window_bounds = array<i64: 8, 8, 512>}, {pipeline_mode = #tpu.pipeline_mode<synchronous>, transform_indices = @transform_1, window_bounds = array<i64: 512, 128>}, {pipeline_mode = #tpu.pipeline_mode<synchronous>, transform_indices = @transform_2, window_bounds = array<i64: 512, 256>}, {pipeline_mode = #tpu.pipeline_mode<synchronous>, transform_indices = @transform_3, window_bounds = array<i64: 1, 512>}, {pipeline_mode = #tpu.pipeline_mode<synchronous>, transform_indices = @transform_4, window_bounds = array<i64: 512, 256>}, {pipeline_mode = #tpu.pipeline_mode<synchronous>, transform_indices = @transform_5, window_bounds = array<i64: 1, 512>}, {transform_indices = @transform_6, window_bounds = array<i64: 8, 8, 128>}]} {
    %c0_i32 = arith.constant 0 : i32
    %0 = arith.cmpi eq, %arg1, %c0_i32 : i32
    %1 = arith.extui %0 : i1 to i32
    %c0_i32_0 = arith.constant 0 : i32
    %2 = arith.cmpi ne, %1, %c0_i32_0 : i32
    scf.if %2 {
      %cst_400 = arith.constant 0.000000e+00 : f32
      %899 = vector.broadcast %cst_400 : f32 to vector<8x128xf32>
      %c0_401 = arith.constant 0 : index
      %c0_402 = arith.constant 0 : index
      %900 = vector.load %arg9[%c0_401, %c0_402] : memref<8x128xf32, #tpu.memory_space<vmem>>, vector<8x128xf32>
      tpu.vector_store %arg9[%c0_401, %c0_402], %899 {strides = array<i32>} : memref<8x128xf32, #tpu.memory_space<vmem>>, vector<8x128xf32>,
      %cst_403 = arith.constant 0.000000e+00 : f32
      %901 = vector.broadcast %cst_403 : f32 to vector<8x128xf32>
      %c0_404 = arith.constant 0 : index
      %c0_405 = arith.constant 0 : index
      %902 = vector.load %arg10[%c0_404, %c0_405] : memref<8x128xf32, #tpu.memory_space<vmem>>, vector<8x128xf32>
      tpu.vector_store %arg10[%c0_404, %c0_405], %901 {strides = array<i32>} : memref<8x128xf32, #tpu.memory_space<vmem>>, vector<8x128xf32>,
      %cst_406 = arith.constant 0.000000e+00 : f32
      %903 = vector.broadcast %cst_406 : f32 to vector<8x128xf32>
      %c0_407 = arith.constant 0 : index
      %c0_408 = arith.constant 0 : index
      %904 = vector.load %arg11[%c0_407, %c0_408] : memref<8x128xf32, #tpu.memory_space<vmem>>, vector<8x128xf32>
      tpu.vector_store %arg11[%c0_407, %c0_408], %903 {strides = array<i32>} : memref<8x128xf32, #tpu.memory_space<vmem>>, vector<8x128xf32>,
      %cst_409 = arith.constant 0.000000e+00 : f32
      %905 = vector.broadcast %cst_409 : f32 to vector<8x128xf32>
      %c0_410 = arith.constant 0 : index
      %c0_411 = arith.constant 0 : index
      %906 = vector.load %arg12[%c0_410, %c0_411] : memref<8x128xf32, #tpu.memory_space<vmem>>, vector<8x128xf32>
      tpu.vector_store %arg12[%c0_410, %c0_411], %905 {strides = array<i32>} : memref<8x128xf32, #tpu.memory_space<vmem>>, vector<8x128xf32>,
      %cst_412 = arith.constant 0.000000e+00 : f32
      %907 = vector.broadcast %cst_412 : f32 to vector<8x128xf32>
      %c0_413 = arith.constant 0 : index
      %c0_414 = arith.constant 0 : index
      %908 = vector.load %arg13[%c0_413, %c0_414] : memref<8x128xf32, #tpu.memory_space<vmem>>, vector<8x128xf32>
      tpu.vector_store %arg13[%c0_413, %c0_414], %907 {strides = array<i32>} : memref<8x128xf32, #tpu.memory_space<vmem>>, vector<8x128xf32>,
      %cst_415 = arith.constant 0.000000e+00 : f32
      %909 = vector.broadcast %cst_415 : f32 to vector<8x128xf32>
      %c0_416 = arith.constant 0 : index
      %c0_417 = arith.constant 0 : index
      %910 = vector.load %arg14[%c0_416, %c0_417] : memref<8x128xf32, #tpu.memory_space<vmem>>, vector<8x128xf32>
      tpu.vector_store %arg14[%c0_416, %c0_417], %909 {strides = array<i32>} : memref<8x128xf32, #tpu.memory_space<vmem>>, vector<8x128xf32>,
    } else {
    }
    %c0_i32_1 = arith.constant 0 : i32
    %3 = arith.index_cast %c0_i32_1 : i32 to index
    %c0 = arith.constant 0 : index
    %c0_2 = arith.constant 0 : index
    %4 = vector.load %arg2[%3, %c0, %c0_2] : memref<8x8x512xf32, #tpu.memory_space<vmem>>, vector<1x8x512xf32>
    %5 = vector.shape_cast %4 : vector<1x8x512xf32> to vector<8x512xf32>
    %c0_3 = arith.constant 0 : index
    %c0_4 = arith.constant 0 : index
    %6 = vector.load %arg9[%c0_3, %c0_4] : memref<8x128xf32, #tpu.memory_space<vmem>>, vector<8x128xf32>
    %7 = arith.truncf %6 : vector<8x128xf32> to vector<8x128xbf16>
    %c0_5 = arith.constant 0 : index
    %c0_6 = arith.constant 0 : index
    %8 = vector.load %arg3[%c0_5, %c0_6] : memref<512x128xbf16, #tpu.memory_space<vmem>>, vector<512x128xbf16>
    %cst = arith.constant dense<0.000000e+00> : vector<8x512xf32>
    %9 = tpu.matmul %7, %8, %cst {dimension_numbers = #tpu.dot_dimension_numbers<[1], [1], [0], [0], [0, 0, 1, 0], [], []>} : vector<8x128xbf16>, vector<512x128xbf16>, vector<8x512xf32> -> vector<8x512xf32>
    %10 = arith.addf %5, %9 : vector<8x512xf32>
    %c0_7 = arith.constant 0 : index
    %c0_8 = arith.constant 0 : index
    %11 = vector.load %arg10[%c0_7, %c0_8] : memref<8x128xf32, #tpu.memory_space<vmem>>, vector<8x128xf32>
    %12 = vector.extract_strided_slice %10 {offsets = [0, 0], sizes = [8, 128], strides = [1, 1]} : vector<8x512xf32> to vector<8x128xf32>
    %13 = arith.negf %12 : vector<8x128xf32>
    %14 = math.exp %13 : vector<8x128xf32>
    %cst_9 = arith.constant 1.000000e+00 : f32
    %15 = vector.broadcast %cst_9 : f32 to vector<8x128xf32>
    %16 = arith.addf %15, %14 : vector<8x128xf32>
    %17 = arith.divf %15, %16 : vector<8x128xf32>
    %18 = vector.extract_strided_slice %10 {offsets = [0, 128], sizes = [8, 128], strides = [1, 1]} : vector<8x512xf32> to vector<8x128xf32>
    %19 = arith.negf %18 : vector<8x128xf32>
    %20 = math.exp %19 : vector<8x128xf32>
    %cst_10 = arith.constant 1.000000e+00 : f32
    %21 = vector.broadcast %cst_10 : f32 to vector<8x128xf32>
    %22 = arith.addf %21, %20 : vector<8x128xf32>
    %23 = arith.divf %21, %22 : vector<8x128xf32>
    %24 = vector.extract_strided_slice %10 {offsets = [0, 256], sizes = [8, 128], strides = [1, 1]} : vector<8x512xf32> to vector<8x128xf32>
    %25 = math.tanh %24 : vector<8x128xf32>
    %26 = vector.extract_strided_slice %10 {offsets = [0, 384], sizes = [8, 128], strides = [1, 1]} : vector<8x512xf32> to vector<8x128xf32>
    %27 = arith.negf %26 : vector<8x128xf32>
    %28 = math.exp %27 : vector<8x128xf32>
    %cst_11 = arith.constant 1.000000e+00 : f32
    %29 = vector.broadcast %cst_11 : f32 to vector<8x128xf32>
    %30 = arith.addf %29, %28 : vector<8x128xf32>
    %31 = arith.divf %29, %30 : vector<8x128xf32>
    %32 = arith.mulf %23, %11 : vector<8x128xf32>
    %33 = arith.mulf %17, %25 : vector<8x128xf32>
    %34 = arith.addf %32, %33 : vector<8x128xf32>
    %35 = math.tanh %34 : vector<8x128xf32>
    %36 = arith.mulf %31, %35 : vector<8x128xf32>
    %c0_12 = arith.constant 0 : index
    %c0_13 = arith.constant 0 : index
    %37 = vector.load %arg9[%c0_12, %c0_13] : memref<8x128xf32, #tpu.memory_space<vmem>>, vector<8x128xf32>
    tpu.vector_store %arg9[%c0_12, %c0_13], %36 {strides = array<i32>} : memref<8x128xf32, #tpu.memory_space<vmem>>, vector<8x128xf32>,
    %c0_14 = arith.constant 0 : index
    %c0_15 = arith.constant 0 : index
    %38 = vector.load %arg10[%c0_14, %c0_15] : memref<8x128xf32, #tpu.memory_space<vmem>>, vector<8x128xf32>
    tpu.vector_store %arg10[%c0_14, %c0_15], %34 {strides = array<i32>} : memref<8x128xf32, #tpu.memory_space<vmem>>, vector<8x128xf32>,
    %c0_16 = arith.constant 0 : index
    %c0_17 = arith.constant 0 : index
    %39 = vector.load %arg11[%c0_16, %c0_17] : memref<8x128xf32, #tpu.memory_space<vmem>>, vector<8x128xf32>
    %40 = tpu.concatenate %36, %39 in 1 : vector<8x128xf32>, vector<8x128xf32> -> vector<8x256xf32>
    %41 = arith.truncf %40 : vector<8x256xf32> to vector<8x256xbf16>
    %c0_18 = arith.constant 0 : index
    %c0_19 = arith.constant 0 : index
    %42 = vector.load %arg4[%c0_18, %c0_19] : memref<512x256xbf16, #tpu.memory_space<vmem>>, vector<512x256xbf16>
    %cst_20 = arith.constant dense<0.000000e+00> : vector<8x512xf32>
    %43 = tpu.matmul %41, %42, %cst_20 {dimension_numbers = #tpu.dot_dimension_numbers<[1], [1], [0], [0], [0, 0, 1, 0], [], []>} : vector<8x256xbf16>, vector<512x256xbf16>, vector<8x512xf32> -> vector<8x512xf32>
    %c0_21 = arith.constant 0 : index
    %c0_22 = arith.constant 0 : index
    %44 = vector.load %arg5[%c0_21, %c0_22] : memref<1x512xf32, #tpu.memory_space<vmem>>, vector<1x512xf32>
    %45 = vector.broadcast %44 : vector<1x512xf32> to vector<8x512xf32>
    %46 = arith.addf %43, %45 : vector<8x512xf32>
    %c0_23 = arith.constant 0 : index
    %c0_24 = arith.constant 0 : index
    %47 = vector.load %arg12[%c0_23, %c0_24] : memref<8x128xf32, #tpu.memory_space<vmem>>, vector<8x128xf32>
    %48 = vector.extract_strided_slice %46 {offsets = [0, 0], sizes = [8, 128], strides = [1, 1]} : vector<8x512xf32> to vector<8x128xf32>
    %49 = arith.negf %48 : vector<8x128xf32>
    %50 = math.exp %49 : vector<8x128xf32>
    %cst_25 = arith.constant 1.000000e+00 : f32
    %51 = vector.broadcast %cst_25 : f32 to vector<8x128xf32>
    %52 = arith.addf %51, %50 : vector<8x128xf32>
    %53 = arith.divf %51, %52 : vector<8x128xf32>
    %54 = vector.extract_strided_slice %46 {offsets = [0, 128], sizes = [8, 128], strides = [1, 1]} : vector<8x512xf32> to vector<8x128xf32>
    %55 = arith.negf %54 : vector<8x128xf32>
    %56 = math.exp %55 : vector<8x128xf32>
    %cst_26 = arith.constant 1.000000e+00 : f32
    %57 = vector.broadcast %cst_26 : f32 to vector<8x128xf32>
    %58 = arith.addf %57, %56 : vector<8x128xf32>
    %59 = arith.divf %57, %58 : vector<8x128xf32>
    %60 = vector.extract_strided_slice %46 {offsets = [0, 256], sizes = [8, 128], strides = [1, 1]} : vector<8x512xf32> to vector<8x128xf32>
    %61 = math.tanh %60 : vector<8x128xf32>
    %62 = vector.extract_strided_slice %46 {offsets = [0, 384], sizes = [8, 128], strides = [1, 1]} : vector<8x512xf32> to vector<8x128xf32>
    %63 = arith.negf %62 : vector<8x128xf32>
    %64 = math.exp %63 : vector<8x128xf32>
    %cst_27 = arith.constant 1.000000e+00 : f32
    %65 = vector.broadcast %cst_27 : f32 to vector<8x128xf32>
    %66 = arith.addf %65, %64 : vector<8x128xf32>
    %67 = arith.divf %65, %66 : vector<8x128xf32>
    %68 = arith.mulf %59, %47 : vector<8x128xf32>
    %69 = arith.mulf %53, %61 : vector<8x128xf32>
    %70 = arith.addf %68, %69 : vector<8x128xf32>
    %71 = math.tanh %70 : vector<8x128xf32>
    %72 = arith.mulf %67, %71 : vector<8x128xf32>
    %c0_28 = arith.constant 0 : index
    %c0_29 = arith.constant 0 : index
    %73 = vector.load %arg11[%c0_28, %c0_29] : memref<8x128xf32, #tpu.memory_space<vmem>>, vector<8x128xf32>
    tpu.vector_store %arg11[%c0_28, %c0_29], %72 {strides = array<i32>} : memref<8x128xf32, #tpu.memory_space<vmem>>, vector<8x128xf32>,
    %c0_30 = arith.constant 0 : index
    %c0_31 = arith.constant 0 : index
    %74 = vector.load %arg12[%c0_30, %c0_31] : memref<8x128xf32, #tpu.memory_space<vmem>>, vector<8x128xf32>
    tpu.vector_store %arg12[%c0_30, %c0_31], %70 {strides = array<i32>} : memref<8x128xf32, #tpu.memory_space<vmem>>, vector<8x128xf32>,
    %c0_32 = arith.constant 0 : index
    %c0_33 = arith.constant 0 : index
    %75 = vector.load %arg13[%c0_32, %c0_33] : memref<8x128xf32, #tpu.memory_space<vmem>>, vector<8x128xf32>
    %76 = tpu.concatenate %72, %75 in 1 : vector<8x128xf32>, vector<8x128xf32> -> vector<8x256xf32>
    %77 = arith.truncf %76 : vector<8x256xf32> to vector<8x256xbf16>
    %c0_34 = arith.constant 0 : index
    %c0_35 = arith.constant 0 : index
    %78 = vector.load %arg6[%c0_34, %c0_35] : memref<512x256xbf16, #tpu.memory_space<vmem>>, vector<512x256xbf16>
    %cst_36 = arith.constant dense<0.000000e+00> : vector<8x512xf32>
    %79 = tpu.matmul %77, %78, %cst_36 {dimension_numbers = #tpu.dot_dimension_numbers<[1], [1], [0], [0], [0, 0, 1, 0], [], []>} : vector<8x256xbf16>, vector<512x256xbf16>, vector<8x512xf32> -> vector<8x512xf32>
    %c0_37 = arith.constant 0 : index
    %c0_38 = arith.constant 0 : index
    %80 = vector.load %arg7[%c0_37, %c0_38] : memref<1x512xf32, #tpu.memory_space<vmem>>, vector<1x512xf32>
    %81 = vector.broadcast %80 : vector<1x512xf32> to vector<8x512xf32>
    %82 = arith.addf %79, %81 : vector<8x512xf32>
    %c0_39 = arith.constant 0 : index
    %c0_40 = arith.constant 0 : index
    %83 = vector.load %arg14[%c0_39, %c0_40] : memref<8x128xf32, #tpu.memory_space<vmem>>, vector<8x128xf32>
    %84 = vector.extract_strided_slice %82 {offsets = [0, 0], sizes = [8, 128], strides = [1, 1]} : vector<8x512xf32> to vector<8x128xf32>
    %85 = arith.negf %84 : vector<8x128xf32>
    %86 = math.exp %85 : vector<8x128xf32>
    %cst_41 = arith.constant 1.000000e+00 : f32
    %87 = vector.broadcast %cst_41 : f32 to vector<8x128xf32>
    %88 = arith.addf %87, %86 : vector<8x128xf32>
    %89 = arith.divf %87, %88 : vector<8x128xf32>
    %90 = vector.extract_strided_slice %82 {offsets = [0, 128], sizes = [8, 128], strides = [1, 1]} : vector<8x512xf32> to vector<8x128xf32>
    %91 = arith.negf %90 : vector<8x128xf32>
    %92 = math.exp %91 : vector<8x128xf32>
    %cst_42 = arith.constant 1.000000e+00 : f32
    %93 = vector.broadcast %cst_42 : f32 to vector<8x128xf32>
    %94 = arith.addf %93, %92 : vector<8x128xf32>
    %95 = arith.divf %93, %94 : vector<8x128xf32>
    %96 = vector.extract_strided_slice %82 {offsets = [0, 256], sizes = [8, 128], strides = [1, 1]} : vector<8x512xf32> to vector<8x128xf32>
    %97 = math.tanh %96 : vector<8x128xf32>
    %98 = vector.extract_strided_slice %82 {offsets = [0, 384], sizes = [8, 128], strides = [1, 1]} : vector<8x512xf32> to vector<8x128xf32>
    %99 = arith.negf %98 : vector<8x128xf32>
    %100 = math.exp %99 : vector<8x128xf32>
    %cst_43 = arith.constant 1.000000e+00 : f32
    %101 = vector.broadcast %cst_43 : f32 to vector<8x128xf32>
    %102 = arith.addf %101, %100 : vector<8x128xf32>
    %103 = arith.divf %101, %102 : vector<8x128xf32>
    %104 = arith.mulf %95, %83 : vector<8x128xf32>
    %105 = arith.mulf %89, %97 : vector<8x128xf32>
    %106 = arith.addf %104, %105 : vector<8x128xf32>
    %107 = math.tanh %106 : vector<8x128xf32>
    %108 = arith.mulf %103, %107 : vector<8x128xf32>
    %c0_44 = arith.constant 0 : index
    %c0_45 = arith.constant 0 : index
    %109 = vector.load %arg13[%c0_44, %c0_45] : memref<8x128xf32, #tpu.memory_space<vmem>>, vector<8x128xf32>
    tpu.vector_store %arg13[%c0_44, %c0_45], %108 {strides = array<i32>} : memref<8x128xf32, #tpu.memory_space<vmem>>, vector<8x128xf32>,
    %c0_46 = arith.constant 0 : index
    %c0_47 = arith.constant 0 : index
    %110 = vector.load %arg14[%c0_46, %c0_47] : memref<8x128xf32, #tpu.memory_space<vmem>>, vector<8x128xf32>
    tpu.vector_store %arg14[%c0_46, %c0_47], %106 {strides = array<i32>} : memref<8x128xf32, #tpu.memory_space<vmem>>, vector<8x128xf32>,
    %111 = arith.index_cast %c0_i32_1 : i32 to index
    %c0_48 = arith.constant 0 : index
    %c0_49 = arith.constant 0 : index
    %112 = vector.load %arg8[%111, %c0_48, %c0_49] : memref<8x8x128xf32, #tpu.memory_space<vmem>>, vector<1x8x128xf32>
    %113 = vector.shape_cast %112 : vector<1x8x128xf32> to vector<8x128xf32>
    %114 = vector.shape_cast %108 : vector<8x128xf32> to vector<1x8x128xf32>
    tpu.vector_store %arg8[%111, %c0_48, %c0_49], %114 {strides = array<i32>} : memref<8x8x128xf32, #tpu.memory_space<vmem>>, vector<1x8x128xf32>,
    %c1_i32 = arith.constant 1 : i32
    %115 = arith.index_cast %c1_i32 : i32 to index
    %c0_50 = arith.constant 0 : index
    %c0_51 = arith.constant 0 : index
    %116 = vector.load %arg2[%115, %c0_50, %c0_51] : memref<8x8x512xf32, #tpu.memory_space<vmem>>, vector<1x8x512xf32>
    %117 = vector.shape_cast %116 : vector<1x8x512xf32> to vector<8x512xf32>
    %c0_52 = arith.constant 0 : index
    %c0_53 = arith.constant 0 : index
    %118 = vector.load %arg9[%c0_52, %c0_53] : memref<8x128xf32, #tpu.memory_space<vmem>>, vector<8x128xf32>
    %119 = arith.truncf %118 : vector<8x128xf32> to vector<8x128xbf16>
    %c0_54 = arith.constant 0 : index
    %c0_55 = arith.constant 0 : index
    %120 = vector.load %arg3[%c0_54, %c0_55] : memref<512x128xbf16, #tpu.memory_space<vmem>>, vector<512x128xbf16>
    %cst_56 = arith.constant dense<0.000000e+00> : vector<8x512xf32>
    %121 = tpu.matmul %119, %120, %cst_56 {dimension_numbers = #tpu.dot_dimension_numbers<[1], [1], [0], [0], [0, 0, 1, 0], [], []>} : vector<8x128xbf16>, vector<512x128xbf16>, vector<8x512xf32> -> vector<8x512xf32>
    %122 = arith.addf %117, %121 : vector<8x512xf32>
    %c0_57 = arith.constant 0 : index
    %c0_58 = arith.constant 0 : index
    %123 = vector.load %arg10[%c0_57, %c0_58] : memref<8x128xf32, #tpu.memory_space<vmem>>, vector<8x128xf32>
    %124 = vector.extract_strided_slice %122 {offsets = [0, 0], sizes = [8, 128], strides = [1, 1]} : vector<8x512xf32> to vector<8x128xf32>
    %125 = arith.negf %124 : vector<8x128xf32>
    %126 = math.exp %125 : vector<8x128xf32>
    %cst_59 = arith.constant 1.000000e+00 : f32
    %127 = vector.broadcast %cst_59 : f32 to vector<8x128xf32>
    %128 = arith.addf %127, %126 : vector<8x128xf32>
    %129 = arith.divf %127, %128 : vector<8x128xf32>
    %130 = vector.extract_strided_slice %122 {offsets = [0, 128], sizes = [8, 128], strides = [1, 1]} : vector<8x512xf32> to vector<8x128xf32>
    %131 = arith.negf %130 : vector<8x128xf32>
    %132 = math.exp %131 : vector<8x128xf32>
    %cst_60 = arith.constant 1.000000e+00 : f32
    %133 = vector.broadcast %cst_60 : f32 to vector<8x128xf32>
    %134 = arith.addf %133, %132 : vector<8x128xf32>
    %135 = arith.divf %133, %134 : vector<8x128xf32>
    %136 = vector.extract_strided_slice %122 {offsets = [0, 256], sizes = [8, 128], strides = [1, 1]} : vector<8x512xf32> to vector<8x128xf32>
    %137 = math.tanh %136 : vector<8x128xf32>
    %138 = vector.extract_strided_slice %122 {offsets = [0, 384], sizes = [8, 128], strides = [1, 1]} : vector<8x512xf32> to vector<8x128xf32>
    %139 = arith.negf %138 : vector<8x128xf32>
    %140 = math.exp %139 : vector<8x128xf32>
    %cst_61 = arith.constant 1.000000e+00 : f32
    %141 = vector.broadcast %cst_61 : f32 to vector<8x128xf32>
    %142 = arith.addf %141, %140 : vector<8x128xf32>
    %143 = arith.divf %141, %142 : vector<8x128xf32>
    %144 = arith.mulf %135, %123 : vector<8x128xf32>
    %145 = arith.mulf %129, %137 : vector<8x128xf32>
    %146 = arith.addf %144, %145 : vector<8x128xf32>
    %147 = math.tanh %146 : vector<8x128xf32>
    %148 = arith.mulf %143, %147 : vector<8x128xf32>
    %c0_62 = arith.constant 0 : index
    %c0_63 = arith.constant 0 : index
    %149 = vector.load %arg9[%c0_62, %c0_63] : memref<8x128xf32, #tpu.memory_space<vmem>>, vector<8x128xf32>
    tpu.vector_store %arg9[%c0_62, %c0_63], %148 {strides = array<i32>} : memref<8x128xf32, #tpu.memory_space<vmem>>, vector<8x128xf32>,
    %c0_64 = arith.constant 0 : index
    %c0_65 = arith.constant 0 : index
    %150 = vector.load %arg10[%c0_64, %c0_65] : memref<8x128xf32, #tpu.memory_space<vmem>>, vector<8x128xf32>
    tpu.vector_store %arg10[%c0_64, %c0_65], %146 {strides = array<i32>} : memref<8x128xf32, #tpu.memory_space<vmem>>, vector<8x128xf32>,
    %c0_66 = arith.constant 0 : index
    %c0_67 = arith.constant 0 : index
    %151 = vector.load %arg11[%c0_66, %c0_67] : memref<8x128xf32, #tpu.memory_space<vmem>>, vector<8x128xf32>
    %152 = tpu.concatenate %148, %151 in 1 : vector<8x128xf32>, vector<8x128xf32> -> vector<8x256xf32>
    %153 = arith.truncf %152 : vector<8x256xf32> to vector<8x256xbf16>
    %c0_68 = arith.constant 0 : index
    %c0_69 = arith.constant 0 : index
    %154 = vector.load %arg4[%c0_68, %c0_69] : memref<512x256xbf16, #tpu.memory_space<vmem>>, vector<512x256xbf16>
    %cst_70 = arith.constant dense<0.000000e+00> : vector<8x512xf32>
    %155 = tpu.matmul %153, %154, %cst_70 {dimension_numbers = #tpu.dot_dimension_numbers<[1], [1], [0], [0], [0, 0, 1, 0], [], []>} : vector<8x256xbf16>, vector<512x256xbf16>, vector<8x512xf32> -> vector<8x512xf32>
    %c0_71 = arith.constant 0 : index
    %c0_72 = arith.constant 0 : index
    %156 = vector.load %arg5[%c0_71, %c0_72] : memref<1x512xf32, #tpu.memory_space<vmem>>, vector<1x512xf32>
    %157 = vector.broadcast %156 : vector<1x512xf32> to vector<8x512xf32>
    %158 = arith.addf %155, %157 : vector<8x512xf32>
    %c0_73 = arith.constant 0 : index
    %c0_74 = arith.constant 0 : index
    %159 = vector.load %arg12[%c0_73, %c0_74] : memref<8x128xf32, #tpu.memory_space<vmem>>, vector<8x128xf32>
    %160 = vector.extract_strided_slice %158 {offsets = [0, 0], sizes = [8, 128], strides = [1, 1]} : vector<8x512xf32> to vector<8x128xf32>
    %161 = arith.negf %160 : vector<8x128xf32>
    %162 = math.exp %161 : vector<8x128xf32>
    %cst_75 = arith.constant 1.000000e+00 : f32
    %163 = vector.broadcast %cst_75 : f32 to vector<8x128xf32>
    %164 = arith.addf %163, %162 : vector<8x128xf32>
    %165 = arith.divf %163, %164 : vector<8x128xf32>
    %166 = vector.extract_strided_slice %158 {offsets = [0, 128], sizes = [8, 128], strides = [1, 1]} : vector<8x512xf32> to vector<8x128xf32>
    %167 = arith.negf %166 : vector<8x128xf32>
    %168 = math.exp %167 : vector<8x128xf32>
    %cst_76 = arith.constant 1.000000e+00 : f32
    %169 = vector.broadcast %cst_76 : f32 to vector<8x128xf32>
    %170 = arith.addf %169, %168 : vector<8x128xf32>
    %171 = arith.divf %169, %170 : vector<8x128xf32>
    %172 = vector.extract_strided_slice %158 {offsets = [0, 256], sizes = [8, 128], strides = [1, 1]} : vector<8x512xf32> to vector<8x128xf32>
    %173 = math.tanh %172 : vector<8x128xf32>
    %174 = vector.extract_strided_slice %158 {offsets = [0, 384], sizes = [8, 128], strides = [1, 1]} : vector<8x512xf32> to vector<8x128xf32>
    %175 = arith.negf %174 : vector<8x128xf32>
    %176 = math.exp %175 : vector<8x128xf32>
    %cst_77 = arith.constant 1.000000e+00 : f32
    %177 = vector.broadcast %cst_77 : f32 to vector<8x128xf32>
    %178 = arith.addf %177, %176 : vector<8x128xf32>
    %179 = arith.divf %177, %178 : vector<8x128xf32>
    %180 = arith.mulf %171, %159 : vector<8x128xf32>
    %181 = arith.mulf %165, %173 : vector<8x128xf32>
    %182 = arith.addf %180, %181 : vector<8x128xf32>
    %183 = math.tanh %182 : vector<8x128xf32>
    %184 = arith.mulf %179, %183 : vector<8x128xf32>
    %c0_78 = arith.constant 0 : index
    %c0_79 = arith.constant 0 : index
    %185 = vector.load %arg11[%c0_78, %c0_79] : memref<8x128xf32, #tpu.memory_space<vmem>>, vector<8x128xf32>
    tpu.vector_store %arg11[%c0_78, %c0_79], %184 {strides = array<i32>} : memref<8x128xf32, #tpu.memory_space<vmem>>, vector<8x128xf32>,
    %c0_80 = arith.constant 0 : index
    %c0_81 = arith.constant 0 : index
    %186 = vector.load %arg12[%c0_80, %c0_81] : memref<8x128xf32, #tpu.memory_space<vmem>>, vector<8x128xf32>
    tpu.vector_store %arg12[%c0_80, %c0_81], %182 {strides = array<i32>} : memref<8x128xf32, #tpu.memory_space<vmem>>, vector<8x128xf32>,
    %c0_82 = arith.constant 0 : index
    %c0_83 = arith.constant 0 : index
    %187 = vector.load %arg13[%c0_82, %c0_83] : memref<8x128xf32, #tpu.memory_space<vmem>>, vector<8x128xf32>
    %188 = tpu.concatenate %184, %187 in 1 : vector<8x128xf32>, vector<8x128xf32> -> vector<8x256xf32>
    %189 = arith.truncf %188 : vector<8x256xf32> to vector<8x256xbf16>
    %c0_84 = arith.constant 0 : index
    %c0_85 = arith.constant 0 : index
    %190 = vector.load %arg6[%c0_84, %c0_85] : memref<512x256xbf16, #tpu.memory_space<vmem>>, vector<512x256xbf16>
    %cst_86 = arith.constant dense<0.000000e+00> : vector<8x512xf32>
    %191 = tpu.matmul %189, %190, %cst_86 {dimension_numbers = #tpu.dot_dimension_numbers<[1], [1], [0], [0], [0, 0, 1, 0], [], []>} : vector<8x256xbf16>, vector<512x256xbf16>, vector<8x512xf32> -> vector<8x512xf32>
    %c0_87 = arith.constant 0 : index
    %c0_88 = arith.constant 0 : index
    %192 = vector.load %arg7[%c0_87, %c0_88] : memref<1x512xf32, #tpu.memory_space<vmem>>, vector<1x512xf32>
    %193 = vector.broadcast %192 : vector<1x512xf32> to vector<8x512xf32>
    %194 = arith.addf %191, %193 : vector<8x512xf32>
    %c0_89 = arith.constant 0 : index
    %c0_90 = arith.constant 0 : index
    %195 = vector.load %arg14[%c0_89, %c0_90] : memref<8x128xf32, #tpu.memory_space<vmem>>, vector<8x128xf32>
    %196 = vector.extract_strided_slice %194 {offsets = [0, 0], sizes = [8, 128], strides = [1, 1]} : vector<8x512xf32> to vector<8x128xf32>
    %197 = arith.negf %196 : vector<8x128xf32>
    %198 = math.exp %197 : vector<8x128xf32>
    %cst_91 = arith.constant 1.000000e+00 : f32
    %199 = vector.broadcast %cst_91 : f32 to vector<8x128xf32>
    %200 = arith.addf %199, %198 : vector<8x128xf32>
    %201 = arith.divf %199, %200 : vector<8x128xf32>
    %202 = vector.extract_strided_slice %194 {offsets = [0, 128], sizes = [8, 128], strides = [1, 1]} : vector<8x512xf32> to vector<8x128xf32>
    %203 = arith.negf %202 : vector<8x128xf32>
    %204 = math.exp %203 : vector<8x128xf32>
    %cst_92 = arith.constant 1.000000e+00 : f32
    %205 = vector.broadcast %cst_92 : f32 to vector<8x128xf32>
    %206 = arith.addf %205, %204 : vector<8x128xf32>
    %207 = arith.divf %205, %206 : vector<8x128xf32>
    %208 = vector.extract_strided_slice %194 {offsets = [0, 256], sizes = [8, 128], strides = [1, 1]} : vector<8x512xf32> to vector<8x128xf32>
    %209 = math.tanh %208 : vector<8x128xf32>
    %210 = vector.extract_strided_slice %194 {offsets = [0, 384], sizes = [8, 128], strides = [1, 1]} : vector<8x512xf32> to vector<8x128xf32>
    %211 = arith.negf %210 : vector<8x128xf32>
    %212 = math.exp %211 : vector<8x128xf32>
    %cst_93 = arith.constant 1.000000e+00 : f32
    %213 = vector.broadcast %cst_93 : f32 to vector<8x128xf32>
    %214 = arith.addf %213, %212 : vector<8x128xf32>
    %215 = arith.divf %213, %214 : vector<8x128xf32>
    %216 = arith.mulf %207, %195 : vector<8x128xf32>
    %217 = arith.mulf %201, %209 : vector<8x128xf32>
    %218 = arith.addf %216, %217 : vector<8x128xf32>
    %219 = math.tanh %218 : vector<8x128xf32>
    %220 = arith.mulf %215, %219 : vector<8x128xf32>
    %c0_94 = arith.constant 0 : index
    %c0_95 = arith.constant 0 : index
    %221 = vector.load %arg13[%c0_94, %c0_95] : memref<8x128xf32, #tpu.memory_space<vmem>>, vector<8x128xf32>
    tpu.vector_store %arg13[%c0_94, %c0_95], %220 {strides = array<i32>} : memref<8x128xf32, #tpu.memory_space<vmem>>, vector<8x128xf32>,
    %c0_96 = arith.constant 0 : index
    %c0_97 = arith.constant 0 : index
    %222 = vector.load %arg14[%c0_96, %c0_97] : memref<8x128xf32, #tpu.memory_space<vmem>>, vector<8x128xf32>
    tpu.vector_store %arg14[%c0_96, %c0_97], %218 {strides = array<i32>} : memref<8x128xf32, #tpu.memory_space<vmem>>, vector<8x128xf32>,
    %223 = arith.index_cast %c1_i32 : i32 to index
    %c0_98 = arith.constant 0 : index
    %c0_99 = arith.constant 0 : index
    %224 = vector.load %arg8[%223, %c0_98, %c0_99] : memref<8x8x128xf32, #tpu.memory_space<vmem>>, vector<1x8x128xf32>
    %225 = vector.shape_cast %224 : vector<1x8x128xf32> to vector<8x128xf32>
    %226 = vector.shape_cast %220 : vector<8x128xf32> to vector<1x8x128xf32>
    tpu.vector_store %arg8[%223, %c0_98, %c0_99], %226 {strides = array<i32>} : memref<8x8x128xf32, #tpu.memory_space<vmem>>, vector<1x8x128xf32>,
    %c2_i32 = arith.constant 2 : i32
    %227 = arith.index_cast %c2_i32 : i32 to index
    %c0_100 = arith.constant 0 : index
    %c0_101 = arith.constant 0 : index
    %228 = vector.load %arg2[%227, %c0_100, %c0_101] : memref<8x8x512xf32, #tpu.memory_space<vmem>>, vector<1x8x512xf32>
    %229 = vector.shape_cast %228 : vector<1x8x512xf32> to vector<8x512xf32>
    %c0_102 = arith.constant 0 : index
    %c0_103 = arith.constant 0 : index
    %230 = vector.load %arg9[%c0_102, %c0_103] : memref<8x128xf32, #tpu.memory_space<vmem>>, vector<8x128xf32>
    %231 = arith.truncf %230 : vector<8x128xf32> to vector<8x128xbf16>
    %c0_104 = arith.constant 0 : index
    %c0_105 = arith.constant 0 : index
    %232 = vector.load %arg3[%c0_104, %c0_105] : memref<512x128xbf16, #tpu.memory_space<vmem>>, vector<512x128xbf16>
    %cst_106 = arith.constant dense<0.000000e+00> : vector<8x512xf32>
    %233 = tpu.matmul %231, %232, %cst_106 {dimension_numbers = #tpu.dot_dimension_numbers<[1], [1], [0], [0], [0, 0, 1, 0], [], []>} : vector<8x128xbf16>, vector<512x128xbf16>, vector<8x512xf32> -> vector<8x512xf32>
    %234 = arith.addf %229, %233 : vector<8x512xf32>
    %c0_107 = arith.constant 0 : index
    %c0_108 = arith.constant 0 : index
    %235 = vector.load %arg10[%c0_107, %c0_108] : memref<8x128xf32, #tpu.memory_space<vmem>>, vector<8x128xf32>
    %236 = vector.extract_strided_slice %234 {offsets = [0, 0], sizes = [8, 128], strides = [1, 1]} : vector<8x512xf32> to vector<8x128xf32>
    %237 = arith.negf %236 : vector<8x128xf32>
    %238 = math.exp %237 : vector<8x128xf32>
    %cst_109 = arith.constant 1.000000e+00 : f32
    %239 = vector.broadcast %cst_109 : f32 to vector<8x128xf32>
    %240 = arith.addf %239, %238 : vector<8x128xf32>
    %241 = arith.divf %239, %240 : vector<8x128xf32>
    %242 = vector.extract_strided_slice %234 {offsets = [0, 128], sizes = [8, 128], strides = [1, 1]} : vector<8x512xf32> to vector<8x128xf32>
    %243 = arith.negf %242 : vector<8x128xf32>
    %244 = math.exp %243 : vector<8x128xf32>
    %cst_110 = arith.constant 1.000000e+00 : f32
    %245 = vector.broadcast %cst_110 : f32 to vector<8x128xf32>
    %246 = arith.addf %245, %244 : vector<8x128xf32>
    %247 = arith.divf %245, %246 : vector<8x128xf32>
    %248 = vector.extract_strided_slice %234 {offsets = [0, 256], sizes = [8, 128], strides = [1, 1]} : vector<8x512xf32> to vector<8x128xf32>
    %249 = math.tanh %248 : vector<8x128xf32>
    %250 = vector.extract_strided_slice %234 {offsets = [0, 384], sizes = [8, 128], strides = [1, 1]} : vector<8x512xf32> to vector<8x128xf32>
    %251 = arith.negf %250 : vector<8x128xf32>
    %252 = math.exp %251 : vector<8x128xf32>
    %cst_111 = arith.constant 1.000000e+00 : f32
    %253 = vector.broadcast %cst_111 : f32 to vector<8x128xf32>
    %254 = arith.addf %253, %252 : vector<8x128xf32>
    %255 = arith.divf %253, %254 : vector<8x128xf32>
    %256 = arith.mulf %247, %235 : vector<8x128xf32>
    %257 = arith.mulf %241, %249 : vector<8x128xf32>
    %258 = arith.addf %256, %257 : vector<8x128xf32>
    %259 = math.tanh %258 : vector<8x128xf32>
    %260 = arith.mulf %255, %259 : vector<8x128xf32>
    %c0_112 = arith.constant 0 : index
    %c0_113 = arith.constant 0 : index
    %261 = vector.load %arg9[%c0_112, %c0_113] : memref<8x128xf32, #tpu.memory_space<vmem>>, vector<8x128xf32>
    tpu.vector_store %arg9[%c0_112, %c0_113], %260 {strides = array<i32>} : memref<8x128xf32, #tpu.memory_space<vmem>>, vector<8x128xf32>,
    %c0_114 = arith.constant 0 : index
    %c0_115 = arith.constant 0 : index
    %262 = vector.load %arg10[%c0_114, %c0_115] : memref<8x128xf32, #tpu.memory_space<vmem>>, vector<8x128xf32>
    tpu.vector_store %arg10[%c0_114, %c0_115], %258 {strides = array<i32>} : memref<8x128xf32, #tpu.memory_space<vmem>>, vector<8x128xf32>,
    %c0_116 = arith.constant 0 : index
    %c0_117 = arith.constant 0 : index
    %263 = vector.load %arg11[%c0_116, %c0_117] : memref<8x128xf32, #tpu.memory_space<vmem>>, vector<8x128xf32>
    %264 = tpu.concatenate %260, %263 in 1 : vector<8x128xf32>, vector<8x128xf32> -> vector<8x256xf32>
    %265 = arith.truncf %264 : vector<8x256xf32> to vector<8x256xbf16>
    %c0_118 = arith.constant 0 : index
    %c0_119 = arith.constant 0 : index
    %266 = vector.load %arg4[%c0_118, %c0_119] : memref<512x256xbf16, #tpu.memory_space<vmem>>, vector<512x256xbf16>
    %cst_120 = arith.constant dense<0.000000e+00> : vector<8x512xf32>
    %267 = tpu.matmul %265, %266, %cst_120 {dimension_numbers = #tpu.dot_dimension_numbers<[1], [1], [0], [0], [0, 0, 1, 0], [], []>} : vector<8x256xbf16>, vector<512x256xbf16>, vector<8x512xf32> -> vector<8x512xf32>
    %c0_121 = arith.constant 0 : index
    %c0_122 = arith.constant 0 : index
    %268 = vector.load %arg5[%c0_121, %c0_122] : memref<1x512xf32, #tpu.memory_space<vmem>>, vector<1x512xf32>
    %269 = vector.broadcast %268 : vector<1x512xf32> to vector<8x512xf32>
    %270 = arith.addf %267, %269 : vector<8x512xf32>
    %c0_123 = arith.constant 0 : index
    %c0_124 = arith.constant 0 : index
    %271 = vector.load %arg12[%c0_123, %c0_124] : memref<8x128xf32, #tpu.memory_space<vmem>>, vector<8x128xf32>
    %272 = vector.extract_strided_slice %270 {offsets = [0, 0], sizes = [8, 128], strides = [1, 1]} : vector<8x512xf32> to vector<8x128xf32>
    %273 = arith.negf %272 : vector<8x128xf32>
    %274 = math.exp %273 : vector<8x128xf32>
    %cst_125 = arith.constant 1.000000e+00 : f32
    %275 = vector.broadcast %cst_125 : f32 to vector<8x128xf32>
    %276 = arith.addf %275, %274 : vector<8x128xf32>
    %277 = arith.divf %275, %276 : vector<8x128xf32>
    %278 = vector.extract_strided_slice %270 {offsets = [0, 128], sizes = [8, 128], strides = [1, 1]} : vector<8x512xf32> to vector<8x128xf32>
    %279 = arith.negf %278 : vector<8x128xf32>
    %280 = math.exp %279 : vector<8x128xf32>
    %cst_126 = arith.constant 1.000000e+00 : f32
    %281 = vector.broadcast %cst_126 : f32 to vector<8x128xf32>
    %282 = arith.addf %281, %280 : vector<8x128xf32>
    %283 = arith.divf %281, %282 : vector<8x128xf32>
    %284 = vector.extract_strided_slice %270 {offsets = [0, 256], sizes = [8, 128], strides = [1, 1]} : vector<8x512xf32> to vector<8x128xf32>
    %285 = math.tanh %284 : vector<8x128xf32>
    %286 = vector.extract_strided_slice %270 {offsets = [0, 384], sizes = [8, 128], strides = [1, 1]} : vector<8x512xf32> to vector<8x128xf32>
    %287 = arith.negf %286 : vector<8x128xf32>
    %288 = math.exp %287 : vector<8x128xf32>
    %cst_127 = arith.constant 1.000000e+00 : f32
    %289 = vector.broadcast %cst_127 : f32 to vector<8x128xf32>
    %290 = arith.addf %289, %288 : vector<8x128xf32>
    %291 = arith.divf %289, %290 : vector<8x128xf32>
    %292 = arith.mulf %283, %271 : vector<8x128xf32>
    %293 = arith.mulf %277, %285 : vector<8x128xf32>
    %294 = arith.addf %292, %293 : vector<8x128xf32>
    %295 = math.tanh %294 : vector<8x128xf32>
    %296 = arith.mulf %291, %295 : vector<8x128xf32>
    %c0_128 = arith.constant 0 : index
    %c0_129 = arith.constant 0 : index
    %297 = vector.load %arg11[%c0_128, %c0_129] : memref<8x128xf32, #tpu.memory_space<vmem>>, vector<8x128xf32>
    tpu.vector_store %arg11[%c0_128, %c0_129], %296 {strides = array<i32>} : memref<8x128xf32, #tpu.memory_space<vmem>>, vector<8x128xf32>,
    %c0_130 = arith.constant 0 : index
    %c0_131 = arith.constant 0 : index
    %298 = vector.load %arg12[%c0_130, %c0_131] : memref<8x128xf32, #tpu.memory_space<vmem>>, vector<8x128xf32>
    tpu.vector_store %arg12[%c0_130, %c0_131], %294 {strides = array<i32>} : memref<8x128xf32, #tpu.memory_space<vmem>>, vector<8x128xf32>,
    %c0_132 = arith.constant 0 : index
    %c0_133 = arith.constant 0 : index
    %299 = vector.load %arg13[%c0_132, %c0_133] : memref<8x128xf32, #tpu.memory_space<vmem>>, vector<8x128xf32>
    %300 = tpu.concatenate %296, %299 in 1 : vector<8x128xf32>, vector<8x128xf32> -> vector<8x256xf32>
    %301 = arith.truncf %300 : vector<8x256xf32> to vector<8x256xbf16>
    %c0_134 = arith.constant 0 : index
    %c0_135 = arith.constant 0 : index
    %302 = vector.load %arg6[%c0_134, %c0_135] : memref<512x256xbf16, #tpu.memory_space<vmem>>, vector<512x256xbf16>
    %cst_136 = arith.constant dense<0.000000e+00> : vector<8x512xf32>
    %303 = tpu.matmul %301, %302, %cst_136 {dimension_numbers = #tpu.dot_dimension_numbers<[1], [1], [0], [0], [0, 0, 1, 0], [], []>} : vector<8x256xbf16>, vector<512x256xbf16>, vector<8x512xf32> -> vector<8x512xf32>
    %c0_137 = arith.constant 0 : index
    %c0_138 = arith.constant 0 : index
    %304 = vector.load %arg7[%c0_137, %c0_138] : memref<1x512xf32, #tpu.memory_space<vmem>>, vector<1x512xf32>
    %305 = vector.broadcast %304 : vector<1x512xf32> to vector<8x512xf32>
    %306 = arith.addf %303, %305 : vector<8x512xf32>
    %c0_139 = arith.constant 0 : index
    %c0_140 = arith.constant 0 : index
    %307 = vector.load %arg14[%c0_139, %c0_140] : memref<8x128xf32, #tpu.memory_space<vmem>>, vector<8x128xf32>
    %308 = vector.extract_strided_slice %306 {offsets = [0, 0], sizes = [8, 128], strides = [1, 1]} : vector<8x512xf32> to vector<8x128xf32>
    %309 = arith.negf %308 : vector<8x128xf32>
    %310 = math.exp %309 : vector<8x128xf32>
    %cst_141 = arith.constant 1.000000e+00 : f32
    %311 = vector.broadcast %cst_141 : f32 to vector<8x128xf32>
    %312 = arith.addf %311, %310 : vector<8x128xf32>
    %313 = arith.divf %311, %312 : vector<8x128xf32>
    %314 = vector.extract_strided_slice %306 {offsets = [0, 128], sizes = [8, 128], strides = [1, 1]} : vector<8x512xf32> to vector<8x128xf32>
    %315 = arith.negf %314 : vector<8x128xf32>
    %316 = math.exp %315 : vector<8x128xf32>
    %cst_142 = arith.constant 1.000000e+00 : f32
    %317 = vector.broadcast %cst_142 : f32 to vector<8x128xf32>
    %318 = arith.addf %317, %316 : vector<8x128xf32>
    %319 = arith.divf %317, %318 : vector<8x128xf32>
    %320 = vector.extract_strided_slice %306 {offsets = [0, 256], sizes = [8, 128], strides = [1, 1]} : vector<8x512xf32> to vector<8x128xf32>
    %321 = math.tanh %320 : vector<8x128xf32>
    %322 = vector.extract_strided_slice %306 {offsets = [0, 384], sizes = [8, 128], strides = [1, 1]} : vector<8x512xf32> to vector<8x128xf32>
    %323 = arith.negf %322 : vector<8x128xf32>
    %324 = math.exp %323 : vector<8x128xf32>
    %cst_143 = arith.constant 1.000000e+00 : f32
    %325 = vector.broadcast %cst_143 : f32 to vector<8x128xf32>
    %326 = arith.addf %325, %324 : vector<8x128xf32>
    %327 = arith.divf %325, %326 : vector<8x128xf32>
    %328 = arith.mulf %319, %307 : vector<8x128xf32>
    %329 = arith.mulf %313, %321 : vector<8x128xf32>
    %330 = arith.addf %328, %329 : vector<8x128xf32>
    %331 = math.tanh %330 : vector<8x128xf32>
    %332 = arith.mulf %327, %331 : vector<8x128xf32>
    %c0_144 = arith.constant 0 : index
    %c0_145 = arith.constant 0 : index
    %333 = vector.load %arg13[%c0_144, %c0_145] : memref<8x128xf32, #tpu.memory_space<vmem>>, vector<8x128xf32>
    tpu.vector_store %arg13[%c0_144, %c0_145], %332 {strides = array<i32>} : memref<8x128xf32, #tpu.memory_space<vmem>>, vector<8x128xf32>,
    %c0_146 = arith.constant 0 : index
    %c0_147 = arith.constant 0 : index
    %334 = vector.load %arg14[%c0_146, %c0_147] : memref<8x128xf32, #tpu.memory_space<vmem>>, vector<8x128xf32>
    tpu.vector_store %arg14[%c0_146, %c0_147], %330 {strides = array<i32>} : memref<8x128xf32, #tpu.memory_space<vmem>>, vector<8x128xf32>,
    %335 = arith.index_cast %c2_i32 : i32 to index
    %c0_148 = arith.constant 0 : index
    %c0_149 = arith.constant 0 : index
    %336 = vector.load %arg8[%335, %c0_148, %c0_149] : memref<8x8x128xf32, #tpu.memory_space<vmem>>, vector<1x8x128xf32>
    %337 = vector.shape_cast %336 : vector<1x8x128xf32> to vector<8x128xf32>
    %338 = vector.shape_cast %332 : vector<8x128xf32> to vector<1x8x128xf32>
    tpu.vector_store %arg8[%335, %c0_148, %c0_149], %338 {strides = array<i32>} : memref<8x8x128xf32, #tpu.memory_space<vmem>>, vector<1x8x128xf32>,
    %c3_i32 = arith.constant 3 : i32
    %339 = arith.index_cast %c3_i32 : i32 to index
    %c0_150 = arith.constant 0 : index
    %c0_151 = arith.constant 0 : index
    %340 = vector.load %arg2[%339, %c0_150, %c0_151] : memref<8x8x512xf32, #tpu.memory_space<vmem>>, vector<1x8x512xf32>
    %341 = vector.shape_cast %340 : vector<1x8x512xf32> to vector<8x512xf32>
    %c0_152 = arith.constant 0 : index
    %c0_153 = arith.constant 0 : index
    %342 = vector.load %arg9[%c0_152, %c0_153] : memref<8x128xf32, #tpu.memory_space<vmem>>, vector<8x128xf32>
    %343 = arith.truncf %342 : vector<8x128xf32> to vector<8x128xbf16>
    %c0_154 = arith.constant 0 : index
    %c0_155 = arith.constant 0 : index
    %344 = vector.load %arg3[%c0_154, %c0_155] : memref<512x128xbf16, #tpu.memory_space<vmem>>, vector<512x128xbf16>
    %cst_156 = arith.constant dense<0.000000e+00> : vector<8x512xf32>
    %345 = tpu.matmul %343, %344, %cst_156 {dimension_numbers = #tpu.dot_dimension_numbers<[1], [1], [0], [0], [0, 0, 1, 0], [], []>} : vector<8x128xbf16>, vector<512x128xbf16>, vector<8x512xf32> -> vector<8x512xf32>
    %346 = arith.addf %341, %345 : vector<8x512xf32>
    %c0_157 = arith.constant 0 : index
    %c0_158 = arith.constant 0 : index
    %347 = vector.load %arg10[%c0_157, %c0_158] : memref<8x128xf32, #tpu.memory_space<vmem>>, vector<8x128xf32>
    %348 = vector.extract_strided_slice %346 {offsets = [0, 0], sizes = [8, 128], strides = [1, 1]} : vector<8x512xf32> to vector<8x128xf32>
    %349 = arith.negf %348 : vector<8x128xf32>
    %350 = math.exp %349 : vector<8x128xf32>
    %cst_159 = arith.constant 1.000000e+00 : f32
    %351 = vector.broadcast %cst_159 : f32 to vector<8x128xf32>
    %352 = arith.addf %351, %350 : vector<8x128xf32>
    %353 = arith.divf %351, %352 : vector<8x128xf32>
    %354 = vector.extract_strided_slice %346 {offsets = [0, 128], sizes = [8, 128], strides = [1, 1]} : vector<8x512xf32> to vector<8x128xf32>
    %355 = arith.negf %354 : vector<8x128xf32>
    %356 = math.exp %355 : vector<8x128xf32>
    %cst_160 = arith.constant 1.000000e+00 : f32
    %357 = vector.broadcast %cst_160 : f32 to vector<8x128xf32>
    %358 = arith.addf %357, %356 : vector<8x128xf32>
    %359 = arith.divf %357, %358 : vector<8x128xf32>
    %360 = vector.extract_strided_slice %346 {offsets = [0, 256], sizes = [8, 128], strides = [1, 1]} : vector<8x512xf32> to vector<8x128xf32>
    %361 = math.tanh %360 : vector<8x128xf32>
    %362 = vector.extract_strided_slice %346 {offsets = [0, 384], sizes = [8, 128], strides = [1, 1]} : vector<8x512xf32> to vector<8x128xf32>
    %363 = arith.negf %362 : vector<8x128xf32>
    %364 = math.exp %363 : vector<8x128xf32>
    %cst_161 = arith.constant 1.000000e+00 : f32
    %365 = vector.broadcast %cst_161 : f32 to vector<8x128xf32>
    %366 = arith.addf %365, %364 : vector<8x128xf32>
    %367 = arith.divf %365, %366 : vector<8x128xf32>
    %368 = arith.mulf %359, %347 : vector<8x128xf32>
    %369 = arith.mulf %353, %361 : vector<8x128xf32>
    %370 = arith.addf %368, %369 : vector<8x128xf32>
    %371 = math.tanh %370 : vector<8x128xf32>
    %372 = arith.mulf %367, %371 : vector<8x128xf32>
    %c0_162 = arith.constant 0 : index
    %c0_163 = arith.constant 0 : index
    %373 = vector.load %arg9[%c0_162, %c0_163] : memref<8x128xf32, #tpu.memory_space<vmem>>, vector<8x128xf32>
    tpu.vector_store %arg9[%c0_162, %c0_163], %372 {strides = array<i32>} : memref<8x128xf32, #tpu.memory_space<vmem>>, vector<8x128xf32>,
    %c0_164 = arith.constant 0 : index
    %c0_165 = arith.constant 0 : index
    %374 = vector.load %arg10[%c0_164, %c0_165] : memref<8x128xf32, #tpu.memory_space<vmem>>, vector<8x128xf32>
    tpu.vector_store %arg10[%c0_164, %c0_165], %370 {strides = array<i32>} : memref<8x128xf32, #tpu.memory_space<vmem>>, vector<8x128xf32>,
    %c0_166 = arith.constant 0 : index
    %c0_167 = arith.constant 0 : index
    %375 = vector.load %arg11[%c0_166, %c0_167] : memref<8x128xf32, #tpu.memory_space<vmem>>, vector<8x128xf32>
    %376 = tpu.concatenate %372, %375 in 1 : vector<8x128xf32>, vector<8x128xf32> -> vector<8x256xf32>
    %377 = arith.truncf %376 : vector<8x256xf32> to vector<8x256xbf16>
    %c0_168 = arith.constant 0 : index
    %c0_169 = arith.constant 0 : index
    %378 = vector.load %arg4[%c0_168, %c0_169] : memref<512x256xbf16, #tpu.memory_space<vmem>>, vector<512x256xbf16>
    %cst_170 = arith.constant dense<0.000000e+00> : vector<8x512xf32>
    %379 = tpu.matmul %377, %378, %cst_170 {dimension_numbers = #tpu.dot_dimension_numbers<[1], [1], [0], [0], [0, 0, 1, 0], [], []>} : vector<8x256xbf16>, vector<512x256xbf16>, vector<8x512xf32> -> vector<8x512xf32>
    %c0_171 = arith.constant 0 : index
    %c0_172 = arith.constant 0 : index
    %380 = vector.load %arg5[%c0_171, %c0_172] : memref<1x512xf32, #tpu.memory_space<vmem>>, vector<1x512xf32>
    %381 = vector.broadcast %380 : vector<1x512xf32> to vector<8x512xf32>
    %382 = arith.addf %379, %381 : vector<8x512xf32>
    %c0_173 = arith.constant 0 : index
    %c0_174 = arith.constant 0 : index
    %383 = vector.load %arg12[%c0_173, %c0_174] : memref<8x128xf32, #tpu.memory_space<vmem>>, vector<8x128xf32>
    %384 = vector.extract_strided_slice %382 {offsets = [0, 0], sizes = [8, 128], strides = [1, 1]} : vector<8x512xf32> to vector<8x128xf32>
    %385 = arith.negf %384 : vector<8x128xf32>
    %386 = math.exp %385 : vector<8x128xf32>
    %cst_175 = arith.constant 1.000000e+00 : f32
    %387 = vector.broadcast %cst_175 : f32 to vector<8x128xf32>
    %388 = arith.addf %387, %386 : vector<8x128xf32>
    %389 = arith.divf %387, %388 : vector<8x128xf32>
    %390 = vector.extract_strided_slice %382 {offsets = [0, 128], sizes = [8, 128], strides = [1, 1]} : vector<8x512xf32> to vector<8x128xf32>
    %391 = arith.negf %390 : vector<8x128xf32>
    %392 = math.exp %391 : vector<8x128xf32>
    %cst_176 = arith.constant 1.000000e+00 : f32
    %393 = vector.broadcast %cst_176 : f32 to vector<8x128xf32>
    %394 = arith.addf %393, %392 : vector<8x128xf32>
    %395 = arith.divf %393, %394 : vector<8x128xf32>
    %396 = vector.extract_strided_slice %382 {offsets = [0, 256], sizes = [8, 128], strides = [1, 1]} : vector<8x512xf32> to vector<8x128xf32>
    %397 = math.tanh %396 : vector<8x128xf32>
    %398 = vector.extract_strided_slice %382 {offsets = [0, 384], sizes = [8, 128], strides = [1, 1]} : vector<8x512xf32> to vector<8x128xf32>
    %399 = arith.negf %398 : vector<8x128xf32>
    %400 = math.exp %399 : vector<8x128xf32>
    %cst_177 = arith.constant 1.000000e+00 : f32
    %401 = vector.broadcast %cst_177 : f32 to vector<8x128xf32>
    %402 = arith.addf %401, %400 : vector<8x128xf32>
    %403 = arith.divf %401, %402 : vector<8x128xf32>
    %404 = arith.mulf %395, %383 : vector<8x128xf32>
    %405 = arith.mulf %389, %397 : vector<8x128xf32>
    %406 = arith.addf %404, %405 : vector<8x128xf32>
    %407 = math.tanh %406 : vector<8x128xf32>
    %408 = arith.mulf %403, %407 : vector<8x128xf32>
    %c0_178 = arith.constant 0 : index
    %c0_179 = arith.constant 0 : index
    %409 = vector.load %arg11[%c0_178, %c0_179] : memref<8x128xf32, #tpu.memory_space<vmem>>, vector<8x128xf32>
    tpu.vector_store %arg11[%c0_178, %c0_179], %408 {strides = array<i32>} : memref<8x128xf32, #tpu.memory_space<vmem>>, vector<8x128xf32>,
    %c0_180 = arith.constant 0 : index
    %c0_181 = arith.constant 0 : index
    %410 = vector.load %arg12[%c0_180, %c0_181] : memref<8x128xf32, #tpu.memory_space<vmem>>, vector<8x128xf32>
    tpu.vector_store %arg12[%c0_180, %c0_181], %406 {strides = array<i32>} : memref<8x128xf32, #tpu.memory_space<vmem>>, vector<8x128xf32>,
    %c0_182 = arith.constant 0 : index
    %c0_183 = arith.constant 0 : index
    %411 = vector.load %arg13[%c0_182, %c0_183] : memref<8x128xf32, #tpu.memory_space<vmem>>, vector<8x128xf32>
    %412 = tpu.concatenate %408, %411 in 1 : vector<8x128xf32>, vector<8x128xf32> -> vector<8x256xf32>
    %413 = arith.truncf %412 : vector<8x256xf32> to vector<8x256xbf16>
    %c0_184 = arith.constant 0 : index
    %c0_185 = arith.constant 0 : index
    %414 = vector.load %arg6[%c0_184, %c0_185] : memref<512x256xbf16, #tpu.memory_space<vmem>>, vector<512x256xbf16>
    %cst_186 = arith.constant dense<0.000000e+00> : vector<8x512xf32>
    %415 = tpu.matmul %413, %414, %cst_186 {dimension_numbers = #tpu.dot_dimension_numbers<[1], [1], [0], [0], [0, 0, 1, 0], [], []>} : vector<8x256xbf16>, vector<512x256xbf16>, vector<8x512xf32> -> vector<8x512xf32>
    %c0_187 = arith.constant 0 : index
    %c0_188 = arith.constant 0 : index
    %416 = vector.load %arg7[%c0_187, %c0_188] : memref<1x512xf32, #tpu.memory_space<vmem>>, vector<1x512xf32>
    %417 = vector.broadcast %416 : vector<1x512xf32> to vector<8x512xf32>
    %418 = arith.addf %415, %417 : vector<8x512xf32>
    %c0_189 = arith.constant 0 : index
    %c0_190 = arith.constant 0 : index
    %419 = vector.load %arg14[%c0_189, %c0_190] : memref<8x128xf32, #tpu.memory_space<vmem>>, vector<8x128xf32>
    %420 = vector.extract_strided_slice %418 {offsets = [0, 0], sizes = [8, 128], strides = [1, 1]} : vector<8x512xf32> to vector<8x128xf32>
    %421 = arith.negf %420 : vector<8x128xf32>
    %422 = math.exp %421 : vector<8x128xf32>
    %cst_191 = arith.constant 1.000000e+00 : f32
    %423 = vector.broadcast %cst_191 : f32 to vector<8x128xf32>
    %424 = arith.addf %423, %422 : vector<8x128xf32>
    %425 = arith.divf %423, %424 : vector<8x128xf32>
    %426 = vector.extract_strided_slice %418 {offsets = [0, 128], sizes = [8, 128], strides = [1, 1]} : vector<8x512xf32> to vector<8x128xf32>
    %427 = arith.negf %426 : vector<8x128xf32>
    %428 = math.exp %427 : vector<8x128xf32>
    %cst_192 = arith.constant 1.000000e+00 : f32
    %429 = vector.broadcast %cst_192 : f32 to vector<8x128xf32>
    %430 = arith.addf %429, %428 : vector<8x128xf32>
    %431 = arith.divf %429, %430 : vector<8x128xf32>
    %432 = vector.extract_strided_slice %418 {offsets = [0, 256], sizes = [8, 128], strides = [1, 1]} : vector<8x512xf32> to vector<8x128xf32>
    %433 = math.tanh %432 : vector<8x128xf32>
    %434 = vector.extract_strided_slice %418 {offsets = [0, 384], sizes = [8, 128], strides = [1, 1]} : vector<8x512xf32> to vector<8x128xf32>
    %435 = arith.negf %434 : vector<8x128xf32>
    %436 = math.exp %435 : vector<8x128xf32>
    %cst_193 = arith.constant 1.000000e+00 : f32
    %437 = vector.broadcast %cst_193 : f32 to vector<8x128xf32>
    %438 = arith.addf %437, %436 : vector<8x128xf32>
    %439 = arith.divf %437, %438 : vector<8x128xf32>
    %440 = arith.mulf %431, %419 : vector<8x128xf32>
    %441 = arith.mulf %425, %433 : vector<8x128xf32>
    %442 = arith.addf %440, %441 : vector<8x128xf32>
    %443 = math.tanh %442 : vector<8x128xf32>
    %444 = arith.mulf %439, %443 : vector<8x128xf32>
    %c0_194 = arith.constant 0 : index
    %c0_195 = arith.constant 0 : index
    %445 = vector.load %arg13[%c0_194, %c0_195] : memref<8x128xf32, #tpu.memory_space<vmem>>, vector<8x128xf32>
    tpu.vector_store %arg13[%c0_194, %c0_195], %444 {strides = array<i32>} : memref<8x128xf32, #tpu.memory_space<vmem>>, vector<8x128xf32>,
    %c0_196 = arith.constant 0 : index
    %c0_197 = arith.constant 0 : index
    %446 = vector.load %arg14[%c0_196, %c0_197] : memref<8x128xf32, #tpu.memory_space<vmem>>, vector<8x128xf32>
    tpu.vector_store %arg14[%c0_196, %c0_197], %442 {strides = array<i32>} : memref<8x128xf32, #tpu.memory_space<vmem>>, vector<8x128xf32>,
    %447 = arith.index_cast %c3_i32 : i32 to index
    %c0_198 = arith.constant 0 : index
    %c0_199 = arith.constant 0 : index
    %448 = vector.load %arg8[%447, %c0_198, %c0_199] : memref<8x8x128xf32, #tpu.memory_space<vmem>>, vector<1x8x128xf32>
    %449 = vector.shape_cast %448 : vector<1x8x128xf32> to vector<8x128xf32>
    %450 = vector.shape_cast %444 : vector<8x128xf32> to vector<1x8x128xf32>
    tpu.vector_store %arg8[%447, %c0_198, %c0_199], %450 {strides = array<i32>} : memref<8x8x128xf32, #tpu.memory_space<vmem>>, vector<1x8x128xf32>,
    %c4_i32 = arith.constant 4 : i32
    %451 = arith.index_cast %c4_i32 : i32 to index
    %c0_200 = arith.constant 0 : index
    %c0_201 = arith.constant 0 : index
    %452 = vector.load %arg2[%451, %c0_200, %c0_201] : memref<8x8x512xf32, #tpu.memory_space<vmem>>, vector<1x8x512xf32>
    %453 = vector.shape_cast %452 : vector<1x8x512xf32> to vector<8x512xf32>
    %c0_202 = arith.constant 0 : index
    %c0_203 = arith.constant 0 : index
    %454 = vector.load %arg9[%c0_202, %c0_203] : memref<8x128xf32, #tpu.memory_space<vmem>>, vector<8x128xf32>
    %455 = arith.truncf %454 : vector<8x128xf32> to vector<8x128xbf16>
    %c0_204 = arith.constant 0 : index
    %c0_205 = arith.constant 0 : index
    %456 = vector.load %arg3[%c0_204, %c0_205] : memref<512x128xbf16, #tpu.memory_space<vmem>>, vector<512x128xbf16>
    %cst_206 = arith.constant dense<0.000000e+00> : vector<8x512xf32>
    %457 = tpu.matmul %455, %456, %cst_206 {dimension_numbers = #tpu.dot_dimension_numbers<[1], [1], [0], [0], [0, 0, 1, 0], [], []>} : vector<8x128xbf16>, vector<512x128xbf16>, vector<8x512xf32> -> vector<8x512xf32>
    %458 = arith.addf %453, %457 : vector<8x512xf32>
    %c0_207 = arith.constant 0 : index
    %c0_208 = arith.constant 0 : index
    %459 = vector.load %arg10[%c0_207, %c0_208] : memref<8x128xf32, #tpu.memory_space<vmem>>, vector<8x128xf32>
    %460 = vector.extract_strided_slice %458 {offsets = [0, 0], sizes = [8, 128], strides = [1, 1]} : vector<8x512xf32> to vector<8x128xf32>
    %461 = arith.negf %460 : vector<8x128xf32>
    %462 = math.exp %461 : vector<8x128xf32>
    %cst_209 = arith.constant 1.000000e+00 : f32
    %463 = vector.broadcast %cst_209 : f32 to vector<8x128xf32>
    %464 = arith.addf %463, %462 : vector<8x128xf32>
    %465 = arith.divf %463, %464 : vector<8x128xf32>
    %466 = vector.extract_strided_slice %458 {offsets = [0, 128], sizes = [8, 128], strides = [1, 1]} : vector<8x512xf32> to vector<8x128xf32>
    %467 = arith.negf %466 : vector<8x128xf32>
    %468 = math.exp %467 : vector<8x128xf32>
    %cst_210 = arith.constant 1.000000e+00 : f32
    %469 = vector.broadcast %cst_210 : f32 to vector<8x128xf32>
    %470 = arith.addf %469, %468 : vector<8x128xf32>
    %471 = arith.divf %469, %470 : vector<8x128xf32>
    %472 = vector.extract_strided_slice %458 {offsets = [0, 256], sizes = [8, 128], strides = [1, 1]} : vector<8x512xf32> to vector<8x128xf32>
    %473 = math.tanh %472 : vector<8x128xf32>
    %474 = vector.extract_strided_slice %458 {offsets = [0, 384], sizes = [8, 128], strides = [1, 1]} : vector<8x512xf32> to vector<8x128xf32>
    %475 = arith.negf %474 : vector<8x128xf32>
    %476 = math.exp %475 : vector<8x128xf32>
    %cst_211 = arith.constant 1.000000e+00 : f32
    %477 = vector.broadcast %cst_211 : f32 to vector<8x128xf32>
    %478 = arith.addf %477, %476 : vector<8x128xf32>
    %479 = arith.divf %477, %478 : vector<8x128xf32>
    %480 = arith.mulf %471, %459 : vector<8x128xf32>
    %481 = arith.mulf %465, %473 : vector<8x128xf32>
    %482 = arith.addf %480, %481 : vector<8x128xf32>
    %483 = math.tanh %482 : vector<8x128xf32>
    %484 = arith.mulf %479, %483 : vector<8x128xf32>
    %c0_212 = arith.constant 0 : index
    %c0_213 = arith.constant 0 : index
    %485 = vector.load %arg9[%c0_212, %c0_213] : memref<8x128xf32, #tpu.memory_space<vmem>>, vector<8x128xf32>
    tpu.vector_store %arg9[%c0_212, %c0_213], %484 {strides = array<i32>} : memref<8x128xf32, #tpu.memory_space<vmem>>, vector<8x128xf32>,
    %c0_214 = arith.constant 0 : index
    %c0_215 = arith.constant 0 : index
    %486 = vector.load %arg10[%c0_214, %c0_215] : memref<8x128xf32, #tpu.memory_space<vmem>>, vector<8x128xf32>
    tpu.vector_store %arg10[%c0_214, %c0_215], %482 {strides = array<i32>} : memref<8x128xf32, #tpu.memory_space<vmem>>, vector<8x128xf32>,
    %c0_216 = arith.constant 0 : index
    %c0_217 = arith.constant 0 : index
    %487 = vector.load %arg11[%c0_216, %c0_217] : memref<8x128xf32, #tpu.memory_space<vmem>>, vector<8x128xf32>
    %488 = tpu.concatenate %484, %487 in 1 : vector<8x128xf32>, vector<8x128xf32> -> vector<8x256xf32>
    %489 = arith.truncf %488 : vector<8x256xf32> to vector<8x256xbf16>
    %c0_218 = arith.constant 0 : index
    %c0_219 = arith.constant 0 : index
    %490 = vector.load %arg4[%c0_218, %c0_219] : memref<512x256xbf16, #tpu.memory_space<vmem>>, vector<512x256xbf16>
    %cst_220 = arith.constant dense<0.000000e+00> : vector<8x512xf32>
    %491 = tpu.matmul %489, %490, %cst_220 {dimension_numbers = #tpu.dot_dimension_numbers<[1], [1], [0], [0], [0, 0, 1, 0], [], []>} : vector<8x256xbf16>, vector<512x256xbf16>, vector<8x512xf32> -> vector<8x512xf32>
    %c0_221 = arith.constant 0 : index
    %c0_222 = arith.constant 0 : index
    %492 = vector.load %arg5[%c0_221, %c0_222] : memref<1x512xf32, #tpu.memory_space<vmem>>, vector<1x512xf32>
    %493 = vector.broadcast %492 : vector<1x512xf32> to vector<8x512xf32>
    %494 = arith.addf %491, %493 : vector<8x512xf32>
    %c0_223 = arith.constant 0 : index
    %c0_224 = arith.constant 0 : index
    %495 = vector.load %arg12[%c0_223, %c0_224] : memref<8x128xf32, #tpu.memory_space<vmem>>, vector<8x128xf32>
    %496 = vector.extract_strided_slice %494 {offsets = [0, 0], sizes = [8, 128], strides = [1, 1]} : vector<8x512xf32> to vector<8x128xf32>
    %497 = arith.negf %496 : vector<8x128xf32>
    %498 = math.exp %497 : vector<8x128xf32>
    %cst_225 = arith.constant 1.000000e+00 : f32
    %499 = vector.broadcast %cst_225 : f32 to vector<8x128xf32>
    %500 = arith.addf %499, %498 : vector<8x128xf32>
    %501 = arith.divf %499, %500 : vector<8x128xf32>
    %502 = vector.extract_strided_slice %494 {offsets = [0, 128], sizes = [8, 128], strides = [1, 1]} : vector<8x512xf32> to vector<8x128xf32>
    %503 = arith.negf %502 : vector<8x128xf32>
    %504 = math.exp %503 : vector<8x128xf32>
    %cst_226 = arith.constant 1.000000e+00 : f32
    %505 = vector.broadcast %cst_226 : f32 to vector<8x128xf32>
    %506 = arith.addf %505, %504 : vector<8x128xf32>
    %507 = arith.divf %505, %506 : vector<8x128xf32>
    %508 = vector.extract_strided_slice %494 {offsets = [0, 256], sizes = [8, 128], strides = [1, 1]} : vector<8x512xf32> to vector<8x128xf32>
    %509 = math.tanh %508 : vector<8x128xf32>
    %510 = vector.extract_strided_slice %494 {offsets = [0, 384], sizes = [8, 128], strides = [1, 1]} : vector<8x512xf32> to vector<8x128xf32>
    %511 = arith.negf %510 : vector<8x128xf32>
    %512 = math.exp %511 : vector<8x128xf32>
    %cst_227 = arith.constant 1.000000e+00 : f32
    %513 = vector.broadcast %cst_227 : f32 to vector<8x128xf32>
    %514 = arith.addf %513, %512 : vector<8x128xf32>
    %515 = arith.divf %513, %514 : vector<8x128xf32>
    %516 = arith.mulf %507, %495 : vector<8x128xf32>
    %517 = arith.mulf %501, %509 : vector<8x128xf32>
    %518 = arith.addf %516, %517 : vector<8x128xf32>
    %519 = math.tanh %518 : vector<8x128xf32>
    %520 = arith.mulf %515, %519 : vector<8x128xf32>
    %c0_228 = arith.constant 0 : index
    %c0_229 = arith.constant 0 : index
    %521 = vector.load %arg11[%c0_228, %c0_229] : memref<8x128xf32, #tpu.memory_space<vmem>>, vector<8x128xf32>
    tpu.vector_store %arg11[%c0_228, %c0_229], %520 {strides = array<i32>} : memref<8x128xf32, #tpu.memory_space<vmem>>, vector<8x128xf32>,
    %c0_230 = arith.constant 0 : index
    %c0_231 = arith.constant 0 : index
    %522 = vector.load %arg12[%c0_230, %c0_231] : memref<8x128xf32, #tpu.memory_space<vmem>>, vector<8x128xf32>
    tpu.vector_store %arg12[%c0_230, %c0_231], %518 {strides = array<i32>} : memref<8x128xf32, #tpu.memory_space<vmem>>, vector<8x128xf32>,
    %c0_232 = arith.constant 0 : index
    %c0_233 = arith.constant 0 : index
    %523 = vector.load %arg13[%c0_232, %c0_233] : memref<8x128xf32, #tpu.memory_space<vmem>>, vector<8x128xf32>
    %524 = tpu.concatenate %520, %523 in 1 : vector<8x128xf32>, vector<8x128xf32> -> vector<8x256xf32>
    %525 = arith.truncf %524 : vector<8x256xf32> to vector<8x256xbf16>
    %c0_234 = arith.constant 0 : index
    %c0_235 = arith.constant 0 : index
    %526 = vector.load %arg6[%c0_234, %c0_235] : memref<512x256xbf16, #tpu.memory_space<vmem>>, vector<512x256xbf16>
    %cst_236 = arith.constant dense<0.000000e+00> : vector<8x512xf32>
    %527 = tpu.matmul %525, %526, %cst_236 {dimension_numbers = #tpu.dot_dimension_numbers<[1], [1], [0], [0], [0, 0, 1, 0], [], []>} : vector<8x256xbf16>, vector<512x256xbf16>, vector<8x512xf32> -> vector<8x512xf32>
    %c0_237 = arith.constant 0 : index
    %c0_238 = arith.constant 0 : index
    %528 = vector.load %arg7[%c0_237, %c0_238] : memref<1x512xf32, #tpu.memory_space<vmem>>, vector<1x512xf32>
    %529 = vector.broadcast %528 : vector<1x512xf32> to vector<8x512xf32>
    %530 = arith.addf %527, %529 : vector<8x512xf32>
    %c0_239 = arith.constant 0 : index
    %c0_240 = arith.constant 0 : index
    %531 = vector.load %arg14[%c0_239, %c0_240] : memref<8x128xf32, #tpu.memory_space<vmem>>, vector<8x128xf32>
    %532 = vector.extract_strided_slice %530 {offsets = [0, 0], sizes = [8, 128], strides = [1, 1]} : vector<8x512xf32> to vector<8x128xf32>
    %533 = arith.negf %532 : vector<8x128xf32>
    %534 = math.exp %533 : vector<8x128xf32>
    %cst_241 = arith.constant 1.000000e+00 : f32
    %535 = vector.broadcast %cst_241 : f32 to vector<8x128xf32>
    %536 = arith.addf %535, %534 : vector<8x128xf32>
    %537 = arith.divf %535, %536 : vector<8x128xf32>
    %538 = vector.extract_strided_slice %530 {offsets = [0, 128], sizes = [8, 128], strides = [1, 1]} : vector<8x512xf32> to vector<8x128xf32>
    %539 = arith.negf %538 : vector<8x128xf32>
    %540 = math.exp %539 : vector<8x128xf32>
    %cst_242 = arith.constant 1.000000e+00 : f32
    %541 = vector.broadcast %cst_242 : f32 to vector<8x128xf32>
    %542 = arith.addf %541, %540 : vector<8x128xf32>
    %543 = arith.divf %541, %542 : vector<8x128xf32>
    %544 = vector.extract_strided_slice %530 {offsets = [0, 256], sizes = [8, 128], strides = [1, 1]} : vector<8x512xf32> to vector<8x128xf32>
    %545 = math.tanh %544 : vector<8x128xf32>
    %546 = vector.extract_strided_slice %530 {offsets = [0, 384], sizes = [8, 128], strides = [1, 1]} : vector<8x512xf32> to vector<8x128xf32>
    %547 = arith.negf %546 : vector<8x128xf32>
    %548 = math.exp %547 : vector<8x128xf32>
    %cst_243 = arith.constant 1.000000e+00 : f32
    %549 = vector.broadcast %cst_243 : f32 to vector<8x128xf32>
    %550 = arith.addf %549, %548 : vector<8x128xf32>
    %551 = arith.divf %549, %550 : vector<8x128xf32>
    %552 = arith.mulf %543, %531 : vector<8x128xf32>
    %553 = arith.mulf %537, %545 : vector<8x128xf32>
    %554 = arith.addf %552, %553 : vector<8x128xf32>
    %555 = math.tanh %554 : vector<8x128xf32>
    %556 = arith.mulf %551, %555 : vector<8x128xf32>
    %c0_244 = arith.constant 0 : index
    %c0_245 = arith.constant 0 : index
    %557 = vector.load %arg13[%c0_244, %c0_245] : memref<8x128xf32, #tpu.memory_space<vmem>>, vector<8x128xf32>
    tpu.vector_store %arg13[%c0_244, %c0_245], %556 {strides = array<i32>} : memref<8x128xf32, #tpu.memory_space<vmem>>, vector<8x128xf32>,
    %c0_246 = arith.constant 0 : index
    %c0_247 = arith.constant 0 : index
    %558 = vector.load %arg14[%c0_246, %c0_247] : memref<8x128xf32, #tpu.memory_space<vmem>>, vector<8x128xf32>
    tpu.vector_store %arg14[%c0_246, %c0_247], %554 {strides = array<i32>} : memref<8x128xf32, #tpu.memory_space<vmem>>, vector<8x128xf32>,
    %559 = arith.index_cast %c4_i32 : i32 to index
    %c0_248 = arith.constant 0 : index
    %c0_249 = arith.constant 0 : index
    %560 = vector.load %arg8[%559, %c0_248, %c0_249] : memref<8x8x128xf32, #tpu.memory_space<vmem>>, vector<1x8x128xf32>
    %561 = vector.shape_cast %560 : vector<1x8x128xf32> to vector<8x128xf32>
    %562 = vector.shape_cast %556 : vector<8x128xf32> to vector<1x8x128xf32>
    tpu.vector_store %arg8[%559, %c0_248, %c0_249], %562 {strides = array<i32>} : memref<8x8x128xf32, #tpu.memory_space<vmem>>, vector<1x8x128xf32>,
    %c5_i32 = arith.constant 5 : i32
    %563 = arith.index_cast %c5_i32 : i32 to index
    %c0_250 = arith.constant 0 : index
    %c0_251 = arith.constant 0 : index
    %564 = vector.load %arg2[%563, %c0_250, %c0_251] : memref<8x8x512xf32, #tpu.memory_space<vmem>>, vector<1x8x512xf32>
    %565 = vector.shape_cast %564 : vector<1x8x512xf32> to vector<8x512xf32>
    %c0_252 = arith.constant 0 : index
    %c0_253 = arith.constant 0 : index
    %566 = vector.load %arg9[%c0_252, %c0_253] : memref<8x128xf32, #tpu.memory_space<vmem>>, vector<8x128xf32>
    %567 = arith.truncf %566 : vector<8x128xf32> to vector<8x128xbf16>
    %c0_254 = arith.constant 0 : index
    %c0_255 = arith.constant 0 : index
    %568 = vector.load %arg3[%c0_254, %c0_255] : memref<512x128xbf16, #tpu.memory_space<vmem>>, vector<512x128xbf16>
    %cst_256 = arith.constant dense<0.000000e+00> : vector<8x512xf32>
    %569 = tpu.matmul %567, %568, %cst_256 {dimension_numbers = #tpu.dot_dimension_numbers<[1], [1], [0], [0], [0, 0, 1, 0], [], []>} : vector<8x128xbf16>, vector<512x128xbf16>, vector<8x512xf32> -> vector<8x512xf32>
    %570 = arith.addf %565, %569 : vector<8x512xf32>
    %c0_257 = arith.constant 0 : index
    %c0_258 = arith.constant 0 : index
    %571 = vector.load %arg10[%c0_257, %c0_258] : memref<8x128xf32, #tpu.memory_space<vmem>>, vector<8x128xf32>
    %572 = vector.extract_strided_slice %570 {offsets = [0, 0], sizes = [8, 128], strides = [1, 1]} : vector<8x512xf32> to vector<8x128xf32>
    %573 = arith.negf %572 : vector<8x128xf32>
    %574 = math.exp %573 : vector<8x128xf32>
    %cst_259 = arith.constant 1.000000e+00 : f32
    %575 = vector.broadcast %cst_259 : f32 to vector<8x128xf32>
    %576 = arith.addf %575, %574 : vector<8x128xf32>
    %577 = arith.divf %575, %576 : vector<8x128xf32>
    %578 = vector.extract_strided_slice %570 {offsets = [0, 128], sizes = [8, 128], strides = [1, 1]} : vector<8x512xf32> to vector<8x128xf32>
    %579 = arith.negf %578 : vector<8x128xf32>
    %580 = math.exp %579 : vector<8x128xf32>
    %cst_260 = arith.constant 1.000000e+00 : f32
    %581 = vector.broadcast %cst_260 : f32 to vector<8x128xf32>
    %582 = arith.addf %581, %580 : vector<8x128xf32>
    %583 = arith.divf %581, %582 : vector<8x128xf32>
    %584 = vector.extract_strided_slice %570 {offsets = [0, 256], sizes = [8, 128], strides = [1, 1]} : vector<8x512xf32> to vector<8x128xf32>
    %585 = math.tanh %584 : vector<8x128xf32>
    %586 = vector.extract_strided_slice %570 {offsets = [0, 384], sizes = [8, 128], strides = [1, 1]} : vector<8x512xf32> to vector<8x128xf32>
    %587 = arith.negf %586 : vector<8x128xf32>
    %588 = math.exp %587 : vector<8x128xf32>
    %cst_261 = arith.constant 1.000000e+00 : f32
    %589 = vector.broadcast %cst_261 : f32 to vector<8x128xf32>
    %590 = arith.addf %589, %588 : vector<8x128xf32>
    %591 = arith.divf %589, %590 : vector<8x128xf32>
    %592 = arith.mulf %583, %571 : vector<8x128xf32>
    %593 = arith.mulf %577, %585 : vector<8x128xf32>
    %594 = arith.addf %592, %593 : vector<8x128xf32>
    %595 = math.tanh %594 : vector<8x128xf32>
    %596 = arith.mulf %591, %595 : vector<8x128xf32>
    %c0_262 = arith.constant 0 : index
    %c0_263 = arith.constant 0 : index
    %597 = vector.load %arg9[%c0_262, %c0_263] : memref<8x128xf32, #tpu.memory_space<vmem>>, vector<8x128xf32>
    tpu.vector_store %arg9[%c0_262, %c0_263], %596 {strides = array<i32>} : memref<8x128xf32, #tpu.memory_space<vmem>>, vector<8x128xf32>,
    %c0_264 = arith.constant 0 : index
    %c0_265 = arith.constant 0 : index
    %598 = vector.load %arg10[%c0_264, %c0_265] : memref<8x128xf32, #tpu.memory_space<vmem>>, vector<8x128xf32>
    tpu.vector_store %arg10[%c0_264, %c0_265], %594 {strides = array<i32>} : memref<8x128xf32, #tpu.memory_space<vmem>>, vector<8x128xf32>,
    %c0_266 = arith.constant 0 : index
    %c0_267 = arith.constant 0 : index
    %599 = vector.load %arg11[%c0_266, %c0_267] : memref<8x128xf32, #tpu.memory_space<vmem>>, vector<8x128xf32>
    %600 = tpu.concatenate %596, %599 in 1 : vector<8x128xf32>, vector<8x128xf32> -> vector<8x256xf32>
    %601 = arith.truncf %600 : vector<8x256xf32> to vector<8x256xbf16>
    %c0_268 = arith.constant 0 : index
    %c0_269 = arith.constant 0 : index
    %602 = vector.load %arg4[%c0_268, %c0_269] : memref<512x256xbf16, #tpu.memory_space<vmem>>, vector<512x256xbf16>
    %cst_270 = arith.constant dense<0.000000e+00> : vector<8x512xf32>
    %603 = tpu.matmul %601, %602, %cst_270 {dimension_numbers = #tpu.dot_dimension_numbers<[1], [1], [0], [0], [0, 0, 1, 0], [], []>} : vector<8x256xbf16>, vector<512x256xbf16>, vector<8x512xf32> -> vector<8x512xf32>
    %c0_271 = arith.constant 0 : index
    %c0_272 = arith.constant 0 : index
    %604 = vector.load %arg5[%c0_271, %c0_272] : memref<1x512xf32, #tpu.memory_space<vmem>>, vector<1x512xf32>
    %605 = vector.broadcast %604 : vector<1x512xf32> to vector<8x512xf32>
    %606 = arith.addf %603, %605 : vector<8x512xf32>
    %c0_273 = arith.constant 0 : index
    %c0_274 = arith.constant 0 : index
    %607 = vector.load %arg12[%c0_273, %c0_274] : memref<8x128xf32, #tpu.memory_space<vmem>>, vector<8x128xf32>
    %608 = vector.extract_strided_slice %606 {offsets = [0, 0], sizes = [8, 128], strides = [1, 1]} : vector<8x512xf32> to vector<8x128xf32>
    %609 = arith.negf %608 : vector<8x128xf32>
    %610 = math.exp %609 : vector<8x128xf32>
    %cst_275 = arith.constant 1.000000e+00 : f32
    %611 = vector.broadcast %cst_275 : f32 to vector<8x128xf32>
    %612 = arith.addf %611, %610 : vector<8x128xf32>
    %613 = arith.divf %611, %612 : vector<8x128xf32>
    %614 = vector.extract_strided_slice %606 {offsets = [0, 128], sizes = [8, 128], strides = [1, 1]} : vector<8x512xf32> to vector<8x128xf32>
    %615 = arith.negf %614 : vector<8x128xf32>
    %616 = math.exp %615 : vector<8x128xf32>
    %cst_276 = arith.constant 1.000000e+00 : f32
    %617 = vector.broadcast %cst_276 : f32 to vector<8x128xf32>
    %618 = arith.addf %617, %616 : vector<8x128xf32>
    %619 = arith.divf %617, %618 : vector<8x128xf32>
    %620 = vector.extract_strided_slice %606 {offsets = [0, 256], sizes = [8, 128], strides = [1, 1]} : vector<8x512xf32> to vector<8x128xf32>
    %621 = math.tanh %620 : vector<8x128xf32>
    %622 = vector.extract_strided_slice %606 {offsets = [0, 384], sizes = [8, 128], strides = [1, 1]} : vector<8x512xf32> to vector<8x128xf32>
    %623 = arith.negf %622 : vector<8x128xf32>
    %624 = math.exp %623 : vector<8x128xf32>
    %cst_277 = arith.constant 1.000000e+00 : f32
    %625 = vector.broadcast %cst_277 : f32 to vector<8x128xf32>
    %626 = arith.addf %625, %624 : vector<8x128xf32>
    %627 = arith.divf %625, %626 : vector<8x128xf32>
    %628 = arith.mulf %619, %607 : vector<8x128xf32>
    %629 = arith.mulf %613, %621 : vector<8x128xf32>
    %630 = arith.addf %628, %629 : vector<8x128xf32>
    %631 = math.tanh %630 : vector<8x128xf32>
    %632 = arith.mulf %627, %631 : vector<8x128xf32>
    %c0_278 = arith.constant 0 : index
    %c0_279 = arith.constant 0 : index
    %633 = vector.load %arg11[%c0_278, %c0_279] : memref<8x128xf32, #tpu.memory_space<vmem>>, vector<8x128xf32>
    tpu.vector_store %arg11[%c0_278, %c0_279], %632 {strides = array<i32>} : memref<8x128xf32, #tpu.memory_space<vmem>>, vector<8x128xf32>,
    %c0_280 = arith.constant 0 : index
    %c0_281 = arith.constant 0 : index
    %634 = vector.load %arg12[%c0_280, %c0_281] : memref<8x128xf32, #tpu.memory_space<vmem>>, vector<8x128xf32>
    tpu.vector_store %arg12[%c0_280, %c0_281], %630 {strides = array<i32>} : memref<8x128xf32, #tpu.memory_space<vmem>>, vector<8x128xf32>,
    %c0_282 = arith.constant 0 : index
    %c0_283 = arith.constant 0 : index
    %635 = vector.load %arg13[%c0_282, %c0_283] : memref<8x128xf32, #tpu.memory_space<vmem>>, vector<8x128xf32>
    %636 = tpu.concatenate %632, %635 in 1 : vector<8x128xf32>, vector<8x128xf32> -> vector<8x256xf32>
    %637 = arith.truncf %636 : vector<8x256xf32> to vector<8x256xbf16>
    %c0_284 = arith.constant 0 : index
    %c0_285 = arith.constant 0 : index
    %638 = vector.load %arg6[%c0_284, %c0_285] : memref<512x256xbf16, #tpu.memory_space<vmem>>, vector<512x256xbf16>
    %cst_286 = arith.constant dense<0.000000e+00> : vector<8x512xf32>
    %639 = tpu.matmul %637, %638, %cst_286 {dimension_numbers = #tpu.dot_dimension_numbers<[1], [1], [0], [0], [0, 0, 1, 0], [], []>} : vector<8x256xbf16>, vector<512x256xbf16>, vector<8x512xf32> -> vector<8x512xf32>
    %c0_287 = arith.constant 0 : index
    %c0_288 = arith.constant 0 : index
    %640 = vector.load %arg7[%c0_287, %c0_288] : memref<1x512xf32, #tpu.memory_space<vmem>>, vector<1x512xf32>
    %641 = vector.broadcast %640 : vector<1x512xf32> to vector<8x512xf32>
    %642 = arith.addf %639, %641 : vector<8x512xf32>
    %c0_289 = arith.constant 0 : index
    %c0_290 = arith.constant 0 : index
    %643 = vector.load %arg14[%c0_289, %c0_290] : memref<8x128xf32, #tpu.memory_space<vmem>>, vector<8x128xf32>
    %644 = vector.extract_strided_slice %642 {offsets = [0, 0], sizes = [8, 128], strides = [1, 1]} : vector<8x512xf32> to vector<8x128xf32>
    %645 = arith.negf %644 : vector<8x128xf32>
    %646 = math.exp %645 : vector<8x128xf32>
    %cst_291 = arith.constant 1.000000e+00 : f32
    %647 = vector.broadcast %cst_291 : f32 to vector<8x128xf32>
    %648 = arith.addf %647, %646 : vector<8x128xf32>
    %649 = arith.divf %647, %648 : vector<8x128xf32>
    %650 = vector.extract_strided_slice %642 {offsets = [0, 128], sizes = [8, 128], strides = [1, 1]} : vector<8x512xf32> to vector<8x128xf32>
    %651 = arith.negf %650 : vector<8x128xf32>
    %652 = math.exp %651 : vector<8x128xf32>
    %cst_292 = arith.constant 1.000000e+00 : f32
    %653 = vector.broadcast %cst_292 : f32 to vector<8x128xf32>
    %654 = arith.addf %653, %652 : vector<8x128xf32>
    %655 = arith.divf %653, %654 : vector<8x128xf32>
    %656 = vector.extract_strided_slice %642 {offsets = [0, 256], sizes = [8, 128], strides = [1, 1]} : vector<8x512xf32> to vector<8x128xf32>
    %657 = math.tanh %656 : vector<8x128xf32>
    %658 = vector.extract_strided_slice %642 {offsets = [0, 384], sizes = [8, 128], strides = [1, 1]} : vector<8x512xf32> to vector<8x128xf32>
    %659 = arith.negf %658 : vector<8x128xf32>
    %660 = math.exp %659 : vector<8x128xf32>
    %cst_293 = arith.constant 1.000000e+00 : f32
    %661 = vector.broadcast %cst_293 : f32 to vector<8x128xf32>
    %662 = arith.addf %661, %660 : vector<8x128xf32>
    %663 = arith.divf %661, %662 : vector<8x128xf32>
    %664 = arith.mulf %655, %643 : vector<8x128xf32>
    %665 = arith.mulf %649, %657 : vector<8x128xf32>
    %666 = arith.addf %664, %665 : vector<8x128xf32>
    %667 = math.tanh %666 : vector<8x128xf32>
    %668 = arith.mulf %663, %667 : vector<8x128xf32>
    %c0_294 = arith.constant 0 : index
    %c0_295 = arith.constant 0 : index
    %669 = vector.load %arg13[%c0_294, %c0_295] : memref<8x128xf32, #tpu.memory_space<vmem>>, vector<8x128xf32>
    tpu.vector_store %arg13[%c0_294, %c0_295], %668 {strides = array<i32>} : memref<8x128xf32, #tpu.memory_space<vmem>>, vector<8x128xf32>,
    %c0_296 = arith.constant 0 : index
    %c0_297 = arith.constant 0 : index
    %670 = vector.load %arg14[%c0_296, %c0_297] : memref<8x128xf32, #tpu.memory_space<vmem>>, vector<8x128xf32>
    tpu.vector_store %arg14[%c0_296, %c0_297], %666 {strides = array<i32>} : memref<8x128xf32, #tpu.memory_space<vmem>>, vector<8x128xf32>,
    %671 = arith.index_cast %c5_i32 : i32 to index
    %c0_298 = arith.constant 0 : index
    %c0_299 = arith.constant 0 : index
    %672 = vector.load %arg8[%671, %c0_298, %c0_299] : memref<8x8x128xf32, #tpu.memory_space<vmem>>, vector<1x8x128xf32>
    %673 = vector.shape_cast %672 : vector<1x8x128xf32> to vector<8x128xf32>
    %674 = vector.shape_cast %668 : vector<8x128xf32> to vector<1x8x128xf32>
    tpu.vector_store %arg8[%671, %c0_298, %c0_299], %674 {strides = array<i32>} : memref<8x8x128xf32, #tpu.memory_space<vmem>>, vector<1x8x128xf32>,
    %c6_i32 = arith.constant 6 : i32
    %675 = arith.index_cast %c6_i32 : i32 to index
    %c0_300 = arith.constant 0 : index
    %c0_301 = arith.constant 0 : index
    %676 = vector.load %arg2[%675, %c0_300, %c0_301] : memref<8x8x512xf32, #tpu.memory_space<vmem>>, vector<1x8x512xf32>
    %677 = vector.shape_cast %676 : vector<1x8x512xf32> to vector<8x512xf32>
    %c0_302 = arith.constant 0 : index
    %c0_303 = arith.constant 0 : index
    %678 = vector.load %arg9[%c0_302, %c0_303] : memref<8x128xf32, #tpu.memory_space<vmem>>, vector<8x128xf32>
    %679 = arith.truncf %678 : vector<8x128xf32> to vector<8x128xbf16>
    %c0_304 = arith.constant 0 : index
    %c0_305 = arith.constant 0 : index
    %680 = vector.load %arg3[%c0_304, %c0_305] : memref<512x128xbf16, #tpu.memory_space<vmem>>, vector<512x128xbf16>
    %cst_306 = arith.constant dense<0.000000e+00> : vector<8x512xf32>
    %681 = tpu.matmul %679, %680, %cst_306 {dimension_numbers = #tpu.dot_dimension_numbers<[1], [1], [0], [0], [0, 0, 1, 0], [], []>} : vector<8x128xbf16>, vector<512x128xbf16>, vector<8x512xf32> -> vector<8x512xf32>
    %682 = arith.addf %677, %681 : vector<8x512xf32>
    %c0_307 = arith.constant 0 : index
    %c0_308 = arith.constant 0 : index
    %683 = vector.load %arg10[%c0_307, %c0_308] : memref<8x128xf32, #tpu.memory_space<vmem>>, vector<8x128xf32>
    %684 = vector.extract_strided_slice %682 {offsets = [0, 0], sizes = [8, 128], strides = [1, 1]} : vector<8x512xf32> to vector<8x128xf32>
    %685 = arith.negf %684 : vector<8x128xf32>
    %686 = math.exp %685 : vector<8x128xf32>
    %cst_309 = arith.constant 1.000000e+00 : f32
    %687 = vector.broadcast %cst_309 : f32 to vector<8x128xf32>
    %688 = arith.addf %687, %686 : vector<8x128xf32>
    %689 = arith.divf %687, %688 : vector<8x128xf32>
    %690 = vector.extract_strided_slice %682 {offsets = [0, 128], sizes = [8, 128], strides = [1, 1]} : vector<8x512xf32> to vector<8x128xf32>
    %691 = arith.negf %690 : vector<8x128xf32>
    %692 = math.exp %691 : vector<8x128xf32>
    %cst_310 = arith.constant 1.000000e+00 : f32
    %693 = vector.broadcast %cst_310 : f32 to vector<8x128xf32>
    %694 = arith.addf %693, %692 : vector<8x128xf32>
    %695 = arith.divf %693, %694 : vector<8x128xf32>
    %696 = vector.extract_strided_slice %682 {offsets = [0, 256], sizes = [8, 128], strides = [1, 1]} : vector<8x512xf32> to vector<8x128xf32>
    %697 = math.tanh %696 : vector<8x128xf32>
    %698 = vector.extract_strided_slice %682 {offsets = [0, 384], sizes = [8, 128], strides = [1, 1]} : vector<8x512xf32> to vector<8x128xf32>
    %699 = arith.negf %698 : vector<8x128xf32>
    %700 = math.exp %699 : vector<8x128xf32>
    %cst_311 = arith.constant 1.000000e+00 : f32
    %701 = vector.broadcast %cst_311 : f32 to vector<8x128xf32>
    %702 = arith.addf %701, %700 : vector<8x128xf32>
    %703 = arith.divf %701, %702 : vector<8x128xf32>
    %704 = arith.mulf %695, %683 : vector<8x128xf32>
    %705 = arith.mulf %689, %697 : vector<8x128xf32>
    %706 = arith.addf %704, %705 : vector<8x128xf32>
    %707 = math.tanh %706 : vector<8x128xf32>
    %708 = arith.mulf %703, %707 : vector<8x128xf32>
    %c0_312 = arith.constant 0 : index
    %c0_313 = arith.constant 0 : index
    %709 = vector.load %arg9[%c0_312, %c0_313] : memref<8x128xf32, #tpu.memory_space<vmem>>, vector<8x128xf32>
    tpu.vector_store %arg9[%c0_312, %c0_313], %708 {strides = array<i32>} : memref<8x128xf32, #tpu.memory_space<vmem>>, vector<8x128xf32>,
    %c0_314 = arith.constant 0 : index
    %c0_315 = arith.constant 0 : index
    %710 = vector.load %arg10[%c0_314, %c0_315] : memref<8x128xf32, #tpu.memory_space<vmem>>, vector<8x128xf32>
    tpu.vector_store %arg10[%c0_314, %c0_315], %706 {strides = array<i32>} : memref<8x128xf32, #tpu.memory_space<vmem>>, vector<8x128xf32>,
    %c0_316 = arith.constant 0 : index
    %c0_317 = arith.constant 0 : index
    %711 = vector.load %arg11[%c0_316, %c0_317] : memref<8x128xf32, #tpu.memory_space<vmem>>, vector<8x128xf32>
    %712 = tpu.concatenate %708, %711 in 1 : vector<8x128xf32>, vector<8x128xf32> -> vector<8x256xf32>
    %713 = arith.truncf %712 : vector<8x256xf32> to vector<8x256xbf16>
    %c0_318 = arith.constant 0 : index
    %c0_319 = arith.constant 0 : index
    %714 = vector.load %arg4[%c0_318, %c0_319] : memref<512x256xbf16, #tpu.memory_space<vmem>>, vector<512x256xbf16>
    %cst_320 = arith.constant dense<0.000000e+00> : vector<8x512xf32>
    %715 = tpu.matmul %713, %714, %cst_320 {dimension_numbers = #tpu.dot_dimension_numbers<[1], [1], [0], [0], [0, 0, 1, 0], [], []>} : vector<8x256xbf16>, vector<512x256xbf16>, vector<8x512xf32> -> vector<8x512xf32>
    %c0_321 = arith.constant 0 : index
    %c0_322 = arith.constant 0 : index
    %716 = vector.load %arg5[%c0_321, %c0_322] : memref<1x512xf32, #tpu.memory_space<vmem>>, vector<1x512xf32>
    %717 = vector.broadcast %716 : vector<1x512xf32> to vector<8x512xf32>
    %718 = arith.addf %715, %717 : vector<8x512xf32>
    %c0_323 = arith.constant 0 : index
    %c0_324 = arith.constant 0 : index
    %719 = vector.load %arg12[%c0_323, %c0_324] : memref<8x128xf32, #tpu.memory_space<vmem>>, vector<8x128xf32>
    %720 = vector.extract_strided_slice %718 {offsets = [0, 0], sizes = [8, 128], strides = [1, 1]} : vector<8x512xf32> to vector<8x128xf32>
    %721 = arith.negf %720 : vector<8x128xf32>
    %722 = math.exp %721 : vector<8x128xf32>
    %cst_325 = arith.constant 1.000000e+00 : f32
    %723 = vector.broadcast %cst_325 : f32 to vector<8x128xf32>
    %724 = arith.addf %723, %722 : vector<8x128xf32>
    %725 = arith.divf %723, %724 : vector<8x128xf32>
    %726 = vector.extract_strided_slice %718 {offsets = [0, 128], sizes = [8, 128], strides = [1, 1]} : vector<8x512xf32> to vector<8x128xf32>
    %727 = arith.negf %726 : vector<8x128xf32>
    %728 = math.exp %727 : vector<8x128xf32>
    %cst_326 = arith.constant 1.000000e+00 : f32
    %729 = vector.broadcast %cst_326 : f32 to vector<8x128xf32>
    %730 = arith.addf %729, %728 : vector<8x128xf32>
    %731 = arith.divf %729, %730 : vector<8x128xf32>
    %732 = vector.extract_strided_slice %718 {offsets = [0, 256], sizes = [8, 128], strides = [1, 1]} : vector<8x512xf32> to vector<8x128xf32>
    %733 = math.tanh %732 : vector<8x128xf32>
    %734 = vector.extract_strided_slice %718 {offsets = [0, 384], sizes = [8, 128], strides = [1, 1]} : vector<8x512xf32> to vector<8x128xf32>
    %735 = arith.negf %734 : vector<8x128xf32>
    %736 = math.exp %735 : vector<8x128xf32>
    %cst_327 = arith.constant 1.000000e+00 : f32
    %737 = vector.broadcast %cst_327 : f32 to vector<8x128xf32>
    %738 = arith.addf %737, %736 : vector<8x128xf32>
    %739 = arith.divf %737, %738 : vector<8x128xf32>
    %740 = arith.mulf %731, %719 : vector<8x128xf32>
    %741 = arith.mulf %725, %733 : vector<8x128xf32>
    %742 = arith.addf %740, %741 : vector<8x128xf32>
    %743 = math.tanh %742 : vector<8x128xf32>
    %744 = arith.mulf %739, %743 : vector<8x128xf32>
    %c0_328 = arith.constant 0 : index
    %c0_329 = arith.constant 0 : index
    %745 = vector.load %arg11[%c0_328, %c0_329] : memref<8x128xf32, #tpu.memory_space<vmem>>, vector<8x128xf32>
    tpu.vector_store %arg11[%c0_328, %c0_329], %744 {strides = array<i32>} : memref<8x128xf32, #tpu.memory_space<vmem>>, vector<8x128xf32>,
    %c0_330 = arith.constant 0 : index
    %c0_331 = arith.constant 0 : index
    %746 = vector.load %arg12[%c0_330, %c0_331] : memref<8x128xf32, #tpu.memory_space<vmem>>, vector<8x128xf32>
    tpu.vector_store %arg12[%c0_330, %c0_331], %742 {strides = array<i32>} : memref<8x128xf32, #tpu.memory_space<vmem>>, vector<8x128xf32>,
    %c0_332 = arith.constant 0 : index
    %c0_333 = arith.constant 0 : index
    %747 = vector.load %arg13[%c0_332, %c0_333] : memref<8x128xf32, #tpu.memory_space<vmem>>, vector<8x128xf32>
    %748 = tpu.concatenate %744, %747 in 1 : vector<8x128xf32>, vector<8x128xf32> -> vector<8x256xf32>
    %749 = arith.truncf %748 : vector<8x256xf32> to vector<8x256xbf16>
    %c0_334 = arith.constant 0 : index
    %c0_335 = arith.constant 0 : index
    %750 = vector.load %arg6[%c0_334, %c0_335] : memref<512x256xbf16, #tpu.memory_space<vmem>>, vector<512x256xbf16>
    %cst_336 = arith.constant dense<0.000000e+00> : vector<8x512xf32>
    %751 = tpu.matmul %749, %750, %cst_336 {dimension_numbers = #tpu.dot_dimension_numbers<[1], [1], [0], [0], [0, 0, 1, 0], [], []>} : vector<8x256xbf16>, vector<512x256xbf16>, vector<8x512xf32> -> vector<8x512xf32>
    %c0_337 = arith.constant 0 : index
    %c0_338 = arith.constant 0 : index
    %752 = vector.load %arg7[%c0_337, %c0_338] : memref<1x512xf32, #tpu.memory_space<vmem>>, vector<1x512xf32>
    %753 = vector.broadcast %752 : vector<1x512xf32> to vector<8x512xf32>
    %754 = arith.addf %751, %753 : vector<8x512xf32>
    %c0_339 = arith.constant 0 : index
    %c0_340 = arith.constant 0 : index
    %755 = vector.load %arg14[%c0_339, %c0_340] : memref<8x128xf32, #tpu.memory_space<vmem>>, vector<8x128xf32>
    %756 = vector.extract_strided_slice %754 {offsets = [0, 0], sizes = [8, 128], strides = [1, 1]} : vector<8x512xf32> to vector<8x128xf32>
    %757 = arith.negf %756 : vector<8x128xf32>
    %758 = math.exp %757 : vector<8x128xf32>
    %cst_341 = arith.constant 1.000000e+00 : f32
    %759 = vector.broadcast %cst_341 : f32 to vector<8x128xf32>
    %760 = arith.addf %759, %758 : vector<8x128xf32>
    %761 = arith.divf %759, %760 : vector<8x128xf32>
    %762 = vector.extract_strided_slice %754 {offsets = [0, 128], sizes = [8, 128], strides = [1, 1]} : vector<8x512xf32> to vector<8x128xf32>
    %763 = arith.negf %762 : vector<8x128xf32>
    %764 = math.exp %763 : vector<8x128xf32>
    %cst_342 = arith.constant 1.000000e+00 : f32
    %765 = vector.broadcast %cst_342 : f32 to vector<8x128xf32>
    %766 = arith.addf %765, %764 : vector<8x128xf32>
    %767 = arith.divf %765, %766 : vector<8x128xf32>
    %768 = vector.extract_strided_slice %754 {offsets = [0, 256], sizes = [8, 128], strides = [1, 1]} : vector<8x512xf32> to vector<8x128xf32>
    %769 = math.tanh %768 : vector<8x128xf32>
    %770 = vector.extract_strided_slice %754 {offsets = [0, 384], sizes = [8, 128], strides = [1, 1]} : vector<8x512xf32> to vector<8x128xf32>
    %771 = arith.negf %770 : vector<8x128xf32>
    %772 = math.exp %771 : vector<8x128xf32>
    %cst_343 = arith.constant 1.000000e+00 : f32
    %773 = vector.broadcast %cst_343 : f32 to vector<8x128xf32>
    %774 = arith.addf %773, %772 : vector<8x128xf32>
    %775 = arith.divf %773, %774 : vector<8x128xf32>
    %776 = arith.mulf %767, %755 : vector<8x128xf32>
    %777 = arith.mulf %761, %769 : vector<8x128xf32>
    %778 = arith.addf %776, %777 : vector<8x128xf32>
    %779 = math.tanh %778 : vector<8x128xf32>
    %780 = arith.mulf %775, %779 : vector<8x128xf32>
    %c0_344 = arith.constant 0 : index
    %c0_345 = arith.constant 0 : index
    %781 = vector.load %arg13[%c0_344, %c0_345] : memref<8x128xf32, #tpu.memory_space<vmem>>, vector<8x128xf32>
    tpu.vector_store %arg13[%c0_344, %c0_345], %780 {strides = array<i32>} : memref<8x128xf32, #tpu.memory_space<vmem>>, vector<8x128xf32>,
    %c0_346 = arith.constant 0 : index
    %c0_347 = arith.constant 0 : index
    %782 = vector.load %arg14[%c0_346, %c0_347] : memref<8x128xf32, #tpu.memory_space<vmem>>, vector<8x128xf32>
    tpu.vector_store %arg14[%c0_346, %c0_347], %778 {strides = array<i32>} : memref<8x128xf32, #tpu.memory_space<vmem>>, vector<8x128xf32>,
    %783 = arith.index_cast %c6_i32 : i32 to index
    %c0_348 = arith.constant 0 : index
    %c0_349 = arith.constant 0 : index
    %784 = vector.load %arg8[%783, %c0_348, %c0_349] : memref<8x8x128xf32, #tpu.memory_space<vmem>>, vector<1x8x128xf32>
    %785 = vector.shape_cast %784 : vector<1x8x128xf32> to vector<8x128xf32>
    %786 = vector.shape_cast %780 : vector<8x128xf32> to vector<1x8x128xf32>
    tpu.vector_store %arg8[%783, %c0_348, %c0_349], %786 {strides = array<i32>} : memref<8x8x128xf32, #tpu.memory_space<vmem>>, vector<1x8x128xf32>,
    %c7_i32 = arith.constant 7 : i32
    %787 = arith.index_cast %c7_i32 : i32 to index
    %c0_350 = arith.constant 0 : index
    %c0_351 = arith.constant 0 : index
    %788 = vector.load %arg2[%787, %c0_350, %c0_351] : memref<8x8x512xf32, #tpu.memory_space<vmem>>, vector<1x8x512xf32>
    %789 = vector.shape_cast %788 : vector<1x8x512xf32> to vector<8x512xf32>
    %c0_352 = arith.constant 0 : index
    %c0_353 = arith.constant 0 : index
    %790 = vector.load %arg9[%c0_352, %c0_353] : memref<8x128xf32, #tpu.memory_space<vmem>>, vector<8x128xf32>
    %791 = arith.truncf %790 : vector<8x128xf32> to vector<8x128xbf16>
    %c0_354 = arith.constant 0 : index
    %c0_355 = arith.constant 0 : index
    %792 = vector.load %arg3[%c0_354, %c0_355] : memref<512x128xbf16, #tpu.memory_space<vmem>>, vector<512x128xbf16>
    %cst_356 = arith.constant dense<0.000000e+00> : vector<8x512xf32>
    %793 = tpu.matmul %791, %792, %cst_356 {dimension_numbers = #tpu.dot_dimension_numbers<[1], [1], [0], [0], [0, 0, 1, 0], [], []>} : vector<8x128xbf16>, vector<512x128xbf16>, vector<8x512xf32> -> vector<8x512xf32>
    %794 = arith.addf %789, %793 : vector<8x512xf32>
    %c0_357 = arith.constant 0 : index
    %c0_358 = arith.constant 0 : index
    %795 = vector.load %arg10[%c0_357, %c0_358] : memref<8x128xf32, #tpu.memory_space<vmem>>, vector<8x128xf32>
    %796 = vector.extract_strided_slice %794 {offsets = [0, 0], sizes = [8, 128], strides = [1, 1]} : vector<8x512xf32> to vector<8x128xf32>
    %797 = arith.negf %796 : vector<8x128xf32>
    %798 = math.exp %797 : vector<8x128xf32>
    %cst_359 = arith.constant 1.000000e+00 : f32
    %799 = vector.broadcast %cst_359 : f32 to vector<8x128xf32>
    %800 = arith.addf %799, %798 : vector<8x128xf32>
    %801 = arith.divf %799, %800 : vector<8x128xf32>
    %802 = vector.extract_strided_slice %794 {offsets = [0, 128], sizes = [8, 128], strides = [1, 1]} : vector<8x512xf32> to vector<8x128xf32>
    %803 = arith.negf %802 : vector<8x128xf32>
    %804 = math.exp %803 : vector<8x128xf32>
    %cst_360 = arith.constant 1.000000e+00 : f32
    %805 = vector.broadcast %cst_360 : f32 to vector<8x128xf32>
    %806 = arith.addf %805, %804 : vector<8x128xf32>
    %807 = arith.divf %805, %806 : vector<8x128xf32>
    %808 = vector.extract_strided_slice %794 {offsets = [0, 256], sizes = [8, 128], strides = [1, 1]} : vector<8x512xf32> to vector<8x128xf32>
    %809 = math.tanh %808 : vector<8x128xf32>
    %810 = vector.extract_strided_slice %794 {offsets = [0, 384], sizes = [8, 128], strides = [1, 1]} : vector<8x512xf32> to vector<8x128xf32>
    %811 = arith.negf %810 : vector<8x128xf32>
    %812 = math.exp %811 : vector<8x128xf32>
    %cst_361 = arith.constant 1.000000e+00 : f32
    %813 = vector.broadcast %cst_361 : f32 to vector<8x128xf32>
    %814 = arith.addf %813, %812 : vector<8x128xf32>
    %815 = arith.divf %813, %814 : vector<8x128xf32>
    %816 = arith.mulf %807, %795 : vector<8x128xf32>
    %817 = arith.mulf %801, %809 : vector<8x128xf32>
    %818 = arith.addf %816, %817 : vector<8x128xf32>
    %819 = math.tanh %818 : vector<8x128xf32>
    %820 = arith.mulf %815, %819 : vector<8x128xf32>
    %c0_362 = arith.constant 0 : index
    %c0_363 = arith.constant 0 : index
    %821 = vector.load %arg9[%c0_362, %c0_363] : memref<8x128xf32, #tpu.memory_space<vmem>>, vector<8x128xf32>
    tpu.vector_store %arg9[%c0_362, %c0_363], %820 {strides = array<i32>} : memref<8x128xf32, #tpu.memory_space<vmem>>, vector<8x128xf32>,
    %c0_364 = arith.constant 0 : index
    %c0_365 = arith.constant 0 : index
    %822 = vector.load %arg10[%c0_364, %c0_365] : memref<8x128xf32, #tpu.memory_space<vmem>>, vector<8x128xf32>
    tpu.vector_store %arg10[%c0_364, %c0_365], %818 {strides = array<i32>} : memref<8x128xf32, #tpu.memory_space<vmem>>, vector<8x128xf32>,
    %c0_366 = arith.constant 0 : index
    %c0_367 = arith.constant 0 : index
    %823 = vector.load %arg11[%c0_366, %c0_367] : memref<8x128xf32, #tpu.memory_space<vmem>>, vector<8x128xf32>
    %824 = tpu.concatenate %820, %823 in 1 : vector<8x128xf32>, vector<8x128xf32> -> vector<8x256xf32>
    %825 = arith.truncf %824 : vector<8x256xf32> to vector<8x256xbf16>
    %c0_368 = arith.constant 0 : index
    %c0_369 = arith.constant 0 : index
    %826 = vector.load %arg4[%c0_368, %c0_369] : memref<512x256xbf16, #tpu.memory_space<vmem>>, vector<512x256xbf16>
    %cst_370 = arith.constant dense<0.000000e+00> : vector<8x512xf32>
    %827 = tpu.matmul %825, %826, %cst_370 {dimension_numbers = #tpu.dot_dimension_numbers<[1], [1], [0], [0], [0, 0, 1, 0], [], []>} : vector<8x256xbf16>, vector<512x256xbf16>, vector<8x512xf32> -> vector<8x512xf32>
    %c0_371 = arith.constant 0 : index
    %c0_372 = arith.constant 0 : index
    %828 = vector.load %arg5[%c0_371, %c0_372] : memref<1x512xf32, #tpu.memory_space<vmem>>, vector<1x512xf32>
    %829 = vector.broadcast %828 : vector<1x512xf32> to vector<8x512xf32>
    %830 = arith.addf %827, %829 : vector<8x512xf32>
    %c0_373 = arith.constant 0 : index
    %c0_374 = arith.constant 0 : index
    %831 = vector.load %arg12[%c0_373, %c0_374] : memref<8x128xf32, #tpu.memory_space<vmem>>, vector<8x128xf32>
    %832 = vector.extract_strided_slice %830 {offsets = [0, 0], sizes = [8, 128], strides = [1, 1]} : vector<8x512xf32> to vector<8x128xf32>
    %833 = arith.negf %832 : vector<8x128xf32>
    %834 = math.exp %833 : vector<8x128xf32>
    %cst_375 = arith.constant 1.000000e+00 : f32
    %835 = vector.broadcast %cst_375 : f32 to vector<8x128xf32>
    %836 = arith.addf %835, %834 : vector<8x128xf32>
    %837 = arith.divf %835, %836 : vector<8x128xf32>
    %838 = vector.extract_strided_slice %830 {offsets = [0, 128], sizes = [8, 128], strides = [1, 1]} : vector<8x512xf32> to vector<8x128xf32>
    %839 = arith.negf %838 : vector<8x128xf32>
    %840 = math.exp %839 : vector<8x128xf32>
    %cst_376 = arith.constant 1.000000e+00 : f32
    %841 = vector.broadcast %cst_376 : f32 to vector<8x128xf32>
    %842 = arith.addf %841, %840 : vector<8x128xf32>
    %843 = arith.divf %841, %842 : vector<8x128xf32>
    %844 = vector.extract_strided_slice %830 {offsets = [0, 256], sizes = [8, 128], strides = [1, 1]} : vector<8x512xf32> to vector<8x128xf32>
    %845 = math.tanh %844 : vector<8x128xf32>
    %846 = vector.extract_strided_slice %830 {offsets = [0, 384], sizes = [8, 128], strides = [1, 1]} : vector<8x512xf32> to vector<8x128xf32>
    %847 = arith.negf %846 : vector<8x128xf32>
    %848 = math.exp %847 : vector<8x128xf32>
    %cst_377 = arith.constant 1.000000e+00 : f32
    %849 = vector.broadcast %cst_377 : f32 to vector<8x128xf32>
    %850 = arith.addf %849, %848 : vector<8x128xf32>
    %851 = arith.divf %849, %850 : vector<8x128xf32>
    %852 = arith.mulf %843, %831 : vector<8x128xf32>
    %853 = arith.mulf %837, %845 : vector<8x128xf32>
    %854 = arith.addf %852, %853 : vector<8x128xf32>
    %855 = math.tanh %854 : vector<8x128xf32>
    %856 = arith.mulf %851, %855 : vector<8x128xf32>
    %c0_378 = arith.constant 0 : index
    %c0_379 = arith.constant 0 : index
    %857 = vector.load %arg11[%c0_378, %c0_379] : memref<8x128xf32, #tpu.memory_space<vmem>>, vector<8x128xf32>
    tpu.vector_store %arg11[%c0_378, %c0_379], %856 {strides = array<i32>} : memref<8x128xf32, #tpu.memory_space<vmem>>, vector<8x128xf32>,
    %c0_380 = arith.constant 0 : index
    %c0_381 = arith.constant 0 : index
    %858 = vector.load %arg12[%c0_380, %c0_381] : memref<8x128xf32, #tpu.memory_space<vmem>>, vector<8x128xf32>
    tpu.vector_store %arg12[%c0_380, %c0_381], %854 {strides = array<i32>} : memref<8x128xf32, #tpu.memory_space<vmem>>, vector<8x128xf32>,
    %c0_382 = arith.constant 0 : index
    %c0_383 = arith.constant 0 : index
    %859 = vector.load %arg13[%c0_382, %c0_383] : memref<8x128xf32, #tpu.memory_space<vmem>>, vector<8x128xf32>
    %860 = tpu.concatenate %856, %859 in 1 : vector<8x128xf32>, vector<8x128xf32> -> vector<8x256xf32>
    %861 = arith.truncf %860 : vector<8x256xf32> to vector<8x256xbf16>
    %c0_384 = arith.constant 0 : index
    %c0_385 = arith.constant 0 : index
    %862 = vector.load %arg6[%c0_384, %c0_385] : memref<512x256xbf16, #tpu.memory_space<vmem>>, vector<512x256xbf16>
    %cst_386 = arith.constant dense<0.000000e+00> : vector<8x512xf32>
    %863 = tpu.matmul %861, %862, %cst_386 {dimension_numbers = #tpu.dot_dimension_numbers<[1], [1], [0], [0], [0, 0, 1, 0], [], []>} : vector<8x256xbf16>, vector<512x256xbf16>, vector<8x512xf32> -> vector<8x512xf32>
    %c0_387 = arith.constant 0 : index
    %c0_388 = arith.constant 0 : index
    %864 = vector.load %arg7[%c0_387, %c0_388] : memref<1x512xf32, #tpu.memory_space<vmem>>, vector<1x512xf32>
    %865 = vector.broadcast %864 : vector<1x512xf32> to vector<8x512xf32>
    %866 = arith.addf %863, %865 : vector<8x512xf32>
    %c0_389 = arith.constant 0 : index
    %c0_390 = arith.constant 0 : index
    %867 = vector.load %arg14[%c0_389, %c0_390] : memref<8x128xf32, #tpu.memory_space<vmem>>, vector<8x128xf32>
    %868 = vector.extract_strided_slice %866 {offsets = [0, 0], sizes = [8, 128], strides = [1, 1]} : vector<8x512xf32> to vector<8x128xf32>
    %869 = arith.negf %868 : vector<8x128xf32>
    %870 = math.exp %869 : vector<8x128xf32>
    %cst_391 = arith.constant 1.000000e+00 : f32
    %871 = vector.broadcast %cst_391 : f32 to vector<8x128xf32>
    %872 = arith.addf %871, %870 : vector<8x128xf32>
    %873 = arith.divf %871, %872 : vector<8x128xf32>
    %874 = vector.extract_strided_slice %866 {offsets = [0, 128], sizes = [8, 128], strides = [1, 1]} : vector<8x512xf32> to vector<8x128xf32>
    %875 = arith.negf %874 : vector<8x128xf32>
    %876 = math.exp %875 : vector<8x128xf32>
    %cst_392 = arith.constant 1.000000e+00 : f32
    %877 = vector.broadcast %cst_392 : f32 to vector<8x128xf32>
    %878 = arith.addf %877, %876 : vector<8x128xf32>
    %879 = arith.divf %877, %878 : vector<8x128xf32>
    %880 = vector.extract_strided_slice %866 {offsets = [0, 256], sizes = [8, 128], strides = [1, 1]} : vector<8x512xf32> to vector<8x128xf32>
    %881 = math.tanh %880 : vector<8x128xf32>
    %882 = vector.extract_strided_slice %866 {offsets = [0, 384], sizes = [8, 128], strides = [1, 1]} : vector<8x512xf32> to vector<8x128xf32>
    %883 = arith.negf %882 : vector<8x128xf32>
    %884 = math.exp %883 : vector<8x128xf32>
    %cst_393 = arith.constant 1.000000e+00 : f32
    %885 = vector.broadcast %cst_393 : f32 to vector<8x128xf32>
    %886 = arith.addf %885, %884 : vector<8x128xf32>
    %887 = arith.divf %885, %886 : vector<8x128xf32>
    %888 = arith.mulf %879, %867 : vector<8x128xf32>
    %889 = arith.mulf %873, %881 : vector<8x128xf32>
    %890 = arith.addf %888, %889 : vector<8x128xf32>
    %891 = math.tanh %890 : vector<8x128xf32>
    %892 = arith.mulf %887, %891 : vector<8x128xf32>
    %c0_394 = arith.constant 0 : index
    %c0_395 = arith.constant 0 : index
    %893 = vector.load %arg13[%c0_394, %c0_395] : memref<8x128xf32, #tpu.memory_space<vmem>>, vector<8x128xf32>
    tpu.vector_store %arg13[%c0_394, %c0_395], %892 {strides = array<i32>} : memref<8x128xf32, #tpu.memory_space<vmem>>, vector<8x128xf32>,
    %c0_396 = arith.constant 0 : index
    %c0_397 = arith.constant 0 : index
    %894 = vector.load %arg14[%c0_396, %c0_397] : memref<8x128xf32, #tpu.memory_space<vmem>>, vector<8x128xf32>
    tpu.vector_store %arg14[%c0_396, %c0_397], %890 {strides = array<i32>} : memref<8x128xf32, #tpu.memory_space<vmem>>, vector<8x128xf32>,
    %895 = arith.index_cast %c7_i32 : i32 to index
    %c0_398 = arith.constant 0 : index
    %c0_399 = arith.constant 0 : index
    %896 = vector.load %arg8[%895, %c0_398, %c0_399] : memref<8x8x128xf32, #tpu.memory_space<vmem>>, vector<1x8x128xf32>
    %897 = vector.shape_cast %896 : vector<1x8x128xf32> to vector<8x128xf32>
    %898 = vector.shape_cast %892 : vector<8x128xf32> to vector<1x8x128xf32>
    tpu.vector_store %arg8[%895, %c0_398, %c0_399], %898 {strides = array<i32>} : memref<8x8x128xf32, #tpu.memory_space<vmem>>, vector<1x8x128xf32>,
    %c8_i32 = arith.constant 8 : i32
    return
  }
  func.func @transform_0(%arg0: i32, %arg1: i32) -> (i32, i32, i32) {
    %c0_i32 = arith.constant 0 : i32
    %c0_i32_0 = arith.constant 0 : i32
    return %arg1, %arg0, %c0_i32 : i32, i32, i32
  }
  func.func @transform_1(%arg0: i32, %arg1: i32) -> (i32, i32) {
    %c0_i32 = arith.constant 0 : i32
    %c0_i32_0 = arith.constant 0 : i32
    %c0_i32_1 = arith.constant 0 : i32
    return %c0_i32, %c0_i32_0 : i32, i32
  }
  func.func @transform_2(%arg0: i32, %arg1: i32) -> (i32, i32) {
    %c0_i32 = arith.constant 0 : i32
    %c0_i32_0 = arith.constant 0 : i32
    %c0_i32_1 = arith.constant 0 : i32
    return %c0_i32, %c0_i32_0 : i32, i32
  }
  func.func @transform_3(%arg0: i32, %arg1: i32) -> (i32, i32) {
    %c0_i32 = arith.constant 0 : i32
    %c0_i32_0 = arith.constant 0 : i32
    %c0_i32_1 = arith.constant 0 : i32
    return %c0_i32, %c0_i32_0 : i32, i32
  }
  func.func @transform_4(%arg0: i32, %arg1: i32) -> (i32, i32) {
    %c0_i32 = arith.constant 0 : i32
    %c0_i32_0 = arith.constant 0 : i32
    %c0_i32_1 = arith.constant 0 : i32
    return %c0_i32, %c0_i32_0 : i32, i32
  }
  func.func @transform_5(%arg0: i32, %arg1: i32) -> (i32, i32) {
    %c0_i32 = arith.constant 0 : i32
    %c0_i32_0 = arith.constant 0 : i32
    %c0_i32_1 = arith.constant 0 : i32
    return %c0_i32, %c0_i32_0 : i32, i32
  }
  func.func @transform_6(%arg0: i32, %arg1: i32) -> (i32, i32, i32) {
    %c0_i32 = arith.constant 0 : i32
    %c0_i32_0 = arith.constant 0 : i32
    return %arg1, %arg0, %c0_i32 : i32, i32, i32
  }
}

</mosaic_0001>

<llo_original>
// kernel: rnn_model_forward.5
$region0: #{rnn_model_forward.5}
  #allocation0 [shape = 'u32[]', space=smem, size = 0x4, offset = 0x4, fixed_abs, tag = 'smem constant byte address 0x4 - core index']
  #allocation1 [shape = 'u32[144,128]{1,0:T(1,128)}', space=vmem, size = 0x12000, scoped, tag = 'internal scratch']
  %s0 = inlined_call_operand.vmem [shape: f32[64,128], index: 0, kind: input, shape index: {}]
  %s1 = inlined_call_operand.vmem [shape: bf16[128,128], index: 1, kind: input, shape index: {}]
  %s2 = inlined_call_operand.vmem [shape: f32[1,128], index: 2, kind: input, shape index: {}]
  %s3 = inlined_call_operand.vmem [shape: f32[64,128], index: 3, kind: output, shape index: {}]
  %s4 = sld [smem:[#allocation0]]
  $region22: #{rnn_model_forward.5} parent=0
    _
  %s6 = ssub.s32 1, %s4
  %s7 = scalar_select 0, %s6, %s4
  // Predicated region
  $region2: #{rnn_model_forward.5} parent=0 // pred_check
    _
  $region3: #{rnn_model_forward.5} parent=0 // pred_check_branch
    %9 = sbr.rel (0) target = $region5
  $region4: #{rnn_model_forward.5} parent=0 // pred_region
    _
  $region5: #{rnn_model_forward.5} parent=0 // pred_fallthru
    _
  // Predicated region
  $region6: #{rnn_model_forward.5} parent=0 // pred_check
    _
  $region7: #{rnn_model_forward.5} parent=0 // pred_check_branch
    %11 = sbr.rel (0) target = $region9
  $region8: #{rnn_model_forward.5} parent=0 // pred_region
    _
  $region9: #{rnn_model_forward.5} parent=0 // pred_fallthru
    _
  // Predicated region
  $region10: #{rnn_model_forward.5} parent=0 // pred_check
    _
  $region11: #{rnn_model_forward.5} parent=0 // pred_check_branch
    %13 = sbr.rel (0) target = $region13
  $region12: #{rnn_model_forward.5} parent=0 // pred_region
    _
  $region13: #{rnn_model_forward.5} parent=0 // pred_fallthru
    _
  %v15 = vld [vmem:[%s0] sm:$0xff]
  %v16 = vld [vmem:[%s0 + $0x8] sm:$0xff]
  %v17 = vld [vmem:[%s0 + $0x10] sm:$0xff]
  %v18 = vld [vmem:[%s0 + $0x18] sm:$0xff]
  %v19 = vld [vmem:[%s0 + $0x20] sm:$0xff]
  %v20 = vld [vmem:[%s0 + $0x28] sm:$0xff]
  %v21 = vld [vmem:[%s0 + $0x30] sm:$0xff]
  %v22 = vld [vmem:[%s0 + $0x38] sm:$0xff]
  %v23 = vpack.c.bf16 %v16, %v15
  %v24 = vpack.c.bf16 %v18, %v17
  %v25 = vpack.c.bf16 %v20, %v19
  %v26 = vpack.c.bf16 %v22, %v21
  %v27 = vld [vmem:[%s1] sm:$0xf]
  %v28 = vld [vmem:[%s1 + $0x4] sm:$0xf]
  %v29 = vld [vmem:[%s1 + $0x8] sm:$0xf]
  %v30 = vld [vmem:[%s1 + $0xc] sm:$0xf]
  %v31 = vld [vmem:[%s1 + $0x10] sm:$0xf]
  %v32 = vld [vmem:[%s1 + $0x14] sm:$0xf]
  %v33 = vld [vmem:[%s1 + $0x18] sm:$0xf]
  %v34 = vld [vmem:[%s1 + $0x1c] sm:$0xf]
  %v35 = vld [vmem:[%s1 + $0x20] sm:$0xf]
  %v36 = vld [vmem:[%s1 + $0x24] sm:$0xf]
  %v37 = vld [vmem:[%s1 + $0x28] sm:$0xf]
  %v38 = vld [vmem:[%s1 + $0x2c] sm:$0xf]
  %v39 = vld [vmem:[%s1 + $0x30] sm:$0xf]
  %v40 = vld [vmem:[%s1 + $0x34] sm:$0xf]
  %v41 = vld [vmem:[%s1 + $0x38] sm:$0xf]
  %v42 = vld [vmem:[%s1 + $0x3c] sm:$0xf]
  %v43 = vld [vmem:[%s2] sm:$0x1]
  %v45 = vlaneseq
  %v46 = vshrl.u32 %v45, 7
  %v47 = vsub.s32 0, %v46
  %v48 = vrot.slane %v43, %v47
  %v66 = vunpack.c.l.b16 %v27
  %v67 = vunpack.c.l.b16 %v28
  %v68 = vunpack.c.l.b16 %v29
  %v69 = vunpack.c.l.b16 %v30
  %v70 = vunpack.c.l.b16 %v31
  %v71 = vunpack.c.l.b16 %v32
  %v72 = vunpack.c.l.b16 %v33
  %v73 = vunpack.c.l.b16 %v34
  %v74 = vunpack.c.l.b16 %v35
  %v75 = vunpack.c.l.b16 %v36
  %v76 = vunpack.c.l.b16 %v37
  %v77 = vunpack.c.l.b16 %v38
  %v78 = vunpack.c.l.b16 %v39
  %v79 = vunpack.c.l.b16 %v40
  %v80 = vunpack.c.l.b16 %v41
  %v81 = vunpack.c.l.b16 %v42
  %v82 = vpack.c.b16 %v67, %v66
  %v83 = vpack.c.b16 %v69, %v68
  %v84 = vpack.c.b16 %v71, %v70
  %v85 = vpack.c.b16 %v73, %v72
  %v86 = vpack.c.b16 %v75, %v74
  %v87 = vpack.c.b16 %v77, %v76
  %v88 = vpack.c.b16 %v79, %v78
  %v89 = vpack.c.b16 %v81, %v80
  %98 = vmatprep.subr.bf16.mxu0 0
  %99 = vmatpush1.bf16.xpose.msra.mxu0 %v82
  %100 = vmatprep.subr.bf16.mxu0 0
  %101 = vmatpush1.bf16.xpose.msra.mxu0 %v83
  %102 = vmatprep.subr.bf16.mxu0 0
  %103 = vmatpush1.bf16.xpose.msra.mxu0 %v84
  %104 = vmatprep.subr.bf16.mxu0 0
  %105 = vmatpush1.bf16.xpose.msra.mxu0 %v85
  %106 = vmatprep.subr.bf16.mxu0 0
  %107 = vmatpush1.bf16.xpose.msra.mxu0 %v86
  %108 = vmatprep.subr.bf16.mxu0 0
  %109 = vmatpush1.bf16.xpose.msra.mxu0 %v87
  %110 = vmatprep.subr.bf16.mxu0 0
  %111 = vmatpush1.bf16.xpose.msra.mxu0 %v88
  %112 = vmatprep.subr.bf16.mxu0 0
  %113 = vmatpush1.bf16.xpose.msra.mxu0 %v89
  %114 = vmatprep.subr.bf16.mxu0 0
  %115 = vmatpush1.bf16.xpose.msra.mxu0 0
  %116 = vmatprep.subr.bf16.mxu0 0
  %117 = vmatpush1.bf16.xpose.msra.mxu0 0
  %118 = vmatprep.subr.bf16.mxu0 0
  %119 = vmatpush1.bf16.xpose.msra.mxu0 0
  %120 = vmatprep.subr.bf16.mxu0 0
  %121 = vmatpush1.bf16.xpose.msra.mxu0 0
  %122 = vmatprep.subr.bf16.mxu0 0
  %123 = vmatpush1.bf16.xpose.msra.mxu0 0
  %124 = vmatprep.subr.bf16.mxu0 0
  %125 = vmatpush1.bf16.xpose.msra.mxu0 0
  %126 = vmatprep.subr.bf16.mxu0 0
  %127 = vmatpush1.bf16.xpose.msra.mxu0 0
  %128 = vmatprep.subr.bf16.mxu0 0
  %129 = vmatpush1.bf16.xpose.msra.mxu0 0
  %130 = vmatprep.mubr.bf16.mxu0 0
  %131 = vmatmul.mubr.bf16.gmra.mrb[0].mxu0 %v23
  %v132 = vpop.f32.mrb[0].mxu0
  %v133 = vadd.f32 %v48, %v132
  %v134 = vpop.f32.mrb[0].mxu0
  %v135 = vpop.f32.mrb[0].mxu0
  %v136 = vadd.f32 %v48, %v135
  %v137 = vpop.f32.mrb[0].mxu0
  %138 = vmatprep.mubr.bf16.mxu0 0
  %139 = vmatmul.mubr.bf16.gmra.mrb[0].mxu0 %v24
  %v140 = vpop.f32.mrb[0].mxu0
  %v141 = vadd.f32 %v48, %v140
  %v142 = vpop.f32.mrb[0].mxu0
  %v143 = vpop.f32.mrb[0].mxu0
  %v144 = vadd.f32 %v48, %v143
  %v145 = vpop.f32.mrb[0].mxu0
  %146 = vmatprep.mubr.bf16.mxu0 0
  %147 = vmatmul.mubr.bf16.gmra.mrb[0].mxu0 %v25
  %v148 = vpop.f32.mrb[0].mxu0
  %v149 = vadd.f32 %v48, %v148
  %v150 = vpop.f32.mrb[0].mxu0
  %v151 = vpop.f32.mrb[0].mxu0
  %v152 = vadd.f32 %v48, %v151
  %v153 = vpop.f32.mrb[0].mxu0
  %154 = vmatprep.mubr.bf16.mxu0 0
  %155 = vmatmul.mubr.bf16.gmra.mrb[0].mxu0 %v26
  %v156 = vpop.f32.mrb[0].mxu0
  %v157 = vadd.f32 %v48, %v156
  %v158 = vpop.f32.mrb[0].mxu0
  %v159 = vpop.f32.mrb[0].mxu0
  %v160 = vadd.f32 %v48, %v159
  %v161 = vpop.f32.mrb[0].mxu0
  %162 = vdwg.mxu0
  %163 = vst [vmem:[%s3] sm:$0xff] %v133
  %164 = vst [vmem:[%s3 + $0x8] sm:$0xff] %v136
  %165 = vst [vmem:[%s3 + $0x10] sm:$0xff] %v141
  %166 = vst [vmem:[%s3 + $0x18] sm:$0xff] %v144
  %167 = vst [vmem:[%s3 + $0x20] sm:$0xff] %v149
  %168 = vst [vmem:[%s3 + $0x28] sm:$0xff] %v152
  %169 = vst [vmem:[%s3 + $0x30] sm:$0xff] %v157
  %170 = vst [vmem:[%s3 + $0x38] sm:$0xff] %v160
  // Predicated region
  $region14: #{rnn_model_forward.5} parent=0 // pred_check
    _
  $region15: #{rnn_model_forward.5} parent=0 // pred_check_branch
    %172 = sbr.rel (0) target = $region17
  $region16: #{rnn_model_forward.5} parent=0 // pred_region
    _
  $region17: #{rnn_model_forward.5} parent=0 // pred_fallthru
    _
  // Predicated region
  $region18: #{rnn_model_forward.5} parent=0 // pred_check
    _
  $region19: #{rnn_model_forward.5} parent=0 // pred_check_branch
    %174 = sbr.rel (0) target = $region21
  $region20: #{rnn_model_forward.5} parent=0 // pred_region
    _
  $region21: #{rnn_model_forward.5} parent=0 // pred_fallthru
    _

// kernel: rnn_model_forward.3
$region0: #{rnn_model_forward.3}
  #allocation0 [shape = 'u32[]', space=smem, size = 0x4, offset = 0x4, fixed_abs, tag = 'smem constant byte address 0x4 - core index']
  #allocation1 [shape = 'u32[144,128]{1,0:T(1,128)}', space=vmem, size = 0x12000, scoped, tag = 'internal scratch']
  %s0 = inlined_call_operand.vmem [shape: f32[64,128], index: 0, kind: input, shape index: {}]
  %s1 = inlined_call_operand.vmem [shape: bf16[512,128], index: 1, kind: input, shape index: {}]
  %s2 = inlined_call_operand.vmem [shape: f32[1,512], index: 2, kind: input, shape index: {}]
  %s3 = inlined_call_operand.vmem [shape: f32[64,512], index: 3, kind: output, shape index: {}]
  %s4 = sld [smem:[#allocation0]]
  $region22: #{rnn_model_forward.3} parent=0
    _
  %s6 = ssub.s32 1, %s4
  %s7 = scalar_select 0, %s6, %s4
  // Predicated region
  $region2: #{rnn_model_forward.3} parent=0 // pred_check
    _
  $region3: #{rnn_model_forward.3} parent=0 // pred_check_branch
    %9 = sbr.rel (0) target = $region5
  $region4: #{rnn_model_forward.3} parent=0 // pred_region
    _
  $region5: #{rnn_model_forward.3} parent=0 // pred_fallthru
    _
  // Predicated region
  $region6: #{rnn_model_forward.3} parent=0 // pred_check
    _
  $region7: #{rnn_model_forward.3} parent=0 // pred_check_branch
    %11 = sbr.rel (0) target = $region9
  $region8: #{rnn_model_forward.3} parent=0 // pred_region
    _
  $region9: #{rnn_model_forward.3} parent=0 // pred_fallthru
    _
  // Predicated region
  $region10: #{rnn_model_forward.3} parent=0 // pred_check
    _
  $region11: #{rnn_model_forward.3} parent=0 // pred_check_branch
    %13 = sbr.rel (0) target = $region13
  $region12: #{rnn_model_forward.3} parent=0 // pred_region
    _
  $region13: #{rnn_model_forward.3} parent=0 // pred_fallthru
    _
  %v15 = vld [vmem:[%s0] sm:$0xff]
  %v16 = vld [vmem:[%s0 + $0x8] sm:$0xff]
  %v17 = vld [vmem:[%s0 + $0x10] sm:$0xff]
  %v18 = vld [vmem:[%s0 + $0x18] sm:$0xff]
  %v19 = vld [vmem:[%s0 + $0x20] sm:$0xff]
  %v20 = vld [vmem:[%s0 + $0x28] sm:$0xff]
  %v21 = vld [vmem:[%s0 + $0x30] sm:$0xff]
  %v22 = vld [vmem:[%s0 + $0x38] sm:$0xff]
  %v23 = vpack.c.bf16 %v16, %v15
  %v24 = vpack.c.bf16 %v18, %v17
  %v25 = vpack.c.bf16 %v20, %v19
  %v26 = vpack.c.bf16 %v22, %v21
  %v27 = vld [vmem:[%s1] sm:$0xf]
  %v28 = vld [vmem:[%s1 + $0x4] sm:$0xf]
  %v29 = vld [vmem:[%s1 + $0x8] sm:$0xf]
  %v30 = vld [vmem:[%s1 + $0xc] sm:$0xf]
  %v31 = vld [vmem:[%s1 + $0x10] sm:$0xf]
  %v32 = vld [vmem:[%s1 + $0x14] sm:$0xf]
  %v33 = vld [vmem:[%s1 + $0x18] sm:$0xf]
  %v34 = vld [vmem:[%s1 + $0x1c] sm:$0xf]
  %v35 = vld [vmem:[%s1 + $0x20] sm:$0xf]
  %v36 = vld [vmem:[%s1 + $0x24] sm:$0xf]
  %v37 = vld [vmem:[%s1 + $0x28] sm:$0xf]
  %v38 = vld [vmem:[%s1 + $0x2c] sm:$0xf]
  %v39 = vld [vmem:[%s1 + $0x30] sm:$0xf]
  %v40 = vld [vmem:[%s1 + $0x34] sm:$0xf]
  %v41 = vld [vmem:[%s1 + $0x38] sm:$0xf]
  %v42 = vld [vmem:[%s1 + $0x3c] sm:$0xf]
  %v43 = vld [vmem:[%s1 + $0x40] sm:$0xf]
  %v44 = vld [vmem:[%s1 + $0x44] sm:$0xf]
  %v45 = vld [vmem:[%s1 + $0x48] sm:$0xf]
  %v46 = vld [vmem:[%s1 + $0x4c] sm:$0xf]
  %v47 = vld [vmem:[%s1 + $0x50] sm:$0xf]
  %v48 = vld [vmem:[%s1 + $0x54] sm:$0xf]
  %v49 = vld [vmem:[%s1 + $0x58] sm:$0xf]
  %v50 = vld [vmem:[%s1 + $0x5c] sm:$0xf]
  %v51 = vld [vmem:[%s1 + $0x60] sm:$0xf]
  %v52 = vld [vmem:[%s1 + $0x64] sm:$0xf]
  %v53 = vld [vmem:[%s1 + $0x68] sm:$0xf]
  %v54 = vld [vmem:[%s1 + $0x6c] sm:$0xf]
  %v55 = vld [vmem:[%s1 + $0x70] sm:$0xf]
  %v56 = vld [vmem:[%s1 + $0x74] sm:$0xf]
  %v57 = vld [vmem:[%s1 + $0x78] sm:$0xf]
  %v58 = vld [vmem:[%s1 + $0x7c] sm:$0xf]
  %v59 = vld [vmem:[%s1 + $0x80] sm:$0xf]
  %v60 = vld [vmem:[%s1 + $0x84] sm:$0xf]
  %v61 = vld [vmem:[%s1 + $0x88] sm:$0xf]
  %v62 = vld [vmem:[%s1 + $0x8c] sm:$0xf]
  %v63 = vld [vmem:[%s1 + $0x90] sm:$0xf]
  %v64 = vld [vmem:[%s1 + $0x94] sm:$0xf]
  %v65 = vld [vmem:[%s1 + $0x98] sm:$0xf]
  %v66 = vld [vmem:[%s1 + $0x9c] sm:$0xf]
  %v67 = vld [vmem:[%s1 + $0xa0] sm:$0xf]
  %v68 = vld [vmem:[%s1 + $0xa4] sm:$0xf]
  %v69 = vld [vmem:[%s1 + $0xa8] sm:$0xf]
  %v70 = vld [vmem:[%s1 + $0xac] sm:$0xf]
  %v71 = vld [vmem:[%s1 + $0xb0] sm:$0xf]
  %v72 = vld [vmem:[%s1 + $0xb4] sm:$0xf]
  %v73 = vld [vmem:[%s1 + $0xb8] sm:$0xf]
  %v74 = vld [vmem:[%s1 + $0xbc] sm:$0xf]
  %v75 = vld [vmem:[%s1 + $0xc0] sm:$0xf]
  %v76 = vld [vmem:[%s1 + $0xc4] sm:$0xf]
  %v77 = vld [vmem:[%s1 + $0xc8] sm:$0xf]
  %v78 = vld [vmem:[%s1 + $0xcc] sm:$0xf]
  %v79 = vld [vmem:[%s1 + $0xd0] sm:$0xf]
  %v80 = vld [vmem:[%s1 + $0xd4] sm:$0xf]
  %v81 = vld [vmem:[%s1 + $0xd8] sm:$0xf]
  %v82 = vld [vmem:[%s1 + $0xdc] sm:$0xf]
  %v83 = vld [vmem:[%s1 + $0xe0] sm:$0xf]
  %v84 = vld [vmem:[%s1 + $0xe4] sm:$0xf]
  %v85 = vld [vmem:[%s1 + $0xe8] sm:$0xf]
  %v86 = vld [vmem:[%s1 + $0xec] sm:$0xf]
  %v87 = vld [vmem:[%s1 + $0xf0] sm:$0xf]
  %v88 = vld [vmem:[%s1 + $0xf4] sm:$0xf]
  %v89 = vld [vmem:[%s1 + $0xf8] sm:$0xf]
  %v90 = vld [vmem:[%s1 + $0xfc] sm:$0xf]
  %v91 = vld [vmem:[%s2] sm:$0xf]
  %v93 = vlaneseq
  %v94 = vshrl.u32 %v93, 7
  %v95 = vsub.s32 0, %v94
  %v96 = vrot.slane %v91, %v95
  %v97 = vlaneseq
  %v98 = vshrl.u32 %v97, 7
  %v99 = vsub.s32 1, %v98
  %v100 = vrot.slane %v91, %v99
  %v101 = vlaneseq
  %v102 = vshrl.u32 %v101, 7
  %v103 = vsub.s32 2, %v102
  %v104 = vrot.slane %v91, %v103
  %v105 = vlaneseq
  %v106 = vshrl.u32 %v105, 7
  %v107 = vsub.s32 3, %v106
  %v108 = vrot.slane %v91, %v107
  %v177 = vunpack.c.l.b16 %v27
  %v178 = vunpack.c.l.b16 %v28
  %v179 = vunpack.c.l.b16 %v29
  %v180 = vunpack.c.l.b16 %v30
  %v181 = vunpack.c.l.b16 %v31
  %v182 = vunpack.c.l.b16 %v32
  %v183 = vunpack.c.l.b16 %v33
  %v184 = vunpack.c.l.b16 %v34
  %v185 = vunpack.c.l.b16 %v35
  %v186 = vunpack.c.l.b16 %v36
  %v187 = vunpack.c.l.b16 %v37
  %v188 = vunpack.c.l.b16 %v38
  %v189 = vunpack.c.l.b16 %v39
  %v190 = vunpack.c.l.b16 %v40
  %v191 = vunpack.c.l.b16 %v41
  %v192 = vunpack.c.l.b16 %v42
  %v193 = vunpack.c.l.b16 %v43
  %v194 = vunpack.c.l.b16 %v44
  %v195 = vunpack.c.l.b16 %v45
  %v196 = vunpack.c.l.b16 %v46
  %v197 = vunpack.c.l.b16 %v47
  %v198 = vunpack.c.l.b16 %v48
  %v199 = vunpack.c.l.b16 %v49
  %v200 = vunpack.c.l.b16 %v50
  %v201 = vunpack.c.l.b16 %v51
  %v202 = vunpack.c.l.b16 %v52
  %v203 = vunpack.c.l.b16 %v53
  %v204 = vunpack.c.l.b16 %v54
  %v205 = vunpack.c.l.b16 %v55
  %v206 = vunpack.c.l.b16 %v56
  %v207 = vunpack.c.l.b16 %v57
  %v208 = vunpack.c.l.b16 %v58
  %v209 = vunpack.c.l.b16 %v59
  %v210 = vunpack.c.l.b16 %v60
  %v211 = vunpack.c.l.b16 %v61
  %v212 = vunpack.c.l.b16 %v62
  %v213 = vunpack.c.l.b16 %v63
  %v214 = vunpack.c.l.b16 %v64
  %v215 = vunpack.c.l.b16 %v65
  %v216 = vunpack.c.l.b16 %v66
  %v217 = vunpack.c.l.b16 %v67
  %v218 = vunpack.c.l.b16 %v68
  %v219 = vunpack.c.l.b16 %v69
  %v220 = vunpack.c.l.b16 %v70
  %v221 = vunpack.c.l.b16 %v71
  %v222 = vunpack.c.l.b16 %v72
  %v223 = vunpack.c.l.b16 %v73
  %v224 = vunpack.c.l.b16 %v74
  %v225 = vunpack.c.l.b16 %v75
  %v226 = vunpack.c.l.b16 %v76
  %v227 = vunpack.c.l.b16 %v77
  %v228 = vunpack.c.l.b16 %v78
  %v229 = vunpack.c.l.b16 %v79
  %v230 = vunpack.c.l.b16 %v80
  %v231 = vunpack.c.l.b16 %v81
  %v232 = vunpack.c.l.b16 %v82
  %v233 = vunpack.c.l.b16 %v83
  %v234 = vunpack.c.l.b16 %v84
  %v235 = vunpack.c.l.b16 %v85
  %v236 = vunpack.c.l.b16 %v86
  %v237 = vunpack.c.l.b16 %v87
  %v238 = vunpack.c.l.b16 %v88
  %v239 = vunpack.c.l.b16 %v89
  %v240 = vunpack.c.l.b16 %v90
  %v241 = vpack.c.b16 %v178, %v177
  %v242 = vpack.c.b16 %v180, %v179
  %v243 = vpack.c.b16 %v182, %v181
  %v244 = vpack.c.b16 %v184, %v183
  %v245 = vpack.c.b16 %v186, %v185
  %v246 = vpack.c.b16 %v188, %v187
  %v247 = vpack.c.b16 %v190, %v189
  %v248 = vpack.c.b16 %v192, %v191
  %v249 = vpack.c.b16 %v194, %v193
  %v250 = vpack.c.b16 %v196, %v195
  %v251 = vpack.c.b16 %v198, %v197
  %v252 = vpack.c.b16 %v200, %v199
  %v253 = vpack.c.b16 %v202, %v201
  %v254 = vpack.c.b16 %v204, %v203
  %v255 = vpack.c.b16 %v206, %v205
  %v256 = vpack.c.b16 %v208, %v207
  %v257 = vpack.c.b16 %v210, %v209
  %v258 = vpack.c.b16 %v212, %v211
  %v259 = vpack.c.b16 %v214, %v213
  %v260 = vpack.c.b16 %v216, %v215
  %v261 = vpack.c.b16 %v218, %v217
  %v262 = vpack.c.b16 %v220, %v219
  %v263 = vpack.c.b16 %v222, %v221
  %v264 = vpack.c.b16 %v224, %v223
  %v265 = vpack.c.b16 %v226, %v225
  %v266 = vpack.c.b16 %v228, %v227
  %v267 = vpack.c.b16 %v230, %v229
  %v268 = vpack.c.b16 %v232, %v231
  %v269 = vpack.c.b16 %v234, %v233
  %v270 = vpack.c.b16 %v236, %v235
  %v271 = vpack.c.b16 %v238, %v237
  %v272 = vpack.c.b16 %v240, %v239
  %305 = vmatprep.subr.bf16.mxu0 0
  %306 = vmatpush1.bf16.xpose.msra.mxu0 %v241
  %307 = vmatprep.subr.bf16.mxu0 0
  %308 = vmatpush1.bf16.xpose.msra.mxu0 %v242
  %309 = vmatprep.subr.bf16.mxu0 0
  %310 = vmatpush1.bf16.xpose.msra.mxu0 %v243
  %311 = vmatprep.subr.bf16.mxu0 0
  %312 = vmatpush1.bf16.xpose.msra.mxu0 %v244
  %313 = vmatprep.subr.bf16.mxu0 0
  %314 = vmatpush1.bf16.xpose.msra.mxu0 %v245
  %315 = vmatprep.subr.bf16.mxu0 0
  %316 = vmatpush1.bf16.xpose.msra.mxu0 %v246
  %317 = vmatprep.subr.bf16.mxu0 0
  %318 = vmatpush1.bf16.xpose.msra.mxu0 %v247
  %319 = vmatprep.subr.bf16.mxu0 0
  %320 = vmatpush1.bf16.xpose.msra.mxu0 %v248
  %321 = vmatprep.subr.bf16.mxu0 0
  %322 = vmatpush1.bf16.xpose.msra.mxu0 %v249
  %323 = vmatprep.subr.bf16.mxu0 0
  %324 = vmatpush1.bf16.xpose.msra.mxu0 %v250
  %325 = vmatprep.subr.bf16.mxu0 0
  %326 = vmatpush1.bf16.xpose.msra.mxu0 %v251
  %327 = vmatprep.subr.bf16.mxu0 0
  %328 = vmatpush1.bf16.xpose.msra.mxu0 %v252
  %329 = vmatprep.subr.bf16.mxu0 0
  %330 = vmatpush1.bf16.xpose.msra.mxu0 %v253
  %331 = vmatprep.subr.bf16.mxu0 0
  %332 = vmatpush1.bf16.xpose.msra.mxu0 %v254
  %333 = vmatprep.subr.bf16.mxu0 0
  %334 = vmatpush1.bf16.xpose.msra.mxu0 %v255
  %335 = vmatprep.subr.bf16.mxu0 0
  %336 = vmatpush1.bf16.xpose.msra.mxu0 %v256
  %337 = vmatprep.mubr.bf16.mxu0 0
  %338 = vmatmul.mubr.bf16.gmra.mrb[0].mxu0 %v23
  %v339 = vpop.f32.mrb[0].mxu0
  %v340 = vadd.f32 %v96, %v339
  %v341 = vpop.f32.mrb[0].mxu0
  %v342 = vadd.f32 %v100, %v341
  %v343 = vpop.f32.mrb[0].mxu0
  %v344 = vadd.f32 %v96, %v343
  %v345 = vpop.f32.mrb[0].mxu0
  %v346 = vadd.f32 %v100, %v345
  %347 = vmatprep.mubr.bf16.mxu0 0
  %348 = vmatmul.mubr.bf16.gmra.mrb[0].mxu0 %v24
  %v349 = vpop.f32.mrb[0].mxu0
  %v350 = vadd.f32 %v96, %v349
  %v351 = vpop.f32.mrb[0].mxu0
  %v352 = vadd.f32 %v100, %v351
  %v353 = vpop.f32.mrb[0].mxu0
  %v354 = vadd.f32 %v96, %v353
  %v355 = vpop.f32.mrb[0].mxu0
  %v356 = vadd.f32 %v100, %v355
  %357 = vmatprep.mubr.bf16.mxu0 0
  %358 = vmatmul.mubr.bf16.gmra.mrb[0].mxu0 %v25
  %v359 = vpop.f32.mrb[0].mxu0
  %v360 = vadd.f32 %v96, %v359
  %v361 = vpop.f32.mrb[0].mxu0
  %v362 = vadd.f32 %v100, %v361
  %v363 = vpop.f32.mrb[0].mxu0
  %v364 = vadd.f32 %v96, %v363
  %v365 = vpop.f32.mrb[0].mxu0
  %v366 = vadd.f32 %v100, %v365
  %367 = vmatprep.mubr.bf16.mxu0 0
  %368 = vmatmul.mubr.bf16.gmra.mrb[0].mxu0 %v26
  %v369 = vpop.f32.mrb[0].mxu0
  %v370 = vadd.f32 %v96, %v369
  %v371 = vpop.f32.mrb[0].mxu0
  %v372 = vadd.f32 %v100, %v371
  %v373 = vpop.f32.mrb[0].mxu0
  %v374 = vadd.f32 %v96, %v373
  %v375 = vpop.f32.mrb[0].mxu0
  %v376 = vadd.f32 %v100, %v375
  %377 = vdwg.mxu0
  %378 = vmatprep.subr.bf16.mxu0 0
  %379 = vmatpush1.bf16.xpose.msra.mxu0 %v257
  %380 = vmatprep.subr.bf16.mxu0 0
  %381 = vmatpush1.bf16.xpose.msra.mxu0 %v258
  %382 = vmatprep.subr.bf16.mxu0 0
  %383 = vmatpush1.bf16.xpose.msra.mxu0 %v259
  %384 = vmatprep.subr.bf16.mxu0 0
  %385 = vmatpush1.bf16.xpose.msra.mxu0 %v260
  %386 = vmatprep.subr.bf16.mxu0 0
  %387 = vmatpush1.bf16.xpose.msra.mxu0 %v261
  %388 = vmatprep.subr.bf16.mxu0 0
  %389 = vmatpush1.bf16.xpose.msra.mxu0 %v262
  %390 = vmatprep.subr.bf16.mxu0 0
  %391 = vmatpush1.bf16.xpose.msra.mxu0 %v263
  %392 = vmatprep.subr.bf16.mxu0 0
  %393 = vmatpush1.bf16.xpose.msra.mxu0 %v264
  %394 = vmatprep.subr.bf16.mxu0 0
  %395 = vmatpush1.bf16.xpose.msra.mxu0 %v265
  %396 = vmatprep.subr.bf16.mxu0 0
  %397 = vmatpush1.bf16.xpose.msra.mxu0 %v266
  %398 = vmatprep.subr.bf16.mxu0 0
  %399 = vmatpush1.bf16.xpose.msra.mxu0 %v267
  %400 = vmatprep.subr.bf16.mxu0 0
  %401 = vmatpush1.bf16.xpose.msra.mxu0 %v268
  %402 = vmatprep.subr.bf16.mxu0 0
  %403 = vmatpush1.bf16.xpose.msra.mxu0 %v269
  %404 = vmatprep.subr.bf16.mxu0 0
  %405 = vmatpush1.bf16.xpose.msra.mxu0 %v270
  %406 = vmatprep.subr.bf16.mxu0 0
  %407 = vmatpush1.bf16.xpose.msra.mxu0 %v271
  %408 = vmatprep.subr.bf16.mxu0 0
  %409 = vmatpush1.bf16.xpose.msra.mxu0 %v272
  %410 = vmatprep.mubr.bf16.mxu0 0
  %411 = vmatmul.mubr.bf16.gmra.mrb[0].mxu0 %v23
  %v412 = vpop.f32.mrb[0].mxu0
  %v413 = vadd.f32 %v104, %v412
  %v414 = vpop.f32.mrb[0].mxu0
  %v415 = vadd.f32 %v108, %v414
  %v416 = vpop.f32.mrb[0].mxu0
  %v417 = vadd.f32 %v104, %v416
  %v418 = vpop.f32.mrb[0].mxu0
  %v419 = vadd.f32 %v108, %v418
  %420 = vmatprep.mubr.bf16.mxu0 0
  %421 = vmatmul.mubr.bf16.gmra.mrb[0].mxu0 %v24
  %v422 = vpop.f32.mrb[0].mxu0
  %v423 = vadd.f32 %v104, %v422
  %v424 = vpop.f32.mrb[0].mxu0
  %v425 = vadd.f32 %v108, %v424
  %v426 = vpop.f32.mrb[0].mxu0
  %v427 = vadd.f32 %v104, %v426
  %v428 = vpop.f32.mrb[0].mxu0
  %v429 = vadd.f32 %v108, %v428
  %430 = vmatprep.mubr.bf16.mxu0 0
  %431 = vmatmul.mubr.bf16.gmra.mrb[0].mxu0 %v25
  %v432 = vpop.f32.mrb[0].mxu0
  %v433 = vadd.f32 %v104, %v432
  %v434 = vpop.f32.mrb[0].mxu0
  %v435 = vadd.f32 %v108, %v434
  %v436 = vpop.f32.mrb[0].mxu0
  %v437 = vadd.f32 %v104, %v436
  %v438 = vpop.f32.mrb[0].mxu0
  %v439 = vadd.f32 %v108, %v438
  %440 = vmatprep.mubr.bf16.mxu0 0
  %441 = vmatmul.mubr.bf16.gmra.mrb[0].mxu0 %v26
  %v442 = vpop.f32.mrb[0].mxu0
  %v443 = vadd.f32 %v104, %v442
  %v444 = vpop.f32.mrb[0].mxu0
  %v445 = vadd.f32 %v108, %v444
  %v446 = vpop.f32.mrb[0].mxu0
  %v447 = vadd.f32 %v104, %v446
  %v448 = vpop.f32.mrb[0].mxu0
  %v449 = vadd.f32 %v108, %v448
  %450 = vdwg.mxu0
  %451 = vst [vmem:[%s3] sm:$0xff] %v340
  %452 = vst [vmem:[%s3 + $0x8] sm:$0xff] %v342
  %453 = vst [vmem:[%s3 + $0x10] sm:$0xff] %v413
  %454 = vst [vmem:[%s3 + $0x18] sm:$0xff] %v415
  %455 = vst [vmem:[%s3 + $0x20] sm:$0xff] %v344
  %456 = vst [vmem:[%s3 + $0x28] sm:$0xff] %v346
  %457 = vst [vmem:[%s3 + $0x30] sm:$0xff] %v417
  %458 = vst [vmem:[%s3 + $0x38] sm:$0xff] %v419
  %459 = vst [vmem:[%s3 + $0x40] sm:$0xff] %v350
  %460 = vst [vmem:[%s3 + $0x48] sm:$0xff] %v352
  %461 = vst [vmem:[%s3 + $0x50] sm:$0xff] %v423
  %462 = vst [vmem:[%s3 + $0x58] sm:$0xff] %v425
  %463 = vst [vmem:[%s3 + $0x60] sm:$0xff] %v354
  %464 = vst [vmem:[%s3 + $0x68] sm:$0xff] %v356
  %465 = vst [vmem:[%s3 + $0x70] sm:$0xff] %v427
  %466 = vst [vmem:[%s3 + $0x78] sm:$0xff] %v429
  %467 = vst [vmem:[%s3 + $0x80] sm:$0xff] %v360
  %468 = vst [vmem:[%s3 + $0x88] sm:$0xff] %v362
  %469 = vst [vmem:[%s3 + $0x90] sm:$0xff] %v433
  %470 = vst [vmem:[%s3 + $0x98] sm:$0xff] %v435
  %471 = vst [vmem:[%s3 + $0xa0] sm:$0xff] %v364
  %472 = vst [vmem:[%s3 + $0xa8] sm:$0xff] %v366
  %473 = vst [vmem:[%s3 + $0xb0] sm:$0xff] %v437
  %474 = vst [vmem:[%s3 + $0xb8] sm:$0xff] %v439
  %475 = vst [vmem:[%s3 + $0xc0] sm:$0xff] %v370
  %476 = vst [vmem:[%s3 + $0xc8] sm:$0xff] %v372
  %477 = vst [vmem:[%s3 + $0xd0] sm:$0xff] %v443
  %478 = vst [vmem:[%s3 + $0xd8] sm:$0xff] %v445
  %479 = vst [vmem:[%s3 + $0xe0] sm:$0xff] %v374
  %480 = vst [vmem:[%s3 + $0xe8] sm:$0xff] %v376
  %481 = vst [vmem:[%s3 + $0xf0] sm:$0xff] %v447
  %482 = vst [vmem:[%s3 + $0xf8] sm:$0xff] %v449
  // Predicated region
  $region14: #{rnn_model_forward.3} parent=0 // pred_check
    _
  $region15: #{rnn_model_forward.3} parent=0 // pred_check_branch
    %484 = sbr.rel (0) target = $region17
  $region16: #{rnn_model_forward.3} parent=0 // pred_region
    _
  $region17: #{rnn_model_forward.3} parent=0 // pred_fallthru
    _
  // Predicated region
  $region18: #{rnn_model_forward.3} parent=0 // pred_check
    _
  $region19: #{rnn_model_forward.3} parent=0 // pred_check_branch
    %486 = sbr.rel (0) target = $region21
  $region20: #{rnn_model_forward.3} parent=0 // pred_region
    _
  $region21: #{rnn_model_forward.3} parent=0 // pred_fallthru
    _

// kernel: rnn_model_forward.4
$region0: #{rnn_model_forward.4}
  #allocation0 [shape = 'u32[]', space=smem, size = 0x4, offset = 0x4, fixed_abs, tag = 'smem constant byte address 0x4 - core index']
  #allocation1 [shape = 'u32[144,128]{1,0:T(1,128)}', space=vmem, size = 0x12000, scoped, tag = 'internal scratch']
  #allocation2 [shape = 'f32[8,128]{1,0:T(8,128)}', space=vmem, size = 0x1000, scoped, tag = 'scratch operand']
  #allocation3 [shape = 'f32[8,128]{1,0:T(8,128)}', space=vmem, size = 0x1000, scoped, tag = 'scratch operand']
  #allocation4 [shape = 'f32[8,128]{1,0:T(8,128)}', space=vmem, size = 0x1000, scoped, tag = 'scratch operand']
  #allocation5 [shape = 'f32[8,128]{1,0:T(8,128)}', space=vmem, size = 0x1000, scoped, tag = 'scratch operand']
  #allocation6 [shape = 'f32[8,128]{1,0:T(8,128)}', space=vmem, size = 0x1000, scoped, tag = 'scratch operand']
  #allocation7 [shape = 'f32[8,128]{1,0:T(8,128)}', space=vmem, size = 0x1000, scoped, tag = 'scratch operand']
  %s0 = inlined_call_operand.vmem [shape: f32[8,8,512], index: 0, kind: input, shape index: {}]
  %s1 = inlined_call_operand.vmem [shape: bf16[512,128], index: 1, kind: input, shape index: {}]
  %s2 = inlined_call_operand.vmem [shape: bf16[512,256], index: 2, kind: input, shape index: {}]
  %s3 = inlined_call_operand.vmem [shape: f32[1,512], index: 3, kind: input, shape index: {}]
  %s4 = inlined_call_operand.vmem [shape: bf16[512,256], index: 4, kind: input, shape index: {}]
  %s5 = inlined_call_operand.vmem [shape: f32[1,512], index: 5, kind: input, shape index: {}]
  %s6 = inlined_call_operand.vmem [shape: f32[8,8,128], index: 6, kind: output, shape index: {}]
  %s7 = sld [smem:[#allocation0]]
  $region38: #{rnn_model_forward.4} parent=0
    _
  %s9 = ssub.s32 1, %s7
  %s10 = scalar_select 0, %s9, %s7
  // Predicated region
  $region2: #{rnn_model_forward.4} parent=0 // pred_check
    _
  $region3: #{rnn_model_forward.4} parent=0 // pred_check_branch
    %12 = sbr.rel (0) target = $region5
  $region4: #{rnn_model_forward.4} parent=0 // pred_region
    _
  $region5: #{rnn_model_forward.4} parent=0 // pred_fallthru
    _
  // Predicated region
  $region6: #{rnn_model_forward.4} parent=0 // pred_check
    _
  $region7: #{rnn_model_forward.4} parent=0 // pred_check_branch
    %14 = sbr.rel (0) target = $region9
  $region8: #{rnn_model_forward.4} parent=0 // pred_region
    _
  $region9: #{rnn_model_forward.4} parent=0 // pred_fallthru
    _
  // Predicated region
  $region10: #{rnn_model_forward.4} parent=0 // pred_check
    _
  $region11: #{rnn_model_forward.4} parent=0 // pred_check_branch
    %16 = sbr.rel (0) target = $region13
  $region12: #{rnn_model_forward.4} parent=0 // pred_region
    _
  $region13: #{rnn_model_forward.4} parent=0 // pred_fallthru
    _
  // Predicated region
  $region14: #{rnn_model_forward.4} parent=0 // pred_check
    _
  $region15: #{rnn_model_forward.4} parent=0 // pred_check_branch
    %18 = sbr.rel (0) target = $region17
  $region16: #{rnn_model_forward.4} parent=0 // pred_region
    _
  $region17: #{rnn_model_forward.4} parent=0 // pred_fallthru
    _
  // Predicated region
  $region18: #{rnn_model_forward.4} parent=0 // pred_check
    _
  $region19: #{rnn_model_forward.4} parent=0 // pred_check_branch
    %20 = sbr.rel (0) target = $region21
  $region20: #{rnn_model_forward.4} parent=0 // pred_region
    _
  $region21: #{rnn_model_forward.4} parent=0 // pred_fallthru
    _
  // Predicated region
  $region22: #{rnn_model_forward.4} parent=0 // pred_check
    _
  $region23: #{rnn_model_forward.4} parent=0 // pred_check_branch
    %22 = sbr.rel (0) target = $region25
  $region24: #{rnn_model_forward.4} parent=0 // pred_region
    _
  $region25: #{rnn_model_forward.4} parent=0 // pred_fallthru
    _
  %p24 = scmp.eq.s32.totalorder 0, 0
  // Predicated region
  $region26: #{rnn_model_forward.4} parent=0 // pred_check
    %p25 = pneg %p24
  $region27: #{rnn_model_forward.4} parent=0 // pred_check_branch
    %27 = sbr.rel (%p25) target = $region29
  $region28: #{rnn_model_forward.4} parent=0 // pred_region
    %28 = vst [vmem:[#allocation2] sm:$0xff] 0.0
    %29 = vst [vmem:[#allocation3] sm:$0xff] 0.0
    %30 = vst [vmem:[#allocation4] sm:$0xff] 0.0
    %31 = vst [vmem:[#allocation5] sm:$0xff] 0.0
    %32 = vst [vmem:[#allocation6] sm:$0xff] 0.0
    %33 = vst [vmem:[#allocation7] sm:$0xff] 0.0
  $region29: #{rnn_model_forward.4} parent=0 // pred_fallthru
    _
  %v34 = vld [vmem:[%s0] sm:$0xff]
  %v35 = vld [vmem:[%s0 + $0x8] sm:$0xff]
  %v36 = vld [vmem:[%s0 + $0x10] sm:$0xff]
  %v37 = vld [vmem:[%s0 + $0x18] sm:$0xff]
  %v38 = vld [vmem:[#allocation2] sm:$0xff]
  %v39 = vpack.c.bf16 %v38, %v38
  %v40 = vld [vmem:[%s1] sm:$0xf]
  %v41 = vld [vmem:[%s1 + $0x4] sm:$0xf]
  %v42 = vld [vmem:[%s1 + $0x8] sm:$0xf]
  %v43 = vld [vmem:[%s1 + $0xc] sm:$0xf]
  %v44 = vld [vmem:[%s1 + $0x10] sm:$0xf]
  %v45 = vld [vmem:[%s1 + $0x14] sm:$0xf]
  %v46 = vld [vmem:[%s1 + $0x18] sm:$0xf]
  %v47 = vld [vmem:[%s1 + $0x1c] sm:$0xf]
  %v48 = vld [vmem:[%s1 + $0x20] sm:$0xf]
  %v49 = vld [vmem:[%s1 + $0x24] sm:$0xf]
  %v50 = vld [vmem:[%s1 + $0x28] sm:$0xf]
  %v51 = vld [vmem:[%s1 + $0x2c] sm:$0xf]
  %v52 = vld [vmem:[%s1 + $0x30] sm:$0xf]
  %v53 = vld [vmem:[%s1 + $0x34] sm:$0xf]
  %v54 = vld [vmem:[%s1 + $0x38] sm:$0xf]
  %v55 = vld [vmem:[%s1 + $0x3c] sm:$0xf]
  %v56 = vld [vmem:[%s1 + $0x40] sm:$0xf]
  %v57 = vld [vmem:[%s1 + $0x44] sm:$0xf]
  %v58 = vld [vmem:[%s1 + $0x48] sm:$0xf]
  %v59 = vld [vmem:[%s1 + $0x4c] sm:$0xf]
  %v60 = vld [vmem:[%s1 + $0x50] sm:$0xf]
  %v61 = vld [vmem:[%s1 + $0x54] sm:$0xf]
  %v62 = vld [vmem:[%s1 + $0x58] sm:$0xf]
  %v63 = vld [vmem:[%s1 + $0x5c] sm:$0xf]
  %v64 = vld [vmem:[%s1 + $0x60] sm:$0xf]
  %v65 = vld [vmem:[%s1 + $0x64] sm:$0xf]
  %v66 = vld [vmem:[%s1 + $0x68] sm:$0xf]
  %v67 = vld [vmem:[%s1 + $0x6c] sm:$0xf]
  %v68 = vld [vmem:[%s1 + $0x70] sm:$0xf]
  %v69 = vld [vmem:[%s1 + $0x74] sm:$0xf]
  %v70 = vld [vmem:[%s1 + $0x78] sm:$0xf]
  %v71 = vld [vmem:[%s1 + $0x7c] sm:$0xf]
  %v72 = vld [vmem:[%s1 + $0x80] sm:$0xf]
  %v73 = vld [vmem:[%s1 + $0x84] sm:$0xf]
  %v74 = vld [vmem:[%s1 + $0x88] sm:$0xf]
  %v75 = vld [vmem:[%s1 + $0x8c] sm:$0xf]
  %v76 = vld [vmem:[%s1 + $0x90] sm:$0xf]
  %v77 = vld [vmem:[%s1 + $0x94] sm:$0xf]
  %v78 = vld [vmem:[%s1 + $0x98] sm:$0xf]
  %v79 = vld [vmem:[%s1 + $0x9c] sm:$0xf]
  %v80 = vld [vmem:[%s1 + $0xa0] sm:$0xf]
  %v81 = vld [vmem:[%s1 + $0xa4] sm:$0xf]
  %v82 = vld [vmem:[%s1 + $0xa8] sm:$0xf]
  %v83 = vld [vmem:[%s1 + $0xac] sm:$0xf]
  %v84 = vld [vmem:[%s1 + $0xb0] sm:$0xf]
  %v85 = vld [vmem:[%s1 + $0xb4] sm:$0xf]
  %v86 = vld [vmem:[%s1 + $0xb8] sm:$0xf]
  %v87 = vld [vmem:[%s1 + $0xbc] sm:$0xf]
  %v88 = vld [vmem:[%s1 + $0xc0] sm:$0xf]
  %v89 = vld [vmem:[%s1 + $0xc4] sm:$0xf]
  %v90 = vld [vmem:[%s1 + $0xc8] sm:$0xf]
  %v91 = vld [vmem:[%s1 + $0xcc] sm:$0xf]
  %v92 = vld [vmem:[%s1 + $0xd0] sm:$0xf]
  %v93 = vld [vmem:[%s1 + $0xd4] sm:$0xf]
  %v94 = vld [vmem:[%s1 + $0xd8] sm:$0xf]
  %v95 = vld [vmem:[%s1 + $0xdc] sm:$0xf]
  %v96 = vld [vmem:[%s1 + $0xe0] sm:$0xf]
  %v97 = vld [vmem:[%s1 + $0xe4] sm:$0xf]
  %v98 = vld [vmem:[%s1 + $0xe8] sm:$0xf]
  %v99 = vld [vmem:[%s1 + $0xec] sm:$0xf]
  %v100 = vld [vmem:[%s1 + $0xf0] sm:$0xf]
  %v101 = vld [vmem:[%s1 + $0xf4] sm:$0xf]
  %v102 = vld [vmem:[%s1 + $0xf8] sm:$0xf]
  %v103 = vld [vmem:[%s1 + $0xfc] sm:$0xf]
  %v168 = vunpack.c.l.b16 %v40
  %v169 = vunpack.c.l.b16 %v41
  %v170 = vunpack.c.l.b16 %v42
  %v171 = vunpack.c.l.b16 %v43
  %v172 = vunpack.c.l.b16 %v44
  %v173 = vunpack.c.l.b16 %v45
  %v174 = vunpack.c.l.b16 %v46
  %v175 = vunpack.c.l.b16 %v47
  %v176 = vunpack.c.l.b16 %v48
  %v177 = vunpack.c.l.b16 %v49
  %v178 = vunpack.c.l.b16 %v50
  %v179 = vunpack.c.l.b16 %v51
  %v180 = vunpack.c.l.b16 %v52
  %v181 = vunpack.c.l.b16 %v53
  %v182 = vunpack.c.l.b16 %v54
  %v183 = vunpack.c.l.b16 %v55
  %v184 = vunpack.c.l.b16 %v56
  %v185 = vunpack.c.l.b16 %v57
  %v186 = vunpack.c.l.b16 %v58
  %v187 = vunpack.c.l.b16 %v59
  %v188 = vunpack.c.l.b16 %v60
  %v189 = vunpack.c.l.b16 %v61
  %v190 = vunpack.c.l.b16 %v62
  %v191 = vunpack.c.l.b16 %v63
  %v192 = vunpack.c.l.b16 %v64
  %v193 = vunpack.c.l.b16 %v65
  %v194 = vunpack.c.l.b16 %v66
  %v195 = vunpack.c.l.b16 %v67
  %v196 = vunpack.c.l.b16 %v68
  %v197 = vunpack.c.l.b16 %v69
  %v198 = vunpack.c.l.b16 %v70
  %v199 = vunpack.c.l.b16 %v71
  %v200 = vunpack.c.l.b16 %v72
  %v201 = vunpack.c.l.b16 %v73
  %v202 = vunpack.c.l.b16 %v74
  %v203 = vunpack.c.l.b16 %v75
  %v204 = vunpack.c.l.b16 %v76
  %v205 = vunpack.c.l.b16 %v77
  %v206 = vunpack.c.l.b16 %v78
  %v207 = vunpack.c.l.b16 %v79
  %v208 = vunpack.c.l.b16 %v80
  %v209 = vunpack.c.l.b16 %v81
  %v210 = vunpack.c.l.b16 %v82
  %v211 = vunpack.c.l.b16 %v83
  %v212 = vunpack.c.l.b16 %v84
  %v213 = vunpack.c.l.b16 %v85
  %v214 = vunpack.c.l.b16 %v86
  %v215 = vunpack.c.l.b16 %v87
  %v216 = vunpack.c.l.b16 %v88
  %v217 = vunpack.c.l.b16 %v89
  %v218 = vunpack.c.l.b16 %v90
  %v219 = vunpack.c.l.b16 %v91
  %v220 = vunpack.c.l.b16 %v92
  %v221 = vunpack.c.l.b16 %v93
  %v222 = vunpack.c.l.b16 %v94
  %v223 = vunpack.c.l.b16 %v95
  %v224 = vunpack.c.l.b16 %v96
  %v225 = vunpack.c.l.b16 %v97
  %v226 = vunpack.c.l.b16 %v98
  %v227 = vunpack.c.l.b16 %v99
  %v228 = vunpack.c.l.b16 %v100
  %v229 = vunpack.c.l.b16 %v101
  %v230 = vunpack.c.l.b16 %v102
  %v231 = vunpack.c.l.b16 %v103
  %v232 = vpack.c.b16 %v169, %v168
  %v233 = vpack.c.b16 %v171, %v170
  %v234 = vpack.c.b16 %v173, %v172
  %v235 = vpack.c.b16 %v175, %v174
  %v236 = vpack.c.b16 %v177, %v176
  %v237 = vpack.c.b16 %v179, %v178
  %v238 = vpack.c.b16 %v181, %v180
  %v239 = vpack.c.b16 %v183, %v182
  %v240 = vpack.c.b16 %v185, %v184
  %v241 = vpack.c.b16 %v187, %v186
  %v242 = vpack.c.b16 %v189, %v188
  %v243 = vpack.c.b16 %v191, %v190
  %v244 = vpack.c.b16 %v193, %v192
  %v245 = vpack.c.b16 %v195, %v194
  %v246 = vpack.c.b16 %v197, %v196
  %v247 = vpack.c.b16 %v199, %v198
  %v248 = vpack.c.b16 %v201, %v200
  %v249 = vpack.c.b16 %v203, %v202
  %v250 = vpack.c.b16 %v205, %v204
  %v251 = vpack.c.b16 %v207, %v206
  %v252 = vpack.c.b16 %v209, %v208
  %v253 = vpack.c.b16 %v211, %v210
  %v254 = vpack.c.b16 %v213, %v212
  %v255 = vpack.c.b16 %v215, %v214
  %v256 = vpack.c.b16 %v217, %v216
  %v257 = vpack.c.b16 %v219, %v218
  %v258 = vpack.c.b16 %v221, %v220
  %v259 = vpack.c.b16 %v223, %v222
  %v260 = vpack.c.b16 %v225, %v224
  %v261 = vpack.c.b16 %v227, %v226
  %v262 = vpack.c.b16 %v229, %v228
  %v263 = vpack.c.b16 %v231, %v230
  %296 = vmatprep.subr.bf16.mxu0 0
  %297 = vmatpush1.bf16.xpose.msra.mxu0 %v232
  %298 = vmatprep.subr.bf16.mxu0 0
  %299 = vmatpush1.bf16.xpose.msra.mxu0 %v233
  %300 = vmatprep.subr.bf16.mxu0 0
  %301 = vmatpush1.bf16.xpose.msra.mxu0 %v234
  %302 = vmatprep.subr.bf16.mxu0 0
  %303 = vmatpush1.bf16.xpose.msra.mxu0 %v235
  %304 = vmatprep.subr.bf16.mxu0 0
  %305 = vmatpush1.bf16.xpose.msra.mxu0 %v236
  %306 = vmatprep.subr.bf16.mxu0 0
  %307 = vmatpush1.bf16.xpose.msra.mxu0 %v237
  %308 = vmatprep.subr.bf16.mxu0 0
  %309 = vmatpush1.bf16.xpose.msra.mxu0 %v238
  %310 = vmatprep.subr.bf16.mxu0 0
  %311 = vmatpush1.bf16.xpose.msra.mxu0 %v239
  %312 = vmatprep.subr.bf16.mxu0 0
  %313 = vmatpush1.bf16.xpose.msra.mxu0 %v240
  %314 = vmatprep.subr.bf16.mxu0 0
  %315 = vmatpush1.bf16.xpose.msra.mxu0 %v241
  %316 = vmatprep.subr.bf16.mxu0 0
  %317 = vmatpush1.bf16.xpose.msra.mxu0 %v242
  %318 = vmatprep.subr.bf16.mxu0 0
  %319 = vmatpush1.bf16.xpose.msra.mxu0 %v243
  %320 = vmatprep.subr.bf16.mxu0 0
  %321 = vmatpush1.bf16.xpose.msra.mxu0 %v244
  %322 = vmatprep.subr.bf16.mxu0 0
  %323 = vmatpush1.bf16.xpose.msra.mxu0 %v245
  %324 = vmatprep.subr.bf16.mxu0 0
  %325 = vmatpush1.bf16.xpose.msra.mxu0 %v246
  %326 = vmatprep.subr.bf16.mxu0 0
  %327 = vmatpush1.bf16.xpose.msra.mxu0 %v247
  %328 = vmatprep.mubr.bf16.mxu0 0
  %329 = vmatmul.mubr.bf16.gmra.mrb[0].mxu0 %v39
  %v330 = vpop.f32.mrb[0].mxu0
  %v331 = vadd.f32 0.0, %v330
  %v332 = vpop.f32.mrb[0].mxu0
  %v333 = vadd.f32 0.0, %v332
  %v334 = vpop.f32.mrb[0].mxu0
  %v335 = vpop.f32.mrb[0].mxu0
  %336 = vdwg.mxu0
  %337 = vmatprep.subr.bf16.mxu0 0
  %338 = vmatpush1.bf16.xpose.msra.mxu0 %v248
  %339 = vmatprep.subr.bf16.mxu0 0
  %340 = vmatpush1.bf16.xpose.msra.mxu0 %v249
  %341 = vmatprep.subr.bf16.mxu0 0
  %342 = vmatpush1.bf16.xpose.msra.mxu0 %v250
  %343 = vmatprep.subr.bf16.mxu0 0
  %344 = vmatpush1.bf16.xpose.msra.mxu0 %v251
  %345 = vmatprep.subr.bf16.mxu0 0
  %346 = vmatpush1.bf16.xpose.msra.mxu0 %v252
  %347 = vmatprep.subr.bf16.mxu0 0
  %348 = vmatpush1.bf16.xpose.msra.mxu0 %v253
  %349 = vmatprep.subr.bf16.mxu0 0
  %350 = vmatpush1.bf16.xpose.msra.mxu0 %v254
  %351 = vmatprep.subr.bf16.mxu0 0
  %352 = vmatpush1.bf16.xpose.msra.mxu0 %v255
  %353 = vmatprep.subr.bf16.mxu0 0
  %354 = vmatpush1.bf16.xpose.msra.mxu0 %v256
  %355 = vmatprep.subr.bf16.mxu0 0
  %356 = vmatpush1.bf16.xpose.msra.mxu0 %v257
  %357 = vmatprep.subr.bf16.mxu0 0
  %358 = vmatpush1.bf16.xpose.msra.mxu0 %v258
  %359 = vmatprep.subr.bf16.mxu0 0
  %360 = vmatpush1.bf16.xpose.msra.mxu0 %v259
  %361 = vmatprep.subr.bf16.mxu0 0
  %362 = vmatpush1.bf16.xpose.msra.mxu0 %v260
  %363 = vmatprep.subr.bf16.mxu0 0
  %364 = vmatpush1.bf16.xpose.msra.mxu0 %v261
  %365 = vmatprep.subr.bf16.mxu0 0
  %366 = vmatpush1.bf16.xpose.msra.mxu0 %v262
  %367 = vmatprep.subr.bf16.mxu0 0
  %368 = vmatpush1.bf16.xpose.msra.mxu0 %v263
  %369 = vmatprep.mubr.bf16.mxu0 0
  %370 = vmatmul.mubr.bf16.gmra.mrb[0].mxu0 %v39
  %v371 = vpop.f32.mrb[0].mxu0
  %v372 = vadd.f32 0.0, %v371
  %v373 = vpop.f32.mrb[0].mxu0
  %v374 = vadd.f32 0.0, %v373
  %v375 = vpop.f32.mrb[0].mxu0
  %v376 = vpop.f32.mrb[0].mxu0
  %377 = vdwg.mxu0
  %v378 = vadd.f32 %v34, %v331
  %v379 = vadd.f32 %v35, %v333
  %v380 = vadd.f32 %v36, %v372
  %v381 = vadd.f32 %v37, %v374
  %v382 = vld [vmem:[#allocation3] sm:$0xff]
  %v383 = vxor.u32 %v378, 2147483648
  %v384 = vmul.f32 %v383, 1.442695
  %v385 = vpow.pop %v384
  %v386 = vadd.f32 %v385, 1.0
  %v387 = vrcp.pop %v386
  %v388 = vmul.f32 1.0, %v387
  %v389 = vxor.u32 %v379, 2147483648
  %v390 = vmul.f32 %v389, 1.442695
  %v391 = vpow.pop %v390
  %v392 = vadd.f32 %v391, 1.0
  %v393 = vrcp.pop %v392
  %v394 = vmul.f32 1.0, %v393
  %v395 = vtanh.pop %v380
  %v396 = vxor.u32 %v381, 2147483648
  %v397 = vmul.f32 %v396, 1.442695
  %v398 = vpow.pop %v397
  %v399 = vadd.f32 %v398, 1.0
  %v400 = vrcp.pop %v399
  %v401 = vmul.f32 1.0, %v400
  %v402 = vmul.f32 %v394, %v382
  %v403 = vmul.f32 %v388, %v395
  %v404 = vadd.f32 %v402, %v403
  %v405 = vtanh.pop %v404
  %v406 = vmul.f32 %v401, %v405
  %407 = vst [vmem:[#allocation2] sm:$0xff] %v406
  %408 = vst [vmem:[#allocation3] sm:$0xff] %v404
  %v409 = vld [vmem:[#allocation4] sm:$0xff]
  %v410 = vpack.c.bf16 %v406, %v406
  %v411 = vpack.c.bf16 %v409, %v409
  %v412 = vld [vmem:[%s2] sm:$0xff]
  %v413 = vld [vmem:[%s2 + $0x8] sm:$0xff]
  %v414 = vld [vmem:[%s2 + $0x10] sm:$0xff]
  %v415 = vld [vmem:[%s2 + $0x18] sm:$0xff]
  %v416 = vld [vmem:[%s2 + $0x20] sm:$0xff]
  %v417 = vld [vmem:[%s2 + $0x28] sm:$0xff]
  %v418 = vld [vmem:[%s2 + $0x30] sm:$0xff]
  %v419 = vld [vmem:[%s2 + $0x38] sm:$0xff]
  %v420 = vld [vmem:[%s2 + $0x40] sm:$0xff]
  %v421 = vld [vmem:[%s2 + $0x48] sm:$0xff]
  %v422 = vld [vmem:[%s2 + $0x50] sm:$0xff]
  %v423 = vld [vmem:[%s2 + $0x58] sm:$0xff]
  %v424 = vld [vmem:[%s2 + $0x60] sm:$0xff]
  %v425 = vld [vmem:[%s2 + $0x68] sm:$0xff]
  %v426 = vld [vmem:[%s2 + $0x70] sm:$0xff]
  %v427 = vld [vmem:[%s2 + $0x78] sm:$0xff]
  %v428 = vld [vmem:[%s2 + $0x80] sm:$0xff]
  %v429 = vld [vmem:[%s2 + $0x88] sm:$0xff]
  %v430 = vld [vmem:[%s2 + $0x90] sm:$0xff]
  %v431 = vld [vmem:[%s2 + $0x98] sm:$0xff]
  %v432 = vld [vmem:[%s2 + $0xa0] sm:$0xff]
  %v433 = vld [vmem:[%s2 + $0xa8] sm:$0xff]
  %v434 = vld [vmem:[%s2 + $0xb0] sm:$0xff]
  %v435 = vld [vmem:[%s2 + $0xb8] sm:$0xff]
  %v436 = vld [vmem:[%s2 + $0xc0] sm:$0xff]
  %v437 = vld [vmem:[%s2 + $0xc8] sm:$0xff]
  %v438 = vld [vmem:[%s2 + $0xd0] sm:$0xff]
  %v439 = vld [vmem:[%s2 + $0xd8] sm:$0xff]
  %v440 = vld [vmem:[%s2 + $0xe0] sm:$0xff]
  %v441 = vld [vmem:[%s2 + $0xe8] sm:$0xff]
  %v442 = vld [vmem:[%s2 + $0xf0] sm:$0xff]
  %v443 = vld [vmem:[%s2 + $0xf8] sm:$0xff]
  %v444 = vld [vmem:[%s2 + $0x100] sm:$0xff]
  %v445 = vld [vmem:[%s2 + $0x108] sm:$0xff]
  %v446 = vld [vmem:[%s2 + $0x110] sm:$0xff]
  %v447 = vld [vmem:[%s2 + $0x118] sm:$0xff]
  %v448 = vld [vmem:[%s2 + $0x120] sm:$0xff]
  %v449 = vld [vmem:[%s2 + $0x128] sm:$0xff]
  %v450 = vld [vmem:[%s2 + $0x130] sm:$0xff]
  %v451 = vld [vmem:[%s2 + $0x138] sm:$0xff]
  %v452 = vld [vmem:[%s2 + $0x140] sm:$0xff]
  %v453 = vld [vmem:[%s2 + $0x148] sm:$0xff]
  %v454 = vld [vmem:[%s2 + $0x150] sm:$0xff]
  %v455 = vld [vmem:[%s2 + $0x158] sm:$0xff]
  %v456 = vld [vmem:[%s2 + $0x160] sm:$0xff]
  %v457 = vld [vmem:[%s2 + $0x168] sm:$0xff]
  %v458 = vld [vmem:[%s2 + $0x170] sm:$0xff]
  %v459 = vld [vmem:[%s2 + $0x178] sm:$0xff]
  %v460 = vld [vmem:[%s2 + $0x180] sm:$0xff]
  %v461 = vld [vmem:[%s2 + $0x188] sm:$0xff]
  %v462 = vld [vmem:[%s2 + $0x190] sm:$0xff]
  %v463 = vld [vmem:[%s2 + $0x198] sm:$0xff]
  %v464 = vld [vmem:[%s2 + $0x1a0] sm:$0xff]
  %v465 = vld [vmem:[%s2 + $0x1a8] sm:$0xff]
  %v466 = vld [vmem:[%s2 + $0x1b0] sm:$0xff]
  %v467 = vld [vmem:[%s2 + $0x1b8] sm:$0xff]
  %v468 = vld [vmem:[%s2 + $0x1c0] sm:$0xff]
  %v469 = vld [vmem:[%s2 + $0x1c8] sm:$0xff]
  %v470 = vld [vmem:[%s2 + $0x1d0] sm:$0xff]
  %v471 = vld [vmem:[%s2 + $0x1d8] sm:$0xff]
  %v472 = vld [vmem:[%s2 + $0x1e0] sm:$0xff]
  %v473 = vld [vmem:[%s2 + $0x1e8] sm:$0xff]
  %v474 = vld [vmem:[%s2 + $0x1f0] sm:$0xff]
  %v475 = vld [vmem:[%s2 + $0x1f8] sm:$0xff]
  %v476 = vld [vmem:[%s3] sm:$0xf]
  %v478 = vlaneseq
  %v479 = vshrl.u32 %v478, 7
  %v480 = vsub.s32 0, %v479
  %v481 = vrot.slane %v476, %v480
  %v482 = vlaneseq
  %v483 = vshrl.u32 %v482, 7
  %v484 = vsub.s32 1, %v483
  %v485 = vrot.slane %v476, %v484
  %v486 = vlaneseq
  %v487 = vshrl.u32 %v486, 7
  %v488 = vsub.s32 2, %v487
  %v489 = vrot.slane %v476, %v488
  %v490 = vlaneseq
  %v491 = vshrl.u32 %v490, 7
  %v492 = vsub.s32 3, %v491
  %v493 = vrot.slane %v476, %v492
  %v562 = vunpack.c.l.b16 %v412
  %v563 = vunpack.c.h.b16 %v412
  %v564 = vunpack.c.l.b16 %v413
  %v565 = vunpack.c.h.b16 %v413
  %v566 = vunpack.c.l.b16 %v414
  %v567 = vunpack.c.h.b16 %v414
  %v568 = vunpack.c.l.b16 %v415
  %v569 = vunpack.c.h.b16 %v415
  %v570 = vunpack.c.l.b16 %v416
  %v571 = vunpack.c.h.b16 %v416
  %v572 = vunpack.c.l.b16 %v417
  %v573 = vunpack.c.h.b16 %v417
  %v574 = vunpack.c.l.b16 %v418
  %v575 = vunpack.c.h.b16 %v418
  %v576 = vunpack.c.l.b16 %v419
  %v577 = vunpack.c.h.b16 %v419
  %v578 = vunpack.c.l.b16 %v420
  %v579 = vunpack.c.h.b16 %v420
  %v580 = vunpack.c.l.b16 %v421
  %v581 = vunpack.c.h.b16 %v421
  %v582 = vunpack.c.l.b16 %v422
  %v583 = vunpack.c.h.b16 %v422
  %v584 = vunpack.c.l.b16 %v423
  %v585 = vunpack.c.h.b16 %v423
  %v586 = vunpack.c.l.b16 %v424
  %v587 = vunpack.c.h.b16 %v424
  %v588 = vunpack.c.l.b16 %v425
  %v589 = vunpack.c.h.b16 %v425
  %v590 = vunpack.c.l.b16 %v426
  %v591 = vunpack.c.h.b16 %v426
  %v592 = vunpack.c.l.b16 %v427
  %v593 = vunpack.c.h.b16 %v427
  %v594 = vunpack.c.l.b16 %v428
  %v595 = vunpack.c.h.b16 %v428
  %v596 = vunpack.c.l.b16 %v429
  %v597 = vunpack.c.h.b16 %v429
  %v598 = vunpack.c.l.b16 %v430
  %v599 = vunpack.c.h.b16 %v430
  %v600 = vunpack.c.l.b16 %v431
  %v601 = vunpack.c.h.b16 %v431
  %v602 = vunpack.c.l.b16 %v432
  %v603 = vunpack.c.h.b16 %v432
  %v604 = vunpack.c.l.b16 %v433
  %v605 = vunpack.c.h.b16 %v433
  %v606 = vunpack.c.l.b16 %v434
  %v607 = vunpack.c.h.b16 %v434
  %v608 = vunpack.c.l.b16 %v435
  %v609 = vunpack.c.h.b16 %v435
  %v610 = vunpack.c.l.b16 %v436
  %v611 = vunpack.c.h.b16 %v436
  %v612 = vunpack.c.l.b16 %v437
  %v613 = vunpack.c.h.b16 %v437
  %v614 = vunpack.c.l.b16 %v438
  %v615 = vunpack.c.h.b16 %v438
  %v616 = vunpack.c.l.b16 %v439
  %v617 = vunpack.c.h.b16 %v439
  %v618 = vunpack.c.l.b16 %v440
  %v619 = vunpack.c.h.b16 %v440
  %v620 = vunpack.c.l.b16 %v441
  %v621 = vunpack.c.h.b16 %v441
  %v622 = vunpack.c.l.b16 %v442
  %v623 = vunpack.c.h.b16 %v442
  %v624 = vunpack.c.l.b16 %v443
  %v625 = vunpack.c.h.b16 %v443
  %v626 = vunpack.c.l.b16 %v444
  %v627 = vunpack.c.h.b16 %v444
  %v628 = vunpack.c.l.b16 %v445
  %v629 = vunpack.c.h.b16 %v445
  %v630 = vunpack.c.l.b16 %v446
  %v631 = vunpack.c.h.b16 %v446
  %v632 = vunpack.c.l.b16 %v447
  %v633 = vunpack.c.h.b16 %v447
  %v634 = vunpack.c.l.b16 %v448
  %v635 = vunpack.c.h.b16 %v448
  %v636 = vunpack.c.l.b16 %v449
  %v637 = vunpack.c.h.b16 %v449
  %v638 = vunpack.c.l.b16 %v450
  %v639 = vunpack.c.h.b16 %v450
  %v640 = vunpack.c.l.b16 %v451
  %v641 = vunpack.c.h.b16 %v451
  %v642 = vunpack.c.l.b16 %v452
  %v643 = vunpack.c.h.b16 %v452
  %v644 = vunpack.c.l.b16 %v453
  %v645 = vunpack.c.h.b16 %v453
  %v646 = vunpack.c.l.b16 %v454
  %v647 = vunpack.c.h.b16 %v454
  %v648 = vunpack.c.l.b16 %v455
  %v649 = vunpack.c.h.b16 %v455
  %v650 = vunpack.c.l.b16 %v456
  %v651 = vunpack.c.h.b16 %v456
  %v652 = vunpack.c.l.b16 %v457
  %v653 = vunpack.c.h.b16 %v457
  %v654 = vunpack.c.l.b16 %v458
  %v655 = vunpack.c.h.b16 %v458
  %v656 = vunpack.c.l.b16 %v459
  %v657 = vunpack.c.h.b16 %v459
  %v658 = vunpack.c.l.b16 %v460
  %v659 = vunpack.c.h.b16 %v460
  %v660 = vunpack.c.l.b16 %v461
  %v661 = vunpack.c.h.b16 %v461
  %v662 = vunpack.c.l.b16 %v462
  %v663 = vunpack.c.h.b16 %v462
  %v664 = vunpack.c.l.b16 %v463
  %v665 = vunpack.c.h.b16 %v463
  %v666 = vunpack.c.l.b16 %v464
  %v667 = vunpack.c.h.b16 %v464
  %v668 = vunpack.c.l.b16 %v465
  %v669 = vunpack.c.h.b16 %v465
  %v670 = vunpack.c.l.b16 %v466
  %v671 = vunpack.c.h.b16 %v466
  %v672 = vunpack.c.l.b16 %v467
  %v673 = vunpack.c.h.b16 %v467
  %v674 = vunpack.c.l.b16 %v468
  %v675 = vunpack.c.h.b16 %v468
  %v676 = vunpack.c.l.b16 %v469
  %v677 = vunpack.c.h.b16 %v469
  %v678 = vunpack.c.l.b16 %v470
  %v679 = vunpack.c.h.b16 %v470
  %v680 = vunpack.c.l.b16 %v471
  %v681 = vunpack.c.h.b16 %v471
  %v682 = vunpack.c.l.b16 %v472
  %v683 = vunpack.c.h.b16 %v472
  %v684 = vunpack.c.l.b16 %v473
  %v685 = vunpack.c.h.b16 %v473
  %v686 = vunpack.c.l.b16 %v474
  %v687 = vunpack.c.h.b16 %v474
  %v688 = vunpack.c.l.b16 %v475
  %v689 = vunpack.c.h.b16 %v475
  %v690 = vpack.c.b16 %v564, %v562
  %v691 = vpack.c.b16 %v565, %v563
  %v692 = vpack.c.b16 %v568, %v566
  %v693 = vpack.c.b16 %v569, %v567
  %v694 = vpack.c.b16 %v572, %v570
  %v695 = vpack.c.b16 %v573, %v571
  %v696 = vpack.c.b16 %v576, %v574
  %v697 = vpack.c.b16 %v577, %v575
  %v698 = vpack.c.b16 %v580, %v578
  %v699 = vpack.c.b16 %v581, %v579
  %v700 = vpack.c.b16 %v584, %v582
  %v701 = vpack.c.b16 %v585, %v583
  %v702 = vpack.c.b16 %v588, %v586
  %v703 = vpack.c.b16 %v589, %v587
  %v704 = vpack.c.b16 %v592, %v590
  %v705 = vpack.c.b16 %v593, %v591
  %v706 = vpack.c.b16 %v596, %v594
  %v707 = vpack.c.b16 %v597, %v595
  %v708 = vpack.c.b16 %v600, %v598
  %v709 = vpack.c.b16 %v601, %v599
  %v710 = vpack.c.b16 %v604, %v602
  %v711 = vpack.c.b16 %v605, %v603
  %v712 = vpack.c.b16 %v608, %v606
  %v713 = vpack.c.b16 %v609, %v607
  %v714 = vpack.c.b16 %v612, %v610
  %v715 = vpack.c.b16 %v613, %v611
  %v716 = vpack.c.b16 %v616, %v614
  %v717 = vpack.c.b16 %v617, %v615
  %v718 = vpack.c.b16 %v620, %v618
  %v719 = vpack.c.b16 %v621, %v619
  %v720 = vpack.c.b16 %v624, %v622
  %v721 = vpack.c.b16 %v625, %v623
  %v722 = vpack.c.b16 %v628, %v626
  %v723 = vpack.c.b16 %v629, %v627
  %v724 = vpack.c.b16 %v632, %v630
  %v725 = vpack.c.b16 %v633, %v631
  %v726 = vpack.c.b16 %v636, %v634
  %v727 = vpack.c.b16 %v637, %v635
  %v728 = vpack.c.b16 %v640, %v638
  %v729 = vpack.c.b16 %v641, %v639
  %v730 = vpack.c.b16 %v644, %v642
  %v731 = vpack.c.b16 %v645, %v643
  %v732 = vpack.c.b16 %v648, %v646
  %v733 = vpack.c.b16 %v649, %v647
  %v734 = vpack.c.b16 %v652, %v650
  %v735 = vpack.c.b16 %v653, %v651
  %v736 = vpack.c.b16 %v656, %v654
  %v737 = vpack.c.b16 %v657, %v655
  %v738 = vpack.c.b16 %v660, %v658
  %v739 = vpack.c.b16 %v661, %v659
  %v740 = vpack.c.b16 %v664, %v662
  %v741 = vpack.c.b16 %v665, %v663
  %v742 = vpack.c.b16 %v668, %v666
  %v743 = vpack.c.b16 %v669, %v667
  %v744 = vpack.c.b16 %v672, %v670
  %v745 = vpack.c.b16 %v673, %v671
  %v746 = vpack.c.b16 %v676, %v674
  %v747 = vpack.c.b16 %v677, %v675
  %v748 = vpack.c.b16 %v680, %v678
  %v749 = vpack.c.b16 %v681, %v679
  %v750 = vpack.c.b16 %v684, %v682
  %v751 = vpack.c.b16 %v685, %v683
  %v752 = vpack.c.b16 %v688, %v686
  %v753 = vpack.c.b16 %v689, %v687
  %818 = vmatprep.subr.bf16.mxu0 %v691
  %819 = vmatpush1.bf16.xpose.msra.mxu0 %v690
  %820 = vmatprep.subr.bf16.mxu0 %v693
  %821 = vmatpush1.bf16.xpose.msra.mxu0 %v692
  %822 = vmatprep.subr.bf16.mxu0 %v695
  %823 = vmatpush1.bf16.xpose.msra.mxu0 %v694
  %824 = vmatprep.subr.bf16.mxu0 %v697
  %825 = vmatpush1.bf16.xpose.msra.mxu0 %v696
  %826 = vmatprep.subr.bf16.mxu0 %v699
  %827 = vmatpush1.bf16.xpose.msra.mxu0 %v698
  %828 = vmatprep.subr.bf16.mxu0 %v701
  %829 = vmatpush1.bf16.xpose.msra.mxu0 %v700
  %830 = vmatprep.subr.bf16.mxu0 %v703
  %831 = vmatpush1.bf16.xpose.msra.mxu0 %v702
  %832 = vmatprep.subr.bf16.mxu0 %v705
  %833 = vmatpush1.bf16.xpose.msra.mxu0 %v704
  %834 = vmatprep.subr.bf16.mxu0 %v707
  %835 = vmatpush1.bf16.xpose.msra.mxu0 %v706
  %836 = vmatprep.subr.bf16.mxu0 %v709
  %837 = vmatpush1.bf16.xpose.msra.mxu0 %v708
  %838 = vmatprep.subr.bf16.mxu0 %v711
  %839 = vmatpush1.bf16.xpose.msra.mxu0 %v710
  %840 = vmatprep.subr.bf16.mxu0 %v713
  %841 = vmatpush1.bf16.xpose.msra.mxu0 %v712
  %842 = vmatprep.subr.bf16.mxu0 %v715
  %843 = vmatpush1.bf16.xpose.msra.mxu0 %v714
  %844 = vmatprep.subr.bf16.mxu0 %v717
  %845 = vmatpush1.bf16.xpose.msra.mxu0 %v716
  %846 = vmatprep.subr.bf16.mxu0 %v719
  %847 = vmatpush1.bf16.xpose.msra.mxu0 %v718
  %848 = vmatprep.subr.bf16.mxu0 %v721
  %849 = vmatpush1.bf16.xpose.msra.mxu0 %v720
  %850 = vmatprep.mubr.bf16.mxu0 %v411
  %851 = vmatmul.mubr.bf16.gmra.mrb[0].mxu0 %v410
  %v852 = vpop.f32.mrb[0].mxu0
  %v853 = vadd.f32 %v481, %v852
  %v854 = vpop.f32.mrb[0].mxu0
  %v855 = vadd.f32 %v485, %v854
  %v856 = vpop.f32.mrb[0].mxu0
  %v857 = vpop.f32.mrb[0].mxu0
  %858 = vdwg.mxu0
  %859 = vmatprep.subr.bf16.mxu0 %v723
  %860 = vmatpush1.bf16.xpose.msra.mxu0 %v722
  %861 = vmatprep.subr.bf16.mxu0 %v725
  %862 = vmatpush1.bf16.xpose.msra.mxu0 %v724
  %863 = vmatprep.subr.bf16.mxu0 %v727
  %864 = vmatpush1.bf16.xpose.msra.mxu0 %v726
  %865 = vmatprep.subr.bf16.mxu0 %v729
  %866 = vmatpush1.bf16.xpose.msra.mxu0 %v728
  %867 = vmatprep.subr.bf16.mxu0 %v731
  %868 = vmatpush1.bf16.xpose.msra.mxu0 %v730
  %869 = vmatprep.subr.bf16.mxu0 %v733
  %870 = vmatpush1.bf16.xpose.msra.mxu0 %v732
  %871 = vmatprep.subr.bf16.mxu0 %v735
  %872 = vmatpush1.bf16.xpose.msra.mxu0 %v734
  %873 = vmatprep.subr.bf16.mxu0 %v737
  %874 = vmatpush1.bf16.xpose.msra.mxu0 %v736
  %875 = vmatprep.subr.bf16.mxu0 %v739
  %876 = vmatpush1.bf16.xpose.msra.mxu0 %v738
  %877 = vmatprep.subr.bf16.mxu0 %v741
  %878 = vmatpush1.bf16.xpose.msra.mxu0 %v740
  %879 = vmatprep.subr.bf16.mxu0 %v743
  %880 = vmatpush1.bf16.xpose.msra.mxu0 %v742
  %881 = vmatprep.subr.bf16.mxu0 %v745
  %882 = vmatpush1.bf16.xpose.msra.mxu0 %v744
  %883 = vmatprep.subr.bf16.mxu0 %v747
  %884 = vmatpush1.bf16.xpose.msra.mxu0 %v746
  %885 = vmatprep.subr.bf16.mxu0 %v749
  %886 = vmatpush1.bf16.xpose.msra.mxu0 %v748
  %887 = vmatprep.subr.bf16.mxu0 %v751
  %888 = vmatpush1.bf16.xpose.msra.mxu0 %v750
  %889 = vmatprep.subr.bf16.mxu0 %v753
  %890 = vmatpush1.bf16.xpose.msra.mxu0 %v752
  %891 = vmatprep.mubr.bf16.mxu0 %v411
  %892 = vmatmul.mubr.bf16.gmra.mrb[0].mxu0 %v410
  %v893 = vpop.f32.mrb[0].mxu0
  %v894 = vadd.f32 %v489, %v893
  %v895 = vpop.f32.mrb[0].mxu0
  %v896 = vadd.f32 %v493, %v895
  %v897 = vpop.f32.mrb[0].mxu0
  %v898 = vpop.f32.mrb[0].mxu0
  %899 = vdwg.mxu0
  %v900 = vld [vmem:[#allocation5] sm:$0xff]
  %v901 = vxor.u32 %v853, 2147483648
  %v902 = vmul.f32 %v901, 1.442695
  %v903 = vpow.pop %v902
  %v904 = vadd.f32 %v903, 1.0
  %v905 = vrcp.pop %v904
  %v906 = vmul.f32 1.0, %v905
  %v907 = vxor.u32 %v855, 2147483648
  %v908 = vmul.f32 %v907, 1.442695
  %v909 = vpow.pop %v908
  %v910 = vadd.f32 %v909, 1.0
  %v911 = vrcp.pop %v910
  %v912 = vmul.f32 1.0, %v911
  %v913 = vtanh.pop %v894
  %v914 = vxor.u32 %v896, 2147483648
  %v915 = vmul.f32 %v914, 1.442695
  %v916 = vpow.pop %v915
  %v917 = vadd.f32 %v916, 1.0
  %v918 = vrcp.pop %v917
  %v919 = vmul.f32 1.0, %v918
  %v920 = vmul.f32 %v912, %v900
  %v921 = vmul.f32 %v906, %v913
  %v922 = vadd.f32 %v920, %v921
  %v923 = vtanh.pop %v922
  %v924 = vmul.f32 %v919, %v923
  %925 = vst [vmem:[#allocation4] sm:$0xff] %v924
  %926 = vst [vmem:[#allocation5] sm:$0xff] %v922
  %v927 = vld [vmem:[#allocation6] sm:$0xff]
  %v928 = vpack.c.bf16 %v924, %v924
  %v929 = vpack.c.bf16 %v927, %v927
  %v930 = vld [vmem:[%s4] sm:$0xff]
  %v931 = vld [vmem:[%s4 + $0x8] sm:$0xff]
  %v932 = vld [vmem:[%s4 + $0x10] sm:$0xff]
  %v933 = vld [vmem:[%s4 + $0x18] sm:$0xff]
  %v934 = vld [vmem:[%s4 + $0x20] sm:$0xff]
  %v935 = vld [vmem:[%s4 + $0x28] sm:$0xff]
  %v936 = vld [vmem:[%s4 + $0x30] sm:$0xff]
  %v937 = vld [vmem:[%s4 + $0x38] sm:$0xff]
  %v938 = vld [vmem:[%s4 + $0x40] sm:$0xff]
  %v939 = vld [vmem:[%s4 + $0x48] sm:$0xff]
  %v940 = vld [vmem:[%s4 + $0x50] sm:$0xff]
  %v941 = vld [vmem:[%s4 + $0x58] sm:$0xff]
  %v942 = vld [vmem:[%s4 + $0x60] sm:$0xff]
  %v943 = vld [vmem:[%s4 + $0x68] sm:$0xff]
  %v944 = vld [vmem:[%s4 + $0x70] sm:$0xff]
  %v945 = vld [vmem:[%s4 + $0x78] sm:$0xff]
  %v946 = vld [vmem:[%s4 + $0x80] sm:$0xff]
  %v947 = vld [vmem:[%s4 + $0x88] sm:$0xff]
  %v948 = vld [vmem:[%s4 + $0x90] sm:$0xff]
  %v949 = vld [vmem:[%s4 + $0x98] sm:$0xff]
  %v950 = vld [vmem:[%s4 + $0xa0] sm:$0xff]
  %v951 = vld [vmem:[%s4 + $0xa8] sm:$0xff]
  %v952 = vld [vmem:[%s4 + $0xb0] sm:$0xff]
  %v953 = vld [vmem:[%s4 + $0xb8] sm:$0xff]
  %v954 = vld [vmem:[%s4 + $0xc0] sm:$0xff]
  %v955 = vld [vmem:[%s4 + $0xc8] sm:$0xff]
  %v956 = vld [vmem:[%s4 + $0xd0] sm:$0xff]
  %v957 = vld [vmem:[%s4 + $0xd8] sm:$0xff]
  %v958 = vld [vmem:[%s4 + $0xe0] sm:$0xff]
  %v959 = vld [vmem:[%s4 + $0xe8] sm:$0xff]
  %v960 = vld [vmem:[%s4 + $0xf0] sm:$0xff]
  %v961 = vld [vmem:[%s4 + $0xf8] sm:$0xff]
  %v962 = vld [vmem:[%s4 + $0x100] sm:$0xff]
  %v963 = vld [vmem:[%s4 + $0x108] sm:$0xff]
  %v964 = vld [vmem:[%s4 + $0x110] sm:$0xff]
  %v965 = vld [vmem:[%s4 + $0x118] sm:$0xff]
  %v966 = vld [vmem:[%s4 + $0x120] sm:$0xff]
  %v967 = vld [vmem:[%s4 + $0x128] sm:$0xff]
  %v968 = vld [vmem:[%s4 + $0x130] sm:$0xff]
  %v969 = vld [vmem:[%s4 + $0x138] sm:$0xff]
  %v970 = vld [vmem:[%s4 + $0x140] sm:$0xff]
  %v971 = vld [vmem:[%s4 + $0x148] sm:$0xff]
  %v972 = vld [vmem:[%s4 + $0x150] sm:$0xff]
  %v973 = vld [vmem:[%s4 + $0x158] sm:$0xff]
  %v974 = vld [vmem:[%s4 + $0x160] sm:$0xff]
  %v975 = vld [vmem:[%s4 + $0x168] sm:$0xff]
  %v976 = vld [vmem:[%s4 + $0x170] sm:$0xff]
  %v977 = vld [vmem:[%s4 + $0x178] sm:$0xff]
  %v978 = vld [vmem:[%s4 + $0x180] sm:$0xff]
  %v979 = vld [vmem:[%s4 + $0x188] sm:$0xff]
  %v980 = vld [vmem:[%s4 + $0x190] sm:$0xff]
  %v981 = vld [vmem:[%s4 + $0x198] sm:$0xff]
  %v982 = vld [vmem:[%s4 + $0x1a0] sm:$0xff]
  %v983 = vld [vmem:[%s4 + $0x1a8] sm:$0xff]
  %v984 = vld [vmem:[%s4 + $0x1b0] sm:$0xff]
  %v985 = vld [vmem:[%s4 + $0x1b8] sm:$0xff]
  %v986 = vld [vmem:[%s4 + $0x1c0] sm:$0xff]
  %v987 = vld [vmem:[%s4 + $0x1c8] sm:$0xff]
  %v988 = vld [vmem:[%s4 + $0x1d0] sm:$0xff]
  %v989 = vld [vmem:[%s4 + $0x1d8] sm:$0xff]
  %v990 = vld [vmem:[%s4 + $0x1e0] sm:$0xff]
  %v991 = vld [vmem:[%s4 + $0x1e8] sm:$0xff]
  %v992 = vld [vmem:[%s4 + $0x1f0] sm:$0xff]
  %v993 = vld [vmem:[%s4 + $0x1f8] sm:$0xff]
  %v994 = vld [vmem:[%s5] sm:$0xf]
  %v996 = vlaneseq
  %v997 = vshrl.u32 %v996, 7
  %v998 = vsub.s32 0, %v997
  %v999 = vrot.slane %v994, %v998
  %v1000 = vlaneseq
  %v1001 = vshrl.u32 %v1000, 7
  %v1002 = vsub.s32 1, %v1001
  %v1003 = vrot.slane %v994, %v1002
  %v1004 = vlaneseq
  %v1005 = vshrl.u32 %v1004, 7
  %v1006 = vsub.s32 2, %v1005
  %v1007 = vrot.slane %v994, %v1006
  %v1008 = vlaneseq
  %v1009 = vshrl.u32 %v1008, 7
  %v1010 = vsub.s32 3, %v1009
  %v1011 = vrot.slane %v994, %v1010
  %v1080 = vunpack.c.l.b16 %v930
  %v1081 = vunpack.c.h.b16 %v930
  %v1082 = vunpack.c.l.b16 %v931
  %v1083 = vunpack.c.h.b16 %v931
  %v1084 = vunpack.c.l.b16 %v932
  %v1085 = vunpack.c.h.b16 %v932
  %v1086 = vunpack.c.l.b16 %v933
  %v1087 = vunpack.c.h.b16 %v933
  %v1088 = vunpack.c.l.b16 %v934
  %v1089 = vunpack.c.h.b16 %v934
  %v1090 = vunpack.c.l.b16 %v935
  %v1091 = vunpack.c.h.b16 %v935
  %v1092 = vunpack.c.l.b16 %v936
  %v1093 = vunpack.c.h.b16 %v936
  %v1094 = vunpack.c.l.b16 %v937
  %v1095 = vunpack.c.h.b16 %v937
  %v1096 = vunpack.c.l.b16 %v938
  %v1097 = vunpack.c.h.b16 %v938
  %v1098 = vunpack.c.l.b16 %v939
  %v1099 = vunpack.c.h.b16 %v939
  %v1100 = vunpack.c.l.b16 %v940
  %v1101 = vunpack.c.h.b16 %v940
  %v1102 = vunpack.c.l.b16 %v941
  %v1103 = vunpack.c.h.b16 %v941
  %v1104 = vunpack.c.l.b16 %v942
  %v1105 = vunpack.c.h.b16 %v942
  %v1106 = vunpack.c.l.b16 %v943
  %v1107 = vunpack.c.h.b16 %v943
  %v1108 = vunpack.c.l.b16 %v944
  %v1109 = vunpack.c.h.b16 %v944
  %v1110 = vunpack.c.l.b16 %v945
  %v1111 = vunpack.c.h.b16 %v945
  %v1112 = vunpack.c.l.b16 %v946
  %v1113 = vunpack.c.h.b16 %v946
  %v1114 = vunpack.c.l.b16 %v947
  %v1115 = vunpack.c.h.b16 %v947
  %v1116 = vunpack.c.l.b16 %v948
  %v1117 = vunpack.c.h.b16 %v948
  %v1118 = vunpack.c.l.b16 %v949
  %v1119 = vunpack.c.h.b16 %v949
  %v1120 = vunpack.c.l.b16 %v950
  %v1121 = vunpack.c.h.b16 %v950
  %v1122 = vunpack.c.l.b16 %v951
  %v1123 = vunpack.c.h.b16 %v951
  %v1124 = vunpack.c.l.b16 %v952
  %v1125 = vunpack.c.h.b16 %v952
  %v1126 = vunpack.c.l.b16 %v953
  %v1127 = vunpack.c.h.b16 %v953
  %v1128 = vunpack.c.l.b16 %v954
  %v1129 = vunpack.c.h.b16 %v954
  %v1130 = vunpack.c.l.b16 %v955
  %v1131 = vunpack.c.h.b16 %v955
  %v1132 = vunpack.c.l.b16 %v956
  %v1133 = vunpack.c.h.b16 %v956
  %v1134 = vunpack.c.l.b16 %v957
  %v1135 = vunpack.c.h.b16 %v957
  %v1136 = vunpack.c.l.b16 %v958
  %v1137 = vunpack.c.h.b16 %v958
  %v1138 = vunpack.c.l.b16 %v959
  %v1139 = vunpack.c.h.b16 %v959
  %v1140 = vunpack.c.l.b16 %v960
  %v1141 = vunpack.c.h.b16 %v960
  %v1142 = vunpack.c.l.b16 %v961
  %v1143 = vunpack.c.h.b16 %v961
  %v1144 = vunpack.c.l.b16 %v962
  %v1145 = vunpack.c.h.b16 %v962
  %v1146 = vunpack.c.l.b16 %v963
  %v1147 = vunpack.c.h.b16 %v963
  %v1148 = vunpack.c.l.b16 %v964
  %v1149 = vunpack.c.h.b16 %v964
  %v1150 = vunpack.c.l.b16 %v965
  %v1151 = vunpack.c.h.b16 %v965
  %v1152 = vunpack.c.l.b16 %v966
  %v1153 = vunpack.c.h.b16 %v966
  %v1154 = vunpack.c.l.b16 %v967
  %v1155 = vunpack.c.h.b16 %v967
  %v1156 = vunpack.c.l.b16 %v968
  %v1157 = vunpack.c.h.b16 %v968
  %v1158 = vunpack.c.l.b16 %v969
  %v1159 = vunpack.c.h.b16 %v969
  %v1160 = vunpack.c.l.b16 %v970
  %v1161 = vunpack.c.h.b16 %v970
  %v1162 = vunpack.c.l.b16 %v971
  %v1163 = vunpack.c.h.b16 %v971
  %v1164 = vunpack.c.l.b16 %v972
  %v1165 = vunpack.c.h.b16 %v972
  %v1166 = vunpack.c.l.b16 %v973
  %v1167 = vunpack.c.h.b16 %v973
  %v1168 = vunpack.c.l.b16 %v974
  %v1169 = vunpack.c.h.b16 %v974
  %v1170 = vunpack.c.l.b16 %v975
  %v1171 = vunpack.c.h.b16 %v975
  %v1172 = vunpack.c.l.b16 %v976
  %v1173 = vunpack.c.h.b16 %v976
  %v1174 = vunpack.c.l.b16 %v977
  %v1175 = vunpack.c.h.b16 %v977
  %v1176 = vunpack.c.l.b16 %v978
  %v1177 = vunpack.c.h.b16 %v978
  %v1178 = vunpack.c.l.b16 %v979
  %v1179 = vunpack.c.h.b16 %v979
  %v1180 = vunpack.c.l.b16 %v980
  %v1181 = vunpack.c.h.b16 %v980
  %v1182 = vunpack.c.l.b16 %v981
  %v1183 = vunpack.c.h.b16 %v981
  %v1184 = vunpack.c.l.b16 %v982
  %v1185 = vunpack.c.h.b16 %v982
  %v1186 = vunpack.c.l.b16 %v983
  %v1187 = vunpack.c.h.b16 %v983
  %v1188 = vunpack.c.l.b16 %v984
  %v1189 = vunpack.c.h.b16 %v984
  %v1190 = vunpack.c.l.b16 %v985
  %v1191 = vunpack.c.h.b16 %v985
  %v1192 = vunpack.c.l.b16 %v986
  %v1193 = vunpack.c.h.b16 %v986
  %v1194 = vunpack.c.l.b16 %v987
  %v1195 = vunpack.c.h.b16 %v987
  %v1196 = vunpack.c.l.b16 %v988
  %v1197 = vunpack.c.h.b16 %v988
  %v1198 = vunpack.c.l.b16 %v989
  %v1199 = vunpack.c.h.b16 %v989
  %v1200 = vunpack.c.l.b16 %v990
  %v1201 = vunpack.c.h.b16 %v990
  %v1202 = vunpack.c.l.b16 %v991
  %v1203 = vunpack.c.h.b16 %v991
  %v1204 = vunpack.c.l.b16 %v992
  %v1205 = vunpack.c.h.b16 %v992
  %v1206 = vunpack.c.l.b16 %v993
  %v1207 = vunpack.c.h.b16 %v993
  %v1208 = vpack.c.b16 %v1082, %v1080
  %v1209 = vpack.c.b16 %v1083, %v1081
  %v1210 = vpack.c.b16 %v1086, %v1084
  %v1211 = vpack.c.b16 %v1087, %v1085
  %v1212 = vpack.c.b16 %v1090, %v1088
  %v1213 = vpack.c.b16 %v1091, %v1089
  %v1214 = vpack.c.b16 %v1094, %v1092
  %v1215 = vpack.c.b16 %v1095, %v1093
  %v1216 = vpack.c.b16 %v1098, %v1096
  %v1217 = vpack.c.b16 %v1099, %v1097
  %v1218 = vpack.c.b16 %v1102, %v1100
  %v1219 = vpack.c.b16 %v1103, %v1101
  %v1220 = vpack.c.b16 %v1106, %v1104
  %v1221 = vpack.c.b16 %v1107, %v1105
  %v1222 = vpack.c.b16 %v1110, %v1108
  %v1223 = vpack.c.b16 %v1111, %v1109
  %v1224 = vpack.c.b16 %v1114, %v1112
  %v1225 = vpack.c.b16 %v1115, %v1113
  %v1226 = vpack.c.b16 %v1118, %v1116
  %v1227 = vpack.c.b16 %v1119, %v1117
  %v1228 = vpack.c.b16 %v1122, %v1120
  %v1229 = vpack.c.b16 %v1123, %v1121
  %v1230 = vpack.c.b16 %v1126, %v1124
  %v1231 = vpack.c.b16 %v1127, %v1125
  %v1232 = vpack.c.b16 %v1130, %v1128
  %v1233 = vpack.c.b16 %v1131, %v1129
  %v1234 = vpack.c.b16 %v1134, %v1132
  %v1235 = vpack.c.b16 %v1135, %v1133
  %v1236 = vpack.c.b16 %v1138, %v1136
  %v1237 = vpack.c.b16 %v1139, %v1137
  %v1238 = vpack.c.b16 %v1142, %v1140
  %v1239 = vpack.c.b16 %v1143, %v1141
  %v1240 = vpack.c.b16 %v1146, %v1144
  %v1241 = vpack.c.b16 %v1147, %v1145
  %v1242 = vpack.c.b16 %v1150, %v1148
  %v1243 = vpack.c.b16 %v1151, %v1149
  %v1244 = vpack.c.b16 %v1154, %v1152
  %v1245 = vpack.c.b16 %v1155, %v1153
  %v1246 = vpack.c.b16 %v1158, %v1156
  %v1247 = vpack.c.b16 %v1159, %v1157
  %v1248 = vpack.c.b16 %v1162, %v1160
  %v1249 = vpack.c.b16 %v1163, %v1161
  %v1250 = vpack.c.b16 %v1166, %v1164
  %v1251 = vpack.c.b16 %v1167, %v1165
  %v1252 = vpack.c.b16 %v1170, %v1168
  %v1253 = vpack.c.b16 %v1171, %v1169
  %v1254 = vpack.c.b16 %v1174, %v1172
  %v1255 = vpack.c.b16 %v1175, %v1173
  %v1256 = vpack.c.b16 %v1178, %v1176
  %v1257 = vpack.c.b16 %v1179, %v1177
  %v1258 = vpack.c.b16 %v1182, %v1180
  %v1259 = vpack.c.b16 %v1183, %v1181
  %v1260 = vpack.c.b16 %v1186, %v1184
  %v1261 = vpack.c.b16 %v1187, %v1185
  %v1262 = vpack.c.b16 %v1190, %v1188
  %v1263 = vpack.c.b16 %v1191, %v1189
  %v1264 = vpack.c.b16 %v1194, %v1192
  %v1265 = vpack.c.b16 %v1195, %v1193
  %v1266 = vpack.c.b16 %v1198, %v1196
  %v1267 = vpack.c.b16 %v1199, %v1197
  %v1268 = vpack.c.b16 %v1202, %v1200
  %v1269 = vpack.c.b16 %v1203, %v1201
  %v1270 = vpack.c.b16 %v1206, %v1204
  %v1271 = vpack.c.b16 %v1207, %v1205
  %1336 = vmatprep.subr.bf16.mxu0 %v1209
  %1337 = vmatpush1.bf16.xpose.msra.mxu0 %v1208
  %1338 = vmatprep.subr.bf16.mxu0 %v1211
  %1339 = vmatpush1.bf16.xpose.msra.mxu0 %v1210
  %1340 = vmatprep.subr.bf16.mxu0 %v1213
  %1341 = vmatpush1.bf16.xpose.msra.mxu0 %v1212
  %1342 = vmatprep.subr.bf16.mxu0 %v1215
  %1343 = vmatpush1.bf16.xpose.msra.mxu0 %v1214
  %1344 = vmatprep.subr.bf16.mxu0 %v1217
  %1345 = vmatpush1.bf16.xpose.msra.mxu0 %v1216
  %1346 = vmatprep.subr.bf16.mxu0 %v1219
  %1347 = vmatpush1.bf16.xpose.msra.mxu0 %v1218
  %1348 = vmatprep.subr.bf16.mxu0 %v1221
  %1349 = vmatpush1.bf16.xpose.msra.mxu0 %v1220
  %1350 = vmatprep.subr.bf16.mxu0 %v1223
  %1351 = vmatpush1.bf16.xpose.msra.mxu0 %v1222
  %1352 = vmatprep.subr.bf16.mxu0 %v1225
  %1353 = vmatpush1.bf16.xpose.msra.mxu0 %v1224
  %1354 = vmatprep.subr.bf16.mxu0 %v1227
  %1355 = vmatpush1.bf16.xpose.msra.mxu0 %v1226
  %1356 = vmatprep.subr.bf16.mxu0 %v1229
  %1357 = vmatpush1.bf16.xpose.msra.mxu0 %v1228
  %1358 = vmatprep.subr.bf16.mxu0 %v1231
  %1359 = vmatpush1.bf16.xpose.msra.mxu0 %v1230
  %1360 = vmatprep.subr.bf16.mxu0 %v1233
  %1361 = vmatpush1.bf16.xpose.msra.mxu0 %v1232
  %1362 = vmatprep.subr.bf16.mxu0 %v1235
  %1363 = vmatpush1.bf16.xpose.msra.mxu0 %v1234
  %1364 = vmatprep.subr.bf16.mxu0 %v1237
  %1365 = vmatpush1.bf16.xpose.msra.mxu0 %v1236
  %1366 = vmatprep.subr.bf16.mxu0 %v1239
  %1367 = vmatpush1.bf16.xpose.msra.mxu0 %v1238
  %1368 = vmatprep.mubr.bf16.mxu0 %v929
  %1369 = vmatmul.mubr.bf16.gmra.mrb[0].mxu0 %v928
  %v1370 = vpop.f32.mrb[0].mxu0
  %v1371 = vadd.f32 %v999, %v1370
  %v1372 = vpop.f32.mrb[0].mxu0
  %v1373 = vadd.f32 %v1003, %v1372
  %v1374 = vpop.f32.mrb[0].mxu0
  %v1375 = vpop.f32.mrb[0].mxu0
  %1376 = vdwg.mxu0
  %1377 = vmatprep.subr.bf16.mxu0 %v1241
  %1378 = vmatpush1.bf16.xpose.msra.mxu0 %v1240
  %1379 = vmatprep.subr.bf16.mxu0 %v1243
  %1380 = vmatpush1.bf16.xpose.msra.mxu0 %v1242
  %1381 = vmatprep.subr.bf16.mxu0 %v1245
  %1382 = vmatpush1.bf16.xpose.msra.mxu0 %v1244
  %1383 = vmatprep.subr.bf16.mxu0 %v1247
  %1384 = vmatpush1.bf16.xpose.msra.mxu0 %v1246
  %1385 = vmatprep.subr.bf16.mxu0 %v1249
  %1386 = vmatpush1.bf16.xpose.msra.mxu0 %v1248
  %1387 = vmatprep.subr.bf16.mxu0 %v1251
  %1388 = vmatpush1.bf16.xpose.msra.mxu0 %v1250
  %1389 = vmatprep.subr.bf16.mxu0 %v1253
  %1390 = vmatpush1.bf16.xpose.msra.mxu0 %v1252
  %1391 = vmatprep.subr.bf16.mxu0 %v1255
  %1392 = vmatpush1.bf16.xpose.msra.mxu0 %v1254
  %1393 = vmatprep.subr.bf16.mxu0 %v1257
  %1394 = vmatpush1.bf16.xpose.msra.mxu0 %v1256
  %1395 = vmatprep.subr.bf16.mxu0 %v1259
  %1396 = vmatpush1.bf16.xpose.msra.mxu0 %v1258
  %1397 = vmatprep.subr.bf16.mxu0 %v1261
  %1398 = vmatpush1.bf16.xpose.msra.mxu0 %v1260
  %1399 = vmatprep.subr.bf16.mxu0 %v1263
  %1400 = vmatpush1.bf16.xpose.msra.mxu0 %v1262
  %1401 = vmatprep.subr.bf16.mxu0 %v1265
  %1402 = vmatpush1.bf16.xpose.msra.mxu0 %v1264
  %1403 = vmatprep.subr.bf16.mxu0 %v1267
  %1404 = vmatpush1.bf16.xpose.msra.mxu0 %v1266
  %1405 = vmatprep.subr.bf16.mxu0 %v1269
  %1406 = vmatpush1.bf16.xpose.msra.mxu0 %v1268
  %1407 = vmatprep.subr.bf16.mxu0 %v1271
  %1408 = vmatpush1.bf16.xpose.msra.mxu0 %v1270
  %1409 = vmatprep.mubr.bf16.mxu0 %v929
  %1410 = vmatmul.mubr.bf16.gmra.mrb[0].mxu0 %v928
  %v1411 = vpop.f32.mrb[0].mxu0
  %v1412 = vadd.f32 %v1007, %v1411
  %v1413 = vpop.f32.mrb[0].mxu0
  %v1414 = vadd.f32 %v1011, %v1413
  %v1415 = vpop.f32.mrb[0].mxu0
  %v1416 = vpop.f32.mrb[0].mxu0
  %1417 = vdwg.mxu0
  %v1418 = vld [vmem:[#allocation7] sm:$0xff]
  %v1419 = vxor.u32 %v1371, 2147483648
  %v1420 = vmul.f32 %v1419, 1.442695
  %v1421 = vpow.pop %v1420
  %v1422 = vadd.f32 %v1421, 1.0
  %v1423 = vrcp.pop %v1422
  %v1424 = vmul.f32 1.0, %v1423
  %v1425 = vxor.u32 %v1373, 2147483648
  %v1426 = vmul.f32 %v1425, 1.442695
  %v1427 = vpow.pop %v1426
  %v1428 = vadd.f32 %v1427, 1.0
  %v1429 = vrcp.pop %v1428
  %v1430 = vmul.f32 1.0, %v1429
  %v1431 = vtanh.pop %v1412
  %v1432 = vxor.u32 %v1414, 2147483648
  %v1433 = vmul.f32 %v1432, 1.442695
  %v1434 = vpow.pop %v1433
  %v1435 = vadd.f32 %v1434, 1.0
  %v1436 = vrcp.pop %v1435
  %v1437 = vmul.f32 1.0, %v1436
  %v1438 = vmul.f32 %v1430, %v1418
  %v1439 = vmul.f32 %v1424, %v1431
  %v1440 = vadd.f32 %v1438, %v1439
  %v1441 = vtanh.pop %v1440
  %v1442 = vmul.f32 %v1437, %v1441
  %1443 = vst [vmem:[#allocation6] sm:$0xff] %v1442
  %1444 = vst [vmem:[#allocation7] sm:$0xff] %v1440
  %1445 = vst [vmem:[%s6] sm:$0xff] %v1442
  %s1446 = scalar_lea.vmem %s0, 32
  %v1447 = vld [vmem:[%s1446] sm:$0xff]
  %v1448 = vld [vmem:[%s1446 + $0x8] sm:$0xff]
  %v1449 = vld [vmem:[%s1446 + $0x10] sm:$0xff]
  %v1450 = vld [vmem:[%s1446 + $0x18] sm:$0xff]
  %v1451 = vld [vmem:[#allocation2] sm:$0xff]
  %v1452 = vpack.c.bf16 %v1451, %v1451
  %v1453 = vld [vmem:[%s1] sm:$0xf]
  %v1454 = vld [vmem:[%s1 + $0x4] sm:$0xf]
  %v1455 = vld [vmem:[%s1 + $0x8] sm:$0xf]
  %v1456 = vld [vmem:[%s1 + $0xc] sm:$0xf]
  %v1457 = vld [vmem:[%s1 + $0x10] sm:$0xf]
  %v1458 = vld [vmem:[%s1 + $0x14] sm:$0xf]
  %v1459 = vld [vmem:[%s1 + $0x18] sm:$0xf]
  %v1460 = vld [vmem:[%s1 + $0x1c] sm:$0xf]
  %v1461 = vld [vmem:[%s1 + $0x20] sm:$0xf]
  %v1462 = vld [vmem:[%s1 + $0x24] sm:$0xf]
  %v1463 = vld [vmem:[%s1 + $0x28] sm:$0xf]
  %v1464 = vld [vmem:[%s1 + $0x2c] sm:$0xf]
  %v1465 = vld [vmem:[%s1 + $0x30] sm:$0xf]
  %v1466 = vld [vmem:[%s1 + $0x34] sm:$0xf]
  %v1467 = vld [vmem:[%s1 + $0x38] sm:$0xf]
  %v1468 = vld [vmem:[%s1 + $0x3c] sm:$0xf]
  %v1469 = vld [vmem:[%s1 + $0x40] sm:$0xf]
  %v1470 = vld [vmem:[%s1 + $0x44] sm:$0xf]
  %v1471 = vld [vmem:[%s1 + $0x48] sm:$0xf]
  %v1472 = vld [vmem:[%s1 + $0x4c] sm:$0xf]
  %v1473 = vld [vmem:[%s1 + $0x50] sm:$0xf]
  %v1474 = vld [vmem:[%s1 + $0x54] sm:$0xf]
  %v1475 = vld [vmem:[%s1 + $0x58] sm:$0xf]
  %v1476 = vld [vmem:[%s1 + $0x5c] sm:$0xf]
  %v1477 = vld [vmem:[%s1 + $0x60] sm:$0xf]
  %v1478 = vld [vmem:[%s1 + $0x64] sm:$0xf]
  %v1479 = vld [vmem:[%s1 + $0x68] sm:$0xf]
  %v1480 = vld [vmem:[%s1 + $0x6c] sm:$0xf]
  %v1481 = vld [vmem:[%s1 + $0x70] sm:$0xf]
  %v1482 = vld [vmem:[%s1 + $0x74] sm:$0xf]
  %v1483 = vld [vmem:[%s1 + $0x78] sm:$0xf]
  %v1484 = vld [vmem:[%s1 + $0x7c] sm:$0xf]
  %v1485 = vld [vmem:[%s1 + $0x80] sm:$0xf]
  %v1486 = vld [vmem:[%s1 + $0x84] sm:$0xf]
  %v1487 = vld [vmem:[%s1 + $0x88] sm:$0xf]
  %v1488 = vld [vmem:[%s1 + $0x8c] sm:$0xf]
  %v1489 = vld [vmem:[%s1 + $0x90] sm:$0xf]
  %v1490 = vld [vmem:[%s1 + $0x94] sm:$0xf]
  %v1491 = vld [vmem:[%s1 + $0x98] sm:$0xf]
  %v1492 = vld [vmem:[%s1 + $0x9c] sm:$0xf]
  %v1493 = vld [vmem:[%s1 + $0xa0] sm:$0xf]
  %v1494 = vld [vmem:[%s1 + $0xa4] sm:$0xf]
  %v1495 = vld [vmem:[%s1 + $0xa8] sm:$0xf]
  %v1496 = vld [vmem:[%s1 + $0xac] sm:$0xf]
  %v1497 = vld [vmem:[%s1 + $0xb0] sm:$0xf]
  %v1498 = vld [vmem:[%s1 + $0xb4] sm:$0xf]
  %v1499 = vld [vmem:[%s1 + $0xb8] sm:$0xf]
  %v1500 = vld [vmem:[%s1 + $0xbc] sm:$0xf]
  %v1501 = vld [vmem:[%s1 + $0xc0] sm:$0xf]
  %v1502 = vld [vmem:[%s1 + $0xc4] sm:$0xf]
  %v1503 = vld [vmem:[%s1 + $0xc8] sm:$0xf]
  %v1504 = vld [vmem:[%s1 + $0xcc] sm:$0xf]
  %v1505 = vld [vmem:[%s1 + $0xd0] sm:$0xf]
  %v1506 = vld [vmem:[%s1 + $0xd4] sm:$0xf]
  %v1507 = vld [vmem:[%s1 + $0xd8] sm:$0xf]
  %v1508 = vld [vmem:[%s1 + $0xdc] sm:$0xf]
  %v1509 = vld [vmem:[%s1 + $0xe0] sm:$0xf]
  %v1510 = vld [vmem:[%s1 + $0xe4] sm:$0xf]
  %v1511 = vld [vmem:[%s1 + $0xe8] sm:$0xf]
  %v1512 = vld [vmem:[%s1 + $0xec] sm:$0xf]
  %v1513 = vld [vmem:[%s1 + $0xf0] sm:$0xf]
  %v1514 = vld [vmem:[%s1 + $0xf4] sm:$0xf]
  %v1515 = vld [vmem:[%s1 + $0xf8] sm:$0xf]
  %v1516 = vld [vmem:[%s1 + $0xfc] sm:$0xf]
  %v1581 = vunpack.c.l.b16 %v1453
  %v1582 = vunpack.c.l.b16 %v1454
  %v1583 = vunpack.c.l.b16 %v1455
  %v1584 = vunpack.c.l.b16 %v1456
  %v1585 = vunpack.c.l.b16 %v1457
  %v1586 = vunpack.c.l.b16 %v1458
  %v1587 = vunpack.c.l.b16 %v1459
  %v1588 = vunpack.c.l.b16 %v1460
  %v1589 = vunpack.c.l.b16 %v1461
  %v1590 = vunpack.c.l.b16 %v1462
  %v1591 = vunpack.c.l.b16 %v1463
  %v1592 = vunpack.c.l.b16 %v1464
  %v1593 = vunpack.c.l.b16 %v1465
  %v1594 = vunpack.c.l.b16 %v1466
  %v1595 = vunpack.c.l.b16 %v1467
  %v1596 = vunpack.c.l.b16 %v1468
  %v1597 = vunpack.c.l.b16 %v1469
  %v1598 = vunpack.c.l.b16 %v1470
  %v1599 = vunpack.c.l.b16 %v1471
  %v1600 = vunpack.c.l.b16 %v1472
  %v1601 = vunpack.c.l.b16 %v1473
  %v1602 = vunpack.c.l.b16 %v1474
  %v1603 = vunpack.c.l.b16 %v1475
  %v1604 = vunpack.c.l.b16 %v1476
  %v1605 = vunpack.c.l.b16 %v1477
  %v1606 = vunpack.c.l.b16 %v1478
  %v1607 = vunpack.c.l.b16 %v1479
  %v1608 = vunpack.c.l.b16 %v1480
  %v1609 = vunpack.c.l.b16 %v1481
  %v1610 = vunpack.c.l.b16 %v1482
  %v1611 = vunpack.c.l.b16 %v1483
  %v1612 = vunpack.c.l.b16 %v1484
  %v1613 = vunpack.c.l.b16 %v1485
  %v1614 = vunpack.c.l.b16 %v1486
  %v1615 = vunpack.c.l.b16 %v1487
  %v1616 = vunpack.c.l.b16 %v1488
  %v1617 = vunpack.c.l.b16 %v1489
  %v1618 = vunpack.c.l.b16 %v1490
  %v1619 = vunpack.c.l.b16 %v1491
  %v1620 = vunpack.c.l.b16 %v1492
  %v1621 = vunpack.c.l.b16 %v1493
  %v1622 = vunpack.c.l.b16 %v1494
  %v1623 = vunpack.c.l.b16 %v1495
  %v1624 = vunpack.c.l.b16 %v1496
  %v1625 = vunpack.c.l.b16 %v1497
  %v1626 = vunpack.c.l.b16 %v1498
  %v1627 = vunpack.c.l.b16 %v1499
  %v1628 = vunpack.c.l.b16 %v1500
  %v1629 = vunpack.c.l.b16 %v1501
  %v1630 = vunpack.c.l.b16 %v1502
  %v1631 = vunpack.c.l.b16 %v1503
  %v1632 = vunpack.c.l.b16 %v1504
  %v1633 = vunpack.c.l.b16 %v1505
  %v1634 = vunpack.c.l.b16 %v1506
  %v1635 = vunpack.c.l.b16 %v1507
  %v1636 = vunpack.c.l.b16 %v1508
  %v1637 = vunpack.c.l.b16 %v1509
  %v1638 = vunpack.c.l.b16 %v1510
  %v1639 = vunpack.c.l.b16 %v1511
  %v1640 = vunpack.c.l.b16 %v1512
  %v1641 = vunpack.c.l.b16 %v1513
  %v1642 = vunpack.c.l.b16 %v1514
  %v1643 = vunpack.c.l.b16 %v1515
  %v1644 = vunpack.c.l.b16 %v1516
  %v1645 = vpack.c.b16 %v1582, %v1581
  %v1646 = vpack.c.b16 %v1584, %v1583
  %v1647 = vpack.c.b16 %v1586, %v1585
  %v1648 = vpack.c.b16 %v1588, %v1587
  %v1649 = vpack.c.b16 %v1590, %v1589
  %v1650 = vpack.c.b16 %v1592, %v1591
  %v1651 = vpack.c.b16 %v1594, %v1593
  %v1652 = vpack.c.b16 %v1596, %v1595
  %v1653 = vpack.c.b16 %v1598, %v1597
  %v1654 = vpack.c.b16 %v1600, %v1599
  %v1655 = vpack.c.b16 %v1602, %v1601
  %v1656 = vpack.c.b16 %v1604, %v1603
  %v1657 = vpack.c.b16 %v1606, %v1605
  %v1658 = vpack.c.b16 %v1608, %v1607
  %v1659 = vpack.c.b16 %v1610, %v1609
  %v1660 = vpack.c.b16 %v1612, %v1611
  %v1661 = vpack.c.b16 %v1614, %v1613
  %v1662 = vpack.c.b16 %v1616, %v1615
  %v1663 = vpack.c.b16 %v1618, %v1617
  %v1664 = vpack.c.b16 %v1620, %v1619
  %v1665 = vpack.c.b16 %v1622, %v1621
  %v1666 = vpack.c.b16 %v1624, %v1623
  %v1667 = vpack.c.b16 %v1626, %v1625
  %v1668 = vpack.c.b16 %v1628, %v1627
  %v1669 = vpack.c.b16 %v1630, %v1629
  %v1670 = vpack.c.b16 %v1632, %v1631
  %v1671 = vpack.c.b16 %v1634, %v1633
  %v1672 = vpack.c.b16 %v1636, %v1635
  %v1673 = vpack.c.b16 %v1638, %v1637
  %v1674 = vpack.c.b16 %v1640, %v1639
  %v1675 = vpack.c.b16 %v1642, %v1641
  %v1676 = vpack.c.b16 %v1644, %v1643
  %1709 = vmatprep.subr.bf16.mxu0 0
  %1710 = vmatpush1.bf16.xpose.msra.mxu0 %v1645
  %1711 = vmatprep.subr.bf16.mxu0 0
  %1712 = vmatpush1.bf16.xpose.msra.mxu0 %v1646
  %1713 = vmatprep.subr.bf16.mxu0 0
  %1714 = vmatpush1.bf16.xpose.msra.mxu0 %v1647
  %1715 = vmatprep.subr.bf16.mxu0 0
  %1716 = vmatpush1.bf16.xpose.msra.mxu0 %v1648
  %1717 = vmatprep.subr.bf16.mxu0 0
  %1718 = vmatpush1.bf16.xpose.msra.mxu0 %v1649
  %1719 = vmatprep.subr.bf16.mxu0 0
  %1720 = vmatpush1.bf16.xpose.msra.mxu0 %v1650
  %1721 = vmatprep.subr.bf16.mxu0 0
  %1722 = vmatpush1.bf16.xpose.msra.mxu0 %v1651
  %1723 = vmatprep.subr.bf16.mxu0 0
  %1724 = vmatpush1.bf16.xpose.msra.mxu0 %v1652
  %1725 = vmatprep.subr.bf16.mxu0 0
  %1726 = vmatpush1.bf16.xpose.msra.mxu0 %v1653
  %1727 = vmatprep.subr.bf16.mxu0 0
  %1728 = vmatpush1.bf16.xpose.msra.mxu0 %v1654
  %1729 = vmatprep.subr.bf16.mxu0 0
  %1730 = vmatpush1.bf16.xpose.msra.mxu0 %v1655
  %1731 = vmatprep.subr.bf16.mxu0 0
  %1732 = vmatpush1.bf16.xpose.msra.mxu0 %v1656
  %1733 = vmatprep.subr.bf16.mxu0 0
  %1734 = vmatpush1.bf16.xpose.msra.mxu0 %v1657
  %1735 = vmatprep.subr.bf16.mxu0 0
  %1736 = vmatpush1.bf16.xpose.msra.mxu0 %v1658
  %1737 = vmatprep.subr.bf16.mxu0 0
  %1738 = vmatpush1.bf16.xpose.msra.mxu0 %v1659
  %1739 = vmatprep.subr.bf16.mxu0 0
  %1740 = vmatpush1.bf16.xpose.msra.mxu0 %v1660
  %1741 = vmatprep.mubr.bf16.mxu0 0
  %1742 = vmatmul.mubr.bf16.gmra.mrb[0].mxu0 %v1452
  %v1743 = vpop.f32.mrb[0].mxu0
  %v1744 = vadd.f32 0.0, %v1743
  %v1745 = vpop.f32.mrb[0].mxu0
  %v1746 = vadd.f32 0.0, %v1745
  %v1747 = vpop.f32.mrb[0].mxu0
  %v1748 = vpop.f32.mrb[0].mxu0
  %1749 = vdwg.mxu0
  %1750 = vmatprep.subr.bf16.mxu0 0
  %1751 = vmatpush1.bf16.xpose.msra.mxu0 %v1661
  %1752 = vmatprep.subr.bf16.mxu0 0
  %1753 = vmatpush1.bf16.xpose.msra.mxu0 %v1662
  %1754 = vmatprep.subr.bf16.mxu0 0
  %1755 = vmatpush1.bf16.xpose.msra.mxu0 %v1663
  %1756 = vmatprep.subr.bf16.mxu0 0
  %1757 = vmatpush1.bf16.xpose.msra.mxu0 %v1664
  %1758 = vmatprep.subr.bf16.mxu0 0
  %1759 = vmatpush1.bf16.xpose.msra.mxu0 %v1665
  %1760 = vmatprep.subr.bf16.mxu0 0
  %1761 = vmatpush1.bf16.xpose.msra.mxu0 %v1666
  %1762 = vmatprep.subr.bf16.mxu0 0
  %1763 = vmatpush1.bf16.xpose.msra.mxu0 %v1667
  %1764 = vmatprep.subr.bf16.mxu0 0
  %1765 = vmatpush1.bf16.xpose.msra.mxu0 %v1668
  %1766 = vmatprep.subr.bf16.mxu0 0
  %1767 = vmatpush1.bf16.xpose.msra.mxu0 %v1669
  %1768 = vmatprep.subr.bf16.mxu0 0
  %1769 = vmatpush1.bf16.xpose.msra.mxu0 %v1670
  %1770 = vmatprep.subr.bf16.mxu0 0
  %1771 = vmatpush1.bf16.xpose.msra.mxu0 %v1671
  %1772 = vmatprep.subr.bf16.mxu0 0
  %1773 = vmatpush1.bf16.xpose.msra.mxu0 %v1672
  %1774 = vmatprep.subr.bf16.mxu0 0
  %1775 = vmatpush1.bf16.xpose.msra.mxu0 %v1673
  %1776 = vmatprep.subr.bf16.mxu0 0
  %1777 = vmatpush1.bf16.xpose.msra.mxu0 %v1674
  %1778 = vmatprep.subr.bf16.mxu0 0
  %1779 = vmatpush1.bf16.xpose.msra.mxu0 %v1675
  %1780 = vmatprep.subr.bf16.mxu0 0
  %1781 = vmatpush1.bf16.xpose.msra.mxu0 %v1676
  %1782 = vmatprep.mubr.bf16.mxu0 0
  %1783 = vmatmul.mubr.bf16.gmra.mrb[0].mxu0 %v1452
  %v1784 = vpop.f32.mrb[0].mxu0
  %v1785 = vadd.f32 0.0, %v1784
  %v1786 = vpop.f32.mrb[0].mxu0
  %v1787 = vadd.f32 0.0, %v1786
  %v1788 = vpop.f32.mrb[0].mxu0
  %v1789 = vpop.f32.mrb[0].mxu0
  %1790 = vdwg.mxu0
  %v1791 = vadd.f32 %v1447, %v1744
  %v1792 = vadd.f32 %v1448, %v1746
  %v1793 = vadd.f32 %v1449, %v1785
  %v1794 = vadd.f32 %v1450, %v1787
  %v1795 = vld [vmem:[#allocation3] sm:$0xff]
  %v1796 = vxor.u32 %v1791, 2147483648
  %v1797 = vmul.f32 %v1796, 1.442695
  %v1798 = vpow.pop %v1797
  %v1799 = vadd.f32 %v1798, 1.0
  %v1800 = vrcp.pop %v1799
  %v1801 = vmul.f32 1.0, %v1800
  %v1802 = vxor.u32 %v1792, 2147483648
  %v1803 = vmul.f32 %v1802, 1.442695
  %v1804 = vpow.pop %v1803
  %v1805 = vadd.f32 %v1804, 1.0
  %v1806 = vrcp.pop %v1805
  %v1807 = vmul.f32 1.0, %v1806
  %v1808 = vtanh.pop %v1793
  %v1809 = vxor.u32 %v1794, 2147483648
  %v1810 = vmul.f32 %v1809, 1.442695
  %v1811 = vpow.pop %v1810
  %v1812 = vadd.f32 %v1811, 1.0
  %v1813 = vrcp.pop %v1812
  %v1814 = vmul.f32 1.0, %v1813
  %v1815 = vmul.f32 %v1807, %v1795
  %v1816 = vmul.f32 %v1801, %v1808
  %v1817 = vadd.f32 %v1815, %v1816
  %v1818 = vtanh.pop %v1817
  %v1819 = vmul.f32 %v1814, %v1818
  %1820 = vst [vmem:[#allocation2] sm:$0xff] %v1819
  %1821 = vst [vmem:[#allocation3] sm:$0xff] %v1817
  %v1822 = vld [vmem:[#allocation4] sm:$0xff]
  %v1823 = vpack.c.bf16 %v1819, %v1819
  %v1824 = vpack.c.bf16 %v1822, %v1822
  %v1825 = vld [vmem:[%s2] sm:$0xff]
  %v1826 = vld [vmem:[%s2 + $0x8] sm:$0xff]
  %v1827 = vld [vmem:[%s2 + $0x10] sm:$0xff]
  %v1828 = vld [vmem:[%s2 + $0x18] sm:$0xff]
  %v1829 = vld [vmem:[%s2 + $0x20] sm:$0xff]
  %v1830 = vld [vmem:[%s2 + $0x28] sm:$0xff]
  %v1831 = vld [vmem:[%s2 + $0x30] sm:$0xff]
  %v1832 = vld [vmem:[%s2 + $0x38] sm:$0xff]
  %v1833 = vld [vmem:[%s2 + $0x40] sm:$0xff]
  %v1834 = vld [vmem:[%s2 + $0x48] sm:$0xff]
  %v1835 = vld [vmem:[%s2 + $0x50] sm:$0xff]
  %v1836 = vld [vmem:[%s2 + $0x58] sm:$0xff]
  %v1837 = vld [vmem:[%s2 + $0x60] sm:$0xff]
  %v1838 = vld [vmem:[%s2 + $0x68] sm:$0xff]
  %v1839 = vld [vmem:[%s2 + $0x70] sm:$0xff]
  %v1840 = vld [vmem:[%s2 + $0x78] sm:$0xff]
  %v1841 = vld [vmem:[%s2 + $0x80] sm:$0xff]
  %v1842 = vld [vmem:[%s2 + $0x88] sm:$0xff]
  %v1843 = vld [vmem:[%s2 + $0x90] sm:$0xff]
  %v1844 = vld [vmem:[%s2 + $0x98] sm:$0xff]
  %v1845 = vld [vmem:[%s2 + $0xa0] sm:$0xff]
  %v1846 = vld [vmem:[%s2 + $0xa8] sm:$0xff]
  %v1847 = vld [vmem:[%s2 + $0xb0] sm:$0xff]
  %v1848 = vld [vmem:[%s2 + $0xb8] sm:$0xff]
  %v1849 = vld [vmem:[%s2 + $0xc0] sm:$0xff]
  %v1850 = vld [vmem:[%s2 + $0xc8] sm:$0xff]
  %v1851 = vld [vmem:[%s2 + $0xd0] sm:$0xff]
  %v1852 = vld [vmem:[%s2 + $0xd8] sm:$0xff]
  %v1853 = vld [vmem:[%s2 + $0xe0] sm:$0xff]
  %v1854 = vld [vmem:[%s2 + $0xe8] sm:$0xff]
  %v1855 = vld [vmem:[%s2 + $0xf0] sm:$0xff]
  %v1856 = vld [vmem:[%s2 + $0xf8] sm:$0xff]
  %v1857 = vld [vmem:[%s2 + $0x100] sm:$0xff]
  %v1858 = vld [vmem:[%s2 + $0x108] sm:$0xff]
  %v1859 = vld [vmem:[%s2 + $0x110] sm:$0xff]
  %v1860 = vld [vmem:[%s2 + $0x118] sm:$0xff]
  %v1861 = vld [vmem:[%s2 + $0x120] sm:$0xff]
  %v1862 = vld [vmem:[%s2 + $0x128] sm:$0xff]
  %v1863 = vld [vmem:[%s2 + $0x130] sm:$0xff]
  %v1864 = vld [vmem:[%s2 + $0x138] sm:$0xff]
  %v1865 = vld [vmem:[%s2 + $0x140] sm:$0xff]
  %v1866 = vld [vmem:[%s2 + $0x148] sm:$0xff]
  %v1867 = vld [vmem:[%s2 + $0x150] sm:$0xff]
  %v1868 = vld [vmem:[%s2 + $0x158] sm:$0xff]
  %v1869 = vld [vmem:[%s2 + $0x160] sm:$0xff]
  %v1870 = vld [vmem:[%s2 + $0x168] sm:$0xff]
  %v1871 = vld [vmem:[%s2 + $0x170] sm:$0xff]
  %v1872 = vld [vmem:[%s2 + $0x178] sm:$0xff]
  %v1873 = vld [vmem:[%s2 + $0x180] sm:$0xff]
  %v1874 = vld [vmem:[%s2 + $0x188] sm:$0xff]
  %v1875 = vld [vmem:[%s2 + $0x190] sm:$0xff]
  %v1876 = vld [vmem:[%s2 + $0x198] sm:$0xff]
  %v1877 = vld [vmem:[%s2 + $0x1a0] sm:$0xff]
  %v1878 = vld [vmem:[%s2 + $0x1a8] sm:$0xff]
  %v1879 = vld [vmem:[%s2 + $0x1b0] sm:$0xff]
  %v1880 = vld [vmem:[%s2 + $0x1b8] sm:$0xff]
  %v1881 = vld [vmem:[%s2 + $0x1c0] sm:$0xff]
  %v1882 = vld [vmem:[%s2 + $0x1c8] sm:$0xff]
  %v1883 = vld [vmem:[%s2 + $0x1d0] sm:$0xff]
  %v1884 = vld [vmem:[%s2 + $0x1d8] sm:$0xff]
  %v1885 = vld [vmem:[%s2 + $0x1e0] sm:$0xff]
  %v1886 = vld [vmem:[%s2 + $0x1e8] sm:$0xff]
  %v1887 = vld [vmem:[%s2 + $0x1f0] sm:$0xff]
  %v1888 = vld [vmem:[%s2 + $0x1f8] sm:$0xff]
  %v1889 = vld [vmem:[%s3] sm:$0xf]
  %v1891 = vlaneseq
  %v1892 = vshrl.u32 %v1891, 7
  %v1893 = vsub.s32 0, %v1892
  %v1894 = vrot.slane %v1889, %v1893
  %v1895 = vlaneseq
  %v1896 = vshrl.u32 %v1895, 7
  %v1897 = vsub.s32 1, %v1896
  %v1898 = vrot.slane %v1889, %v1897
  %v1899 = vlaneseq
  %v1900 = vshrl.u32 %v1899, 7
  %v1901 = vsub.s32 2, %v1900
  %v1902 = vrot.slane %v1889, %v1901
  %v1903 = vlaneseq
  %v1904 = vshrl.u32 %v1903, 7
  %v1905 = vsub.s32 3, %v1904
  %v1906 = vrot.slane %v1889, %v1905
  %v1975 = vunpack.c.l.b16 %v1825
  %v1976 = vunpack.c.h.b16 %v1825
  %v1977 = vunpack.c.l.b16 %v1826
  %v1978 = vunpack.c.h.b16 %v1826
  %v1979 = vunpack.c.l.b16 %v1827
  %v1980 = vunpack.c.h.b16 %v1827
  %v1981 = vunpack.c.l.b16 %v1828
  %v1982 = vunpack.c.h.b16 %v1828
  %v1983 = vunpack.c.l.b16 %v1829
  %v1984 = vunpack.c.h.b16 %v1829
  %v1985 = vunpack.c.l.b16 %v1830
  %v1986 = vunpack.c.h.b16 %v1830
  %v1987 = vunpack.c.l.b16 %v1831
  %v1988 = vunpack.c.h.b16 %v1831
  %v1989 = vunpack.c.l.b16 %v1832
  %v1990 = vunpack.c.h.b16 %v1832
  %v1991 = vunpack.c.l.b16 %v1833
  %v1992 = vunpack.c.h.b16 %v1833
  %v1993 = vunpack.c.l.b16 %v1834
  %v1994 = vunpack.c.h.b16 %v1834
  %v1995 = vunpack.c.l.b16 %v1835
  %v1996 = vunpack.c.h.b16 %v1835
  %v1997 = vunpack.c.l.b16 %v1836
  %v1998 = vunpack.c.h.b16 %v1836
  %v1999 = vunpack.c.l.b16 %v1837
  %v2000 = vunpack.c.h.b16 %v1837
  %v2001 = vunpack.c.l.b16 %v1838
  %v2002 = vunpack.c.h.b16 %v1838
  %v2003 = vunpack.c.l.b16 %v1839
  %v2004 = vunpack.c.h.b16 %v1839
  %v2005 = vunpack.c.l.b16 %v1840
  %v2006 = vunpack.c.h.b16 %v1840
  %v2007 = vunpack.c.l.b16 %v1841
  %v2008 = vunpack.c.h.b16 %v1841
  %v2009 = vunpack.c.l.b16 %v1842
  %v2010 = vunpack.c.h.b16 %v1842
  %v2011 = vunpack.c.l.b16 %v1843
  %v2012 = vunpack.c.h.b16 %v1843
  %v2013 = vunpack.c.l.b16 %v1844
  %v2014 = vunpack.c.h.b16 %v1844
  %v2015 = vunpack.c.l.b16 %v1845
  %v2016 = vunpack.c.h.b16 %v1845
  %v2017 = vunpack.c.l.b16 %v1846
  %v2018 = vunpack.c.h.b16 %v1846
  %v2019 = vunpack.c.l.b16 %v1847
  %v2020 = vunpack.c.h.b16 %v1847
  %v2021 = vunpack.c.l.b16 %v1848
  %v2022 = vunpack.c.h.b16 %v1848
  %v2023 = vunpack.c.l.b16 %v1849
  %v2024 = vunpack.c.h.b16 %v1849
  %v2025 = vunpack.c.l.b16 %v1850
  %v2026 = vunpack.c.h.b16 %v1850
  %v2027 = vunpack.c.l.b16 %v1851
  %v2028 = vunpack.c.h.b16 %v1851
  %v2029 = vunpack.c.l.b16 %v1852
  %v2030 = vunpack.c.h.b16 %v1852
  %v2031 = vunpack.c.l.b16 %v1853
  %v2032 = vunpack.c.h.b16 %v1853
  %v2033 = vunpack.c.l.b16 %v1854
  %v2034 = vunpack.c.h.b16 %v1854
  %v2035 = vunpack.c.l.b16 %v1855
  %v2036 = vunpack.c.h.b16 %v1855
  %v2037 = vunpack.c.l.b16 %v1856
  %v2038 = vunpack.c.h.b16 %v1856
  %v2039 = vunpack.c.l.b16 %v1857
  %v2040 = vunpack.c.h.b16 %v1857
  %v2041 = vunpack.c.l.b16 %v1858
  %v2042 = vunpack.c.h.b16 %v1858
  %v2043 = vunpack.c.l.b16 %v1859
  %v2044 = vunpack.c.h.b16 %v1859
  %v2045 = vunpack.c.l.b16 %v1860
  %v2046 = vunpack.c.h.b16 %v1860
  %v2047 = vunpack.c.l.b16 %v1861
  %v2048 = vunpack.c.h.b16 %v1861
  %v2049 = vunpack.c.l.b16 %v1862
  %v2050 = vunpack.c.h.b16 %v1862
  %v2051 = vunpack.c.l.b16 %v1863
  %v2052 = vunpack.c.h.b16 %v1863
  %v2053 = vunpack.c.l.b16 %v1864
  %v2054 = vunpack.c.h.b16 %v1864
  %v2055 = vunpack.c.l.b16 %v1865
  %v2056 = vunpack.c.h.b16 %v1865
  %v2057 = vunpack.c.l.b16 %v1866
  %v2058 = vunpack.c.h.b16 %v1866
  %v2059 = vunpack.c.l.b16 %v1867
  %v2060 = vunpack.c.h.b16 %v1867
  %v2061 = vunpack.c.l.b16 %v1868
  %v2062 = vunpack.c.h.b16 %v1868
  %v2063 = vunpack.c.l.b16 %v1869
  %v2064 = vunpack.c.h.b16 %v1869
  %v2065 = vunpack.c.l.b16 %v1870
  %v2066 = vunpack.c.h.b16 %v1870
  %v2067 = vunpack.c.l.b16 %v1871
  %v2068 = vunpack.c.h.b16 %v1871
  %v2069 = vunpack.c.l.b16 %v1872
  %v2070 = vunpack.c.h.b16 %v1872
  %v2071 = vunpack.c.l.b16 %v1873
  %v2072 = vunpack.c.h.b16 %v1873
  %v2073 = vunpack.c.l.b16 %v1874
  %v2074 = vunpack.c.h.b16 %v1874
  %v2075 = vunpack.c.l.b16 %v1875
  %v2076 = vunpack.c.h.b16 %v1875
  %v2077 = vunpack.c.l.b16 %v1876
  %v2078 = vunpack.c.h.b16 %v1876
  %v2079 = vunpack.c.l.b16 %v1877
  %v2080 = vunpack.c.h.b16 %v1877
  %v2081 = vunpack.c.l.b16 %v1878
  %v2082 = vunpack.c.h.b16 %v1878
  %v2083 = vunpack.c.l.b16 %v1879
  %v2084 = vunpack.c.h.b16 %v1879
  %v2085 = vunpack.c.l.b16 %v1880
  %v2086 = vunpack.c.h.b16 %v1880
  %v2087 = vunpack.c.l.b16 %v1881
  %v2088 = vunpack.c.h.b16 %v1881
  %v2089 = vunpack.c.l.b16 %v1882
  %v2090 = vunpack.c.h.b16 %v1882
  %v2091 = vunpack.c.l.b16 %v1883
  %v2092 = vunpack.c.h.b16 %v1883
  %v2093 = vunpack.c.l.b16 %v1884
  %v2094 = vunpack.c.h.b16 %v1884
  %v2095 = vunpack.c.l.b16 %v1885
  %v2096 = vunpack.c.h.b16 %v1885
  %v2097 = vunpack.c.l.b16 %v1886
  %v2098 = vunpack.c.h.b16 %v1886
  %v2099 = vunpack.c.l.b16 %v1887
  %v2100 = vunpack.c.h.b16 %v1887
  %v2101 = vunpack.c.l.b16 %v1888
  %v2102 = vunpack.c.h.b16 %v1888
  %v2103 = vpack.c.b16 %v1977, %v1975
  %v2104 = vpack.c.b16 %v1978, %v1976
  %v2105 = vpack.c.b16 %v1981, %v1979
  %v2106 = vpack.c.b16 %v1982, %v1980
  %v2107 = vpack.c.b16 %v1985, %v1983
  %v2108 = vpack.c.b16 %v1986, %v1984
  %v2109 = vpack.c.b16 %v1989, %v1987
  %v2110 = vpack.c.b16 %v1990, %v1988
  %v2111 = vpack.c.b16 %v1993, %v1991
  %v2112 = vpack.c.b16 %v1994, %v1992
  %v2113 = vpack.c.b16 %v1997, %v1995
  %v2114 = vpack.c.b16 %v1998, %v1996
  %v2115 = vpack.c.b16 %v2001, %v1999
  %v2116 = vpack.c.b16 %v2002, %v2000
  %v2117 = vpack.c.b16 %v2005, %v2003
  %v2118 = vpack.c.b16 %v2006, %v2004
  %v2119 = vpack.c.b16 %v2009, %v2007
  %v2120 = vpack.c.b16 %v2010, %v2008
  %v2121 = vpack.c.b16 %v2013, %v2011
  %v2122 = vpack.c.b16 %v2014, %v2012
  %v2123 = vpack.c.b16 %v2017, %v2015
  %v2124 = vpack.c.b16 %v2018, %v2016
  %v2125 = vpack.c.b16 %v2021, %v2019
  %v2126 = vpack.c.b16 %v2022, %v2020
  %v2127 = vpack.c.b16 %v2025, %v2023
  %v2128 = vpack.c.b16 %v2026, %v2024
  %v2129 = vpack.c.b16 %v2029, %v2027
  %v2130 = vpack.c.b16 %v2030, %v2028
  %v2131 = vpack.c.b16 %v2033, %v2031
  %v2132 = vpack.c.b16 %v2034, %v2032
  %v2133 = vpack.c.b16 %v2037, %v2035
  %v2134 = vpack.c.b16 %v2038, %v2036
  %v2135 = vpack.c.b16 %v2041, %v2039
  %v2136 = vpack.c.b16 %v2042, %v2040
  %v2137 = vpack.c.b16 %v2045, %v2043
  %v2138 = vpack.c.b16 %v2046, %v2044
  %v2139 = vpack.c.b16 %v2049, %v2047
  %v2140 = vpack.c.b16 %v2050, %v2048
  %v2141 = vpack.c.b16 %v2053, %v2051
  %v2142 = vpack.c.b16 %v2054, %v2052
  %v2143 = vpack.c.b16 %v2057, %v2055
  %v2144 = vpack.c.b16 %v2058, %v2056
  %v2145 = vpack.c.b16 %v2061, %v2059
  %v2146 = vpack.c.b16 %v2062, %v2060
  %v2147 = vpack.c.b16 %v2065, %v2063
  %v2148 = vpack.c.b16 %v2066, %v2064
  %v2149 = vpack.c.b16 %v2069, %v2067
  %v2150 = vpack.c.b16 %v2070, %v2068
  %v2151 = vpack.c.b16 %v2073, %v2071
  %v2152 = vpack.c.b16 %v2074, %v2072
  %v2153 = vpack.c.b16 %v2077, %v2075
  %v2154 = vpack.c.b16 %v2078, %v2076
  %v2155 = vpack.c.b16 %v2081, %v2079
  %v2156 = vpack.c.b16 %v2082, %v2080
  %v2157 = vpack.c.b16 %v2085, %v2083
  %v2158 = vpack.c.b16 %v2086, %v2084
  %v2159 = vpack.c.b16 %v2089, %v2087
  %v2160 = vpack.c.b16 %v2090, %v2088
  %v2161 = vpack.c.b16 %v2093, %v2091
  %v2162 = vpack.c.b16 %v2094, %v2092
  %v2163 = vpack.c.b16 %v2097, %v2095
  %v2164 = vpack.c.b16 %v2098, %v2096
  %v2165 = vpack.c.b16 %v2101, %v2099
  %v2166 = vpack.c.b16 %v2102, %v2100
  %2231 = vmatprep.subr.bf16.mxu0 %v2104
  %2232 = vmatpush1.bf16.xpose.msra.mxu0 %v2103
  %2233 = vmatprep.subr.bf16.mxu0 %v2106
  %2234 = vmatpush1.bf16.xpose.msra.mxu0 %v2105
  %2235 = vmatprep.subr.bf16.mxu0 %v2108
  %2236 = vmatpush1.bf16.xpose.msra.mxu0 %v2107
  %2237 = vmatprep.subr.bf16.mxu0 %v2110
  %2238 = vmatpush1.bf16.xpose.msra.mxu0 %v2109
  %2239 = vmatprep.subr.bf16.mxu0 %v2112
  %2240 = vmatpush1.bf16.xpose.msra.mxu0 %v2111
  %2241 = vmatprep.subr.bf16.mxu0 %v2114
  %2242 = vmatpush1.bf16.xpose.msra.mxu0 %v2113
  %2243 = vmatprep.subr.bf16.mxu0 %v2116
  %2244 = vmatpush1.bf16.xpose.msra.mxu0 %v2115
  %2245 = vmatprep.subr.bf16.mxu0 %v2118
  %2246 = vmatpush1.bf16.xpose.msra.mxu0 %v2117
  %2247 = vmatprep.subr.bf16.mxu0 %v2120
  %2248 = vmatpush1.bf16.xpose.msra.mxu0 %v2119
  %2249 = vmatprep.subr.bf16.mxu0 %v2122
  %2250 = vmatpush1.bf16.xpose.msra.mxu0 %v2121
  %2251 = vmatprep.subr.bf16.mxu0 %v2124
  %2252 = vmatpush1.bf16.xpose.msra.mxu0 %v2123
  %2253 = vmatprep.subr.bf16.mxu0 %v2126
  %2254 = vmatpush1.bf16.xpose.msra.mxu0 %v2125
  %2255 = vmatprep.subr.bf16.mxu0 %v2128
  %2256 = vmatpush1.bf16.xpose.msra.mxu0 %v2127
  %2257 = vmatprep.subr.bf16.mxu0 %v2130
  %2258 = vmatpush1.bf16.xpose.msra.mxu0 %v2129
  %2259 = vmatprep.subr.bf16.mxu0 %v2132
  %2260 = vmatpush1.bf16.xpose.msra.mxu0 %v2131
  %2261 = vmatprep.subr.bf16.mxu0 %v2134
  %2262 = vmatpush1.bf16.xpose.msra.mxu0 %v2133
  %2263 = vmatprep.mubr.bf16.mxu0 %v1824
  %2264 = vmatmul.mubr.bf16.gmra.mrb[0].mxu0 %v1823
  %v2265 = vpop.f32.mrb[0].mxu0
  %v2266 = vadd.f32 %v1894, %v2265
  %v2267 = vpop.f32.mrb[0].mxu0
  %v2268 = vadd.f32 %v1898, %v2267
  %v2269 = vpop.f32.mrb[0].mxu0
  %v2270 = vpop.f32.mrb[0].mxu0
  %2271 = vdwg.mxu0
  %2272 = vmatprep.subr.bf16.mxu0 %v2136
  %2273 = vmatpush1.bf16.xpose.msra.mxu0 %v2135
  %2274 = vmatprep.subr.bf16.mxu0 %v2138
  %2275 = vmatpush1.bf16.xpose.msra.mxu0 %v2137
  %2276 = vmatprep.subr.bf16.mxu0 %v2140
  %2277 = vmatpush1.bf16.xpose.msra.mxu0 %v2139
  %2278 = vmatprep.subr.bf16.mxu0 %v2142
  %2279 = vmatpush1.bf16.xpose.msra.mxu0 %v2141
  %2280 = vmatprep.subr.bf16.mxu0 %v2144
  %2281 = vmatpush1.bf16.xpose.msra.mxu0 %v2143
  %2282 = vmatprep.subr.bf16.mxu0 %v2146
  %2283 = vmatpush1.bf16.xpose.msra.mxu0 %v2145
  %2284 = vmatprep.subr.bf16.mxu0 %v2148
  %2285 = vmatpush1.bf16.xpose.msra.mxu0 %v2147
  %2286 = vmatprep.subr.bf16.mxu0 %v2150
  %2287 = vmatpush1.bf16.xpose.msra.mxu0 %v2149
  %2288 = vmatprep.subr.bf16.mxu0 %v2152
  %2289 = vmatpush1.bf16.xpose.msra.mxu0 %v2151
  %2290 = vmatprep.subr.bf16.mxu0 %v2154
  %2291 = vmatpush1.bf16.xpose.msra.mxu0 %v2153
  %2292 = vmatprep.subr.bf16.mxu0 %v2156
  %2293 = vmatpush1.bf16.xpose.msra.mxu0 %v2155
  %2294 = vmatprep.subr.bf16.mxu0 %v2158
  %2295 = vmatpush1.bf16.xpose.msra.mxu0 %v2157
  %2296 = vmatprep.subr.bf16.mxu0 %v2160
  %2297 = vmatpush1.bf16.xpose.msra.mxu0 %v2159
  %2298 = vmatprep.subr.bf16.mxu0 %v2162
  %2299 = vmatpush1.bf16.xpose.msra.mxu0 %v2161
  %2300 = vmatprep.subr.bf16.mxu0 %v2164
  %2301 = vmatpush1.bf16.xpose.msra.mxu0 %v2163
  %2302 = vmatprep.subr.bf16.mxu0 %v2166
  %2303 = vmatpush1.bf16.xpose.msra.mxu0 %v2165
  %2304 = vmatprep.mubr.bf16.mxu0 %v1824
  %2305 = vmatmul.mubr.bf16.gmra.mrb[0].mxu0 %v1823
  %v2306 = vpop.f32.mrb[0].mxu0
  %v2307 = vadd.f32 %v1902, %v2306
  %v2308 = vpop.f32.mrb[0].mxu0
  %v2309 = vadd.f32 %v1906, %v2308
  %v2310 = vpop.f32.mrb[0].mxu0
  %v2311 = vpop.f32.mrb[0].mxu0
  %2312 = vdwg.mxu0
  %v2313 = vld [vmem:[#allocation5] sm:$0xff]
  %v2314 = vxor.u32 %v2266, 2147483648
  %v2315 = vmul.f32 %v2314, 1.442695
  %v2316 = vpow.pop %v2315
  %v2317 = vadd.f32 %v2316, 1.0
  %v2318 = vrcp.pop %v2317
  %v2319 = vmul.f32 1.0, %v2318
  %v2320 = vxor.u32 %v2268, 2147483648
  %v2321 = vmul.f32 %v2320, 1.442695
  %v2322 = vpow.pop %v2321
  %v2323 = vadd.f32 %v2322, 1.0
  %v2324 = vrcp.pop %v2323
  %v2325 = vmul.f32 1.0, %v2324
  %v2326 = vtanh.pop %v2307
  %v2327 = vxor.u32 %v2309, 2147483648
  %v2328 = vmul.f32 %v2327, 1.442695
  %v2329 = vpow.pop %v2328
  %v2330 = vadd.f32 %v2329, 1.0
  %v2331 = vrcp.pop %v2330
  %v2332 = vmul.f32 1.0, %v2331
  %v2333 = vmul.f32 %v2325, %v2313
  %v2334 = vmul.f32 %v2319, %v2326
  %v2335 = vadd.f32 %v2333, %v2334
  %v2336 = vtanh.pop %v2335
  %v2337 = vmul.f32 %v2332, %v2336
  %2338 = vst [vmem:[#allocation4] sm:$0xff] %v2337
  %2339 = vst [vmem:[#allocation5] sm:$0xff] %v2335
  %v2340 = vld [vmem:[#allocation6] sm:$0xff]
  %v2341 = vpack.c.bf16 %v2337, %v2337
  %v2342 = vpack.c.bf16 %v2340, %v2340
  %v2343 = vld [vmem:[%s4] sm:$0xff]
  %v2344 = vld [vmem:[%s4 + $0x8] sm:$0xff]
  %v2345 = vld [vmem:[%s4 + $0x10] sm:$0xff]
  %v2346 = vld [vmem:[%s4 + $0x18] sm:$0xff]
  %v2347 = vld [vmem:[%s4 + $0x20] sm:$0xff]
  %v2348 = vld [vmem:[%s4 + $0x28] sm:$0xff]
  %v2349 = vld [vmem:[%s4 + $0x30] sm:$0xff]
  %v2350 = vld [vmem:[%s4 + $0x38] sm:$0xff]
  %v2351 = vld [vmem:[%s4 + $0x40] sm:$0xff]
  %v2352 = vld [vmem:[%s4 + $0x48] sm:$0xff]
  %v2353 = vld [vmem:[%s4 + $0x50] sm:$0xff]
  %v2354 = vld [vmem:[%s4 + $0x58] sm:$0xff]
  %v2355 = vld [vmem:[%s4 + $0x60] sm:$0xff]
  %v2356 = vld [vmem:[%s4 + $0x68] sm:$0xff]
  %v2357 = vld [vmem:[%s4 + $0x70] sm:$0xff]
  %v2358 = vld [vmem:[%s4 + $0x78] sm:$0xff]
  %v2359 = vld [vmem:[%s4 + $0x80] sm:$0xff]
  %v2360 = vld [vmem:[%s4 + $0x88] sm:$0xff]
  %v2361 = vld [vmem:[%s4 + $0x90] sm:$0xff]
  %v2362 = vld [vmem:[%s4 + $0x98] sm:$0xff]
  %v2363 = vld [vmem:[%s4 + $0xa0] sm:$0xff]
  %v2364 = vld [vmem:[%s4 + $0xa8] sm:$0xff]
  %v2365 = vld [vmem:[%s4 + $0xb0] sm:$0xff]
  %v2366 = vld [vmem:[%s4 + $0xb8] sm:$0xff]
  %v2367 = vld [vmem:[%s4 + $0xc0] sm:$0xff]
  %v2368 = vld [vmem:[%s4 + $0xc8] sm:$0xff]
  %v2369 = vld [vmem:[%s4 + $0xd0] sm:$0xff]
  %v2370 = vld [vmem:[%s4 + $0xd8] sm:$0xff]
  %v2371 = vld [vmem:[%s4 + $0xe0] sm:$0xff]
  %v2372 = vld [vmem:[%s4 + $0xe8] sm:$0xff]
  %v2373 = vld [vmem:[%s4 + $0xf0] sm:$0xff]
  %v2374 = vld [vmem:[%s4 + $0xf8] sm:$0xff]
  %v2375 = vld [vmem:[%s4 + $0x100] sm:$0xff]
  %v2376 = vld [vmem:[%s4 + $0x108] sm:$0xff]
  %v2377 = vld [vmem:[%s4 + $0x110] sm:$0xff]
  %v2378 = vld [vmem:[%s4 + $0x118] sm:$0xff]
  %v2379 = vld [vmem:[%s4 + $0x120] sm:$0xff]
  %v2380 = vld [vmem:[%s4 + $0x128] sm:$0xff]
  %v2381 = vld [vmem:[%s4 + $0x130] sm:$0xff]
  %v2382 = vld [vmem:[%s4 + $0x138] sm:$0xff]
  %v2383 = vld [vmem:[%s4 + $0x140] sm:$0xff]
  %v2384 = vld [vmem:[%s4 + $0x148] sm:$0xff]
  %v2385 = vld [vmem:[%s4 + $0x150] sm:$0xff]
  %v2386 = vld [vmem:[%s4 + $0x158] sm:$0xff]
  %v2387 = vld [vmem:[%s4 + $0x160] sm:$0xff]
  %v2388 = vld [vmem:[%s4 + $0x168] sm:$0xff]
  %v2389 = vld [vmem:[%s4 + $0x170] sm:$0xff]
  %v2390 = vld [vmem:[%s4 + $0x178] sm:$0xff]
  %v2391 = vld [vmem:[%s4 + $0x180] sm:$0xff]
  %v2392 = vld [vmem:[%s4 + $0x188] sm:$0xff]
  %v2393 = vld [vmem:[%s4 + $0x190] sm:$0xff]
  %v2394 = vld [vmem:[%s4 + $0x198] sm:$0xff]
  %v2395 = vld [vmem:[%s4 + $0x1a0] sm:$0xff]
  %v2396 = vld [vmem:[%s4 + $0x1a8] sm:$0xff]
  %v2397 = vld [vmem:[%s4 + $0x1b0] sm:$0xff]
  %v2398 = vld [vmem:[%s4 + $0x1b8] sm:$0xff]
  %v2399 = vld [vmem:[%s4 + $0x1c0] sm:$0xff]
  %v2400 = vld [vmem:[%s4 + $0x1c8] sm:$0xff]
  %v2401 = vld [vmem:[%s4 + $0x1d0] sm:$0xff]
  %v2402 = vld [vmem:[%s4 + $0x1d8] sm:$0xff]
  %v2403 = vld [vmem:[%s4 + $0x1e0] sm:$0xff]
  %v2404 = vld [vmem:[%s4 + $0x1e8] sm:$0xff]
  %v2405 = vld [vmem:[%s4 + $0x1f0] sm:$0xff]
  %v2406 = vld [vmem:[%s4 + $0x1f8] sm:$0xff]
  %v2407 = vld [vmem:[%s5] sm:$0xf]
  %v2409 = vlaneseq
  %v2410 = vshrl.u32 %v2409, 7
  %v2411 = vsub.s32 0, %v2410
  %v2412 = vrot.slane %v2407, %v2411
  %v2413 = vlaneseq
  %v2414 = vshrl.u32 %v2413, 7
  %v2415 = vsub.s32 1, %v2414
  %v2416 = vrot.slane %v2407, %v2415
  %v2417 = vlaneseq
  %v2418 = vshrl.u32 %v2417, 7
  %v2419 = vsub.s32 2, %v2418
  %v2420 = vrot.slane %v2407, %v2419
  %v2421 = vlaneseq
  %v2422 = vshrl.u32 %v2421, 7
  %v2423 = vsub.s32 3, %v2422
  %v2424 = vrot.slane %v2407, %v2423
  %v2493 = vunpack.c.l.b16 %v2343
  %v2494 = vunpack.c.h.b16 %v2343
  %v2495 = vunpack.c.l.b16 %v2344
  %v2496 = vunpack.c.h.b16 %v2344
  %v2497 = vunpack.c.l.b16 %v2345
  %v2498 = vunpack.c.h.b16 %v2345
  %v2499 = vunpack.c.l.b16 %v2346
  %v2500 = vunpack.c.h.b16 %v2346
  %v2501 = vunpack.c.l.b16 %v2347
  %v2502 = vunpack.c.h.b16 %v2347
  %v2503 = vunpack.c.l.b16 %v2348
  %v2504 = vunpack.c.h.b16 %v2348
  %v2505 = vunpack.c.l.b16 %v2349
  %v2506 = vunpack.c.h.b16 %v2349
  %v2507 = vunpack.c.l.b16 %v2350
  %v2508 = vunpack.c.h.b16 %v2350
  %v2509 = vunpack.c.l.b16 %v2351
  %v2510 = vunpack.c.h.b16 %v2351
  %v2511 = vunpack.c.l.b16 %v2352
  %v2512 = vunpack.c.h.b16 %v2352
  %v2513 = vunpack.c.l.b16 %v2353
  %v2514 = vunpack.c.h.b16 %v2353
  %v2515 = vunpack.c.l.b16 %v2354
  %v2516 = vunpack.c.h.b16 %v2354
  %v2517 = vunpack.c.l.b16 %v2355
  %v2518 = vunpack.c.h.b16 %v2355
  %v2519 = vunpack.c.l.b16 %v2356
  %v2520 = vunpack.c.h.b16 %v2356
  %v2521 = vunpack.c.l.b16 %v2357
  %v2522 = vunpack.c.h.b16 %v2357
  %v2523 = vunpack.c.l.b16 %v2358
  %v2524 = vunpack.c.h.b16 %v2358
  %v2525 = vunpack.c.l.b16 %v2359
  %v2526 = vunpack.c.h.b16 %v2359
  %v2527 = vunpack.c.l.b16 %v2360
  %v2528 = vunpack.c.h.b16 %v2360
  %v2529 = vunpack.c.l.b16 %v2361
  %v2530 = vunpack.c.h.b16 %v2361
  %v2531 = vunpack.c.l.b16 %v2362
  %v2532 = vunpack.c.h.b16 %v2362
  %v2533 = vunpack.c.l.b16 %v2363
  %v2534 = vunpack.c.h.b16 %v2363
  %v2535 = vunpack.c.l.b16 %v2364
  %v2536 = vunpack.c.h.b16 %v2364
  %v2537 = vunpack.c.l.b16 %v2365
  %v2538 = vunpack.c.h.b16 %v2365
  %v2539 = vunpack.c.l.b16 %v2366
  %v2540 = vunpack.c.h.b16 %v2366
  %v2541 = vunpack.c.l.b16 %v2367
  %v2542 = vunpack.c.h.b16 %v2367
  %v2543 = vunpack.c.l.b16 %v2368
  %v2544 = vunpack.c.h.b16 %v2368
  %v2545 = vunpack.c.l.b16 %v2369
  %v2546 = vunpack.c.h.b16 %v2369
  %v2547 = vunpack.c.l.b16 %v2370
  %v2548 = vunpack.c.h.b16 %v2370
  %v2549 = vunpack.c.l.b16 %v2371
  %v2550 = vunpack.c.h.b16 %v2371
  %v2551 = vunpack.c.l.b16 %v2372
  %v2552 = vunpack.c.h.b16 %v2372
  %v2553 = vunpack.c.l.b16 %v2373
  %v2554 = vunpack.c.h.b16 %v2373
  %v2555 = vunpack.c.l.b16 %v2374
  %v2556 = vunpack.c.h.b16 %v2374
  %v2557 = vunpack.c.l.b16 %v2375
  %v2558 = vunpack.c.h.b16 %v2375
  %v2559 = vunpack.c.l.b16 %v2376
  %v2560 = vunpack.c.h.b16 %v2376
  %v2561 = vunpack.c.l.b16 %v2377
  %v2562 = vunpack.c.h.b16 %v2377
  %v2563 = vunpack.c.l.b16 %v2378
  %v2564 = vunpack.c.h.b16 %v2378
  %v2565 = vunpack.c.l.b16 %v2379
  %v2566 = vunpack.c.h.b16 %v2379
  %v2567 = vunpack.c.l.b16 %v2380
  %v2568 = vunpack.c.h.b16 %v2380
  %v2569 = vunpack.c.l.b16 %v2381
  %v2570 = vunpack.c.h.b16 %v2381
  %v2571 = vunpack.c.l.b16 %v2382
  %v2572 = vunpack.c.h.b16 %v2382
  %v2573 = vunpack.c.l.b16 %v2383
  %v2574 = vunpack.c.h.b16 %v2383
  %v2575 = vunpack.c.l.b16 %v2384
  %v2576 = vunpack.c.h.b16 %v2384
  %v2577 = vunpack.c.l.b16 %v2385
  %v2578 = vunpack.c.h.b16 %v2385
  %v2579 = vunpack.c.l.b16 %v2386
  %v2580 = vunpack.c.h.b16 %v2386
  %v2581 = vunpack.c.l.b16 %v2387
  %v2582 = vunpack.c.h.b16 %v2387
  %v2583 = vunpack.c.l.b16 %v2388
  %v2584 = vunpack.c.h.b16 %v2388
  %v2585 = vunpack.c.l.b16 %v2389
  %v2586 = vunpack.c.h.b16 %v2389
  %v2587 = vunpack.c.l.b16 %v2390
  %v2588 = vunpack.c.h.b16 %v2390
  %v2589 = vunpack.c.l.b16 %v2391
  %v2590 = vunpack.c.h.b16 %v2391
  %v2591 = vunpack.c.l.b16 %v2392
  %v2592 = vunpack.c.h.b16 %v2392
  %v2593 = vunpack.c.l.b16 %v2393
  %v2594 = vunpack.c.h.b16 %v2393
  %v2595 = vunpack.c.l.b16 %v2394
  %v2596 = vunpack.c.h.b16 %v2394
  %v2597 = vunpack.c.l.b16 %v2395
  %v2598 = vunpack.c.h.b16 %v2395
  %v2599 = vunpack.c.l.b16 %v2396
  %v2600 = vunpack.c.h.b16 %v2396
  %v2601 = vunpack.c.l.b16 %v2397
  %v2602 = vunpack.c.h.b16 %v2397
  %v2603 = vunpack.c.l.b16 %v2398
  %v2604 = vunpack.c.h.b16 %v2398
  %v2605 = vunpack.c.l.b16 %v2399
  %v2606 = vunpack.c.h.b16 %v2399
  %v2607 = vunpack.c.l.b16 %v2400
  %v2608 = vunpack.c.h.b16 %v2400
  %v2609 = vunpack.c.l.b16 %v2401
  %v2610 = vunpack.c.h.b16 %v2401
  %v2611 = vunpack.c.l.b16 %v2402
  %v2612 = vunpack.c.h.b16 %v2402
  %v2613 = vunpack.c.l.b16 %v2403
  %v2614 = vunpack.c.h.b16 %v2403
  %v2615 = vunpack.c.l.b16 %v2404
  %v2616 = vunpack.c.h.b16 %v2404
  %v2617 = vunpack.c.l.b16 %v2405
  %v2618 = vunpack.c.h.b16 %v2405
  %v2619 = vunpack.c.l.b16 %v2406
  %v2620 = vunpack.c.h.b16 %v2406
  %v2621 = vpack.c.b16 %v2495, %v2493
  %v2622 = vpack.c.b16 %v2496, %v2494
  %v2623 = vpack.c.b16 %v2499, %v2497
  %v2624 = vpack.c.b16 %v2500, %v2498
  %v2625 = vpack.c.b16 %v2503, %v2501
  %v2626 = vpack.c.b16 %v2504, %v2502
  %v2627 = vpack.c.b16 %v2507, %v2505
  %v2628 = vpack.c.b16 %v2508, %v2506
  %v2629 = vpack.c.b16 %v2511, %v2509
  %v2630 = vpack.c.b16 %v2512, %v2510
  %v2631 = vpack.c.b16 %v2515, %v2513
  %v2632 = vpack.c.b16 %v2516, %v2514
  %v2633 = vpack.c.b16 %v2519, %v2517
  %v2634 = vpack.c.b16 %v2520, %v2518
  %v2635 = vpack.c.b16 %v2523, %v2521
  %v2636 = vpack.c.b16 %v2524, %v2522
  %v2637 = vpack.c.b16 %v2527, %v2525
  %v2638 = vpack.c.b16 %v2528, %v2526
  %v2639 = vpack.c.b16 %v2531, %v2529
  %v2640 = vpack.c.b16 %v2532, %v2530
  %v2641 = vpack.c.b16 %v2535, %v2533
  %v2642 = vpack.c.b16 %v2536, %v2534
  %v2643 = vpack.c.b16 %v2539, %v2537
  %v2644 = vpack.c.b16 %v2540, %v2538
  %v2645 = vpack.c.b16 %v2543, %v2541
  %v2646 = vpack.c.b16 %v2544, %v2542
  %v2647 = vpack.c.b16 %v2547, %v2545
  %v2648 = vpack.c.b16 %v2548, %v2546
  %v2649 = vpack.c.b16 %v2551, %v2549
  %v2650 = vpack.c.b16 %v2552, %v2550
  %v2651 = vpack.c.b16 %v2555, %v2553
  %v2652 = vpack.c.b16 %v2556, %v2554
  %v2653 = vpack.c.b16 %v2559, %v2557
  %v2654 = vpack.c.b16 %v2560, %v2558
  %v2655 = vpack.c.b16 %v2563, %v2561
  %v2656 = vpack.c.b16 %v2564, %v2562
  %v2657 = vpack.c.b16 %v2567, %v2565
  %v2658 = vpack.c.b16 %v2568, %v2566
  %v2659 = vpack.c.b16 %v2571, %v2569
  %v2660 = vpack.c.b16 %v2572, %v2570
  %v2661 = vpack.c.b16 %v2575, %v2573
  %v2662 = vpack.c.b16 %v2576, %v2574
  %v2663 = vpack.c.b16 %v2579, %v2577
  %v2664 = vpack.c.b16 %v2580, %v2578
  %v2665 = vpack.c.b16 %v2583, %v2581
  %v2666 = vpack.c.b16 %v2584, %v2582
  %v2667 = vpack.c.b16 %v2587, %v2585
  %v2668 = vpack.c.b16 %v2588, %v2586
  %v2669 = vpack.c.b16 %v2591, %v2589
  %v2670 = vpack.c.b16 %v2592, %v2590
  %v2671 = vpack.c.b16 %v2595, %v2593
  %v2672 = vpack.c.b16 %v2596, %v2594
  %v2673 = vpack.c.b16 %v2599, %v2597
  %v2674 = vpack.c.b16 %v2600, %v2598
  %v2675 = vpack.c.b16 %v2603, %v2601
  %v2676 = vpack.c.b16 %v2604, %v2602
  %v2677 = vpack.c.b16 %v2607, %v2605
  %v2678 = vpack.c.b16 %v2608, %v2606
  %v2679 = vpack.c.b16 %v2611, %v2609
  %v2680 = vpack.c.b16 %v2612, %v2610
  %v2681 = vpack.c.b16 %v2615, %v2613
  %v2682 = vpack.c.b16 %v2616, %v2614
  %v2683 = vpack.c.b16 %v2619, %v2617
  %v2684 = vpack.c.b16 %v2620, %v2618
  %2749 = vmatprep.subr.bf16.mxu0 %v2622
  %2750 = vmatpush1.bf16.xpose.msra.mxu0 %v2621
  %2751 = vmatprep.subr.bf16.mxu0 %v2624
  %2752 = vmatpush1.bf16.xpose.msra.mxu0 %v2623
  %2753 = vmatprep.subr.bf16.mxu0 %v2626
  %2754 = vmatpush1.bf16.xpose.msra.mxu0 %v2625
  %2755 = vmatprep.subr.bf16.mxu0 %v2628
  %2756 = vmatpush1.bf16.xpose.msra.mxu0 %v2627
  %2757 = vmatprep.subr.bf16.mxu0 %v2630
  %2758 = vmatpush1.bf16.xpose.msra.mxu0 %v2629
  %2759 = vmatprep.subr.bf16.mxu0 %v2632
  %2760 = vmatpush1.bf16.xpose.msra.mxu0 %v2631
  %2761 = vmatprep.subr.bf16.mxu0 %v2634
  %2762 = vmatpush1.bf16.xpose.msra.mxu0 %v2633
  %2763 = vmatprep.subr.bf16.mxu0 %v2636
  %2764 = vmatpush1.bf16.xpose.msra.mxu0 %v2635
  %2765 = vmatprep.subr.bf16.mxu0 %v2638
  %2766 = vmatpush1.bf16.xpose.msra.mxu0 %v2637
  %2767 = vmatprep.subr.bf16.mxu0 %v2640
  %2768 = vmatpush1.bf16.xpose.msra.mxu0 %v2639
  %2769 = vmatprep.subr.bf16.mxu0 %v2642
  %2770 = vmatpush1.bf16.xpose.msra.mxu0 %v2641
  %2771 = vmatprep.subr.bf16.mxu0 %v2644
  %2772 = vmatpush1.bf16.xpose.msra.mxu0 %v2643
  %2773 = vmatprep.subr.bf16.mxu0 %v2646
  %2774 = vmatpush1.bf16.xpose.msra.mxu0 %v2645
  %2775 = vmatprep.subr.bf16.mxu0 %v2648
  %2776 = vmatpush1.bf16.xpose.msra.mxu0 %v2647
  %2777 = vmatprep.subr.bf16.mxu0 %v2650
  %2778 = vmatpush1.bf16.xpose.msra.mxu0 %v2649
  %2779 = vmatprep.subr.bf16.mxu0 %v2652
  %2780 = vmatpush1.bf16.xpose.msra.mxu0 %v2651
  %2781 = vmatprep.mubr.bf16.mxu0 %v2342
  %2782 = vmatmul.mubr.bf16.gmra.mrb[0].mxu0 %v2341
  %v2783 = vpop.f32.mrb[0].mxu0
  %v2784 = vadd.f32 %v2412, %v2783
  %v2785 = vpop.f32.mrb[0].mxu0
  %v2786 = vadd.f32 %v2416, %v2785
  %v2787 = vpop.f32.mrb[0].mxu0
  %v2788 = vpop.f32.mrb[0].mxu0
  %2789 = vdwg.mxu0
  %2790 = vmatprep.subr.bf16.mxu0 %v2654
  %2791 = vmatpush1.bf16.xpose.msra.mxu0 %v2653
  %2792 = vmatprep.subr.bf16.mxu0 %v2656
  %2793 = vmatpush1.bf16.xpose.msra.mxu0 %v2655
  %2794 = vmatprep.subr.bf16.mxu0 %v2658
  %2795 = vmatpush1.bf16.xpose.msra.mxu0 %v2657
  %2796 = vmatprep.subr.bf16.mxu0 %v2660
  %2797 = vmatpush1.bf16.xpose.msra.mxu0 %v2659
  %2798 = vmatprep.subr.bf16.mxu0 %v2662
  %2799 = vmatpush1.bf16.xpose.msra.mxu0 %v2661
  %2800 = vmatprep.subr.bf16.mxu0 %v2664
  %2801 = vmatpush1.bf16.xpose.msra.mxu0 %v2663
  %2802 = vmatprep.subr.bf16.mxu0 %v2666
  %2803 = vmatpush1.bf16.xpose.msra.mxu0 %v2665
  %2804 = vmatprep.subr.bf16.mxu0 %v2668
  %2805 = vmatpush1.bf16.xpose.msra.mxu0 %v2667
  %2806 = vmatprep.subr.bf16.mxu0 %v2670
  %2807 = vmatpush1.bf16.xpose.msra.mxu0 %v2669
  %2808 = vmatprep.subr.bf16.mxu0 %v2672
  %2809 = vmatpush1.bf16.xpose.msra.mxu0 %v2671
  %2810 = vmatprep.subr.bf16.mxu0 %v2674
  %2811 = vmatpush1.bf16.xpose.msra.mxu0 %v2673
  %2812 = vmatprep.subr.bf16.mxu0 %v2676
  %2813 = vmatpush1.bf16.xpose.msra.mxu0 %v2675
  %2814 = vmatprep.subr.bf16.mxu0 %v2678
  %2815 = vmatpush1.bf16.xpose.msra.mxu0 %v2677
  %2816 = vmatprep.subr.bf16.mxu0 %v2680
  %2817 = vmatpush1.bf16.xpose.msra.mxu0 %v2679
  %2818 = vmatprep.subr.bf16.mxu0 %v2682
  %2819 = vmatpush1.bf16.xpose.msra.mxu0 %v2681
  %2820 = vmatprep.subr.bf16.mxu0 %v2684
  %2821 = vmatpush1.bf16.xpose.msra.mxu0 %v2683
  %2822 = vmatprep.mubr.bf16.mxu0 %v2342
  %2823 = vmatmul.mubr.bf16.gmra.mrb[0].mxu0 %v2341
  %v2824 = vpop.f32.mrb[0].mxu0
  %v2825 = vadd.f32 %v2420, %v2824
  %v2826 = vpop.f32.mrb[0].mxu0
  %v2827 = vadd.f32 %v2424, %v2826
  %v2828 = vpop.f32.mrb[0].mxu0
  %v2829 = vpop.f32.mrb[0].mxu0
  %2830 = vdwg.mxu0
  %v2831 = vld [vmem:[#allocation7] sm:$0xff]
  %v2832 = vxor.u32 %v2784, 2147483648
  %v2833 = vmul.f32 %v2832, 1.442695
  %v2834 = vpow.pop %v2833
  %v2835 = vadd.f32 %v2834, 1.0
  %v2836 = vrcp.pop %v2835
  %v2837 = vmul.f32 1.0, %v2836
  %v2838 = vxor.u32 %v2786, 2147483648
  %v2839 = vmul.f32 %v2838, 1.442695
  %v2840 = vpow.pop %v2839
  %v2841 = vadd.f32 %v2840, 1.0
  %v2842 = vrcp.pop %v2841
  %v2843 = vmul.f32 1.0, %v2842
  %v2844 = vtanh.pop %v2825
  %v2845 = vxor.u32 %v2827, 2147483648
  %v2846 = vmul.f32 %v2845, 1.442695
  %v2847 = vpow.pop %v2846
  %v2848 = vadd.f32 %v2847, 1.0
  %v2849 = vrcp.pop %v2848
  %v2850 = vmul.f32 1.0, %v2849
  %v2851 = vmul.f32 %v2843, %v2831
  %v2852 = vmul.f32 %v2837, %v2844
  %v2853 = vadd.f32 %v2851, %v2852
  %v2854 = vtanh.pop %v2853
  %v2855 = vmul.f32 %v2850, %v2854
  %2856 = vst [vmem:[#allocation6] sm:$0xff] %v2855
  %2857 = vst [vmem:[#allocation7] sm:$0xff] %v2853
  %s2858 = scalar_lea.vmem %s6, 8
  %2859 = vst [vmem:[%s2858] sm:$0xff] %v2855
  %s2860 = scalar_lea.vmem %s0, 64
  %v2861 = vld [vmem:[%s2860] sm:$0xff]
  %v2862 = vld [vmem:[%s2860 + $0x8] sm:$0xff]
  %v2863 = vld [vmem:[%s2860 + $0x10] sm:$0xff]
  %v2864 = vld [vmem:[%s2860 + $0x18] sm:$0xff]
  %v2865 = vld [vmem:[#allocation2] sm:$0xff]
  %v2866 = vpack.c.bf16 %v2865, %v2865
  %v2867 = vld [vmem:[%s1] sm:$0xf]
  %v2868 = vld [vmem:[%s1 + $0x4] sm:$0xf]
  %v2869 = vld [vmem:[%s1 + $0x8] sm:$0xf]
  %v2870 = vld [vmem:[%s1 + $0xc] sm:$0xf]
  %v2871 = vld [vmem:[%s1 + $0x10] sm:$0xf]
  %v2872 = vld [vmem:[%s1 + $0x14] sm:$0xf]
  %v2873 = vld [vmem:[%s1 + $0x18] sm:$0xf]
  %v2874 = vld [vmem:[%s1 + $0x1c] sm:$0xf]
  %v2875 = vld [vmem:[%s1 + $0x20] sm:$0xf]
  %v2876 = vld [vmem:[%s1 + $0x24] sm:$0xf]
  %v2877 = vld [vmem:[%s1 + $0x28] sm:$0xf]
  %v2878 = vld [vmem:[%s1 + $0x2c] sm:$0xf]
  %v2879 = vld [vmem:[%s1 + $0x30] sm:$0xf]
  %v2880 = vld [vmem:[%s1 + $0x34] sm:$0xf]
  %v2881 = vld [vmem:[%s1 + $0x38] sm:$0xf]
  %v2882 = vld [vmem:[%s1 + $0x3c] sm:$0xf]
  %v2883 = vld [vmem:[%s1 + $0x40] sm:$0xf]
  %v2884 = vld [vmem:[%s1 + $0x44] sm:$0xf]
  %v2885 = vld [vmem:[%s1 + $0x48] sm:$0xf]
  %v2886 = vld [vmem:[%s1 + $0x4c] sm:$0xf]
  %v2887 = vld [vmem:[%s1 + $0x50] sm:$0xf]
  %v2888 = vld [vmem:[%s1 + $0x54] sm:$0xf]
  %v2889 = vld [vmem:[%s1 + $0x58] sm:$0xf]
  %v2890 = vld [vmem:[%s1 + $0x5c] sm:$0xf]
  %v2891 = vld [vmem:[%s1 + $0x60] sm:$0xf]
  %v2892 = vld [vmem:[%s1 + $0x64] sm:$0xf]
  %v2893 = vld [vmem:[%s1 + $0x68] sm:$0xf]
  %v2894 = vld [vmem:[%s1 + $0x6c] sm:$0xf]
  %v2895 = vld [vmem:[%s1 + $0x70] sm:$0xf]
  %v2896 = vld [vmem:[%s1 + $0x74] sm:$0xf]
  %v2897 = vld [vmem:[%s1 + $0x78] sm:$0xf]
  %v2898 = vld [vmem:[%s1 + $0x7c] sm:$0xf]
  %v2899 = vld [vmem:[%s1 + $0x80] sm:$0xf]
  %v2900 = vld [vmem:[%s1 + $0x84] sm:$0xf]
  %v2901 = vld [vmem:[%s1 + $0x88] sm:$0xf]
  %v2902 = vld [vmem:[%s1 + $0x8c] sm:$0xf]
  %v2903 = vld [vmem:[%s1 + $0x90] sm:$0xf]
  %v2904 = vld [vmem:[%s1 + $0x94] sm:$0xf]
  %v2905 = vld [vmem:[%s1 + $0x98] sm:$0xf]
  %v2906 = vld [vmem:[%s1 + $0x9c] sm:$0xf]
  %v2907 = vld [vmem:[%s1 + $0xa0] sm:$0xf]
  %v2908 = vld [vmem:[%s1 + $0xa4] sm:$0xf]
  %v2909 = vld [vmem:[%s1 + $0xa8] sm:$0xf]
  %v2910 = vld [vmem:[%s1 + $0xac] sm:$0xf]
  %v2911 = vld [vmem:[%s1 + $0xb0] sm:$0xf]
  %v2912 = vld [vmem:[%s1 + $0xb4] sm:$0xf]
  %v2913 = vld [vmem:[%s1 + $0xb8] sm:$0xf]
  %v2914 = vld [vmem:[%s1 + $0xbc] sm:$0xf]
  %v2915 = vld [vmem:[%s1 + $0xc0] sm:$0xf]
  %v2916 = vld [vmem:[%s1 + $0xc4] sm:$0xf]
  %v2917 = vld [vmem:[%s1 + $0xc8] sm:$0xf]
  %v2918 = vld [vmem:[%s1 + $0xcc] sm:$0xf]
  %v2919 = vld [vmem:[%s1 + $0xd0] sm:$0xf]
  %v2920 = vld [vmem:[%s1 + $0xd4] sm:$0xf]
  %v2921 = vld [vmem:[%s1 + $0xd8] sm:$0xf]
  %v2922 = vld [vmem:[%s1 + $0xdc] sm:$0xf]
  %v2923 = vld [vmem:[%s1 + $0xe0] sm:$0xf]
  %v2924 = vld [vmem:[%s1 + $0xe4] sm:$0xf]
  %v2925 = vld [vmem:[%s1 + $0xe8] sm:$0xf]
  %v2926 = vld [vmem:[%s1 + $0xec] sm:$0xf]
  %v2927 = vld [vmem:[%s1 + $0xf0] sm:$0xf]
  %v2928 = vld [vmem:[%s1 + $0xf4] sm:$0xf]
  %v2929 = vld [vmem:[%s1 + $0xf8] sm:$0xf]
  %v2930 = vld [vmem:[%s1 + $0xfc] sm:$0xf]
  %v2995 = vunpack.c.l.b16 %v2867
  %v2996 = vunpack.c.l.b16 %v2868
  %v2997 = vunpack.c.l.b16 %v2869
  %v2998 = vunpack.c.l.b16 %v2870
  %v2999 = vunpack.c.l.b16 %v2871
  %v3000 = vunpack.c.l.b16 %v2872
  %v3001 = vunpack.c.l.b16 %v2873
  %v3002 = vunpack.c.l.b16 %v2874
  %v3003 = vunpack.c.l.b16 %v2875
  %v3004 = vunpack.c.l.b16 %v2876
  %v3005 = vunpack.c.l.b16 %v2877
  %v3006 = vunpack.c.l.b16 %v2878
  %v3007 = vunpack.c.l.b16 %v2879
  %v3008 = vunpack.c.l.b16 %v2880
  %v3009 = vunpack.c.l.b16 %v2881
  %v3010 = vunpack.c.l.b16 %v2882
  %v3011 = vunpack.c.l.b16 %v2883
  %v3012 = vunpack.c.l.b16 %v2884
  %v3013 = vunpack.c.l.b16 %v2885
  %v3014 = vunpack.c.l.b16 %v2886
  %v3015 = vunpack.c.l.b16 %v2887
  %v3016 = vunpack.c.l.b16 %v2888
  %v3017 = vunpack.c.l.b16 %v2889
  %v3018 = vunpack.c.l.b16 %v2890
  %v3019 = vunpack.c.l.b16 %v2891
  %v3020 = vunpack.c.l.b16 %v2892
  %v3021 = vunpack.c.l.b16 %v2893
  %v3022 = vunpack.c.l.b16 %v2894
  %v3023 = vunpack.c.l.b16 %v2895
  %v3024 = vunpack.c.l.b16 %v2896
  %v3025 = vunpack.c.l.b16 %v2897
  %v3026 = vunpack.c.l.b16 %v2898
  %v3027 = vunpack.c.l.b16 %v2899
  %v3028 = vunpack.c.l.b16 %v2900
  %v3029 = vunpack.c.l.b16 %v2901
  %v3030 = vunpack.c.l.b16 %v2902
  %v3031 = vunpack.c.l.b16 %v2903
  %v3032 = vunpack.c.l.b16 %v2904
  %v3033 = vunpack.c.l.b16 %v2905
  %v3034 = vunpack.c.l.b16 %v2906
  %v3035 = vunpack.c.l.b16 %v2907
  %v3036 = vunpack.c.l.b16 %v2908
  %v3037 = vunpack.c.l.b16 %v2909
  %v3038 = vunpack.c.l.b16 %v2910
  %v3039 = vunpack.c.l.b16 %v2911
  %v3040 = vunpack.c.l.b16 %v2912
  %v3041 = vunpack.c.l.b16 %v2913
  %v3042 = vunpack.c.l.b16 %v2914
  %v3043 = vunpack.c.l.b16 %v2915
  %v3044 = vunpack.c.l.b16 %v2916
  %v3045 = vunpack.c.l.b16 %v2917
  %v3046 = vunpack.c.l.b16 %v2918
  %v3047 = vunpack.c.l.b16 %v2919
  %v3048 = vunpack.c.l.b16 %v2920
  %v3049 = vunpack.c.l.b16 %v2921
  %v3050 = vunpack.c.l.b16 %v2922
  %v3051 = vunpack.c.l.b16 %v2923
  %v3052 = vunpack.c.l.b16 %v2924
  %v3053 = vunpack.c.l.b16 %v2925
  %v3054 = vunpack.c.l.b16 %v2926
  %v3055 = vunpack.c.l.b16 %v2927
  %v3056 = vunpack.c.l.b16 %v2928
  %v3057 = vunpack.c.l.b16 %v2929
  %v3058 = vunpack.c.l.b16 %v2930
  %v3059 = vpack.c.b16 %v2996, %v2995
  %v3060 = vpack.c.b16 %v2998, %v2997
  %v3061 = vpack.c.b16 %v3000, %v2999
  %v3062 = vpack.c.b16 %v3002, %v3001
  %v3063 = vpack.c.b16 %v3004, %v3003
  %v3064 = vpack.c.b16 %v3006, %v3005
  %v3065 = vpack.c.b16 %v3008, %v3007
  %v3066 = vpack.c.b16 %v3010, %v3009
  %v3067 = vpack.c.b16 %v3012, %v3011
  %v3068 = vpack.c.b16 %v3014, %v3013
  %v3069 = vpack.c.b16 %v3016, %v3015
  %v3070 = vpack.c.b16 %v3018, %v3017
  %v3071 = vpack.c.b16 %v3020, %v3019
  %v3072 = vpack.c.b16 %v3022, %v3021
  %v3073 = vpack.c.b16 %v3024, %v3023
  %v3074 = vpack.c.b16 %v3026, %v3025
  %v3075 = vpack.c.b16 %v3028, %v3027
  %v3076 = vpack.c.b16 %v3030, %v3029
  %v3077 = vpack.c.b16 %v3032, %v3031
  %v3078 = vpack.c.b16 %v3034, %v3033
  %v3079 = vpack.c.b16 %v3036, %v3035
  %v3080 = vpack.c.b16 %v3038, %v3037
  %v3081 = vpack.c.b16 %v3040, %v3039
  %v3082 = vpack.c.b16 %v3042, %v3041
  %v3083 = vpack.c.b16 %v3044, %v3043
  %v3084 = vpack.c.b16 %v3046, %v3045
  %v3085 = vpack.c.b16 %v3048, %v3047
  %v3086 = vpack.c.b16 %v3050, %v3049
  %v3087 = vpack.c.b16 %v3052, %v3051
  %v3088 = vpack.c.b16 %v3054, %v3053
  %v3089 = vpack.c.b16 %v3056, %v3055
  %v3090 = vpack.c.b16 %v3058, %v3057
  %3123 = vmatprep.subr.bf16.mxu0 0
  %3124 = vmatpush1.bf16.xpose.msra.mxu0 %v3059
  %3125 = vmatprep.subr.bf16.mxu0 0
  %3126 = vmatpush1.bf16.xpose.msra.mxu0 %v3060
  %3127 = vmatprep.subr.bf16.mxu0 0
  %3128 = vmatpush1.bf16.xpose.msra.mxu0 %v3061
  %3129 = vmatprep.subr.bf16.mxu0 0
  %3130 = vmatpush1.bf16.xpose.msra.mxu0 %v3062
  %3131 = vmatprep.subr.bf16.mxu0 0
  %3132 = vmatpush1.bf16.xpose.msra.mxu0 %v3063
  %3133 = vmatprep.subr.bf16.mxu0 0
  %3134 = vmatpush1.bf16.xpose.msra.mxu0 %v3064
  %3135 = vmatprep.subr.bf16.mxu0 0
  %3136 = vmatpush1.bf16.xpose.msra.mxu0 %v3065
  %3137 = vmatprep.subr.bf16.mxu0 0
  %3138 = vmatpush1.bf16.xpose.msra.mxu0 %v3066
  %3139 = vmatprep.subr.bf16.mxu0 0
  %3140 = vmatpush1.bf16.xpose.msra.mxu0 %v3067
  %3141 = vmatprep.subr.bf16.mxu0 0
  %3142 = vmatpush1.bf16.xpose.msra.mxu0 %v3068
  %3143 = vmatprep.subr.bf16.mxu0 0
  %3144 = vmatpush1.bf16.xpose.msra.mxu0 %v3069
  %3145 = vmatprep.subr.bf16.mxu0 0
  %3146 = vmatpush1.bf16.xpose.msra.mxu0 %v3070
  %3147 = vmatprep.subr.bf16.mxu0 0
  %3148 = vmatpush1.bf16.xpose.msra.mxu0 %v3071
  %3149 = vmatprep.subr.bf16.mxu0 0
  %3150 = vmatpush1.bf16.xpose.msra.mxu0 %v3072
  %3151 = vmatprep.subr.bf16.mxu0 0
  %3152 = vmatpush1.bf16.xpose.msra.mxu0 %v3073
  %3153 = vmatprep.subr.bf16.mxu0 0
  %3154 = vmatpush1.bf16.xpose.msra.mxu0 %v3074
  %3155 = vmatprep.mubr.bf16.mxu0 0
  %3156 = vmatmul.mubr.bf16.gmra.mrb[0].mxu0 %v2866
  %v3157 = vpop.f32.mrb[0].mxu0
  %v3158 = vadd.f32 0.0, %v3157
  %v3159 = vpop.f32.mrb[0].mxu0
  %v3160 = vadd.f32 0.0, %v3159
  %v3161 = vpop.f32.mrb[0].mxu0
  %v3162 = vpop.f32.mrb[0].mxu0
  %3163 = vdwg.mxu0
  %3164 = vmatprep.subr.bf16.mxu0 0
  %3165 = vmatpush1.bf16.xpose.msra.mxu0 %v3075
  %3166 = vmatprep.subr.bf16.mxu0 0
  %3167 = vmatpush1.bf16.xpose.msra.mxu0 %v3076
  %3168 = vmatprep.subr.bf16.mxu0 0
  %3169 = vmatpush1.bf16.xpose.msra.mxu0 %v3077
  %3170 = vmatprep.subr.bf16.mxu0 0
  %3171 = vmatpush1.bf16.xpose.msra.mxu0 %v3078
  %3172 = vmatprep.subr.bf16.mxu0 0
  %3173 = vmatpush1.bf16.xpose.msra.mxu0 %v3079
  %3174 = vmatprep.subr.bf16.mxu0 0
  %3175 = vmatpush1.bf16.xpose.msra.mxu0 %v3080
  %3176 = vmatprep.subr.bf16.mxu0 0
  %3177 = vmatpush1.bf16.xpose.msra.mxu0 %v3081
  %3178 = vmatprep.subr.bf16.mxu0 0
  %3179 = vmatpush1.bf16.xpose.msra.mxu0 %v3082
  %3180 = vmatprep.subr.bf16.mxu0 0
  %3181 = vmatpush1.bf16.xpose.msra.mxu0 %v3083
  %3182 = vmatprep.subr.bf16.mxu0 0
  %3183 = vmatpush1.bf16.xpose.msra.mxu0 %v3084
  %3184 = vmatprep.subr.bf16.mxu0 0
  %3185 = vmatpush1.bf16.xpose.msra.mxu0 %v3085
  %3186 = vmatprep.subr.bf16.mxu0 0
  %3187 = vmatpush1.bf16.xpose.msra.mxu0 %v3086
  %3188 = vmatprep.subr.bf16.mxu0 0
  %3189 = vmatpush1.bf16.xpose.msra.mxu0 %v3087
  %3190 = vmatprep.subr.bf16.mxu0 0
  %3191 = vmatpush1.bf16.xpose.msra.mxu0 %v3088
  %3192 = vmatprep.subr.bf16.mxu0 0
  %3193 = vmatpush1.bf16.xpose.msra.mxu0 %v3089
  %3194 = vmatprep.subr.bf16.mxu0 0
  %3195 = vmatpush1.bf16.xpose.msra.mxu0 %v3090
  %3196 = vmatprep.mubr.bf16.mxu0 0
  %3197 = vmatmul.mubr.bf16.gmra.mrb[0].mxu0 %v2866
  %v3198 = vpop.f32.mrb[0].mxu0
  %v3199 = vadd.f32 0.0, %v3198
  %v3200 = vpop.f32.mrb[0].mxu0
  %v3201 = vadd.f32 0.0, %v3200
  %v3202 = vpop.f32.mrb[0].mxu0
  %v3203 = vpop.f32.mrb[0].mxu0
  %3204 = vdwg.mxu0
  %v3205 = vadd.f32 %v2861, %v3158
  %v3206 = vadd.f32 %v2862, %v3160
  %v3207 = vadd.f32 %v2863, %v3199
  %v3208 = vadd.f32 %v2864, %v3201
  %v3209 = vld [vmem:[#allocation3] sm:$0xff]
  %v3210 = vxor.u32 %v3205, 2147483648
  %v3211 = vmul.f32 %v3210, 1.442695
  %v3212 = vpow.pop %v3211
  %v3213 = vadd.f32 %v3212, 1.0
  %v3214 = vrcp.pop %v3213
  %v3215 = vmul.f32 1.0, %v3214
  %v3216 = vxor.u32 %v3206, 2147483648
  %v3217 = vmul.f32 %v3216, 1.442695
  %v3218 = vpow.pop %v3217
  %v3219 = vadd.f32 %v3218, 1.0
  %v3220 = vrcp.pop %v3219
  %v3221 = vmul.f32 1.0, %v3220
  %v3222 = vtanh.pop %v3207
  %v3223 = vxor.u32 %v3208, 2147483648
  %v3224 = vmul.f32 %v3223, 1.442695
  %v3225 = vpow.pop %v3224
  %v3226 = vadd.f32 %v3225, 1.0
  %v3227 = vrcp.pop %v3226
  %v3228 = vmul.f32 1.0, %v3227
  %v3229 = vmul.f32 %v3221, %v3209
  %v3230 = vmul.f32 %v3215, %v3222
  %v3231 = vadd.f32 %v3229, %v3230
  %v3232 = vtanh.pop %v3231
  %v3233 = vmul.f32 %v3228, %v3232
  %3234 = vst [vmem:[#allocation2] sm:$0xff] %v3233
  %3235 = vst [vmem:[#allocation3] sm:$0xff] %v3231
  %v3236 = vld [vmem:[#allocation4] sm:$0xff]
  %v3237 = vpack.c.bf16 %v3233, %v3233
  %v3238 = vpack.c.bf16 %v3236, %v3236
  %v3239 = vld [vmem:[%s2] sm:$0xff]
  %v3240 = vld [vmem:[%s2 + $0x8] sm:$0xff]
  %v3241 = vld [vmem:[%s2 + $0x10] sm:$0xff]
  %v3242 = vld [vmem:[%s2 + $0x18] sm:$0xff]
  %v3243 = vld [vmem:[%s2 + $0x20] sm:$0xff]
  %v3244 = vld [vmem:[%s2 + $0x28] sm:$0xff]
  %v3245 = vld [vmem:[%s2 + $0x30] sm:$0xff]
  %v3246 = vld [vmem:[%s2 + $0x38] sm:$0xff]
  %v3247 = vld [vmem:[%s2 + $0x40] sm:$0xff]
  %v3248 = vld [vmem:[%s2 + $0x48] sm:$0xff]
  %v3249 = vld [vmem:[%s2 + $0x50] sm:$0xff]
  %v3250 = vld [vmem:[%s2 + $0x58] sm:$0xff]
  %v3251 = vld [vmem:[%s2 + $0x60] sm:$0xff]
  %v3252 = vld [vmem:[%s2 + $0x68] sm:$0xff]
  %v3253 = vld [vmem:[%s2 + $0x70] sm:$0xff]
  %v3254 = vld [vmem:[%s2 + $0x78] sm:$0xff]
  %v3255 = vld [vmem:[%s2 + $0x80] sm:$0xff]
  %v3256 = vld [vmem:[%s2 + $0x88] sm:$0xff]
  %v3257 = vld [vmem:[%s2 + $0x90] sm:$0xff]
  %v3258 = vld [vmem:[%s2 + $0x98] sm:$0xff]
  %v3259 = vld [vmem:[%s2 + $0xa0] sm:$0xff]
  %v3260 = vld [vmem:[%s2 + $0xa8] sm:$0xff]
  %v3261 = vld [vmem:[%s2 + $0xb0] sm:$0xff]
  %v3262 = vld [vmem:[%s2 + $0xb8] sm:$0xff]
  %v3263 = vld [vmem:[%s2 + $0xc0] sm:$0xff]
  %v3264 = vld [vmem:[%s2 + $0xc8] sm:$0xff]
  %v3265 = vld [vmem:[%s2 + $0xd0] sm:$0xff]
  %v3266 = vld [vmem:[%s2 + $0xd8] sm:$0xff]
  %v3267 = vld [vmem:[%s2 + $0xe0] sm:$0xff]
  %v3268 = vld [vmem:[%s2 + $0xe8] sm:$0xff]
  %v3269 = vld [vmem:[%s2 + $0xf0] sm:$0xff]
  %v3270 = vld [vmem:[%s2 + $0xf8] sm:$0xff]
  %v3271 = vld [vmem:[%s2 + $0x100] sm:$0xff]
  %v3272 = vld [vmem:[%s2 + $0x108] sm:$0xff]
  %v3273 = vld [vmem:[%s2 + $0x110] sm:$0xff]
  %v3274 = vld [vmem:[%s2 + $0x118] sm:$0xff]
  %v3275 = vld [vmem:[%s2 + $0x120] sm:$0xff]
  %v3276 = vld [vmem:[%s2 + $0x128] sm:$0xff]
  %v3277 = vld [vmem:[%s2 + $0x130] sm:$0xff]
  %v3278 = vld [vmem:[%s2 + $0x138] sm:$0xff]
  %v3279 = vld [vmem:[%s2 + $0x140] sm:$0xff]
  %v3280 = vld [vmem:[%s2 + $0x148] sm:$0xff]
  %v3281 = vld [vmem:[%s2 + $0x150] sm:$0xff]
  %v3282 = vld [vmem:[%s2 + $0x158] sm:$0xff]
  %v3283 = vld [vmem:[%s2 + $0x160] sm:$0xff]
  %v3284 = vld [vmem:[%s2 + $0x168] sm:$0xff]
  %v3285 = vld [vmem:[%s2 + $0x170] sm:$0xff]
  %v3286 = vld [vmem:[%s2 + $0x178] sm:$0xff]
  %v3287 = vld [vmem:[%s2 + $0x180] sm:$0xff]
  %v3288 = vld [vmem:[%s2 + $0x188] sm:$0xff]
  %v3289 = vld [vmem:[%s2 + $0x190] sm:$0xff]
  %v3290 = vld [vmem:[%s2 + $0x198] sm:$0xff]
  %v3291 = vld [vmem:[%s2 + $0x1a0] sm:$0xff]
  %v3292 = vld [vmem:[%s2 + $0x1a8] sm:$0xff]
  %v3293 = vld [vmem:[%s2 + $0x1b0] sm:$0xff]
  %v3294 = vld [vmem:[%s2 + $0x1b8] sm:$0xff]
  %v3295 = vld [vmem:[%s2 + $0x1c0] sm:$0xff]
  %v3296 = vld [vmem:[%s2 + $0x1c8] sm:$0xff]
  %v3297 = vld [vmem:[%s2 + $0x1d0] sm:$0xff]
  %v3298 = vld [vmem:[%s2 + $0x1d8] sm:$0xff]
  %v3299 = vld [vmem:[%s2 + $0x1e0] sm:$0xff]
  %v3300 = vld [vmem:[%s2 + $0x1e8] sm:$0xff]
  %v3301 = vld [vmem:[%s2 + $0x1f0] sm:$0xff]
  %v3302 = vld [vmem:[%s2 + $0x1f8] sm:$0xff]
  %v3303 = vld [vmem:[%s3] sm:$0xf]
  %v3305 = vlaneseq
  %v3306 = vshrl.u32 %v3305, 7
  %v3307 = vsub.s32 0, %v3306
  %v3308 = vrot.slane %v3303, %v3307
  %v3309 = vlaneseq
  %v3310 = vshrl.u32 %v3309, 7
  %v3311 = vsub.s32 1, %v3310
  %v3312 = vrot.slane %v3303, %v3311
  %v3313 = vlaneseq
  %v3314 = vshrl.u32 %v3313, 7
  %v3315 = vsub.s32 2, %v3314
  %v3316 = vrot.slane %v3303, %v3315
  %v3317 = vlaneseq
  %v3318 = vshrl.u32 %v3317, 7
  %v3319 = vsub.s32 3, %v3318
  %v3320 = vrot.slane %v3303, %v3319
  %v3389 = vunpack.c.l.b16 %v3239
  %v3390 = vunpack.c.h.b16 %v3239
  %v3391 = vunpack.c.l.b16 %v3240
  %v3392 = vunpack.c.h.b16 %v3240
  %v3393 = vunpack.c.l.b16 %v3241
  %v3394 = vunpack.c.h.b16 %v3241
  %v3395 = vunpack.c.l.b16 %v3242
  %v3396 = vunpack.c.h.b16 %v3242
  %v3397 = vunpack.c.l.b16 %v3243
  %v3398 = vunpack.c.h.b16 %v3243
  %v3399 = vunpack.c.l.b16 %v3244
  %v3400 = vunpack.c.h.b16 %v3244
  %v3401 = vunpack.c.l.b16 %v3245
  %v3402 = vunpack.c.h.b16 %v3245
  %v3403 = vunpack.c.l.b16 %v3246
  %v3404 = vunpack.c.h.b16 %v3246
  %v3405 = vunpack.c.l.b16 %v3247
  %v3406 = vunpack.c.h.b16 %v3247
  %v3407 = vunpack.c.l.b16 %v3248
  %v3408 = vunpack.c.h.b16 %v3248
  %v3409 = vunpack.c.l.b16 %v3249
  %v3410 = vunpack.c.h.b16 %v3249
  %v3411 = vunpack.c.l.b16 %v3250
  %v3412 = vunpack.c.h.b16 %v3250
  %v3413 = vunpack.c.l.b16 %v3251
  %v3414 = vunpack.c.h.b16 %v3251
  %v3415 = vunpack.c.l.b16 %v3252
  %v3416 = vunpack.c.h.b16 %v3252
  %v3417 = vunpack.c.l.b16 %v3253
  %v3418 = vunpack.c.h.b16 %v3253
  %v3419 = vunpack.c.l.b16 %v3254
  %v3420 = vunpack.c.h.b16 %v3254
  %v3421 = vunpack.c.l.b16 %v3255
  %v3422 = vunpack.c.h.b16 %v3255
  %v3423 = vunpack.c.l.b16 %v3256
  %v3424 = vunpack.c.h.b16 %v3256
  %v3425 = vunpack.c.l.b16 %v3257
  %v3426 = vunpack.c.h.b16 %v3257
  %v3427 = vunpack.c.l.b16 %v3258
  %v3428 = vunpack.c.h.b16 %v3258
  %v3429 = vunpack.c.l.b16 %v3259
  %v3430 = vunpack.c.h.b16 %v3259
  %v3431 = vunpack.c.l.b16 %v3260
  %v3432 = vunpack.c.h.b16 %v3260
  %v3433 = vunpack.c.l.b16 %v3261
  %v3434 = vunpack.c.h.b16 %v3261
  %v3435 = vunpack.c.l.b16 %v3262
  %v3436 = vunpack.c.h.b16 %v3262
  %v3437 = vunpack.c.l.b16 %v3263
  %v3438 = vunpack.c.h.b16 %v3263
  %v3439 = vunpack.c.l.b16 %v3264
  %v3440 = vunpack.c.h.b16 %v3264
  %v3441 = vunpack.c.l.b16 %v3265
  %v3442 = vunpack.c.h.b16 %v3265
  %v3443 = vunpack.c.l.b16 %v3266
  %v3444 = vunpack.c.h.b16 %v3266
  %v3445 = vunpack.c.l.b16 %v3267
  %v3446 = vunpack.c.h.b16 %v3267
  %v3447 = vunpack.c.l.b16 %v3268
  %v3448 = vunpack.c.h.b16 %v3268
  %v3449 = vunpack.c.l.b16 %v3269
  %v3450 = vunpack.c.h.b16 %v3269
  %v3451 = vunpack.c.l.b16 %v3270
  %v3452 = vunpack.c.h.b16 %v3270
  %v3453 = vunpack.c.l.b16 %v3271
  %v3454 = vunpack.c.h.b16 %v3271
  %v3455 = vunpack.c.l.b16 %v3272
  %v3456 = vunpack.c.h.b16 %v3272
  %v3457 = vunpack.c.l.b16 %v3273
  %v3458 = vunpack.c.h.b16 %v3273
  %v3459 = vunpack.c.l.b16 %v3274
  %v3460 = vunpack.c.h.b16 %v3274
  %v3461 = vunpack.c.l.b16 %v3275
  %v3462 = vunpack.c.h.b16 %v3275
  %v3463 = vunpack.c.l.b16 %v3276
  %v3464 = vunpack.c.h.b16 %v3276
  %v3465 = vunpack.c.l.b16 %v3277
  %v3466 = vunpack.c.h.b16 %v3277
  %v3467 = vunpack.c.l.b16 %v3278
  %v3468 = vunpack.c.h.b16 %v3278
  %v3469 = vunpack.c.l.b16 %v3279
  %v3470 = vunpack.c.h.b16 %v3279
  %v3471 = vunpack.c.l.b16 %v3280
  %v3472 = vunpack.c.h.b16 %v3280
  %v3473 = vunpack.c.l.b16 %v3281
  %v3474 = vunpack.c.h.b16 %v3281
  %v3475 = vunpack.c.l.b16 %v3282
  %v3476 = vunpack.c.h.b16 %v3282
  %v3477 = vunpack.c.l.b16 %v3283
  %v3478 = vunpack.c.h.b16 %v3283
  %v3479 = vunpack.c.l.b16 %v3284
  %v3480 = vunpack.c.h.b16 %v3284
  %v3481 = vunpack.c.l.b16 %v3285
  %v3482 = vunpack.c.h.b16 %v3285
  %v3483 = vunpack.c.l.b16 %v3286
  %v3484 = vunpack.c.h.b16 %v3286
  %v3485 = vunpack.c.l.b16 %v3287
  %v3486 = vunpack.c.h.b16 %v3287
  %v3487 = vunpack.c.l.b16 %v3288
  %v3488 = vunpack.c.h.b16 %v3288
  %v3489 = vunpack.c.l.b16 %v3289
  %v3490 = vunpack.c.h.b16 %v3289
  %v3491 = vunpack.c.l.b16 %v3290
  %v3492 = vunpack.c.h.b16 %v3290
  %v3493 = vunpack.c.l.b16 %v3291
  %v3494 = vunpack.c.h.b16 %v3291
  %v3495 = vunpack.c.l.b16 %v3292
  %v3496 = vunpack.c.h.b16 %v3292
  %v3497 = vunpack.c.l.b16 %v3293
  %v3498 = vunpack.c.h.b16 %v3293
  %v3499 = vunpack.c.l.b16 %v3294
  %v3500 = vunpack.c.h.b16 %v3294
  %v3501 = vunpack.c.l.b16 %v3295
  %v3502 = vunpack.c.h.b16 %v3295
  %v3503 = vunpack.c.l.b16 %v3296
  %v3504 = vunpack.c.h.b16 %v3296
  %v3505 = vunpack.c.l.b16 %v3297
  %v3506 = vunpack.c.h.b16 %v3297
  %v3507 = vunpack.c.l.b16 %v3298
  %v3508 = vunpack.c.h.b16 %v3298
  %v3509 = vunpack.c.l.b16 %v3299
  %v3510 = vunpack.c.h.b16 %v3299
  %v3511 = vunpack.c.l.b16 %v3300
  %v3512 = vunpack.c.h.b16 %v3300
  %v3513 = vunpack.c.l.b16 %v3301
  %v3514 = vunpack.c.h.b16 %v3301
  %v3515 = vunpack.c.l.b16 %v3302
  %v3516 = vunpack.c.h.b16 %v3302
  %v3517 = vpack.c.b16 %v3391, %v3389
  %v3518 = vpack.c.b16 %v3392, %v3390
  %v3519 = vpack.c.b16 %v3395, %v3393
  %v3520 = vpack.c.b16 %v3396, %v3394
  %v3521 = vpack.c.b16 %v3399, %v3397
  %v3522 = vpack.c.b16 %v3400, %v3398
  %v3523 = vpack.c.b16 %v3403, %v3401
  %v3524 = vpack.c.b16 %v3404, %v3402
  %v3525 = vpack.c.b16 %v3407, %v3405
  %v3526 = vpack.c.b16 %v3408, %v3406
  %v3527 = vpack.c.b16 %v3411, %v3409
  %v3528 = vpack.c.b16 %v3412, %v3410
  %v3529 = vpack.c.b16 %v3415, %v3413
  %v3530 = vpack.c.b16 %v3416, %v3414
  %v3531 = vpack.c.b16 %v3419, %v3417
  %v3532 = vpack.c.b16 %v3420, %v3418
  %v3533 = vpack.c.b16 %v3423, %v3421
  %v3534 = vpack.c.b16 %v3424, %v3422
  %v3535 = vpack.c.b16 %v3427, %v3425
  %v3536 = vpack.c.b16 %v3428, %v3426
  %v3537 = vpack.c.b16 %v3431, %v3429
  %v3538 = vpack.c.b16 %v3432, %v3430
  %v3539 = vpack.c.b16 %v3435, %v3433
  %v3540 = vpack.c.b16 %v3436, %v3434
  %v3541 = vpack.c.b16 %v3439, %v3437
  %v3542 = vpack.c.b16 %v3440, %v3438
  %v3543 = vpack.c.b16 %v3443, %v3441
  %v3544 = vpack.c.b16 %v3444, %v3442
  %v3545 = vpack.c.b16 %v3447, %v3445
  %v3546 = vpack.c.b16 %v3448, %v3446
  %v3547 = vpack.c.b16 %v3451, %v3449
  %v3548 = vpack.c.b16 %v3452, %v3450
  %v3549 = vpack.c.b16 %v3455, %v3453
  %v3550 = vpack.c.b16 %v3456, %v3454
  %v3551 = vpack.c.b16 %v3459, %v3457
  %v3552 = vpack.c.b16 %v3460, %v3458
  %v3553 = vpack.c.b16 %v3463, %v3461
  %v3554 = vpack.c.b16 %v3464, %v3462
  %v3555 = vpack.c.b16 %v3467, %v3465
  %v3556 = vpack.c.b16 %v3468, %v3466
  %v3557 = vpack.c.b16 %v3471, %v3469
  %v3558 = vpack.c.b16 %v3472, %v3470
  %v3559 = vpack.c.b16 %v3475, %v3473
  %v3560 = vpack.c.b16 %v3476, %v3474
  %v3561 = vpack.c.b16 %v3479, %v3477
  %v3562 = vpack.c.b16 %v3480, %v3478
  %v3563 = vpack.c.b16 %v3483, %v3481
  %v3564 = vpack.c.b16 %v3484, %v3482
  %v3565 = vpack.c.b16 %v3487, %v3485
  %v3566 = vpack.c.b16 %v3488, %v3486
  %v3567 = vpack.c.b16 %v3491, %v3489
  %v3568 = vpack.c.b16 %v3492, %v3490
  %v3569 = vpack.c.b16 %v3495, %v3493
  %v3570 = vpack.c.b16 %v3496, %v3494
  %v3571 = vpack.c.b16 %v3499, %v3497
  %v3572 = vpack.c.b16 %v3500, %v3498
  %v3573 = vpack.c.b16 %v3503, %v3501
  %v3574 = vpack.c.b16 %v3504, %v3502
  %v3575 = vpack.c.b16 %v3507, %v3505
  %v3576 = vpack.c.b16 %v3508, %v3506
  %v3577 = vpack.c.b16 %v3511, %v3509
  %v3578 = vpack.c.b16 %v3512, %v3510
  %v3579 = vpack.c.b16 %v3515, %v3513
  %v3580 = vpack.c.b16 %v3516, %v3514
  %3645 = vmatprep.subr.bf16.mxu0 %v3518
  %3646 = vmatpush1.bf16.xpose.msra.mxu0 %v3517
  %3647 = vmatprep.subr.bf16.mxu0 %v3520
  %3648 = vmatpush1.bf16.xpose.msra.mxu0 %v3519
  %3649 = vmatprep.subr.bf16.mxu0 %v3522
  %3650 = vmatpush1.bf16.xpose.msra.mxu0 %v3521
  %3651 = vmatprep.subr.bf16.mxu0 %v3524
  %3652 = vmatpush1.bf16.xpose.msra.mxu0 %v3523
  %3653 = vmatprep.subr.bf16.mxu0 %v3526
  %3654 = vmatpush1.bf16.xpose.msra.mxu0 %v3525
  %3655 = vmatprep.subr.bf16.mxu0 %v3528
  %3656 = vmatpush1.bf16.xpose.msra.mxu0 %v3527
  %3657 = vmatprep.subr.bf16.mxu0 %v3530
  %3658 = vmatpush1.bf16.xpose.msra.mxu0 %v3529
  %3659 = vmatprep.subr.bf16.mxu0 %v3532
  %3660 = vmatpush1.bf16.xpose.msra.mxu0 %v3531
  %3661 = vmatprep.subr.bf16.mxu0 %v3534
  %3662 = vmatpush1.bf16.xpose.msra.mxu0 %v3533
  %3663 = vmatprep.subr.bf16.mxu0 %v3536
  %3664 = vmatpush1.bf16.xpose.msra.mxu0 %v3535
  %3665 = vmatprep.subr.bf16.mxu0 %v3538
  %3666 = vmatpush1.bf16.xpose.msra.mxu0 %v3537
  %3667 = vmatprep.subr.bf16.mxu0 %v3540
  %3668 = vmatpush1.bf16.xpose.msra.mxu0 %v3539
  %3669 = vmatprep.subr.bf16.mxu0 %v3542
  %3670 = vmatpush1.bf16.xpose.msra.mxu0 %v3541
  %3671 = vmatprep.subr.bf16.mxu0 %v3544
  %3672 = vmatpush1.bf16.xpose.msra.mxu0 %v3543
  %3673 = vmatprep.subr.bf16.mxu0 %v3546
  %3674 = vmatpush1.bf16.xpose.msra.mxu0 %v3545
  %3675 = vmatprep.subr.bf16.mxu0 %v3548
  %3676 = vmatpush1.bf16.xpose.msra.mxu0 %v3547
  %3677 = vmatprep.mubr.bf16.mxu0 %v3238
  %3678 = vmatmul.mubr.bf16.gmra.mrb[0].mxu0 %v3237
  %v3679 = vpop.f32.mrb[0].mxu0
  %v3680 = vadd.f32 %v3308, %v3679
  %v3681 = vpop.f32.mrb[0].mxu0
  %v3682 = vadd.f32 %v3312, %v3681
  %v3683 = vpop.f32.mrb[0].mxu0
  %v3684 = vpop.f32.mrb[0].mxu0
  %3685 = vdwg.mxu0
  %3686 = vmatprep.subr.bf16.mxu0 %v3550
  %3687 = vmatpush1.bf16.xpose.msra.mxu0 %v3549
  %3688 = vmatprep.subr.bf16.mxu0 %v3552
  %3689 = vmatpush1.bf16.xpose.msra.mxu0 %v3551
  %3690 = vmatprep.subr.bf16.mxu0 %v3554
  %3691 = vmatpush1.bf16.xpose.msra.mxu0 %v3553
  %3692 = vmatprep.subr.bf16.mxu0 %v3556
  %3693 = vmatpush1.bf16.xpose.msra.mxu0 %v3555
  %3694 = vmatprep.subr.bf16.mxu0 %v3558
  %3695 = vmatpush1.bf16.xpose.msra.mxu0 %v3557
  %3696 = vmatprep.subr.bf16.mxu0 %v3560
  %3697 = vmatpush1.bf16.xpose.msra.mxu0 %v3559
  %3698 = vmatprep.subr.bf16.mxu0 %v3562
  %3699 = vmatpush1.bf16.xpose.msra.mxu0 %v3561
  %3700 = vmatprep.subr.bf16.mxu0 %v3564
  %3701 = vmatpush1.bf16.xpose.msra.mxu0 %v3563
  %3702 = vmatprep.subr.bf16.mxu0 %v3566
  %3703 = vmatpush1.bf16.xpose.msra.mxu0 %v3565
  %3704 = vmatprep.subr.bf16.mxu0 %v3568
  %3705 = vmatpush1.bf16.xpose.msra.mxu0 %v3567
  %3706 = vmatprep.subr.bf16.mxu0 %v3570
  %3707 = vmatpush1.bf16.xpose.msra.mxu0 %v3569
  %3708 = vmatprep.subr.bf16.mxu0 %v3572
  %3709 = vmatpush1.bf16.xpose.msra.mxu0 %v3571
  %3710 = vmatprep.subr.bf16.mxu0 %v3574
  %3711 = vmatpush1.bf16.xpose.msra.mxu0 %v3573
  %3712 = vmatprep.subr.bf16.mxu0 %v3576
  %3713 = vmatpush1.bf16.xpose.msra.mxu0 %v3575
  %3714 = vmatprep.subr.bf16.mxu0 %v3578
  %3715 = vmatpush1.bf16.xpose.msra.mxu0 %v3577
  %3716 = vmatprep.subr.bf16.mxu0 %v3580
  %3717 = vmatpush1.bf16.xpose.msra.mxu0 %v3579
  %3718 = vmatprep.mubr.bf16.mxu0 %v3238
  %3719 = vmatmul.mubr.bf16.gmra.mrb[0].mxu0 %v3237
  %v3720 = vpop.f32.mrb[0].mxu0
  %v3721 = vadd.f32 %v3316, %v3720
  %v3722 = vpop.f32.mrb[0].mxu0
  %v3723 = vadd.f32 %v3320, %v3722
  %v3724 = vpop.f32.mrb[0].mxu0
  %v3725 = vpop.f32.mrb[0].mxu0
  %3726 = vdwg.mxu0
  %v3727 = vld [vmem:[#allocation5] sm:$0xff]
  %v3728 = vxor.u32 %v3680, 2147483648
  %v3729 = vmul.f32 %v3728, 1.442695
  %v3730 = vpow.pop %v3729
  %v3731 = vadd.f32 %v3730, 1.0
  %v3732 = vrcp.pop %v3731
  %v3733 = vmul.f32 1.0, %v3732
  %v3734 = vxor.u32 %v3682, 2147483648
  %v3735 = vmul.f32 %v3734, 1.442695
  %v3736 = vpow.pop %v3735
  %v3737 = vadd.f32 %v3736, 1.0
  %v3738 = vrcp.pop %v3737
  %v3739 = vmul.f32 1.0, %v3738
  %v3740 = vtanh.pop %v3721
  %v3741 = vxor.u32 %v3723, 2147483648
  %v3742 = vmul.f32 %v3741, 1.442695
  %v3743 = vpow.pop %v3742
  %v3744 = vadd.f32 %v3743, 1.0
  %v3745 = vrcp.pop %v3744
  %v3746 = vmul.f32 1.0, %v3745
  %v3747 = vmul.f32 %v3739, %v3727
  %v3748 = vmul.f32 %v3733, %v3740
  %v3749 = vadd.f32 %v3747, %v3748
  %v3750 = vtanh.pop %v3749
  %v3751 = vmul.f32 %v3746, %v3750
  %3752 = vst [vmem:[#allocation4] sm:$0xff] %v3751
  %3753 = vst [vmem:[#allocation5] sm:$0xff] %v3749
  %v3754 = vld [vmem:[#allocation6] sm:$0xff]
  %v3755 = vpack.c.bf16 %v3751, %v3751
  %v3756 = vpack.c.bf16 %v3754, %v3754
  %v3757 = vld [vmem:[%s4] sm:$0xff]
  %v3758 = vld [vmem:[%s4 + $0x8] sm:$0xff]
  %v3759 = vld [vmem:[%s4 + $0x10] sm:$0xff]
  %v3760 = vld [vmem:[%s4 + $0x18] sm:$0xff]
  %v3761 = vld [vmem:[%s4 + $0x20] sm:$0xff]
  %v3762 = vld [vmem:[%s4 + $0x28] sm:$0xff]
  %v3763 = vld [vmem:[%s4 + $0x30] sm:$0xff]
  %v3764 = vld [vmem:[%s4 + $0x38] sm:$0xff]
  %v3765 = vld [vmem:[%s4 + $0x40] sm:$0xff]
  %v3766 = vld [vmem:[%s4 + $0x48] sm:$0xff]
  %v3767 = vld [vmem:[%s4 + $0x50] sm:$0xff]
  %v3768 = vld [vmem:[%s4 + $0x58] sm:$0xff]
  %v3769 = vld [vmem:[%s4 + $0x60] sm:$0xff]
  %v3770 = vld [vmem:[%s4 + $0x68] sm:$0xff]
  %v3771 = vld [vmem:[%s4 + $0x70] sm:$0xff]
  %v3772 = vld [vmem:[%s4 + $0x78] sm:$0xff]
  %v3773 = vld [vmem:[%s4 + $0x80] sm:$0xff]
  %v3774 = vld [vmem:[%s4 + $0x88] sm:$0xff]
  %v3775 = vld [vmem:[%s4 + $0x90] sm:$0xff]
  %v3776 = vld [vmem:[%s4 + $0x98] sm:$0xff]
  %v3777 = vld [vmem:[%s4 + $0xa0] sm:$0xff]
  %v3778 = vld [vmem:[%s4 + $0xa8] sm:$0xff]
  %v3779 = vld [vmem:[%s4 + $0xb0] sm:$0xff]
  %v3780 = vld [vmem:[%s4 + $0xb8] sm:$0xff]
  %v3781 = vld [vmem:[%s4 + $0xc0] sm:$0xff]
  %v3782 = vld [vmem:[%s4 + $0xc8] sm:$0xff]
  %v3783 = vld [vmem:[%s4 + $0xd0] sm:$0xff]
  %v3784 = vld [vmem:[%s4 + $0xd8] sm:$0xff]
  %v3785 = vld [vmem:[%s4 + $0xe0] sm:$0xff]
  %v3786 = vld [vmem:[%s4 + $0xe8] sm:$0xff]
  %v3787 = vld [vmem:[%s4 + $0xf0] sm:$0xff]
  %v3788 = vld [vmem:[%s4 + $0xf8] sm:$0xff]
  %v3789 = vld [vmem:[%s4 + $0x100] sm:$0xff]
  %v3790 = vld [vmem:[%s4 + $0x108] sm:$0xff]
  %v3791 = vld [vmem:[%s4 + $0x110] sm:$0xff]
  %v3792 = vld [vmem:[%s4 + $0x118] sm:$0xff]
  %v3793 = vld [vmem:[%s4 + $0x120] sm:$0xff]
  %v3794 = vld [vmem:[%s4 + $0x128] sm:$0xff]
  %v3795 = vld [vmem:[%s4 + $0x130] sm:$0xff]
  %v3796 = vld [vmem:[%s4 + $0x138] sm:$0xff]
  %v3797 = vld [vmem:[%s4 + $0x140] sm:$0xff]
  %v3798 = vld [vmem:[%s4 + $0x148] sm:$0xff]
  %v3799 = vld [vmem:[%s4 + $0x150] sm:$0xff]
  %v3800 = vld [vmem:[%s4 + $0x158] sm:$0xff]
  %v3801 = vld [vmem:[%s4 + $0x160] sm:$0xff]
  %v3802 = vld [vmem:[%s4 + $0x168] sm:$0xff]
  %v3803 = vld [vmem:[%s4 + $0x170] sm:$0xff]
  %v3804 = vld [vmem:[%s4 + $0x178] sm:$0xff]
  %v3805 = vld [vmem:[%s4 + $0x180] sm:$0xff]
  %v3806 = vld [vmem:[%s4 + $0x188] sm:$0xff]
  %v3807 = vld [vmem:[%s4 + $0x190] sm:$0xff]
  %v3808 = vld [vmem:[%s4 + $0x198] sm:$0xff]
  %v3809 = vld [vmem:[%s4 + $0x1a0] sm:$0xff]
  %v3810 = vld [vmem:[%s4 + $0x1a8] sm:$0xff]
  %v3811 = vld [vmem:[%s4 + $0x1b0] sm:$0xff]
  %v3812 = vld [vmem:[%s4 + $0x1b8] sm:$0xff]
  %v3813 = vld [vmem:[%s4 + $0x1c0] sm:$0xff]
  %v3814 = vld [vmem:[%s4 + $0x1c8] sm:$0xff]
  %v3815 = vld [vmem:[%s4 + $0x1d0] sm:$0xff]
  %v3816 = vld [vmem:[%s4 + $0x1d8] sm:$0xff]
  %v3817 = vld [vmem:[%s4 + $0x1e0] sm:$0xff]
  %v3818 = vld [vmem:[%s4 + $0x1e8] sm:$0xff]
  %v3819 = vld [vmem:[%s4 + $0x1f0] sm:$0xff]
  %v3820 = vld [vmem:[%s4 + $0x1f8] sm:$0xff]
  %v3821 = vld [vmem:[%s5] sm:$0xf]
  %v3823 = vlaneseq
  %v3824 = vshrl.u32 %v3823, 7
  %v3825 = vsub.s32 0, %v3824
  %v3826 = vrot.slane %v3821, %v3825
  %v3827 = vlaneseq
  %v3828 = vshrl.u32 %v3827, 7
  %v3829 = vsub.s32 1, %v3828
  %v3830 = vrot.slane %v3821, %v3829
  %v3831 = vlaneseq
  %v3832 = vshrl.u32 %v3831, 7
  %v3833 = vsub.s32 2, %v3832
  %v3834 = vrot.slane %v3821, %v3833
  %v3835 = vlaneseq
  %v3836 = vshrl.u32 %v3835, 7
  %v3837 = vsub.s32 3, %v3836
  %v3838 = vrot.slane %v3821, %v3837
  %v3907 = vunpack.c.l.b16 %v3757
  %v3908 = vunpack.c.h.b16 %v3757
  %v3909 = vunpack.c.l.b16 %v3758
  %v3910 = vunpack.c.h.b16 %v3758
  %v3911 = vunpack.c.l.b16 %v3759
  %v3912 = vunpack.c.h.b16 %v3759
  %v3913 = vunpack.c.l.b16 %v3760
  %v3914 = vunpack.c.h.b16 %v3760
  %v3915 = vunpack.c.l.b16 %v3761
  %v3916 = vunpack.c.h.b16 %v3761
  %v3917 = vunpack.c.l.b16 %v3762
  %v3918 = vunpack.c.h.b16 %v3762
  %v3919 = vunpack.c.l.b16 %v3763
  %v3920 = vunpack.c.h.b16 %v3763
  %v3921 = vunpack.c.l.b16 %v3764
  %v3922 = vunpack.c.h.b16 %v3764
  %v3923 = vunpack.c.l.b16 %v3765
  %v3924 = vunpack.c.h.b16 %v3765
  %v3925 = vunpack.c.l.b16 %v3766
  %v3926 = vunpack.c.h.b16 %v3766
  %v3927 = vunpack.c.l.b16 %v3767
  %v3928 = vunpack.c.h.b16 %v3767
  %v3929 = vunpack.c.l.b16 %v3768
  %v3930 = vunpack.c.h.b16 %v3768
  %v3931 = vunpack.c.l.b16 %v3769
  %v3932 = vunpack.c.h.b16 %v3769
  %v3933 = vunpack.c.l.b16 %v3770
  %v3934 = vunpack.c.h.b16 %v3770
  %v3935 = vunpack.c.l.b16 %v3771
  %v3936 = vunpack.c.h.b16 %v3771
  %v3937 = vunpack.c.l.b16 %v3772
  %v3938 = vunpack.c.h.b16 %v3772
  %v3939 = vunpack.c.l.b16 %v3773
  %v3940 = vunpack.c.h.b16 %v3773
  %v3941 = vunpack.c.l.b16 %v3774
  %v3942 = vunpack.c.h.b16 %v3774
  %v3943 = vunpack.c.l.b16 %v3775
  %v3944 = vunpack.c.h.b16 %v3775
  %v3945 = vunpack.c.l.b16 %v3776
  %v3946 = vunpack.c.h.b16 %v3776
  %v3947 = vunpack.c.l.b16 %v3777
  %v3948 = vunpack.c.h.b16 %v3777
  %v3949 = vunpack.c.l.b16 %v3778
  %v3950 = vunpack.c.h.b16 %v3778
  %v3951 = vunpack.c.l.b16 %v3779
  %v3952 = vunpack.c.h.b16 %v3779
  %v3953 = vunpack.c.l.b16 %v3780
  %v3954 = vunpack.c.h.b16 %v3780
  %v3955 = vunpack.c.l.b16 %v3781
  %v3956 = vunpack.c.h.b16 %v3781
  %v3957 = vunpack.c.l.b16 %v3782
  %v3958 = vunpack.c.h.b16 %v3782
  %v3959 = vunpack.c.l.b16 %v3783
  %v3960 = vunpack.c.h.b16 %v3783
  %v3961 = vunpack.c.l.b16 %v3784
  %v3962 = vunpack.c.h.b16 %v3784
  %v3963 = vunpack.c.l.b16 %v3785
  %v3964 = vunpack.c.h.b16 %v3785
  %v3965 = vunpack.c.l.b16 %v3786
  %v3966 = vunpack.c.h.b16 %v3786
  %v3967 = vunpack.c.l.b16 %v3787
  %v3968 = vunpack.c.h.b16 %v3787
  %v3969 = vunpack.c.l.b16 %v3788
  %v3970 = vunpack.c.h.b16 %v3788
  %v3971 = vunpack.c.l.b16 %v3789
  %v3972 = vunpack.c.h.b16 %v3789
  %v3973 = vunpack.c.l.b16 %v3790
  %v3974 = vunpack.c.h.b16 %v3790
  %v3975 = vunpack.c.l.b16 %v3791
  %v3976 = vunpack.c.h.b16 %v3791
  %v3977 = vunpack.c.l.b16 %v3792
  %v3978 = vunpack.c.h.b16 %v3792
  %v3979 = vunpack.c.l.b16 %v3793
  %v3980 = vunpack.c.h.b16 %v3793
  %v3981 = vunpack.c.l.b16 %v3794
  %v3982 = vunpack.c.h.b16 %v3794
  %v3983 = vunpack.c.l.b16 %v3795
  %v3984 = vunpack.c.h.b16 %v3795
  %v3985 = vunpack.c.l.b16 %v3796
  %v3986 = vunpack.c.h.b16 %v3796
  %v3987 = vunpack.c.l.b16 %v3797
  %v3988 = vunpack.c.h.b16 %v3797
  %v3989 = vunpack.c.l.b16 %v3798
  %v3990 = vunpack.c.h.b16 %v3798
  %v3991 = vunpack.c.l.b16 %v3799
  %v3992 = vunpack.c.h.b16 %v3799
  %v3993 = vunpack.c.l.b16 %v3800
  %v3994 = vunpack.c.h.b16 %v3800
  %v3995 = vunpack.c.l.b16 %v3801
  %v3996 = vunpack.c.h.b16 %v3801
  %v3997 = vunpack.c.l.b16 %v3802
  %v3998 = vunpack.c.h.b16 %v3802
  %v3999 = vunpack.c.l.b16 %v3803
  %v4000 = vunpack.c.h.b16 %v3803
  %v4001 = vunpack.c.l.b16 %v3804
  %v4002 = vunpack.c.h.b16 %v3804
  %v4003 = vunpack.c.l.b16 %v3805
  %v4004 = vunpack.c.h.b16 %v3805
  %v4005 = vunpack.c.l.b16 %v3806
  %v4006 = vunpack.c.h.b16 %v3806
  %v4007 = vunpack.c.l.b16 %v3807
  %v4008 = vunpack.c.h.b16 %v3807
  %v4009 = vunpack.c.l.b16 %v3808
  %v4010 = vunpack.c.h.b16 %v3808
  %v4011 = vunpack.c.l.b16 %v3809
  %v4012 = vunpack.c.h.b16 %v3809
  %v4013 = vunpack.c.l.b16 %v3810
  %v4014 = vunpack.c.h.b16 %v3810
  %v4015 = vunpack.c.l.b16 %v3811
  %v4016 = vunpack.c.h.b16 %v3811
  %v4017 = vunpack.c.l.b16 %v3812
  %v4018 = vunpack.c.h.b16 %v3812
  %v4019 = vunpack.c.l.b16 %v3813
  %v4020 = vunpack.c.h.b16 %v3813
  %v4021 = vunpack.c.l.b16 %v3814
  %v4022 = vunpack.c.h.b16 %v3814
  %v4023 = vunpack.c.l.b16 %v3815
  %v4024 = vunpack.c.h.b16 %v3815
  %v4025 = vunpack.c.l.b16 %v3816
  %v4026 = vunpack.c.h.b16 %v3816
  %v4027 = vunpack.c.l.b16 %v3817
  %v4028 = vunpack.c.h.b16 %v3817
  %v4029 = vunpack.c.l.b16 %v3818
  %v4030 = vunpack.c.h.b16 %v3818
  %v4031 = vunpack.c.l.b16 %v3819
  %v4032 = vunpack.c.h.b16 %v3819
  %v4033 = vunpack.c.l.b16 %v3820
  %v4034 = vunpack.c.h.b16 %v3820
  %v4035 = vpack.c.b16 %v3909, %v3907
  %v4036 = vpack.c.b16 %v3910, %v3908
  %v4037 = vpack.c.b16 %v3913, %v3911
  %v4038 = vpack.c.b16 %v3914, %v3912
  %v4039 = vpack.c.b16 %v3917, %v3915
  %v4040 = vpack.c.b16 %v3918, %v3916
  %v4041 = vpack.c.b16 %v3921, %v3919
  %v4042 = vpack.c.b16 %v3922, %v3920
  %v4043 = vpack.c.b16 %v3925, %v3923
  %v4044 = vpack.c.b16 %v3926, %v3924
  %v4045 = vpack.c.b16 %v3929, %v3927
  %v4046 = vpack.c.b16 %v3930, %v3928
  %v4047 = vpack.c.b16 %v3933, %v3931
  %v4048 = vpack.c.b16 %v3934, %v3932
  %v4049 = vpack.c.b16 %v3937, %v3935
  %v4050 = vpack.c.b16 %v3938, %v3936
  %v4051 = vpack.c.b16 %v3941, %v3939
  %v4052 = vpack.c.b16 %v3942, %v3940
  %v4053 = vpack.c.b16 %v3945, %v3943
  %v4054 = vpack.c.b16 %v3946, %v3944
  %v4055 = vpack.c.b16 %v3949, %v3947
  %v4056 = vpack.c.b16 %v3950, %v3948
  %v4057 = vpack.c.b16 %v3953, %v3951
  %v4058 = vpack.c.b16 %v3954, %v3952
  %v4059 = vpack.c.b16 %v3957, %v3955
  %v4060 = vpack.c.b16 %v3958, %v3956
  %v4061 = vpack.c.b16 %v3961, %v3959
  %v4062 = vpack.c.b16 %v3962, %v3960
  %v4063 = vpack.c.b16 %v3965, %v3963
  %v4064 = vpack.c.b16 %v3966, %v3964
  %v4065 = vpack.c.b16 %v3969, %v3967
  %v4066 = vpack.c.b16 %v3970, %v3968
  %v4067 = vpack.c.b16 %v3973, %v3971
  %v4068 = vpack.c.b16 %v3974, %v3972
  %v4069 = vpack.c.b16 %v3977, %v3975
  %v4070 = vpack.c.b16 %v3978, %v3976
  %v4071 = vpack.c.b16 %v3981, %v3979
  %v4072 = vpack.c.b16 %v3982, %v3980
  %v4073 = vpack.c.b16 %v3985, %v3983
  %v4074 = vpack.c.b16 %v3986, %v3984
  %v4075 = vpack.c.b16 %v3989, %v3987
  %v4076 = vpack.c.b16 %v3990, %v3988
  %v4077 = vpack.c.b16 %v3993, %v3991
  %v4078 = vpack.c.b16 %v3994, %v3992
  %v4079 = vpack.c.b16 %v3997, %v3995
  %v4080 = vpack.c.b16 %v3998, %v3996
  %v4081 = vpack.c.b16 %v4001, %v3999
  %v4082 = vpack.c.b16 %v4002, %v4000
  %v4083 = vpack.c.b16 %v4005, %v4003
  %v4084 = vpack.c.b16 %v4006, %v4004
  %v4085 = vpack.c.b16 %v4009, %v4007
  %v4086 = vpack.c.b16 %v4010, %v4008
  %v4087 = vpack.c.b16 %v4013, %v4011
  %v4088 = vpack.c.b16 %v4014, %v4012
  %v4089 = vpack.c.b16 %v4017, %v4015
  %v4090 = vpack.c.b16 %v4018, %v4016
  %v4091 = vpack.c.b16 %v4021, %v4019
  %v4092 = vpack.c.b16 %v4022, %v4020
  %v4093 = vpack.c.b16 %v4025, %v4023
  %v4094 = vpack.c.b16 %v4026, %v4024
  %v4095 = vpack.c.b16 %v4029, %v4027
  %v4096 = vpack.c.b16 %v4030, %v4028
  %v4097 = vpack.c.b16 %v4033, %v4031
  %v4098 = vpack.c.b16 %v4034, %v4032
  %4163 = vmatprep.subr.bf16.mxu0 %v4036
  %4164 = vmatpush1.bf16.xpose.msra.mxu0 %v4035
  %4165 = vmatprep.subr.bf16.mxu0 %v4038
  %4166 = vmatpush1.bf16.xpose.msra.mxu0 %v4037
  %4167 = vmatprep.subr.bf16.mxu0 %v4040
  %4168 = vmatpush1.bf16.xpose.msra.mxu0 %v4039
  %4169 = vmatprep.subr.bf16.mxu0 %v4042
  %4170 = vmatpush1.bf16.xpose.msra.mxu0 %v4041
  %4171 = vmatprep.subr.bf16.mxu0 %v4044
  %4172 = vmatpush1.bf16.xpose.msra.mxu0 %v4043
  %4173 = vmatprep.subr.bf16.mxu0 %v4046
  %4174 = vmatpush1.bf16.xpose.msra.mxu0 %v4045
  %4175 = vmatprep.subr.bf16.mxu0 %v4048
  %4176 = vmatpush1.bf16.xpose.msra.mxu0 %v4047
  %4177 = vmatprep.subr.bf16.mxu0 %v4050
  %4178 = vmatpush1.bf16.xpose.msra.mxu0 %v4049
  %4179 = vmatprep.subr.bf16.mxu0 %v4052
  %4180 = vmatpush1.bf16.xpose.msra.mxu0 %v4051
  %4181 = vmatprep.subr.bf16.mxu0 %v4054
  %4182 = vmatpush1.bf16.xpose.msra.mxu0 %v4053
  %4183 = vmatprep.subr.bf16.mxu0 %v4056
  %4184 = vmatpush1.bf16.xpose.msra.mxu0 %v4055
  %4185 = vmatprep.subr.bf16.mxu0 %v4058
  %4186 = vmatpush1.bf16.xpose.msra.mxu0 %v4057
  %4187 = vmatprep.subr.bf16.mxu0 %v4060
  %4188 = vmatpush1.bf16.xpose.msra.mxu0 %v4059
  %4189 = vmatprep.subr.bf16.mxu0 %v4062
  %4190 = vmatpush1.bf16.xpose.msra.mxu0 %v4061
  %4191 = vmatprep.subr.bf16.mxu0 %v4064
  %4192 = vmatpush1.bf16.xpose.msra.mxu0 %v4063
  %4193 = vmatprep.subr.bf16.mxu0 %v4066
  %4194 = vmatpush1.bf16.xpose.msra.mxu0 %v4065
  %4195 = vmatprep.mubr.bf16.mxu0 %v3756
  %4196 = vmatmul.mubr.bf16.gmra.mrb[0].mxu0 %v3755
  %v4197 = vpop.f32.mrb[0].mxu0
  %v4198 = vadd.f32 %v3826, %v4197
  %v4199 = vpop.f32.mrb[0].mxu0
  %v4200 = vadd.f32 %v3830, %v4199
  %v4201 = vpop.f32.mrb[0].mxu0
  %v4202 = vpop.f32.mrb[0].mxu0
  %4203 = vdwg.mxu0
  %4204 = vmatprep.subr.bf16.mxu0 %v4068
  %4205 = vmatpush1.bf16.xpose.msra.mxu0 %v4067
  %4206 = vmatprep.subr.bf16.mxu0 %v4070
  %4207 = vmatpush1.bf16.xpose.msra.mxu0 %v4069
  %4208 = vmatprep.subr.bf16.mxu0 %v4072
  %4209 = vmatpush1.bf16.xpose.msra.mxu0 %v4071
  %4210 = vmatprep.subr.bf16.mxu0 %v4074
  %4211 = vmatpush1.bf16.xpose.msra.mxu0 %v4073
  %4212 = vmatprep.subr.bf16.mxu0 %v4076
  %4213 = vmatpush1.bf16.xpose.msra.mxu0 %v4075
  %4214 = vmatprep.subr.bf16.mxu0 %v4078
  %4215 = vmatpush1.bf16.xpose.msra.mxu0 %v4077
  %4216 = vmatprep.subr.bf16.mxu0 %v4080
  %4217 = vmatpush1.bf16.xpose.msra.mxu0 %v4079
  %4218 = vmatprep.subr.bf16.mxu0 %v4082
  %4219 = vmatpush1.bf16.xpose.msra.mxu0 %v4081
  %4220 = vmatprep.subr.bf16.mxu0 %v4084
  %4221 = vmatpush1.bf16.xpose.msra.mxu0 %v4083
  %4222 = vmatprep.subr.bf16.mxu0 %v4086
  %4223 = vmatpush1.bf16.xpose.msra.mxu0 %v4085
  %4224 = vmatprep.subr.bf16.mxu0 %v4088
  %4225 = vmatpush1.bf16.xpose.msra.mxu0 %v4087
  %4226 = vmatprep.subr.bf16.mxu0 %v4090
  %4227 = vmatpush1.bf16.xpose.msra.mxu0 %v4089
  %4228 = vmatprep.subr.bf16.mxu0 %v4092
  %4229 = vmatpush1.bf16.xpose.msra.mxu0 %v4091
  %4230 = vmatprep.subr.bf16.mxu0 %v4094
  %4231 = vmatpush1.bf16.xpose.msra.mxu0 %v4093
  %4232 = vmatprep.subr.bf16.mxu0 %v4096
  %4233 = vmatpush1.bf16.xpose.msra.mxu0 %v4095
  %4234 = vmatprep.subr.bf16.mxu0 %v4098
  %4235 = vmatpush1.bf16.xpose.msra.mxu0 %v4097
  %4236 = vmatprep.mubr.bf16.mxu0 %v3756
  %4237 = vmatmul.mubr.bf16.gmra.mrb[0].mxu0 %v3755
  %v4238 = vpop.f32.mrb[0].mxu0
  %v4239 = vadd.f32 %v3834, %v4238
  %v4240 = vpop.f32.mrb[0].mxu0
  %v4241 = vadd.f32 %v3838, %v4240
  %v4242 = vpop.f32.mrb[0].mxu0
  %v4243 = vpop.f32.mrb[0].mxu0
  %4244 = vdwg.mxu0
  %v4245 = vld [vmem:[#allocation7] sm:$0xff]
  %v4246 = vxor.u32 %v4198, 2147483648
  %v4247 = vmul.f32 %v4246, 1.442695
  %v4248 = vpow.pop %v4247
  %v4249 = vadd.f32 %v4248, 1.0
  %v4250 = vrcp.pop %v4249
  %v4251 = vmul.f32 1.0, %v4250
  %v4252 = vxor.u32 %v4200, 2147483648
  %v4253 = vmul.f32 %v4252, 1.442695
  %v4254 = vpow.pop %v4253
  %v4255 = vadd.f32 %v4254, 1.0
  %v4256 = vrcp.pop %v4255
  %v4257 = vmul.f32 1.0, %v4256
  %v4258 = vtanh.pop %v4239
  %v4259 = vxor.u32 %v4241, 2147483648
  %v4260 = vmul.f32 %v4259, 1.442695
  %v4261 = vpow.pop %v4260
  %v4262 = vadd.f32 %v4261, 1.0
  %v4263 = vrcp.pop %v4262
  %v4264 = vmul.f32 1.0, %v4263
  %v4265 = vmul.f32 %v4257, %v4245
  %v4266 = vmul.f32 %v4251, %v4258
  %v4267 = vadd.f32 %v4265, %v4266
  %v4268 = vtanh.pop %v4267
  %v4269 = vmul.f32 %v4264, %v4268
  %4270 = vst [vmem:[#allocation6] sm:$0xff] %v4269
  %4271 = vst [vmem:[#allocation7] sm:$0xff] %v4267
  %s4272 = scalar_lea.vmem %s6, 16
  %4273 = vst [vmem:[%s4272] sm:$0xff] %v4269
  %s4274 = scalar_lea.vmem %s0, 96
  %v4275 = vld [vmem:[%s4274] sm:$0xff]
  %v4276 = vld [vmem:[%s4274 + $0x8] sm:$0xff]
  %v4277 = vld [vmem:[%s4274 + $0x10] sm:$0xff]
  %v4278 = vld [vmem:[%s4274 + $0x18] sm:$0xff]
  %v4279 = vld [vmem:[#allocation2] sm:$0xff]
  %v4280 = vpack.c.bf16 %v4279, %v4279
  %v4281 = vld [vmem:[%s1] sm:$0xf]
  %v4282 = vld [vmem:[%s1 + $0x4] sm:$0xf]
  %v4283 = vld [vmem:[%s1 + $0x8] sm:$0xf]
  %v4284 = vld [vmem:[%s1 + $0xc] sm:$0xf]
  %v4285 = vld [vmem:[%s1 + $0x10] sm:$0xf]
  %v4286 = vld [vmem:[%s1 + $0x14] sm:$0xf]
  %v4287 = vld [vmem:[%s1 + $0x18] sm:$0xf]
  %v4288 = vld [vmem:[%s1 + $0x1c] sm:$0xf]
  %v4289 = vld [vmem:[%s1 + $0x20] sm:$0xf]
  %v4290 = vld [vmem:[%s1 + $0x24] sm:$0xf]
  %v4291 = vld [vmem:[%s1 + $0x28] sm:$0xf]
  %v4292 = vld [vmem:[%s1 + $0x2c] sm:$0xf]
  %v4293 = vld [vmem:[%s1 + $0x30] sm:$0xf]
  %v4294 = vld [vmem:[%s1 + $0x34] sm:$0xf]
  %v4295 = vld [vmem:[%s1 + $0x38] sm:$0xf]
  %v4296 = vld [vmem:[%s1 + $0x3c] sm:$0xf]
  %v4297 = vld [vmem:[%s1 + $0x40] sm:$0xf]
  %v4298 = vld [vmem:[%s1 + $0x44] sm:$0xf]
  %v4299 = vld [vmem:[%s1 + $0x48] sm:$0xf]
  %v4300 = vld [vmem:[%s1 + $0x4c] sm:$0xf]
  %v4301 = vld [vmem:[%s1 + $0x50] sm:$0xf]
  %v4302 = vld [vmem:[%s1 + $0x54] sm:$0xf]
  %v4303 = vld [vmem:[%s1 + $0x58] sm:$0xf]
  %v4304 = vld [vmem:[%s1 + $0x5c] sm:$0xf]
  %v4305 = vld [vmem:[%s1 + $0x60] sm:$0xf]
  %v4306 = vld [vmem:[%s1 + $0x64] sm:$0xf]
  %v4307 = vld [vmem:[%s1 + $0x68] sm:$0xf]
  %v4308 = vld [vmem:[%s1 + $0x6c] sm:$0xf]
  %v4309 = vld [vmem:[%s1 + $0x70] sm:$0xf]
  %v4310 = vld [vmem:[%s1 + $0x74] sm:$0xf]
  %v4311 = vld [vmem:[%s1 + $0x78] sm:$0xf]
  %v4312 = vld [vmem:[%s1 + $0x7c] sm:$0xf]
  %v4313 = vld [vmem:[%s1 + $0x80] sm:$0xf]
  %v4314 = vld [vmem:[%s1 + $0x84] sm:$0xf]
  %v4315 = vld [vmem:[%s1 + $0x88] sm:$0xf]
  %v4316 = vld [vmem:[%s1 + $0x8c] sm:$0xf]
  %v4317 = vld [vmem:[%s1 + $0x90] sm:$0xf]
  %v4318 = vld [vmem:[%s1 + $0x94] sm:$0xf]
  %v4319 = vld [vmem:[%s1 + $0x98] sm:$0xf]
  %v4320 = vld [vmem:[%s1 + $0x9c] sm:$0xf]
  %v4321 = vld [vmem:[%s1 + $0xa0] sm:$0xf]
  %v4322 = vld [vmem:[%s1 + $0xa4] sm:$0xf]
  %v4323 = vld [vmem:[%s1 + $0xa8] sm:$0xf]
  %v4324 = vld [vmem:[%s1 + $0xac] sm:$0xf]
  %v4325 = vld [vmem:[%s1 + $0xb0] sm:$0xf]
  %v4326 = vld [vmem:[%s1 + $0xb4] sm:$0xf]
  %v4327 = vld [vmem:[%s1 + $0xb8] sm:$0xf]
  %v4328 = vld [vmem:[%s1 + $0xbc] sm:$0xf]
  %v4329 = vld [vmem:[%s1 + $0xc0] sm:$0xf]
  %v4330 = vld [vmem:[%s1 + $0xc4] sm:$0xf]
  %v4331 = vld [vmem:[%s1 + $0xc8] sm:$0xf]
  %v4332 = vld [vmem:[%s1 + $0xcc] sm:$0xf]
  %v4333 = vld [vmem:[%s1 + $0xd0] sm:$0xf]
  %v4334 = vld [vmem:[%s1 + $0xd4] sm:$0xf]
  %v4335 = vld [vmem:[%s1 + $0xd8] sm:$0xf]
  %v4336 = vld [vmem:[%s1 + $0xdc] sm:$0xf]
  %v4337 = vld [vmem:[%s1 + $0xe0] sm:$0xf]
  %v4338 = vld [vmem:[%s1 + $0xe4] sm:$0xf]
  %v4339 = vld [vmem:[%s1 + $0xe8] sm:$0xf]
  %v4340 = vld [vmem:[%s1 + $0xec] sm:$0xf]
  %v4341 = vld [vmem:[%s1 + $0xf0] sm:$0xf]
  %v4342 = vld [vmem:[%s1 + $0xf4] sm:$0xf]
  %v4343 = vld [vmem:[%s1 + $0xf8] sm:$0xf]
  %v4344 = vld [vmem:[%s1 + $0xfc] sm:$0xf]
  %v4409 = vunpack.c.l.b16 %v4281
  %v4410 = vunpack.c.l.b16 %v4282
  %v4411 = vunpack.c.l.b16 %v4283
  %v4412 = vunpack.c.l.b16 %v4284
  %v4413 = vunpack.c.l.b16 %v4285
  %v4414 = vunpack.c.l.b16 %v4286
  %v4415 = vunpack.c.l.b16 %v4287
  %v4416 = vunpack.c.l.b16 %v4288
  %v4417 = vunpack.c.l.b16 %v4289
  %v4418 = vunpack.c.l.b16 %v4290
  %v4419 = vunpack.c.l.b16 %v4291
  %v4420 = vunpack.c.l.b16 %v4292
  %v4421 = vunpack.c.l.b16 %v4293
  %v4422 = vunpack.c.l.b16 %v4294
  %v4423 = vunpack.c.l.b16 %v4295
  %v4424 = vunpack.c.l.b16 %v4296
  %v4425 = vunpack.c.l.b16 %v4297
  %v4426 = vunpack.c.l.b16 %v4298
  %v4427 = vunpack.c.l.b16 %v4299
  %v4428 = vunpack.c.l.b16 %v4300
  %v4429 = vunpack.c.l.b16 %v4301
  %v4430 = vunpack.c.l.b16 %v4302
  %v4431 = vunpack.c.l.b16 %v4303
  %v4432 = vunpack.c.l.b16 %v4304
  %v4433 = vunpack.c.l.b16 %v4305
  %v4434 = vunpack.c.l.b16 %v4306
  %v4435 = vunpack.c.l.b16 %v4307
  %v4436 = vunpack.c.l.b16 %v4308
  %v4437 = vunpack.c.l.b16 %v4309
  %v4438 = vunpack.c.l.b16 %v4310
  %v4439 = vunpack.c.l.b16 %v4311
  %v4440 = vunpack.c.l.b16 %v4312
  %v4441 = vunpack.c.l.b16 %v4313
  %v4442 = vunpack.c.l.b16 %v4314
  %v4443 = vunpack.c.l.b16 %v4315
  %v4444 = vunpack.c.l.b16 %v4316
  %v4445 = vunpack.c.l.b16 %v4317
  %v4446 = vunpack.c.l.b16 %v4318
  %v4447 = vunpack.c.l.b16 %v4319
  %v4448 = vunpack.c.l.b16 %v4320
  %v4449 = vunpack.c.l.b16 %v4321
  %v4450 = vunpack.c.l.b16 %v4322
  %v4451 = vunpack.c.l.b16 %v4323
  %v4452 = vunpack.c.l.b16 %v4324
  %v4453 = vunpack.c.l.b16 %v4325
  %v4454 = vunpack.c.l.b16 %v4326
  %v4455 = vunpack.c.l.b16 %v4327
  %v4456 = vunpack.c.l.b16 %v4328
  %v4457 = vunpack.c.l.b16 %v4329
  %v4458 = vunpack.c.l.b16 %v4330
  %v4459 = vunpack.c.l.b16 %v4331
  %v4460 = vunpack.c.l.b16 %v4332
  %v4461 = vunpack.c.l.b16 %v4333
  %v4462 = vunpack.c.l.b16 %v4334
  %v4463 = vunpack.c.l.b16 %v4335
  %v4464 = vunpack.c.l.b16 %v4336
  %v4465 = vunpack.c.l.b16 %v4337
  %v4466 = vunpack.c.l.b16 %v4338
  %v4467 = vunpack.c.l.b16 %v4339
  %v4468 = vunpack.c.l.b16 %v4340
  %v4469 = vunpack.c.l.b16 %v4341
  %v4470 = vunpack.c.l.b16 %v4342
  %v4471 = vunpack.c.l.b16 %v4343
  %v4472 = vunpack.c.l.b16 %v4344
  %v4473 = vpack.c.b16 %v4410, %v4409
  %v4474 = vpack.c.b16 %v4412, %v4411
  %v4475 = vpack.c.b16 %v4414, %v4413
  %v4476 = vpack.c.b16 %v4416, %v4415
  %v4477 = vpack.c.b16 %v4418, %v4417
  %v4478 = vpack.c.b16 %v4420, %v4419
  %v4479 = vpack.c.b16 %v4422, %v4421
  %v4480 = vpack.c.b16 %v4424, %v4423
  %v4481 = vpack.c.b16 %v4426, %v4425
  %v4482 = vpack.c.b16 %v4428, %v4427
  %v4483 = vpack.c.b16 %v4430, %v4429
  %v4484 = vpack.c.b16 %v4432, %v4431
  %v4485 = vpack.c.b16 %v4434, %v4433
  %v4486 = vpack.c.b16 %v4436, %v4435
  %v4487 = vpack.c.b16 %v4438, %v4437
  %v4488 = vpack.c.b16 %v4440, %v4439
  %v4489 = vpack.c.b16 %v4442, %v4441
  %v4490 = vpack.c.b16 %v4444, %v4443
  %v4491 = vpack.c.b16 %v4446, %v4445
  %v4492 = vpack.c.b16 %v4448, %v4447
  %v4493 = vpack.c.b16 %v4450, %v4449
  %v4494 = vpack.c.b16 %v4452, %v4451
  %v4495 = vpack.c.b16 %v4454, %v4453
  %v4496 = vpack.c.b16 %v4456, %v4455
  %v4497 = vpack.c.b16 %v4458, %v4457
  %v4498 = vpack.c.b16 %v4460, %v4459
  %v4499 = vpack.c.b16 %v4462, %v4461
  %v4500 = vpack.c.b16 %v4464, %v4463
  %v4501 = vpack.c.b16 %v4466, %v4465
  %v4502 = vpack.c.b16 %v4468, %v4467
  %v4503 = vpack.c.b16 %v4470, %v4469
  %v4504 = vpack.c.b16 %v4472, %v4471
  %4537 = vmatprep.subr.bf16.mxu0 0
  %4538 = vmatpush1.bf16.xpose.msra.mxu0 %v4473
  %4539 = vmatprep.subr.bf16.mxu0 0
  %4540 = vmatpush1.bf16.xpose.msra.mxu0 %v4474
  %4541 = vmatprep.subr.bf16.mxu0 0
  %4542 = vmatpush1.bf16.xpose.msra.mxu0 %v4475
  %4543 = vmatprep.subr.bf16.mxu0 0
  %4544 = vmatpush1.bf16.xpose.msra.mxu0 %v4476
  %4545 = vmatprep.subr.bf16.mxu0 0
  %4546 = vmatpush1.bf16.xpose.msra.mxu0 %v4477
  %4547 = vmatprep.subr.bf16.mxu0 0
  %4548 = vmatpush1.bf16.xpose.msra.mxu0 %v4478
  %4549 = vmatprep.subr.bf16.mxu0 0
  %4550 = vmatpush1.bf16.xpose.msra.mxu0 %v4479
  %4551 = vmatprep.subr.bf16.mxu0 0
  %4552 = vmatpush1.bf16.xpose.msra.mxu0 %v4480
  %4553 = vmatprep.subr.bf16.mxu0 0
  %4554 = vmatpush1.bf16.xpose.msra.mxu0 %v4481
  %4555 = vmatprep.subr.bf16.mxu0 0
  %4556 = vmatpush1.bf16.xpose.msra.mxu0 %v4482
  %4557 = vmatprep.subr.bf16.mxu0 0
  %4558 = vmatpush1.bf16.xpose.msra.mxu0 %v4483
  %4559 = vmatprep.subr.bf16.mxu0 0
  %4560 = vmatpush1.bf16.xpose.msra.mxu0 %v4484
  %4561 = vmatprep.subr.bf16.mxu0 0
  %4562 = vmatpush1.bf16.xpose.msra.mxu0 %v4485
  %4563 = vmatprep.subr.bf16.mxu0 0
  %4564 = vmatpush1.bf16.xpose.msra.mxu0 %v4486
  %4565 = vmatprep.subr.bf16.mxu0 0
  %4566 = vmatpush1.bf16.xpose.msra.mxu0 %v4487
  %4567 = vmatprep.subr.bf16.mxu0 0
  %4568 = vmatpush1.bf16.xpose.msra.mxu0 %v4488
  %4569 = vmatprep.mubr.bf16.mxu0 0
  %4570 = vmatmul.mubr.bf16.gmra.mrb[0].mxu0 %v4280
  %v4571 = vpop.f32.mrb[0].mxu0
  %v4572 = vadd.f32 0.0, %v4571
  %v4573 = vpop.f32.mrb[0].mxu0
  %v4574 = vadd.f32 0.0, %v4573
  %v4575 = vpop.f32.mrb[0].mxu0
  %v4576 = vpop.f32.mrb[0].mxu0
  %4577 = vdwg.mxu0
  %4578 = vmatprep.subr.bf16.mxu0 0
  %4579 = vmatpush1.bf16.xpose.msra.mxu0 %v4489
  %4580 = vmatprep.subr.bf16.mxu0 0
  %4581 = vmatpush1.bf16.xpose.msra.mxu0 %v4490
  %4582 = vmatprep.subr.bf16.mxu0 0
  %4583 = vmatpush1.bf16.xpose.msra.mxu0 %v4491
  %4584 = vmatprep.subr.bf16.mxu0 0
  %4585 = vmatpush1.bf16.xpose.msra.mxu0 %v4492
  %4586 = vmatprep.subr.bf16.mxu0 0
  %4587 = vmatpush1.bf16.xpose.msra.mxu0 %v4493
  %4588 = vmatprep.subr.bf16.mxu0 0
  %4589 = vmatpush1.bf16.xpose.msra.mxu0 %v4494
  %4590 = vmatprep.subr.bf16.mxu0 0
  %4591 = vmatpush1.bf16.xpose.msra.mxu0 %v4495
  %4592 = vmatprep.subr.bf16.mxu0 0
  %4593 = vmatpush1.bf16.xpose.msra.mxu0 %v4496
  %4594 = vmatprep.subr.bf16.mxu0 0
  %4595 = vmatpush1.bf16.xpose.msra.mxu0 %v4497
  %4596 = vmatprep.subr.bf16.mxu0 0
  %4597 = vmatpush1.bf16.xpose.msra.mxu0 %v4498
  %4598 = vmatprep.subr.bf16.mxu0 0
  %4599 = vmatpush1.bf16.xpose.msra.mxu0 %v4499
  %4600 = vmatprep.subr.bf16.mxu0 0
  %4601 = vmatpush1.bf16.xpose.msra.mxu0 %v4500
  %4602 = vmatprep.subr.bf16.mxu0 0
  %4603 = vmatpush1.bf16.xpose.msra.mxu0 %v4501
  %4604 = vmatprep.subr.bf16.mxu0 0
  %4605 = vmatpush1.bf16.xpose.msra.mxu0 %v4502
  %4606 = vmatprep.subr.bf16.mxu0 0
  %4607 = vmatpush1.bf16.xpose.msra.mxu0 %v4503
  %4608 = vmatprep.subr.bf16.mxu0 0
  %4609 = vmatpush1.bf16.xpose.msra.mxu0 %v4504
  %4610 = vmatprep.mubr.bf16.mxu0 0
  %4611 = vmatmul.mubr.bf16.gmra.mrb[0].mxu0 %v4280
  %v4612 = vpop.f32.mrb[0].mxu0
  %v4613 = vadd.f32 0.0, %v4612
  %v4614 = vpop.f32.mrb[0].mxu0
  %v4615 = vadd.f32 0.0, %v4614
  %v4616 = vpop.f32.mrb[0].mxu0
  %v4617 = vpop.f32.mrb[0].mxu0
  %4618 = vdwg.mxu0
  %v4619 = vadd.f32 %v4275, %v4572
  %v4620 = vadd.f32 %v4276, %v4574
  %v4621 = vadd.f32 %v4277, %v4613
  %v4622 = vadd.f32 %v4278, %v4615
  %v4623 = vld [vmem:[#allocation3] sm:$0xff]
  %v4624 = vxor.u32 %v4619, 2147483648
  %v4625 = vmul.f32 %v4624, 1.442695
  %v4626 = vpow.pop %v4625
  %v4627 = vadd.f32 %v4626, 1.0
  %v4628 = vrcp.pop %v4627
  %v4629 = vmul.f32 1.0, %v4628
  %v4630 = vxor.u32 %v4620, 2147483648
  %v4631 = vmul.f32 %v4630, 1.442695
  %v4632 = vpow.pop %v4631
  %v4633 = vadd.f32 %v4632, 1.0
  %v4634 = vrcp.pop %v4633
  %v4635 = vmul.f32 1.0, %v4634
  %v4636 = vtanh.pop %v4621
  %v4637 = vxor.u32 %v4622, 2147483648
  %v4638 = vmul.f32 %v4637, 1.442695
  %v4639 = vpow.pop %v4638
  %v4640 = vadd.f32 %v4639, 1.0
  %v4641 = vrcp.pop %v4640
  %v4642 = vmul.f32 1.0, %v4641
  %v4643 = vmul.f32 %v4635, %v4623
  %v4644 = vmul.f32 %v4629, %v4636
  %v4645 = vadd.f32 %v4643, %v4644
  %v4646 = vtanh.pop %v4645
  %v4647 = vmul.f32 %v4642, %v4646
  %4648 = vst [vmem:[#allocation2] sm:$0xff] %v4647
  %4649 = vst [vmem:[#allocation3] sm:$0xff] %v4645
  %v4650 = vld [vmem:[#allocation4] sm:$0xff]
  %v4651 = vpack.c.bf16 %v4647, %v4647
  %v4652 = vpack.c.bf16 %v4650, %v4650
  %v4653 = vld [vmem:[%s2] sm:$0xff]
  %v4654 = vld [vmem:[%s2 + $0x8] sm:$0xff]
  %v4655 = vld [vmem:[%s2 + $0x10] sm:$0xff]
  %v4656 = vld [vmem:[%s2 + $0x18] sm:$0xff]
  %v4657 = vld [vmem:[%s2 + $0x20] sm:$0xff]
  %v4658 = vld [vmem:[%s2 + $0x28] sm:$0xff]
  %v4659 = vld [vmem:[%s2 + $0x30] sm:$0xff]
  %v4660 = vld [vmem:[%s2 + $0x38] sm:$0xff]
  %v4661 = vld [vmem:[%s2 + $0x40] sm:$0xff]
  %v4662 = vld [vmem:[%s2 + $0x48] sm:$0xff]
  %v4663 = vld [vmem:[%s2 + $0x50] sm:$0xff]
  %v4664 = vld [vmem:[%s2 + $0x58] sm:$0xff]
  %v4665 = vld [vmem:[%s2 + $0x60] sm:$0xff]
  %v4666 = vld [vmem:[%s2 + $0x68] sm:$0xff]
  %v4667 = vld [vmem:[%s2 + $0x70] sm:$0xff]
  %v4668 = vld [vmem:[%s2 + $0x78] sm:$0xff]
  %v4669 = vld [vmem:[%s2 + $0x80] sm:$0xff]
  %v4670 = vld [vmem:[%s2 + $0x88] sm:$0xff]
  %v4671 = vld [vmem:[%s2 + $0x90] sm:$0xff]
  %v4672 = vld [vmem:[%s2 + $0x98] sm:$0xff]
  %v4673 = vld [vmem:[%s2 + $0xa0] sm:$0xff]
  %v4674 = vld [vmem:[%s2 + $0xa8] sm:$0xff]
  %v4675 = vld [vmem:[%s2 + $0xb0] sm:$0xff]
  %v4676 = vld [vmem:[%s2 + $0xb8] sm:$0xff]
  %v4677 = vld [vmem:[%s2 + $0xc0] sm:$0xff]
  %v4678 = vld [vmem:[%s2 + $0xc8] sm:$0xff]
  %v4679 = vld [vmem:[%s2 + $0xd0] sm:$0xff]
  %v4680 = vld [vmem:[%s2 + $0xd8] sm:$0xff]
  %v4681 = vld [vmem:[%s2 + $0xe0] sm:$0xff]
  %v4682 = vld [vmem:[%s2 + $0xe8] sm:$0xff]
  %v4683 = vld [vmem:[%s2 + $0xf0] sm:$0xff]
  %v4684 = vld [vmem:[%s2 + $0xf8] sm:$0xff]
  %v4685 = vld [vmem:[%s2 + $0x100] sm:$0xff]
  %v4686 = vld [vmem:[%s2 + $0x108] sm:$0xff]
  %v4687 = vld [vmem:[%s2 + $0x110] sm:$0xff]
  %v4688 = vld [vmem:[%s2 + $0x118] sm:$0xff]
  %v4689 = vld [vmem:[%s2 + $0x120] sm:$0xff]
  %v4690 = vld [vmem:[%s2 + $0x128] sm:$0xff]
  %v4691 = vld [vmem:[%s2 + $0x130] sm:$0xff]
  %v4692 = vld [vmem:[%s2 + $0x138] sm:$0xff]
  %v4693 = vld [vmem:[%s2 + $0x140] sm:$0xff]
  %v4694 = vld [vmem:[%s2 + $0x148] sm:$0xff]
  %v4695 = vld [vmem:[%s2 + $0x150] sm:$0xff]
  %v4696 = vld [vmem:[%s2 + $0x158] sm:$0xff]
  %v4697 = vld [vmem:[%s2 + $0x160] sm:$0xff]
  %v4698 = vld [vmem:[%s2 + $0x168] sm:$0xff]
  %v4699 = vld [vmem:[%s2 + $0x170] sm:$0xff]
  %v4700 = vld [vmem:[%s2 + $0x178] sm:$0xff]
  %v4701 = vld [vmem:[%s2 + $0x180] sm:$0xff]
  %v4702 = vld [vmem:[%s2 + $0x188] sm:$0xff]
  %v4703 = vld [vmem:[%s2 + $0x190] sm:$0xff]
  %v4704 = vld [vmem:[%s2 + $0x198] sm:$0xff]
  %v4705 = vld [vmem:[%s2 + $0x1a0] sm:$0xff]
  %v4706 = vld [vmem:[%s2 + $0x1a8] sm:$0xff]
  %v4707 = vld [vmem:[%s2 + $0x1b0] sm:$0xff]
  %v4708 = vld [vmem:[%s2 + $0x1b8] sm:$0xff]
  %v4709 = vld [vmem:[%s2 + $0x1c0] sm:$0xff]
  %v4710 = vld [vmem:[%s2 + $0x1c8] sm:$0xff]
  %v4711 = vld [vmem:[%s2 + $0x1d0] sm:$0xff]
  %v4712 = vld [vmem:[%s2 + $0x1d8] sm:$0xff]
  %v4713 = vld [vmem:[%s2 + $0x1e0] sm:$0xff]
  %v4714 = vld [vmem:[%s2 + $0x1e8] sm:$0xff]
  %v4715 = vld [vmem:[%s2 + $0x1f0] sm:$0xff]
  %v4716 = vld [vmem:[%s2 + $0x1f8] sm:$0xff]
  %v4717 = vld [vmem:[%s3] sm:$0xf]
  %v4719 = vlaneseq
  %v4720 = vshrl.u32 %v4719, 7
  %v4721 = vsub.s32 0, %v4720
  %v4722 = vrot.slane %v4717, %v4721
  %v4723 = vlaneseq
  %v4724 = vshrl.u32 %v4723, 7
  %v4725 = vsub.s32 1, %v4724
  %v4726 = vrot.slane %v4717, %v4725
  %v4727 = vlaneseq
  %v4728 = vshrl.u32 %v4727, 7
  %v4729 = vsub.s32 2, %v4728
  %v4730 = vrot.slane %v4717, %v4729
  %v4731 = vlaneseq
  %v4732 = vshrl.u32 %v4731, 7
  %v4733 = vsub.s32 3, %v4732
  %v4734 = vrot.slane %v4717, %v4733
  %v4803 = vunpack.c.l.b16 %v4653
  %v4804 = vunpack.c.h.b16 %v4653
  %v4805 = vunpack.c.l.b16 %v4654
  %v4806 = vunpack.c.h.b16 %v4654
  %v4807 = vunpack.c.l.b16 %v4655
  %v4808 = vunpack.c.h.b16 %v4655
  %v4809 = vunpack.c.l.b16 %v4656
  %v4810 = vunpack.c.h.b16 %v4656
  %v4811 = vunpack.c.l.b16 %v4657
  %v4812 = vunpack.c.h.b16 %v4657
  %v4813 = vunpack.c.l.b16 %v4658
  %v4814 = vunpack.c.h.b16 %v4658
  %v4815 = vunpack.c.l.b16 %v4659
  %v4816 = vunpack.c.h.b16 %v4659
  %v4817 = vunpack.c.l.b16 %v4660
  %v4818 = vunpack.c.h.b16 %v4660
  %v4819 = vunpack.c.l.b16 %v4661
  %v4820 = vunpack.c.h.b16 %v4661
  %v4821 = vunpack.c.l.b16 %v4662
  %v4822 = vunpack.c.h.b16 %v4662
  %v4823 = vunpack.c.l.b16 %v4663
  %v4824 = vunpack.c.h.b16 %v4663
  %v4825 = vunpack.c.l.b16 %v4664
  %v4826 = vunpack.c.h.b16 %v4664
  %v4827 = vunpack.c.l.b16 %v4665
  %v4828 = vunpack.c.h.b16 %v4665
  %v4829 = vunpack.c.l.b16 %v4666
  %v4830 = vunpack.c.h.b16 %v4666
  %v4831 = vunpack.c.l.b16 %v4667
  %v4832 = vunpack.c.h.b16 %v4667
  %v4833 = vunpack.c.l.b16 %v4668
  %v4834 = vunpack.c.h.b16 %v4668
  %v4835 = vunpack.c.l.b16 %v4669
  %v4836 = vunpack.c.h.b16 %v4669
  %v4837 = vunpack.c.l.b16 %v4670
  %v4838 = vunpack.c.h.b16 %v4670
  %v4839 = vunpack.c.l.b16 %v4671
  %v4840 = vunpack.c.h.b16 %v4671
  %v4841 = vunpack.c.l.b16 %v4672
  %v4842 = vunpack.c.h.b16 %v4672
  %v4843 = vunpack.c.l.b16 %v4673
  %v4844 = vunpack.c.h.b16 %v4673
  %v4845 = vunpack.c.l.b16 %v4674
  %v4846 = vunpack.c.h.b16 %v4674
  %v4847 = vunpack.c.l.b16 %v4675
  %v4848 = vunpack.c.h.b16 %v4675
  %v4849 = vunpack.c.l.b16 %v4676
  %v4850 = vunpack.c.h.b16 %v4676
  %v4851 = vunpack.c.l.b16 %v4677
  %v4852 = vunpack.c.h.b16 %v4677
  %v4853 = vunpack.c.l.b16 %v4678
  %v4854 = vunpack.c.h.b16 %v4678
  %v4855 = vunpack.c.l.b16 %v4679
  %v4856 = vunpack.c.h.b16 %v4679
  %v4857 = vunpack.c.l.b16 %v4680
  %v4858 = vunpack.c.h.b16 %v4680
  %v4859 = vunpack.c.l.b16 %v4681
  %v4860 = vunpack.c.h.b16 %v4681
  %v4861 = vunpack.c.l.b16 %v4682
  %v4862 = vunpack.c.h.b16 %v4682
  %v4863 = vunpack.c.l.b16 %v4683
  %v4864 = vunpack.c.h.b16 %v4683
  %v4865 = vunpack.c.l.b16 %v4684
  %v4866 = vunpack.c.h.b16 %v4684
  %v4867 = vunpack.c.l.b16 %v4685
  %v4868 = vunpack.c.h.b16 %v4685
  %v4869 = vunpack.c.l.b16 %v4686
  %v4870 = vunpack.c.h.b16 %v4686
  %v4871 = vunpack.c.l.b16 %v4687
  %v4872 = vunpack.c.h.b16 %v4687
  %v4873 = vunpack.c.l.b16 %v4688
  %v4874 = vunpack.c.h.b16 %v4688
  %v4875 = vunpack.c.l.b16 %v4689
  %v4876 = vunpack.c.h.b16 %v4689
  %v4877 = vunpack.c.l.b16 %v4690
  %v4878 = vunpack.c.h.b16 %v4690
  %v4879 = vunpack.c.l.b16 %v4691
  %v4880 = vunpack.c.h.b16 %v4691
  %v4881 = vunpack.c.l.b16 %v4692
  %v4882 = vunpack.c.h.b16 %v4692
  %v4883 = vunpack.c.l.b16 %v4693
  %v4884 = vunpack.c.h.b16 %v4693
  %v4885 = vunpack.c.l.b16 %v4694
  %v4886 = vunpack.c.h.b16 %v4694
  %v4887 = vunpack.c.l.b16 %v4695
  %v4888 = vunpack.c.h.b16 %v4695
  %v4889 = vunpack.c.l.b16 %v4696
  %v4890 = vunpack.c.h.b16 %v4696
  %v4891 = vunpack.c.l.b16 %v4697
  %v4892 = vunpack.c.h.b16 %v4697
  %v4893 = vunpack.c.l.b16 %v4698
  %v4894 = vunpack.c.h.b16 %v4698
  %v4895 = vunpack.c.l.b16 %v4699
  %v4896 = vunpack.c.h.b16 %v4699
  %v4897 = vunpack.c.l.b16 %v4700
  %v4898 = vunpack.c.h.b16 %v4700
  %v4899 = vunpack.c.l.b16 %v4701
  %v4900 = vunpack.c.h.b16 %v4701
  %v4901 = vunpack.c.l.b16 %v4702
  %v4902 = vunpack.c.h.b16 %v4702
  %v4903 = vunpack.c.l.b16 %v4703
  %v4904 = vunpack.c.h.b16 %v4703
  %v4905 = vunpack.c.l.b16 %v4704
  %v4906 = vunpack.c.h.b16 %v4704
  %v4907 = vunpack.c.l.b16 %v4705
  %v4908 = vunpack.c.h.b16 %v4705
  %v4909 = vunpack.c.l.b16 %v4706
  %v4910 = vunpack.c.h.b16 %v4706
  %v4911 = vunpack.c.l.b16 %v4707
  %v4912 = vunpack.c.h.b16 %v4707
  %v4913 = vunpack.c.l.b16 %v4708
  %v4914 = vunpack.c.h.b16 %v4708
  %v4915 = vunpack.c.l.b16 %v4709
  %v4916 = vunpack.c.h.b16 %v4709
  %v4917 = vunpack.c.l.b16 %v4710
  %v4918 = vunpack.c.h.b16 %v4710
  %v4919 = vunpack.c.l.b16 %v4711
  %v4920 = vunpack.c.h.b16 %v4711
  %v4921 = vunpack.c.l.b16 %v4712
  %v4922 = vunpack.c.h.b16 %v4712
  %v4923 = vunpack.c.l.b16 %v4713
  %v4924 = vunpack.c.h.b16 %v4713
  %v4925 = vunpack.c.l.b16 %v4714
  %v4926 = vunpack.c.h.b16 %v4714
  %v4927 = vunpack.c.l.b16 %v4715
  %v4928 = vunpack.c.h.b16 %v4715
  %v4929 = vunpack.c.l.b16 %v4716
  %v4930 = vunpack.c.h.b16 %v4716
  %v4931 = vpack.c.b16 %v4805, %v4803
  %v4932 = vpack.c.b16 %v4806, %v4804
  %v4933 = vpack.c.b16 %v4809, %v4807
  %v4934 = vpack.c.b16 %v4810, %v4808
  %v4935 = vpack.c.b16 %v4813, %v4811
  %v4936 = vpack.c.b16 %v4814, %v4812
  %v4937 = vpack.c.b16 %v4817, %v4815
  %v4938 = vpack.c.b16 %v4818, %v4816
  %v4939 = vpack.c.b16 %v4821, %v4819
  %v4940 = vpack.c.b16 %v4822, %v4820
  %v4941 = vpack.c.b16 %v4825, %v4823
  %v4942 = vpack.c.b16 %v4826, %v4824
  %v4943 = vpack.c.b16 %v4829, %v4827
  %v4944 = vpack.c.b16 %v4830, %v4828
  %v4945 = vpack.c.b16 %v4833, %v4831
  %v4946 = vpack.c.b16 %v4834, %v4832
  %v4947 = vpack.c.b16 %v4837, %v4835
  %v4948 = vpack.c.b16 %v4838, %v4836
  %v4949 = vpack.c.b16 %v4841, %v4839
  %v4950 = vpack.c.b16 %v4842, %v4840
  %v4951 = vpack.c.b16 %v4845, %v4843
  %v4952 = vpack.c.b16 %v4846, %v4844
  %v4953 = vpack.c.b16 %v4849, %v4847
  %v4954 = vpack.c.b16 %v4850, %v4848
  %v4955 = vpack.c.b16 %v4853, %v4851
  %v4956 = vpack.c.b16 %v4854, %v4852
  %v4957 = vpack.c.b16 %v4857, %v4855
  %v4958 = vpack.c.b16 %v4858, %v4856
  %v4959 = vpack.c.b16 %v4861, %v4859
  %v4960 = vpack.c.b16 %v4862, %v4860
  %v4961 = vpack.c.b16 %v4865, %v4863
  %v4962 = vpack.c.b16 %v4866, %v4864
  %v4963 = vpack.c.b16 %v4869, %v4867
  %v4964 = vpack.c.b16 %v4870, %v4868
  %v4965 = vpack.c.b16 %v4873, %v4871
  %v4966 = vpack.c.b16 %v4874, %v4872
  %v4967 = vpack.c.b16 %v4877, %v4875
  %v4968 = vpack.c.b16 %v4878, %v4876
  %v4969 = vpack.c.b16 %v4881, %v4879
  %v4970 = vpack.c.b16 %v4882, %v4880
  %v4971 = vpack.c.b16 %v4885, %v4883
  %v4972 = vpack.c.b16 %v4886, %v4884
  %v4973 = vpack.c.b16 %v4889, %v4887
  %v4974 = vpack.c.b16 %v4890, %v4888
  %v4975 = vpack.c.b16 %v4893, %v4891
  %v4976 = vpack.c.b16 %v4894, %v4892
  %v4977 = vpack.c.b16 %v4897, %v4895
  %v4978 = vpack.c.b16 %v4898, %v4896
  %v4979 = vpack.c.b16 %v4901, %v4899
  %v4980 = vpack.c.b16 %v4902, %v4900
  %v4981 = vpack.c.b16 %v4905, %v4903
  %v4982 = vpack.c.b16 %v4906, %v4904
  %v4983 = vpack.c.b16 %v4909, %v4907
  %v4984 = vpack.c.b16 %v4910, %v4908
  %v4985 = vpack.c.b16 %v4913, %v4911
  %v4986 = vpack.c.b16 %v4914, %v4912
  %v4987 = vpack.c.b16 %v4917, %v4915
  %v4988 = vpack.c.b16 %v4918, %v4916
  %v4989 = vpack.c.b16 %v4921, %v4919
  %v4990 = vpack.c.b16 %v4922, %v4920
  %v4991 = vpack.c.b16 %v4925, %v4923
  %v4992 = vpack.c.b16 %v4926, %v4924
  %v4993 = vpack.c.b16 %v4929, %v4927
  %v4994 = vpack.c.b16 %v4930, %v4928
  %5059 = vmatprep.subr.bf16.mxu0 %v4932
  %5060 = vmatpush1.bf16.xpose.msra.mxu0 %v4931
  %5061 = vmatprep.subr.bf16.mxu0 %v4934
  %5062 = vmatpush1.bf16.xpose.msra.mxu0 %v4933
  %5063 = vmatprep.subr.bf16.mxu0 %v4936
  %5064 = vmatpush1.bf16.xpose.msra.mxu0 %v4935
  %5065 = vmatprep.subr.bf16.mxu0 %v4938
  %5066 = vmatpush1.bf16.xpose.msra.mxu0 %v4937
  %5067 = vmatprep.subr.bf16.mxu0 %v4940
  %5068 = vmatpush1.bf16.xpose.msra.mxu0 %v4939
  %5069 = vmatprep.subr.bf16.mxu0 %v4942
  %5070 = vmatpush1.bf16.xpose.msra.mxu0 %v4941
  %5071 = vmatprep.subr.bf16.mxu0 %v4944
  %5072 = vmatpush1.bf16.xpose.msra.mxu0 %v4943
  %5073 = vmatprep.subr.bf16.mxu0 %v4946
  %5074 = vmatpush1.bf16.xpose.msra.mxu0 %v4945
  %5075 = vmatprep.subr.bf16.mxu0 %v4948
  %5076 = vmatpush1.bf16.xpose.msra.mxu0 %v4947
  %5077 = vmatprep.subr.bf16.mxu0 %v4950
  %5078 = vmatpush1.bf16.xpose.msra.mxu0 %v4949
  %5079 = vmatprep.subr.bf16.mxu0 %v4952
  %5080 = vmatpush1.bf16.xpose.msra.mxu0 %v4951
  %5081 = vmatprep.subr.bf16.mxu0 %v4954
  %5082 = vmatpush1.bf16.xpose.msra.mxu0 %v4953
  %5083 = vmatprep.subr.bf16.mxu0 %v4956
  %5084 = vmatpush1.bf16.xpose.msra.mxu0 %v4955
  %5085 = vmatprep.subr.bf16.mxu0 %v4958
  %5086 = vmatpush1.bf16.xpose.msra.mxu0 %v4957
  %5087 = vmatprep.subr.bf16.mxu0 %v4960
  %5088 = vmatpush1.bf16.xpose.msra.mxu0 %v4959
  %5089 = vmatprep.subr.bf16.mxu0 %v4962
  %5090 = vmatpush1.bf16.xpose.msra.mxu0 %v4961
  %5091 = vmatprep.mubr.bf16.mxu0 %v4652
  %5092 = vmatmul.mubr.bf16.gmra.mrb[0].mxu0 %v4651
  %v5093 = vpop.f32.mrb[0].mxu0
  %v5094 = vadd.f32 %v4722, %v5093
  %v5095 = vpop.f32.mrb[0].mxu0
  %v5096 = vadd.f32 %v4726, %v5095
  %v5097 = vpop.f32.mrb[0].mxu0
  %v5098 = vpop.f32.mrb[0].mxu0
  %5099 = vdwg.mxu0
  %5100 = vmatprep.subr.bf16.mxu0 %v4964
  %5101 = vmatpush1.bf16.xpose.msra.mxu0 %v4963
  %5102 = vmatprep.subr.bf16.mxu0 %v4966
  %5103 = vmatpush1.bf16.xpose.msra.mxu0 %v4965
  %5104 = vmatprep.subr.bf16.mxu0 %v4968
  %5105 = vmatpush1.bf16.xpose.msra.mxu0 %v4967
  %5106 = vmatprep.subr.bf16.mxu0 %v4970
  %5107 = vmatpush1.bf16.xpose.msra.mxu0 %v4969
  %5108 = vmatprep.subr.bf16.mxu0 %v4972
  %5109 = vmatpush1.bf16.xpose.msra.mxu0 %v4971
  %5110 = vmatprep.subr.bf16.mxu0 %v4974
  %5111 = vmatpush1.bf16.xpose.msra.mxu0 %v4973
  %5112 = vmatprep.subr.bf16.mxu0 %v4976
  %5113 = vmatpush1.bf16.xpose.msra.mxu0 %v4975
  %5114 = vmatprep.subr.bf16.mxu0 %v4978
  %5115 = vmatpush1.bf16.xpose.msra.mxu0 %v4977
  %5116 = vmatprep.subr.bf16.mxu0 %v4980
  %5117 = vmatpush1.bf16.xpose.msra.mxu0 %v4979
  %5118 = vmatprep.subr.bf16.mxu0 %v4982
  %5119 = vmatpush1.bf16.xpose.msra.mxu0 %v4981
  %5120 = vmatprep.subr.bf16.mxu0 %v4984
  %5121 = vmatpush1.bf16.xpose.msra.mxu0 %v4983
  %5122 = vmatprep.subr.bf16.mxu0 %v4986
  %5123 = vmatpush1.bf16.xpose.msra.mxu0 %v4985
  %5124 = vmatprep.subr.bf16.mxu0 %v4988
  %5125 = vmatpush1.bf16.xpose.msra.mxu0 %v4987
  %5126 = vmatprep.subr.bf16.mxu0 %v4990
  %5127 = vmatpush1.bf16.xpose.msra.mxu0 %v4989
  %5128 = vmatprep.subr.bf16.mxu0 %v4992
  %5129 = vmatpush1.bf16.xpose.msra.mxu0 %v4991
  %5130 = vmatprep.subr.bf16.mxu0 %v4994
  %5131 = vmatpush1.bf16.xpose.msra.mxu0 %v4993
  %5132 = vmatprep.mubr.bf16.mxu0 %v4652
  %5133 = vmatmul.mubr.bf16.gmra.mrb[0].mxu0 %v4651
  %v5134 = vpop.f32.mrb[0].mxu0
  %v5135 = vadd.f32 %v4730, %v5134
  %v5136 = vpop.f32.mrb[0].mxu0
  %v5137 = vadd.f32 %v4734, %v5136
  %v5138 = vpop.f32.mrb[0].mxu0
  %v5139 = vpop.f32.mrb[0].mxu0
  %5140 = vdwg.mxu0
  %v5141 = vld [vmem:[#allocation5] sm:$0xff]
  %v5142 = vxor.u32 %v5094, 2147483648
  %v5143 = vmul.f32 %v5142, 1.442695
  %v5144 = vpow.pop %v5143
  %v5145 = vadd.f32 %v5144, 1.0
  %v5146 = vrcp.pop %v5145
  %v5147 = vmul.f32 1.0, %v5146
  %v5148 = vxor.u32 %v5096, 2147483648
  %v5149 = vmul.f32 %v5148, 1.442695
  %v5150 = vpow.pop %v5149
  %v5151 = vadd.f32 %v5150, 1.0
  %v5152 = vrcp.pop %v5151
  %v5153 = vmul.f32 1.0, %v5152
  %v5154 = vtanh.pop %v5135
  %v5155 = vxor.u32 %v5137, 2147483648
  %v5156 = vmul.f32 %v5155, 1.442695
  %v5157 = vpow.pop %v5156
  %v5158 = vadd.f32 %v5157, 1.0
  %v5159 = vrcp.pop %v5158
  %v5160 = vmul.f32 1.0, %v5159
  %v5161 = vmul.f32 %v5153, %v5141
  %v5162 = vmul.f32 %v5147, %v5154
  %v5163 = vadd.f32 %v5161, %v5162
  %v5164 = vtanh.pop %v5163
  %v5165 = vmul.f32 %v5160, %v5164
  %5166 = vst [vmem:[#allocation4] sm:$0xff] %v5165
  %5167 = vst [vmem:[#allocation5] sm:$0xff] %v5163
  %v5168 = vld [vmem:[#allocation6] sm:$0xff]
  %v5169 = vpack.c.bf16 %v5165, %v5165
  %v5170 = vpack.c.bf16 %v5168, %v5168
  %v5171 = vld [vmem:[%s4] sm:$0xff]
  %v5172 = vld [vmem:[%s4 + $0x8] sm:$0xff]
  %v5173 = vld [vmem:[%s4 + $0x10] sm:$0xff]
  %v5174 = vld [vmem:[%s4 + $0x18] sm:$0xff]
  %v5175 = vld [vmem:[%s4 + $0x20] sm:$0xff]
  %v5176 = vld [vmem:[%s4 + $0x28] sm:$0xff]
  %v5177 = vld [vmem:[%s4 + $0x30] sm:$0xff]
  %v5178 = vld [vmem:[%s4 + $0x38] sm:$0xff]
  %v5179 = vld [vmem:[%s4 + $0x40] sm:$0xff]
  %v5180 = vld [vmem:[%s4 + $0x48] sm:$0xff]
  %v5181 = vld [vmem:[%s4 + $0x50] sm:$0xff]
  %v5182 = vld [vmem:[%s4 + $0x58] sm:$0xff]
  %v5183 = vld [vmem:[%s4 + $0x60] sm:$0xff]
  %v5184 = vld [vmem:[%s4 + $0x68] sm:$0xff]
  %v5185 = vld [vmem:[%s4 + $0x70] sm:$0xff]
  %v5186 = vld [vmem:[%s4 + $0x78] sm:$0xff]
  %v5187 = vld [vmem:[%s4 + $0x80] sm:$0xff]
  %v5188 = vld [vmem:[%s4 + $0x88] sm:$0xff]
  %v5189 = vld [vmem:[%s4 + $0x90] sm:$0xff]
  %v5190 = vld [vmem:[%s4 + $0x98] sm:$0xff]
  %v5191 = vld [vmem:[%s4 + $0xa0] sm:$0xff]
  %v5192 = vld [vmem:[%s4 + $0xa8] sm:$0xff]
  %v5193 = vld [vmem:[%s4 + $0xb0] sm:$0xff]
  %v5194 = vld [vmem:[%s4 + $0xb8] sm:$0xff]
  %v5195 = vld [vmem:[%s4 + $0xc0] sm:$0xff]
  %v5196 = vld [vmem:[%s4 + $0xc8] sm:$0xff]
  %v5197 = vld [vmem:[%s4 + $0xd0] sm:$0xff]
  %v5198 = vld [vmem:[%s4 + $0xd8] sm:$0xff]
  %v5199 = vld [vmem:[%s4 + $0xe0] sm:$0xff]
  %v5200 = vld [vmem:[%s4 + $0xe8] sm:$0xff]
  %v5201 = vld [vmem:[%s4 + $0xf0] sm:$0xff]
  %v5202 = vld [vmem:[%s4 + $0xf8] sm:$0xff]
  %v5203 = vld [vmem:[%s4 + $0x100] sm:$0xff]
  %v5204 = vld [vmem:[%s4 + $0x108] sm:$0xff]
  %v5205 = vld [vmem:[%s4 + $0x110] sm:$0xff]
  %v5206 = vld [vmem:[%s4 + $0x118] sm:$0xff]
  %v5207 = vld [vmem:[%s4 + $0x120] sm:$0xff]
  %v5208 = vld [vmem:[%s4 + $0x128] sm:$0xff]
  %v5209 = vld [vmem:[%s4 + $0x130] sm:$0xff]
  %v5210 = vld [vmem:[%s4 + $0x138] sm:$0xff]
  %v5211 = vld [vmem:[%s4 + $0x140] sm:$0xff]
  %v5212 = vld [vmem:[%s4 + $0x148] sm:$0xff]
  %v5213 = vld [vmem:[%s4 + $0x150] sm:$0xff]
  %v5214 = vld [vmem:[%s4 + $0x158] sm:$0xff]
  %v5215 = vld [vmem:[%s4 + $0x160] sm:$0xff]
  %v5216 = vld [vmem:[%s4 + $0x168] sm:$0xff]
  %v5217 = vld [vmem:[%s4 + $0x170] sm:$0xff]
  %v5218 = vld [vmem:[%s4 + $0x178] sm:$0xff]
  %v5219 = vld [vmem:[%s4 + $0x180] sm:$0xff]
  %v5220 = vld [vmem:[%s4 + $0x188] sm:$0xff]
  %v5221 = vld [vmem:[%s4 + $0x190] sm:$0xff]
  %v5222 = vld [vmem:[%s4 + $0x198] sm:$0xff]
  %v5223 = vld [vmem:[%s4 + $0x1a0] sm:$0xff]
  %v5224 = vld [vmem:[%s4 + $0x1a8] sm:$0xff]
  %v5225 = vld [vmem:[%s4 + $0x1b0] sm:$0xff]
  %v5226 = vld [vmem:[%s4 + $0x1b8] sm:$0xff]
  %v5227 = vld [vmem:[%s4 + $0x1c0] sm:$0xff]
  %v5228 = vld [vmem:[%s4 + $0x1c8] sm:$0xff]
  %v5229 = vld [vmem:[%s4 + $0x1d0] sm:$0xff]
  %v5230 = vld [vmem:[%s4 + $0x1d8] sm:$0xff]
  %v5231 = vld [vmem:[%s4 + $0x1e0] sm:$0xff]
  %v5232 = vld [vmem:[%s4 + $0x1e8] sm:$0xff]
  %v5233 = vld [vmem:[%s4 + $0x1f0] sm:$0xff]
  %v5234 = vld [vmem:[%s4 + $0x1f8] sm:$0xff]
  %v5235 = vld [vmem:[%s5] sm:$0xf]
  %v5237 = vlaneseq
  %v5238 = vshrl.u32 %v5237, 7
  %v5239 = vsub.s32 0, %v5238
  %v5240 = vrot.slane %v5235, %v5239
  %v5241 = vlaneseq
  %v5242 = vshrl.u32 %v5241, 7
  %v5243 = vsub.s32 1, %v5242
  %v5244 = vrot.slane %v5235, %v5243
  %v5245 = vlaneseq
  %v5246 = vshrl.u32 %v5245, 7
  %v5247 = vsub.s32 2, %v5246
  %v5248 = vrot.slane %v5235, %v5247
  %v5249 = vlaneseq
  %v5250 = vshrl.u32 %v5249, 7
  %v5251 = vsub.s32 3, %v5250
  %v5252 = vrot.slane %v5235, %v5251
  %v5321 = vunpack.c.l.b16 %v5171
  %v5322 = vunpack.c.h.b16 %v5171
  %v5323 = vunpack.c.l.b16 %v5172
  %v5324 = vunpack.c.h.b16 %v5172
  %v5325 = vunpack.c.l.b16 %v5173
  %v5326 = vunpack.c.h.b16 %v5173
  %v5327 = vunpack.c.l.b16 %v5174
  %v5328 = vunpack.c.h.b16 %v5174
  %v5329 = vunpack.c.l.b16 %v5175
  %v5330 = vunpack.c.h.b16 %v5175
  %v5331 = vunpack.c.l.b16 %v5176
  %v5332 = vunpack.c.h.b16 %v5176
  %v5333 = vunpack.c.l.b16 %v5177
  %v5334 = vunpack.c.h.b16 %v5177
  %v5335 = vunpack.c.l.b16 %v5178
  %v5336 = vunpack.c.h.b16 %v5178
  %v5337 = vunpack.c.l.b16 %v5179
  %v5338 = vunpack.c.h.b16 %v5179
  %v5339 = vunpack.c.l.b16 %v5180
  %v5340 = vunpack.c.h.b16 %v5180
  %v5341 = vunpack.c.l.b16 %v5181
  %v5342 = vunpack.c.h.b16 %v5181
  %v5343 = vunpack.c.l.b16 %v5182
  %v5344 = vunpack.c.h.b16 %v5182
  %v5345 = vunpack.c.l.b16 %v5183
  %v5346 = vunpack.c.h.b16 %v5183
  %v5347 = vunpack.c.l.b16 %v5184
  %v5348 = vunpack.c.h.b16 %v5184
  %v5349 = vunpack.c.l.b16 %v5185
  %v5350 = vunpack.c.h.b16 %v5185
  %v5351 = vunpack.c.l.b16 %v5186
  %v5352 = vunpack.c.h.b16 %v5186
  %v5353 = vunpack.c.l.b16 %v5187
  %v5354 = vunpack.c.h.b16 %v5187
  %v5355 = vunpack.c.l.b16 %v5188
  %v5356 = vunpack.c.h.b16 %v5188
  %v5357 = vunpack.c.l.b16 %v5189
  %v5358 = vunpack.c.h.b16 %v5189
  %v5359 = vunpack.c.l.b16 %v5190
  %v5360 = vunpack.c.h.b16 %v5190
  %v5361 = vunpack.c.l.b16 %v5191
  %v5362 = vunpack.c.h.b16 %v5191
  %v5363 = vunpack.c.l.b16 %v5192
  %v5364 = vunpack.c.h.b16 %v5192
  %v5365 = vunpack.c.l.b16 %v5193
  %v5366 = vunpack.c.h.b16 %v5193
  %v5367 = vunpack.c.l.b16 %v5194
  %v5368 = vunpack.c.h.b16 %v5194
  %v5369 = vunpack.c.l.b16 %v5195
  %v5370 = vunpack.c.h.b16 %v5195
  %v5371 = vunpack.c.l.b16 %v5196
  %v5372 = vunpack.c.h.b16 %v5196
  %v5373 = vunpack.c.l.b16 %v5197
  %v5374 = vunpack.c.h.b16 %v5197
  %v5375 = vunpack.c.l.b16 %v5198
  %v5376 = vunpack.c.h.b16 %v5198
  %v5377 = vunpack.c.l.b16 %v5199
  %v5378 = vunpack.c.h.b16 %v5199
  %v5379 = vunpack.c.l.b16 %v5200
  %v5380 = vunpack.c.h.b16 %v5200
  %v5381 = vunpack.c.l.b16 %v5201
  %v5382 = vunpack.c.h.b16 %v5201
  %v5383 = vunpack.c.l.b16 %v5202
  %v5384 = vunpack.c.h.b16 %v5202
  %v5385 = vunpack.c.l.b16 %v5203
  %v5386 = vunpack.c.h.b16 %v5203
  %v5387 = vunpack.c.l.b16 %v5204
  %v5388 = vunpack.c.h.b16 %v5204
  %v5389 = vunpack.c.l.b16 %v5205
  %v5390 = vunpack.c.h.b16 %v5205
  %v5391 = vunpack.c.l.b16 %v5206
  %v5392 = vunpack.c.h.b16 %v5206
  %v5393 = vunpack.c.l.b16 %v5207
  %v5394 = vunpack.c.h.b16 %v5207
  %v5395 = vunpack.c.l.b16 %v5208
  %v5396 = vunpack.c.h.b16 %v5208
  %v5397 = vunpack.c.l.b16 %v5209
  %v5398 = vunpack.c.h.b16 %v5209
  %v5399 = vunpack.c.l.b16 %v5210
  %v5400 = vunpack.c.h.b16 %v5210
  %v5401 = vunpack.c.l.b16 %v5211
  %v5402 = vunpack.c.h.b16 %v5211
  %v5403 = vunpack.c.l.b16 %v5212
  %v5404 = vunpack.c.h.b16 %v5212
  %v5405 = vunpack.c.l.b16 %v5213
  %v5406 = vunpack.c.h.b16 %v5213
  %v5407 = vunpack.c.l.b16 %v5214
  %v5408 = vunpack.c.h.b16 %v5214
  %v5409 = vunpack.c.l.b16 %v5215
  %v5410 = vunpack.c.h.b16 %v5215
  %v5411 = vunpack.c.l.b16 %v5216
  %v5412 = vunpack.c.h.b16 %v5216
  %v5413 = vunpack.c.l.b16 %v5217
  %v5414 = vunpack.c.h.b16 %v5217
  %v5415 = vunpack.c.l.b16 %v5218
  %v5416 = vunpack.c.h.b16 %v5218
  %v5417 = vunpack.c.l.b16 %v5219
  %v5418 = vunpack.c.h.b16 %v5219
  %v5419 = vunpack.c.l.b16 %v5220
  %v5420 = vunpack.c.h.b16 %v5220
  %v5421 = vunpack.c.l.b16 %v5221
  %v5422 = vunpack.c.h.b16 %v5221
  %v5423 = vunpack.c.l.b16 %v5222
  %v5424 = vunpack.c.h.b16 %v5222
  %v5425 = vunpack.c.l.b16 %v5223
  %v5426 = vunpack.c.h.b16 %v5223
  %v5427 = vunpack.c.l.b16 %v5224
  %v5428 = vunpack.c.h.b16 %v5224
  %v5429 = vunpack.c.l.b16 %v5225
  %v5430 = vunpack.c.h.b16 %v5225
  %v5431 = vunpack.c.l.b16 %v5226
  %v5432 = vunpack.c.h.b16 %v5226
  %v5433 = vunpack.c.l.b16 %v5227
  %v5434 = vunpack.c.h.b16 %v5227
  %v5435 = vunpack.c.l.b16 %v5228
  %v5436 = vunpack.c.h.b16 %v5228
  %v5437 = vunpack.c.l.b16 %v5229
  %v5438 = vunpack.c.h.b16 %v5229
  %v5439 = vunpack.c.l.b16 %v5230
  %v5440 = vunpack.c.h.b16 %v5230
  %v5441 = vunpack.c.l.b16 %v5231
  %v5442 = vunpack.c.h.b16 %v5231
  %v5443 = vunpack.c.l.b16 %v5232
  %v5444 = vunpack.c.h.b16 %v5232
  %v5445 = vunpack.c.l.b16 %v5233
  %v5446 = vunpack.c.h.b16 %v5233
  %v5447 = vunpack.c.l.b16 %v5234
  %v5448 = vunpack.c.h.b16 %v5234
  %v5449 = vpack.c.b16 %v5323, %v5321
  %v5450 = vpack.c.b16 %v5324, %v5322
  %v5451 = vpack.c.b16 %v5327, %v5325
  %v5452 = vpack.c.b16 %v5328, %v5326
  %v5453 = vpack.c.b16 %v5331, %v5329
  %v5454 = vpack.c.b16 %v5332, %v5330
  %v5455 = vpack.c.b16 %v5335, %v5333
  %v5456 = vpack.c.b16 %v5336, %v5334
  %v5457 = vpack.c.b16 %v5339, %v5337
  %v5458 = vpack.c.b16 %v5340, %v5338
  %v5459 = vpack.c.b16 %v5343, %v5341
  %v5460 = vpack.c.b16 %v5344, %v5342
  %v5461 = vpack.c.b16 %v5347, %v5345
  %v5462 = vpack.c.b16 %v5348, %v5346
  %v5463 = vpack.c.b16 %v5351, %v5349
  %v5464 = vpack.c.b16 %v5352, %v5350
  %v5465 = vpack.c.b16 %v5355, %v5353
  %v5466 = vpack.c.b16 %v5356, %v5354
  %v5467 = vpack.c.b16 %v5359, %v5357
  %v5468 = vpack.c.b16 %v5360, %v5358
  %v5469 = vpack.c.b16 %v5363, %v5361
  %v5470 = vpack.c.b16 %v5364, %v5362
  %v5471 = vpack.c.b16 %v5367, %v5365
  %v5472 = vpack.c.b16 %v5368, %v5366
  %v5473 = vpack.c.b16 %v5371, %v5369
  %v5474 = vpack.c.b16 %v5372, %v5370
  %v5475 = vpack.c.b16 %v5375, %v5373
  %v5476 = vpack.c.b16 %v5376, %v5374
  %v5477 = vpack.c.b16 %v5379, %v5377
  %v5478 = vpack.c.b16 %v5380, %v5378
  %v5479 = vpack.c.b16 %v5383, %v5381
  %v5480 = vpack.c.b16 %v5384, %v5382
  %v5481 = vpack.c.b16 %v5387, %v5385
  %v5482 = vpack.c.b16 %v5388, %v5386
  %v5483 = vpack.c.b16 %v5391, %v5389
  %v5484 = vpack.c.b16 %v5392, %v5390
  %v5485 = vpack.c.b16 %v5395, %v5393
  %v5486 = vpack.c.b16 %v5396, %v5394
  %v5487 = vpack.c.b16 %v5399, %v5397
  %v5488 = vpack.c.b16 %v5400, %v5398
  %v5489 = vpack.c.b16 %v5403, %v5401
  %v5490 = vpack.c.b16 %v5404, %v5402
  %v5491 = vpack.c.b16 %v5407, %v5405
  %v5492 = vpack.c.b16 %v5408, %v5406
  %v5493 = vpack.c.b16 %v5411, %v5409
  %v5494 = vpack.c.b16 %v5412, %v5410
  %v5495 = vpack.c.b16 %v5415, %v5413
  %v5496 = vpack.c.b16 %v5416, %v5414
  %v5497 = vpack.c.b16 %v5419, %v5417
  %v5498 = vpack.c.b16 %v5420, %v5418
  %v5499 = vpack.c.b16 %v5423, %v5421
  %v5500 = vpack.c.b16 %v5424, %v5422
  %v5501 = vpack.c.b16 %v5427, %v5425
  %v5502 = vpack.c.b16 %v5428, %v5426
  %v5503 = vpack.c.b16 %v5431, %v5429
  %v5504 = vpack.c.b16 %v5432, %v5430
  %v5505 = vpack.c.b16 %v5435, %v5433
  %v5506 = vpack.c.b16 %v5436, %v5434
  %v5507 = vpack.c.b16 %v5439, %v5437
  %v5508 = vpack.c.b16 %v5440, %v5438
  %v5509 = vpack.c.b16 %v5443, %v5441
  %v5510 = vpack.c.b16 %v5444, %v5442
  %v5511 = vpack.c.b16 %v5447, %v5445
  %v5512 = vpack.c.b16 %v5448, %v5446
  %5577 = vmatprep.subr.bf16.mxu0 %v5450
  %5578 = vmatpush1.bf16.xpose.msra.mxu0 %v5449
  %5579 = vmatprep.subr.bf16.mxu0 %v5452
  %5580 = vmatpush1.bf16.xpose.msra.mxu0 %v5451
  %5581 = vmatprep.subr.bf16.mxu0 %v5454
  %5582 = vmatpush1.bf16.xpose.msra.mxu0 %v5453
  %5583 = vmatprep.subr.bf16.mxu0 %v5456
  %5584 = vmatpush1.bf16.xpose.msra.mxu0 %v5455
  %5585 = vmatprep.subr.bf16.mxu0 %v5458
  %5586 = vmatpush1.bf16.xpose.msra.mxu0 %v5457
  %5587 = vmatprep.subr.bf16.mxu0 %v5460
  %5588 = vmatpush1.bf16.xpose.msra.mxu0 %v5459
  %5589 = vmatprep.subr.bf16.mxu0 %v5462
  %5590 = vmatpush1.bf16.xpose.msra.mxu0 %v5461
  %5591 = vmatprep.subr.bf16.mxu0 %v5464
  %5592 = vmatpush1.bf16.xpose.msra.mxu0 %v5463
  %5593 = vmatprep.subr.bf16.mxu0 %v5466
  %5594 = vmatpush1.bf16.xpose.msra.mxu0 %v5465
  %5595 = vmatprep.subr.bf16.mxu0 %v5468
  %5596 = vmatpush1.bf16.xpose.msra.mxu0 %v5467
  %5597 = vmatprep.subr.bf16.mxu0 %v5470
  %5598 = vmatpush1.bf16.xpose.msra.mxu0 %v5469
  %5599 = vmatprep.subr.bf16.mxu0 %v5472
  %5600 = vmatpush1.bf16.xpose.msra.mxu0 %v5471
  %5601 = vmatprep.subr.bf16.mxu0 %v5474
  %5602 = vmatpush1.bf16.xpose.msra.mxu0 %v5473
  %5603 = vmatprep.subr.bf16.mxu0 %v5476
  %5604 = vmatpush1.bf16.xpose.msra.mxu0 %v5475
  %5605 = vmatprep.subr.bf16.mxu0 %v5478
  %5606 = vmatpush1.bf16.xpose.msra.mxu0 %v5477
  %5607 = vmatprep.subr.bf16.mxu0 %v5480
  %5608 = vmatpush1.bf16.xpose.msra.mxu0 %v5479
  %5609 = vmatprep.mubr.bf16.mxu0 %v5170
  %5610 = vmatmul.mubr.bf16.gmra.mrb[0].mxu0 %v5169
  %v5611 = vpop.f32.mrb[0].mxu0
  %v5612 = vadd.f32 %v5240, %v5611
  %v5613 = vpop.f32.mrb[0].mxu0
  %v5614 = vadd.f32 %v5244, %v5613
  %v5615 = vpop.f32.mrb[0].mxu0
  %v5616 = vpop.f32.mrb[0].mxu0
  %5617 = vdwg.mxu0
  %5618 = vmatprep.subr.bf16.mxu0 %v5482
  %5619 = vmatpush1.bf16.xpose.msra.mxu0 %v5481
  %5620 = vmatprep.subr.bf16.mxu0 %v5484
  %5621 = vmatpush1.bf16.xpose.msra.mxu0 %v5483
  %5622 = vmatprep.subr.bf16.mxu0 %v5486
  %5623 = vmatpush1.bf16.xpose.msra.mxu0 %v5485
  %5624 = vmatprep.subr.bf16.mxu0 %v5488
  %5625 = vmatpush1.bf16.xpose.msra.mxu0 %v5487
  %5626 = vmatprep.subr.bf16.mxu0 %v5490
  %5627 = vmatpush1.bf16.xpose.msra.mxu0 %v5489
  %5628 = vmatprep.subr.bf16.mxu0 %v5492
  %5629 = vmatpush1.bf16.xpose.msra.mxu0 %v5491
  %5630 = vmatprep.subr.bf16.mxu0 %v5494
  %5631 = vmatpush1.bf16.xpose.msra.mxu0 %v5493
  %5632 = vmatprep.subr.bf16.mxu0 %v5496
  %5633 = vmatpush1.bf16.xpose.msra.mxu0 %v5495
  %5634 = vmatprep.subr.bf16.mxu0 %v5498
  %5635 = vmatpush1.bf16.xpose.msra.mxu0 %v5497
  %5636 = vmatprep.subr.bf16.mxu0 %v5500
  %5637 = vmatpush1.bf16.xpose.msra.mxu0 %v5499
  %5638 = vmatprep.subr.bf16.mxu0 %v5502
  %5639 = vmatpush1.bf16.xpose.msra.mxu0 %v5501
  %5640 = vmatprep.subr.bf16.mxu0 %v5504
  %5641 = vmatpush1.bf16.xpose.msra.mxu0 %v5503
  %5642 = vmatprep.subr.bf16.mxu0 %v5506
  %5643 = vmatpush1.bf16.xpose.msra.mxu0 %v5505
  %5644 = vmatprep.subr.bf16.mxu0 %v5508
  %5645 = vmatpush1.bf16.xpose.msra.mxu0 %v5507
  %5646 = vmatprep.subr.bf16.mxu0 %v5510
  %5647 = vmatpush1.bf16.xpose.msra.mxu0 %v5509
  %5648 = vmatprep.subr.bf16.mxu0 %v5512
  %5649 = vmatpush1.bf16.xpose.msra.mxu0 %v5511
  %5650 = vmatprep.mubr.bf16.mxu0 %v5170
  %5651 = vmatmul.mubr.bf16.gmra.mrb[0].mxu0 %v5169
  %v5652 = vpop.f32.mrb[0].mxu0
  %v5653 = vadd.f32 %v5248, %v5652
  %v5654 = vpop.f32.mrb[0].mxu0
  %v5655 = vadd.f32 %v5252, %v5654
  %v5656 = vpop.f32.mrb[0].mxu0
  %v5657 = vpop.f32.mrb[0].mxu0
  %5658 = vdwg.mxu0
  %v5659 = vld [vmem:[#allocation7] sm:$0xff]
  %v5660 = vxor.u32 %v5612, 2147483648
  %v5661 = vmul.f32 %v5660, 1.442695
  %v5662 = vpow.pop %v5661
  %v5663 = vadd.f32 %v5662, 1.0
  %v5664 = vrcp.pop %v5663
  %v5665 = vmul.f32 1.0, %v5664
  %v5666 = vxor.u32 %v5614, 2147483648
  %v5667 = vmul.f32 %v5666, 1.442695
  %v5668 = vpow.pop %v5667
  %v5669 = vadd.f32 %v5668, 1.0
  %v5670 = vrcp.pop %v5669
  %v5671 = vmul.f32 1.0, %v5670
  %v5672 = vtanh.pop %v5653
  %v5673 = vxor.u32 %v5655, 2147483648
  %v5674 = vmul.f32 %v5673, 1.442695
  %v5675 = vpow.pop %v5674
  %v5676 = vadd.f32 %v5675, 1.0
  %v5677 = vrcp.pop %v5676
  %v5678 = vmul.f32 1.0, %v5677
  %v5679 = vmul.f32 %v5671, %v5659
  %v5680 = vmul.f32 %v5665, %v5672
  %v5681 = vadd.f32 %v5679, %v5680
  %v5682 = vtanh.pop %v5681
  %v5683 = vmul.f32 %v5678, %v5682
  %5684 = vst [vmem:[#allocation6] sm:$0xff] %v5683
  %5685 = vst [vmem:[#allocation7] sm:$0xff] %v5681
  %s5686 = scalar_lea.vmem %s6, 24
  %5687 = vst [vmem:[%s5686] sm:$0xff] %v5683
  %s5688 = scalar_lea.vmem %s0, 128
  %v5689 = vld [vmem:[%s5688] sm:$0xff]
  %v5690 = vld [vmem:[%s5688 + $0x8] sm:$0xff]
  %v5691 = vld [vmem:[%s5688 + $0x10] sm:$0xff]
  %v5692 = vld [vmem:[%s5688 + $0x18] sm:$0xff]
  %v5693 = vld [vmem:[#allocation2] sm:$0xff]
  %v5694 = vpack.c.bf16 %v5693, %v5693
  %v5695 = vld [vmem:[%s1] sm:$0xf]
  %v5696 = vld [vmem:[%s1 + $0x4] sm:$0xf]
  %v5697 = vld [vmem:[%s1 + $0x8] sm:$0xf]
  %v5698 = vld [vmem:[%s1 + $0xc] sm:$0xf]
  %v5699 = vld [vmem:[%s1 + $0x10] sm:$0xf]
  %v5700 = vld [vmem:[%s1 + $0x14] sm:$0xf]
  %v5701 = vld [vmem:[%s1 + $0x18] sm:$0xf]
  %v5702 = vld [vmem:[%s1 + $0x1c] sm:$0xf]
  %v5703 = vld [vmem:[%s1 + $0x20] sm:$0xf]
  %v5704 = vld [vmem:[%s1 + $0x24] sm:$0xf]
  %v5705 = vld [vmem:[%s1 + $0x28] sm:$0xf]
  %v5706 = vld [vmem:[%s1 + $0x2c] sm:$0xf]
  %v5707 = vld [vmem:[%s1 + $0x30] sm:$0xf]
  %v5708 = vld [vmem:[%s1 + $0x34] sm:$0xf]
  %v5709 = vld [vmem:[%s1 + $0x38] sm:$0xf]
  %v5710 = vld [vmem:[%s1 + $0x3c] sm:$0xf]
  %v5711 = vld [vmem:[%s1 + $0x40] sm:$0xf]
  %v5712 = vld [vmem:[%s1 + $0x44] sm:$0xf]
  %v5713 = vld [vmem:[%s1 + $0x48] sm:$0xf]
  %v5714 = vld [vmem:[%s1 + $0x4c] sm:$0xf]
  %v5715 = vld [vmem:[%s1 + $0x50] sm:$0xf]
  %v5716 = vld [vmem:[%s1 + $0x54] sm:$0xf]
  %v5717 = vld [vmem:[%s1 + $0x58] sm:$0xf]
  %v5718 = vld [vmem:[%s1 + $0x5c] sm:$0xf]
  %v5719 = vld [vmem:[%s1 + $0x60] sm:$0xf]
  %v5720 = vld [vmem:[%s1 + $0x64] sm:$0xf]
  %v5721 = vld [vmem:[%s1 + $0x68] sm:$0xf]
  %v5722 = vld [vmem:[%s1 + $0x6c] sm:$0xf]
  %v5723 = vld [vmem:[%s1 + $0x70] sm:$0xf]
  %v5724 = vld [vmem:[%s1 + $0x74] sm:$0xf]
  %v5725 = vld [vmem:[%s1 + $0x78] sm:$0xf]
  %v5726 = vld [vmem:[%s1 + $0x7c] sm:$0xf]
  %v5727 = vld [vmem:[%s1 + $0x80] sm:$0xf]
  %v5728 = vld [vmem:[%s1 + $0x84] sm:$0xf]
  %v5729 = vld [vmem:[%s1 + $0x88] sm:$0xf]
  %v5730 = vld [vmem:[%s1 + $0x8c] sm:$0xf]
  %v5731 = vld [vmem:[%s1 + $0x90] sm:$0xf]
  %v5732 = vld [vmem:[%s1 + $0x94] sm:$0xf]
  %v5733 = vld [vmem:[%s1 + $0x98] sm:$0xf]
  %v5734 = vld [vmem:[%s1 + $0x9c] sm:$0xf]
  %v5735 = vld [vmem:[%s1 + $0xa0] sm:$0xf]
  %v5736 = vld [vmem:[%s1 + $0xa4] sm:$0xf]
  %v5737 = vld [vmem:[%s1 + $0xa8] sm:$0xf]
  %v5738 = vld [vmem:[%s1 + $0xac] sm:$0xf]
  %v5739 = vld [vmem:[%s1 + $0xb0] sm:$0xf]
  %v5740 = vld [vmem:[%s1 + $0xb4] sm:$0xf]
  %v5741 = vld [vmem:[%s1 + $0xb8] sm:$0xf]
  %v5742 = vld [vmem:[%s1 + $0xbc] sm:$0xf]
  %v5743 = vld [vmem:[%s1 + $0xc0] sm:$0xf]
  %v5744 = vld [vmem:[%s1 + $0xc4] sm:$0xf]
  %v5745 = vld [vmem:[%s1 + $0xc8] sm:$0xf]
  %v5746 = vld [vmem:[%s1 + $0xcc] sm:$0xf]
  %v5747 = vld [vmem:[%s1 + $0xd0] sm:$0xf]
  %v5748 = vld [vmem:[%s1 + $0xd4] sm:$0xf]
  %v5749 = vld [vmem:[%s1 + $0xd8] sm:$0xf]
  %v5750 = vld [vmem:[%s1 + $0xdc] sm:$0xf]
  %v5751 = vld [vmem:[%s1 + $0xe0] sm:$0xf]
  %v5752 = vld [vmem:[%s1 + $0xe4] sm:$0xf]
  %v5753 = vld [vmem:[%s1 + $0xe8] sm:$0xf]
  %v5754 = vld [vmem:[%s1 + $0xec] sm:$0xf]
  %v5755 = vld [vmem:[%s1 + $0xf0] sm:$0xf]
  %v5756 = vld [vmem:[%s1 + $0xf4] sm:$0xf]
  %v5757 = vld [vmem:[%s1 + $0xf8] sm:$0xf]
  %v5758 = vld [vmem:[%s1 + $0xfc] sm:$0xf]
  %v5823 = vunpack.c.l.b16 %v5695
  %v5824 = vunpack.c.l.b16 %v5696
  %v5825 = vunpack.c.l.b16 %v5697
  %v5826 = vunpack.c.l.b16 %v5698
  %v5827 = vunpack.c.l.b16 %v5699
  %v5828 = vunpack.c.l.b16 %v5700
  %v5829 = vunpack.c.l.b16 %v5701
  %v5830 = vunpack.c.l.b16 %v5702
  %v5831 = vunpack.c.l.b16 %v5703
  %v5832 = vunpack.c.l.b16 %v5704
  %v5833 = vunpack.c.l.b16 %v5705
  %v5834 = vunpack.c.l.b16 %v5706
  %v5835 = vunpack.c.l.b16 %v5707
  %v5836 = vunpack.c.l.b16 %v5708
  %v5837 = vunpack.c.l.b16 %v5709
  %v5838 = vunpack.c.l.b16 %v5710
  %v5839 = vunpack.c.l.b16 %v5711
  %v5840 = vunpack.c.l.b16 %v5712
  %v5841 = vunpack.c.l.b16 %v5713
  %v5842 = vunpack.c.l.b16 %v5714
  %v5843 = vunpack.c.l.b16 %v5715
  %v5844 = vunpack.c.l.b16 %v5716
  %v5845 = vunpack.c.l.b16 %v5717
  %v5846 = vunpack.c.l.b16 %v5718
  %v5847 = vunpack.c.l.b16 %v5719
  %v5848 = vunpack.c.l.b16 %v5720
  %v5849 = vunpack.c.l.b16 %v5721
  %v5850 = vunpack.c.l.b16 %v5722
  %v5851 = vunpack.c.l.b16 %v5723
  %v5852 = vunpack.c.l.b16 %v5724
  %v5853 = vunpack.c.l.b16 %v5725
  %v5854 = vunpack.c.l.b16 %v5726
  %v5855 = vunpack.c.l.b16 %v5727
  %v5856 = vunpack.c.l.b16 %v5728
  %v5857 = vunpack.c.l.b16 %v5729
  %v5858 = vunpack.c.l.b16 %v5730
  %v5859 = vunpack.c.l.b16 %v5731
  %v5860 = vunpack.c.l.b16 %v5732
  %v5861 = vunpack.c.l.b16 %v5733
  %v5862 = vunpack.c.l.b16 %v5734
  %v5863 = vunpack.c.l.b16 %v5735
  %v5864 = vunpack.c.l.b16 %v5736
  %v5865 = vunpack.c.l.b16 %v5737
  %v5866 = vunpack.c.l.b16 %v5738
  %v5867 = vunpack.c.l.b16 %v5739
  %v5868 = vunpack.c.l.b16 %v5740
  %v5869 = vunpack.c.l.b16 %v5741
  %v5870 = vunpack.c.l.b16 %v5742
  %v5871 = vunpack.c.l.b16 %v5743
  %v5872 = vunpack.c.l.b16 %v5744
  %v5873 = vunpack.c.l.b16 %v5745
  %v5874 = vunpack.c.l.b16 %v5746
  %v5875 = vunpack.c.l.b16 %v5747
  %v5876 = vunpack.c.l.b16 %v5748
  %v5877 = vunpack.c.l.b16 %v5749
  %v5878 = vunpack.c.l.b16 %v5750
  %v5879 = vunpack.c.l.b16 %v5751
  %v5880 = vunpack.c.l.b16 %v5752
  %v5881 = vunpack.c.l.b16 %v5753
  %v5882 = vunpack.c.l.b16 %v5754
  %v5883 = vunpack.c.l.b16 %v5755
  %v5884 = vunpack.c.l.b16 %v5756
  %v5885 = vunpack.c.l.b16 %v5757
  %v5886 = vunpack.c.l.b16 %v5758
  %v5887 = vpack.c.b16 %v5824, %v5823
  %v5888 = vpack.c.b16 %v5826, %v5825
  %v5889 = vpack.c.b16 %v5828, %v5827
  %v5890 = vpack.c.b16 %v5830, %v5829
  %v5891 = vpack.c.b16 %v5832, %v5831
  %v5892 = vpack.c.b16 %v5834, %v5833
  %v5893 = vpack.c.b16 %v5836, %v5835
  %v5894 = vpack.c.b16 %v5838, %v5837
  %v5895 = vpack.c.b16 %v5840, %v5839
  %v5896 = vpack.c.b16 %v5842, %v5841
  %v5897 = vpack.c.b16 %v5844, %v5843
  %v5898 = vpack.c.b16 %v5846, %v5845
  %v5899 = vpack.c.b16 %v5848, %v5847
  %v5900 = vpack.c.b16 %v5850, %v5849
  %v5901 = vpack.c.b16 %v5852, %v5851
  %v5902 = vpack.c.b16 %v5854, %v5853
  %v5903 = vpack.c.b16 %v5856, %v5855
  %v5904 = vpack.c.b16 %v5858, %v5857
  %v5905 = vpack.c.b16 %v5860, %v5859
  %v5906 = vpack.c.b16 %v5862, %v5861
  %v5907 = vpack.c.b16 %v5864, %v5863
  %v5908 = vpack.c.b16 %v5866, %v5865
  %v5909 = vpack.c.b16 %v5868, %v5867
  %v5910 = vpack.c.b16 %v5870, %v5869
  %v5911 = vpack.c.b16 %v5872, %v5871
  %v5912 = vpack.c.b16 %v5874, %v5873
  %v5913 = vpack.c.b16 %v5876, %v5875
  %v5914 = vpack.c.b16 %v5878, %v5877
  %v5915 = vpack.c.b16 %v5880, %v5879
  %v5916 = vpack.c.b16 %v5882, %v5881
  %v5917 = vpack.c.b16 %v5884, %v5883
  %v5918 = vpack.c.b16 %v5886, %v5885
  %5951 = vmatprep.subr.bf16.mxu0 0
  %5952 = vmatpush1.bf16.xpose.msra.mxu0 %v5887
  %5953 = vmatprep.subr.bf16.mxu0 0
  %5954 = vmatpush1.bf16.xpose.msra.mxu0 %v5888
  %5955 = vmatprep.subr.bf16.mxu0 0
  %5956 = vmatpush1.bf16.xpose.msra.mxu0 %v5889
  %5957 = vmatprep.subr.bf16.mxu0 0
  %5958 = vmatpush1.bf16.xpose.msra.mxu0 %v5890
  %5959 = vmatprep.subr.bf16.mxu0 0
  %5960 = vmatpush1.bf16.xpose.msra.mxu0 %v5891
  %5961 = vmatprep.subr.bf16.mxu0 0
  %5962 = vmatpush1.bf16.xpose.msra.mxu0 %v5892
  %5963 = vmatprep.subr.bf16.mxu0 0
  %5964 = vmatpush1.bf16.xpose.msra.mxu0 %v5893
  %5965 = vmatprep.subr.bf16.mxu0 0
  %5966 = vmatpush1.bf16.xpose.msra.mxu0 %v5894
  %5967 = vmatprep.subr.bf16.mxu0 0
  %5968 = vmatpush1.bf16.xpose.msra.mxu0 %v5895
  %5969 = vmatprep.subr.bf16.mxu0 0
  %5970 = vmatpush1.bf16.xpose.msra.mxu0 %v5896
  %5971 = vmatprep.subr.bf16.mxu0 0
  %5972 = vmatpush1.bf16.xpose.msra.mxu0 %v5897
  %5973 = vmatprep.subr.bf16.mxu0 0
  %5974 = vmatpush1.bf16.xpose.msra.mxu0 %v5898
  %5975 = vmatprep.subr.bf16.mxu0 0
  %5976 = vmatpush1.bf16.xpose.msra.mxu0 %v5899
  %5977 = vmatprep.subr.bf16.mxu0 0
  %5978 = vmatpush1.bf16.xpose.msra.mxu0 %v5900
  %5979 = vmatprep.subr.bf16.mxu0 0
  %5980 = vmatpush1.bf16.xpose.msra.mxu0 %v5901
  %5981 = vmatprep.subr.bf16.mxu0 0
  %5982 = vmatpush1.bf16.xpose.msra.mxu0 %v5902
  %5983 = vmatprep.mubr.bf16.mxu0 0
  %5984 = vmatmul.mubr.bf16.gmra.mrb[0].mxu0 %v5694
  %v5985 = vpop.f32.mrb[0].mxu0
  %v5986 = vadd.f32 0.0, %v5985
  %v5987 = vpop.f32.mrb[0].mxu0
  %v5988 = vadd.f32 0.0, %v5987
  %v5989 = vpop.f32.mrb[0].mxu0
  %v5990 = vpop.f32.mrb[0].mxu0
  %5991 = vdwg.mxu0
  %5992 = vmatprep.subr.bf16.mxu0 0
  %5993 = vmatpush1.bf16.xpose.msra.mxu0 %v5903
  %5994 = vmatprep.subr.bf16.mxu0 0
  %5995 = vmatpush1.bf16.xpose.msra.mxu0 %v5904
  %5996 = vmatprep.subr.bf16.mxu0 0
  %5997 = vmatpush1.bf16.xpose.msra.mxu0 %v5905
  %5998 = vmatprep.subr.bf16.mxu0 0
  %5999 = vmatpush1.bf16.xpose.msra.mxu0 %v5906
  %6000 = vmatprep.subr.bf16.mxu0 0
  %6001 = vmatpush1.bf16.xpose.msra.mxu0 %v5907
  %6002 = vmatprep.subr.bf16.mxu0 0
  %6003 = vmatpush1.bf16.xpose.msra.mxu0 %v5908
  %6004 = vmatprep.subr.bf16.mxu0 0
  %6005 = vmatpush1.bf16.xpose.msra.mxu0 %v5909
  %6006 = vmatprep.subr.bf16.mxu0 0
  %6007 = vmatpush1.bf16.xpose.msra.mxu0 %v5910
  %6008 = vmatprep.subr.bf16.mxu0 0
  %6009 = vmatpush1.bf16.xpose.msra.mxu0 %v5911
  %6010 = vmatprep.subr.bf16.mxu0 0
  %6011 = vmatpush1.bf16.xpose.msra.mxu0 %v5912
  %6012 = vmatprep.subr.bf16.mxu0 0
  %6013 = vmatpush1.bf16.xpose.msra.mxu0 %v5913
  %6014 = vmatprep.subr.bf16.mxu0 0
  %6015 = vmatpush1.bf16.xpose.msra.mxu0 %v5914
  %6016 = vmatprep.subr.bf16.mxu0 0
  %6017 = vmatpush1.bf16.xpose.msra.mxu0 %v5915
  %6018 = vmatprep.subr.bf16.mxu0 0
  %6019 = vmatpush1.bf16.xpose.msra.mxu0 %v5916
  %6020 = vmatprep.subr.bf16.mxu0 0
  %6021 = vmatpush1.bf16.xpose.msra.mxu0 %v5917
  %6022 = vmatprep.subr.bf16.mxu0 0
  %6023 = vmatpush1.bf16.xpose.msra.mxu0 %v5918
  %6024 = vmatprep.mubr.bf16.mxu0 0
  %6025 = vmatmul.mubr.bf16.gmra.mrb[0].mxu0 %v5694
  %v6026 = vpop.f32.mrb[0].mxu0
  %v6027 = vadd.f32 0.0, %v6026
  %v6028 = vpop.f32.mrb[0].mxu0
  %v6029 = vadd.f32 0.0, %v6028
  %v6030 = vpop.f32.mrb[0].mxu0
  %v6031 = vpop.f32.mrb[0].mxu0
  %6032 = vdwg.mxu0
  %v6033 = vadd.f32 %v5689, %v5986
  %v6034 = vadd.f32 %v5690, %v5988
  %v6035 = vadd.f32 %v5691, %v6027
  %v6036 = vadd.f32 %v5692, %v6029
  %v6037 = vld [vmem:[#allocation3] sm:$0xff]
  %v6038 = vxor.u32 %v6033, 2147483648
  %v6039 = vmul.f32 %v6038, 1.442695
  %v6040 = vpow.pop %v6039
  %v6041 = vadd.f32 %v6040, 1.0
  %v6042 = vrcp.pop %v6041
  %v6043 = vmul.f32 1.0, %v6042
  %v6044 = vxor.u32 %v6034, 2147483648
  %v6045 = vmul.f32 %v6044, 1.442695
  %v6046 = vpow.pop %v6045
  %v6047 = vadd.f32 %v6046, 1.0
  %v6048 = vrcp.pop %v6047
  %v6049 = vmul.f32 1.0, %v6048
  %v6050 = vtanh.pop %v6035
  %v6051 = vxor.u32 %v6036, 2147483648
  %v6052 = vmul.f32 %v6051, 1.442695
  %v6053 = vpow.pop %v6052
  %v6054 = vadd.f32 %v6053, 1.0
  %v6055 = vrcp.pop %v6054
  %v6056 = vmul.f32 1.0, %v6055
  %v6057 = vmul.f32 %v6049, %v6037
  %v6058 = vmul.f32 %v6043, %v6050
  %v6059 = vadd.f32 %v6057, %v6058
  %v6060 = vtanh.pop %v6059
  %v6061 = vmul.f32 %v6056, %v6060
  %6062 = vst [vmem:[#allocation2] sm:$0xff] %v6061
  %6063 = vst [vmem:[#allocation3] sm:$0xff] %v6059
  %v6064 = vld [vmem:[#allocation4] sm:$0xff]
  %v6065 = vpack.c.bf16 %v6061, %v6061
  %v6066 = vpack.c.bf16 %v6064, %v6064
  %v6067 = vld [vmem:[%s2] sm:$0xff]
  %v6068 = vld [vmem:[%s2 + $0x8] sm:$0xff]
  %v6069 = vld [vmem:[%s2 + $0x10] sm:$0xff]
  %v6070 = vld [vmem:[%s2 + $0x18] sm:$0xff]
  %v6071 = vld [vmem:[%s2 + $0x20] sm:$0xff]
  %v6072 = vld [vmem:[%s2 + $0x28] sm:$0xff]
  %v6073 = vld [vmem:[%s2 + $0x30] sm:$0xff]
  %v6074 = vld [vmem:[%s2 + $0x38] sm:$0xff]
  %v6075 = vld [vmem:[%s2 + $0x40] sm:$0xff]
  %v6076 = vld [vmem:[%s2 + $0x48] sm:$0xff]
  %v6077 = vld [vmem:[%s2 + $0x50] sm:$0xff]
  %v6078 = vld [vmem:[%s2 + $0x58] sm:$0xff]
  %v6079 = vld [vmem:[%s2 + $0x60] sm:$0xff]
  %v6080 = vld [vmem:[%s2 + $0x68] sm:$0xff]
  %v6081 = vld [vmem:[%s2 + $0x70] sm:$0xff]
  %v6082 = vld [vmem:[%s2 + $0x78] sm:$0xff]
  %v6083 = vld [vmem:[%s2 + $0x80] sm:$0xff]
  %v6084 = vld [vmem:[%s2 + $0x88] sm:$0xff]
  %v6085 = vld [vmem:[%s2 + $0x90] sm:$0xff]
  %v6086 = vld [vmem:[%s2 + $0x98] sm:$0xff]
  %v6087 = vld [vmem:[%s2 + $0xa0] sm:$0xff]
  %v6088 = vld [vmem:[%s2 + $0xa8] sm:$0xff]
  %v6089 = vld [vmem:[%s2 + $0xb0] sm:$0xff]
  %v6090 = vld [vmem:[%s2 + $0xb8] sm:$0xff]
  %v6091 = vld [vmem:[%s2 + $0xc0] sm:$0xff]
  %v6092 = vld [vmem:[%s2 + $0xc8] sm:$0xff]
  %v6093 = vld [vmem:[%s2 + $0xd0] sm:$0xff]
  %v6094 = vld [vmem:[%s2 + $0xd8] sm:$0xff]
  %v6095 = vld [vmem:[%s2 + $0xe0] sm:$0xff]
  %v6096 = vld [vmem:[%s2 + $0xe8] sm:$0xff]
  %v6097 = vld [vmem:[%s2 + $0xf0] sm:$0xff]
  %v6098 = vld [vmem:[%s2 + $0xf8] sm:$0xff]
  %v6099 = vld [vmem:[%s2 + $0x100] sm:$0xff]
  %v6100 = vld [vmem:[%s2 + $0x108] sm:$0xff]
  %v6101 = vld [vmem:[%s2 + $0x110] sm:$0xff]
  %v6102 = vld [vmem:[%s2 + $0x118] sm:$0xff]
  %v6103 = vld [vmem:[%s2 + $0x120] sm:$0xff]
  %v6104 = vld [vmem:[%s2 + $0x128] sm:$0xff]
  %v6105 = vld [vmem:[%s2 + $0x130] sm:$0xff]
  %v6106 = vld [vmem:[%s2 + $0x138] sm:$0xff]
  %v6107 = vld [vmem:[%s2 + $0x140] sm:$0xff]
  %v6108 = vld [vmem:[%s2 + $0x148] sm:$0xff]
  %v6109 = vld [vmem:[%s2 + $0x150] sm:$0xff]
  %v6110 = vld [vmem:[%s2 + $0x158] sm:$0xff]
  %v6111 = vld [vmem:[%s2 + $0x160] sm:$0xff]
  %v6112 = vld [vmem:[%s2 + $0x168] sm:$0xff]
  %v6113 = vld [vmem:[%s2 + $0x170] sm:$0xff]
  %v6114 = vld [vmem:[%s2 + $0x178] sm:$0xff]
  %v6115 = vld [vmem:[%s2 + $0x180] sm:$0xff]
  %v6116 = vld [vmem:[%s2 + $0x188] sm:$0xff]
  %v6117 = vld [vmem:[%s2 + $0x190] sm:$0xff]
  %v6118 = vld [vmem:[%s2 + $0x198] sm:$0xff]
  %v6119 = vld [vmem:[%s2 + $0x1a0] sm:$0xff]
  %v6120 = vld [vmem:[%s2 + $0x1a8] sm:$0xff]
  %v6121 = vld [vmem:[%s2 + $0x1b0] sm:$0xff]
  %v6122 = vld [vmem:[%s2 + $0x1b8] sm:$0xff]
  %v6123 = vld [vmem:[%s2 + $0x1c0] sm:$0xff]
  %v6124 = vld [vmem:[%s2 + $0x1c8] sm:$0xff]
  %v6125 = vld [vmem:[%s2 + $0x1d0] sm:$0xff]
  %v6126 = vld [vmem:[%s2 + $0x1d8] sm:$0xff]
  %v6127 = vld [vmem:[%s2 + $0x1e0] sm:$0xff]
  %v6128 = vld [vmem:[%s2 + $0x1e8] sm:$0xff]
  %v6129 = vld [vmem:[%s2 + $0x1f0] sm:$0xff]
  %v6130 = vld [vmem:[%s2 + $0x1f8] sm:$0xff]
  %v6131 = vld [vmem:[%s3] sm:$0xf]
  %v6133 = vlaneseq
  %v6134 = vshrl.u32 %v6133, 7
  %v6135 = vsub.s32 0, %v6134
  %v6136 = vrot.slane %v6131, %v6135
  %v6137 = vlaneseq
  %v6138 = vshrl.u32 %v6137, 7
  %v6139 = vsub.s32 1, %v6138
  %v6140 = vrot.slane %v6131, %v6139
  %v6141 = vlaneseq
  %v6142 = vshrl.u32 %v6141, 7
  %v6143 = vsub.s32 2, %v6142
  %v6144 = vrot.slane %v6131, %v6143
  %v6145 = vlaneseq
  %v6146 = vshrl.u32 %v6145, 7
  %v6147 = vsub.s32 3, %v6146
  %v6148 = vrot.slane %v6131, %v6147
  %v6217 = vunpack.c.l.b16 %v6067
  %v6218 = vunpack.c.h.b16 %v6067
  %v6219 = vunpack.c.l.b16 %v6068
  %v6220 = vunpack.c.h.b16 %v6068
  %v6221 = vunpack.c.l.b16 %v6069
  %v6222 = vunpack.c.h.b16 %v6069
  %v6223 = vunpack.c.l.b16 %v6070
  %v6224 = vunpack.c.h.b16 %v6070
  %v6225 = vunpack.c.l.b16 %v6071
  %v6226 = vunpack.c.h.b16 %v6071
  %v6227 = vunpack.c.l.b16 %v6072
  %v6228 = vunpack.c.h.b16 %v6072
  %v6229 = vunpack.c.l.b16 %v6073
  %v6230 = vunpack.c.h.b16 %v6073
  %v6231 = vunpack.c.l.b16 %v6074
  %v6232 = vunpack.c.h.b16 %v6074
  %v6233 = vunpack.c.l.b16 %v6075
  %v6234 = vunpack.c.h.b16 %v6075
  %v6235 = vunpack.c.l.b16 %v6076
  %v6236 = vunpack.c.h.b16 %v6076
  %v6237 = vunpack.c.l.b16 %v6077
  %v6238 = vunpack.c.h.b16 %v6077
  %v6239 = vunpack.c.l.b16 %v6078
  %v6240 = vunpack.c.h.b16 %v6078
  %v6241 = vunpack.c.l.b16 %v6079
  %v6242 = vunpack.c.h.b16 %v6079
  %v6243 = vunpack.c.l.b16 %v6080
  %v6244 = vunpack.c.h.b16 %v6080
  %v6245 = vunpack.c.l.b16 %v6081
  %v6246 = vunpack.c.h.b16 %v6081
  %v6247 = vunpack.c.l.b16 %v6082
  %v6248 = vunpack.c.h.b16 %v6082
  %v6249 = vunpack.c.l.b16 %v6083
  %v6250 = vunpack.c.h.b16 %v6083
  %v6251 = vunpack.c.l.b16 %v6084
  %v6252 = vunpack.c.h.b16 %v6084
  %v6253 = vunpack.c.l.b16 %v6085
  %v6254 = vunpack.c.h.b16 %v6085
  %v6255 = vunpack.c.l.b16 %v6086
  %v6256 = vunpack.c.h.b16 %v6086
  %v6257 = vunpack.c.l.b16 %v6087
  %v6258 = vunpack.c.h.b16 %v6087
  %v6259 = vunpack.c.l.b16 %v6088
  %v6260 = vunpack.c.h.b16 %v6088
  %v6261 = vunpack.c.l.b16 %v6089
  %v6262 = vunpack.c.h.b16 %v6089
  %v6263 = vunpack.c.l.b16 %v6090
  %v6264 = vunpack.c.h.b16 %v6090
  %v6265 = vunpack.c.l.b16 %v6091
  %v6266 = vunpack.c.h.b16 %v6091
  %v6267 = vunpack.c.l.b16 %v6092
  %v6268 = vunpack.c.h.b16 %v6092
  %v6269 = vunpack.c.l.b16 %v6093
  %v6270 = vunpack.c.h.b16 %v6093
  %v6271 = vunpack.c.l.b16 %v6094
  %v6272 = vunpack.c.h.b16 %v6094
  %v6273 = vunpack.c.l.b16 %v6095
  %v6274 = vunpack.c.h.b16 %v6095
  %v6275 = vunpack.c.l.b16 %v6096
  %v6276 = vunpack.c.h.b16 %v6096
  %v6277 = vunpack.c.l.b16 %v6097
  %v6278 = vunpack.c.h.b16 %v6097
  %v6279 = vunpack.c.l.b16 %v6098
  %v6280 = vunpack.c.h.b16 %v6098
  %v6281 = vunpack.c.l.b16 %v6099
  %v6282 = vunpack.c.h.b16 %v6099
  %v6283 = vunpack.c.l.b16 %v6100
  %v6284 = vunpack.c.h.b16 %v6100
  %v6285 = vunpack.c.l.b16 %v6101
  %v6286 = vunpack.c.h.b16 %v6101
  %v6287 = vunpack.c.l.b16 %v6102
  %v6288 = vunpack.c.h.b16 %v6102
  %v6289 = vunpack.c.l.b16 %v6103
  %v6290 = vunpack.c.h.b16 %v6103
  %v6291 = vunpack.c.l.b16 %v6104
  %v6292 = vunpack.c.h.b16 %v6104
  %v6293 = vunpack.c.l.b16 %v6105
  %v6294 = vunpack.c.h.b16 %v6105
  %v6295 = vunpack.c.l.b16 %v6106
  %v6296 = vunpack.c.h.b16 %v6106
  %v6297 = vunpack.c.l.b16 %v6107
  %v6298 = vunpack.c.h.b16 %v6107
  %v6299 = vunpack.c.l.b16 %v6108
  %v6300 = vunpack.c.h.b16 %v6108
  %v6301 = vunpack.c.l.b16 %v6109
  %v6302 = vunpack.c.h.b16 %v6109
  %v6303 = vunpack.c.l.b16 %v6110
  %v6304 = vunpack.c.h.b16 %v6110
  %v6305 = vunpack.c.l.b16 %v6111
  %v6306 = vunpack.c.h.b16 %v6111
  %v6307 = vunpack.c.l.b16 %v6112
  %v6308 = vunpack.c.h.b16 %v6112
  %v6309 = vunpack.c.l.b16 %v6113
  %v6310 = vunpack.c.h.b16 %v6113
  %v6311 = vunpack.c.l.b16 %v6114
  %v6312 = vunpack.c.h.b16 %v6114
  %v6313 = vunpack.c.l.b16 %v6115
  %v6314 = vunpack.c.h.b16 %v6115
  %v6315 = vunpack.c.l.b16 %v6116
  %v6316 = vunpack.c.h.b16 %v6116
  %v6317 = vunpack.c.l.b16 %v6117
  %v6318 = vunpack.c.h.b16 %v6117
  %v6319 = vunpack.c.l.b16 %v6118
  %v6320 = vunpack.c.h.b16 %v6118
  %v6321 = vunpack.c.l.b16 %v6119
  %v6322 = vunpack.c.h.b16 %v6119
  %v6323 = vunpack.c.l.b16 %v6120
  %v6324 = vunpack.c.h.b16 %v6120
  %v6325 = vunpack.c.l.b16 %v6121
  %v6326 = vunpack.c.h.b16 %v6121
  %v6327 = vunpack.c.l.b16 %v6122
  %v6328 = vunpack.c.h.b16 %v6122
  %v6329 = vunpack.c.l.b16 %v6123
  %v6330 = vunpack.c.h.b16 %v6123
  %v6331 = vunpack.c.l.b16 %v6124
  %v6332 = vunpack.c.h.b16 %v6124
  %v6333 = vunpack.c.l.b16 %v6125
  %v6334 = vunpack.c.h.b16 %v6125
  %v6335 = vunpack.c.l.b16 %v6126
  %v6336 = vunpack.c.h.b16 %v6126
  %v6337 = vunpack.c.l.b16 %v6127
  %v6338 = vunpack.c.h.b16 %v6127
  %v6339 = vunpack.c.l.b16 %v6128
  %v6340 = vunpack.c.h.b16 %v6128
  %v6341 = vunpack.c.l.b16 %v6129
  %v6342 = vunpack.c.h.b16 %v6129
  %v6343 = vunpack.c.l.b16 %v6130
  %v6344 = vunpack.c.h.b16 %v6130
  %v6345 = vpack.c.b16 %v6219, %v6217
  %v6346 = vpack.c.b16 %v6220, %v6218
  %v6347 = vpack.c.b16 %v6223, %v6221
  %v6348 = vpack.c.b16 %v6224, %v6222
  %v6349 = vpack.c.b16 %v6227, %v6225
  %v6350 = vpack.c.b16 %v6228, %v6226
  %v6351 = vpack.c.b16 %v6231, %v6229
  %v6352 = vpack.c.b16 %v6232, %v6230
  %v6353 = vpack.c.b16 %v6235, %v6233
  %v6354 = vpack.c.b16 %v6236, %v6234
  %v6355 = vpack.c.b16 %v6239, %v6237
  %v6356 = vpack.c.b16 %v6240, %v6238
  %v6357 = vpack.c.b16 %v6243, %v6241
  %v6358 = vpack.c.b16 %v6244, %v6242
  %v6359 = vpack.c.b16 %v6247, %v6245
  %v6360 = vpack.c.b16 %v6248, %v6246
  %v6361 = vpack.c.b16 %v6251, %v6249
  %v6362 = vpack.c.b16 %v6252, %v6250
  %v6363 = vpack.c.b16 %v6255, %v6253
  %v6364 = vpack.c.b16 %v6256, %v6254
  %v6365 = vpack.c.b16 %v6259, %v6257
  %v6366 = vpack.c.b16 %v6260, %v6258
  %v6367 = vpack.c.b16 %v6263, %v6261
  %v6368 = vpack.c.b16 %v6264, %v6262
  %v6369 = vpack.c.b16 %v6267, %v6265
  %v6370 = vpack.c.b16 %v6268, %v6266
  %v6371 = vpack.c.b16 %v6271, %v6269
  %v6372 = vpack.c.b16 %v6272, %v6270
  %v6373 = vpack.c.b16 %v6275, %v6273
  %v6374 = vpack.c.b16 %v6276, %v6274
  %v6375 = vpack.c.b16 %v6279, %v6277
  %v6376 = vpack.c.b16 %v6280, %v6278
  %v6377 = vpack.c.b16 %v6283, %v6281
  %v6378 = vpack.c.b16 %v6284, %v6282
  %v6379 = vpack.c.b16 %v6287, %v6285
  %v6380 = vpack.c.b16 %v6288, %v6286
  %v6381 = vpack.c.b16 %v6291, %v6289
  %v6382 = vpack.c.b16 %v6292, %v6290
  %v6383 = vpack.c.b16 %v6295, %v6293
  %v6384 = vpack.c.b16 %v6296, %v6294
  %v6385 = vpack.c.b16 %v6299, %v6297
  %v6386 = vpack.c.b16 %v6300, %v6298
  %v6387 = vpack.c.b16 %v6303, %v6301
  %v6388 = vpack.c.b16 %v6304, %v6302
  %v6389 = vpack.c.b16 %v6307, %v6305
  %v6390 = vpack.c.b16 %v6308, %v6306
  %v6391 = vpack.c.b16 %v6311, %v6309
  %v6392 = vpack.c.b16 %v6312, %v6310
  %v6393 = vpack.c.b16 %v6315, %v6313
  %v6394 = vpack.c.b16 %v6316, %v6314
  %v6395 = vpack.c.b16 %v6319, %v6317
  %v6396 = vpack.c.b16 %v6320, %v6318
  %v6397 = vpack.c.b16 %v6323, %v6321
  %v6398 = vpack.c.b16 %v6324, %v6322
  %v6399 = vpack.c.b16 %v6327, %v6325
  %v6400 = vpack.c.b16 %v6328, %v6326
  %v6401 = vpack.c.b16 %v6331, %v6329
  %v6402 = vpack.c.b16 %v6332, %v6330
  %v6403 = vpack.c.b16 %v6335, %v6333
  %v6404 = vpack.c.b16 %v6336, %v6334
  %v6405 = vpack.c.b16 %v6339, %v6337
  %v6406 = vpack.c.b16 %v6340, %v6338
  %v6407 = vpack.c.b16 %v6343, %v6341
  %v6408 = vpack.c.b16 %v6344, %v6342
  %6473 = vmatprep.subr.bf16.mxu0 %v6346
  %6474 = vmatpush1.bf16.xpose.msra.mxu0 %v6345
  %6475 = vmatprep.subr.bf16.mxu0 %v6348
  %6476 = vmatpush1.bf16.xpose.msra.mxu0 %v6347
  %6477 = vmatprep.subr.bf16.mxu0 %v6350
  %6478 = vmatpush1.bf16.xpose.msra.mxu0 %v6349
  %6479 = vmatprep.subr.bf16.mxu0 %v6352
  %6480 = vmatpush1.bf16.xpose.msra.mxu0 %v6351
  %6481 = vmatprep.subr.bf16.mxu0 %v6354
  %6482 = vmatpush1.bf16.xpose.msra.mxu0 %v6353
  %6483 = vmatprep.subr.bf16.mxu0 %v6356
  %6484 = vmatpush1.bf16.xpose.msra.mxu0 %v6355
  %6485 = vmatprep.subr.bf16.mxu0 %v6358
  %6486 = vmatpush1.bf16.xpose.msra.mxu0 %v6357
  %6487 = vmatprep.subr.bf16.mxu0 %v6360
  %6488 = vmatpush1.bf16.xpose.msra.mxu0 %v6359
  %6489 = vmatprep.subr.bf16.mxu0 %v6362
  %6490 = vmatpush1.bf16.xpose.msra.mxu0 %v6361
  %6491 = vmatprep.subr.bf16.mxu0 %v6364
  %6492 = vmatpush1.bf16.xpose.msra.mxu0 %v6363
  %6493 = vmatprep.subr.bf16.mxu0 %v6366
  %6494 = vmatpush1.bf16.xpose.msra.mxu0 %v6365
  %6495 = vmatprep.subr.bf16.mxu0 %v6368
  %6496 = vmatpush1.bf16.xpose.msra.mxu0 %v6367
  %6497 = vmatprep.subr.bf16.mxu0 %v6370
  %6498 = vmatpush1.bf16.xpose.msra.mxu0 %v6369
  %6499 = vmatprep.subr.bf16.mxu0 %v6372
  %6500 = vmatpush1.bf16.xpose.msra.mxu0 %v6371
  %6501 = vmatprep.subr.bf16.mxu0 %v6374
  %6502 = vmatpush1.bf16.xpose.msra.mxu0 %v6373
  %6503 = vmatprep.subr.bf16.mxu0 %v6376
  %6504 = vmatpush1.bf16.xpose.msra.mxu0 %v6375
  %6505 = vmatprep.mubr.bf16.mxu0 %v6066
  %6506 = vmatmul.mubr.bf16.gmra.mrb[0].mxu0 %v6065
  %v6507 = vpop.f32.mrb[0].mxu0
  %v6508 = vadd.f32 %v6136, %v6507
  %v6509 = vpop.f32.mrb[0].mxu0
  %v6510 = vadd.f32 %v6140, %v6509
  %v6511 = vpop.f32.mrb[0].mxu0
  %v6512 = vpop.f32.mrb[0].mxu0
  %6513 = vdwg.mxu0
  %6514 = vmatprep.subr.bf16.mxu0 %v6378
  %6515 = vmatpush1.bf16.xpose.msra.mxu0 %v6377
  %6516 = vmatprep.subr.bf16.mxu0 %v6380
  %6517 = vmatpush1.bf16.xpose.msra.mxu0 %v6379
  %6518 = vmatprep.subr.bf16.mxu0 %v6382
  %6519 = vmatpush1.bf16.xpose.msra.mxu0 %v6381
  %6520 = vmatprep.subr.bf16.mxu0 %v6384
  %6521 = vmatpush1.bf16.xpose.msra.mxu0 %v6383
  %6522 = vmatprep.subr.bf16.mxu0 %v6386
  %6523 = vmatpush1.bf16.xpose.msra.mxu0 %v6385
  %6524 = vmatprep.subr.bf16.mxu0 %v6388
  %6525 = vmatpush1.bf16.xpose.msra.mxu0 %v6387
  %6526 = vmatprep.subr.bf16.mxu0 %v6390
  %6527 = vmatpush1.bf16.xpose.msra.mxu0 %v6389
  %6528 = vmatprep.subr.bf16.mxu0 %v6392
  %6529 = vmatpush1.bf16.xpose.msra.mxu0 %v6391
  %6530 = vmatprep.subr.bf16.mxu0 %v6394
  %6531 = vmatpush1.bf16.xpose.msra.mxu0 %v6393
  %6532 = vmatprep.subr.bf16.mxu0 %v6396
  %6533 = vmatpush1.bf16.xpose.msra.mxu0 %v6395
  %6534 = vmatprep.subr.bf16.mxu0 %v6398
  %6535 = vmatpush1.bf16.xpose.msra.mxu0 %v6397
  %6536 = vmatprep.subr.bf16.mxu0 %v6400
  %6537 = vmatpush1.bf16.xpose.msra.mxu0 %v6399
  %6538 = vmatprep.subr.bf16.mxu0 %v6402
  %6539 = vmatpush1.bf16.xpose.msra.mxu0 %v6401
  %6540 = vmatprep.subr.bf16.mxu0 %v6404
  %6541 = vmatpush1.bf16.xpose.msra.mxu0 %v6403
  %6542 = vmatprep.subr.bf16.mxu0 %v6406
  %6543 = vmatpush1.bf16.xpose.msra.mxu0 %v6405
  %6544 = vmatprep.subr.bf16.mxu0 %v6408
  %6545 = vmatpush1.bf16.xpose.msra.mxu0 %v6407
  %6546 = vmatprep.mubr.bf16.mxu0 %v6066
  %6547 = vmatmul.mubr.bf16.gmra.mrb[0].mxu0 %v6065
  %v6548 = vpop.f32.mrb[0].mxu0
  %v6549 = vadd.f32 %v6144, %v6548
  %v6550 = vpop.f32.mrb[0].mxu0
  %v6551 = vadd.f32 %v6148, %v6550
  %v6552 = vpop.f32.mrb[0].mxu0
  %v6553 = vpop.f32.mrb[0].mxu0
  %6554 = vdwg.mxu0
  %v6555 = vld [vmem:[#allocation5] sm:$0xff]
  %v6556 = vxor.u32 %v6508, 2147483648
  %v6557 = vmul.f32 %v6556, 1.442695
  %v6558 = vpow.pop %v6557
  %v6559 = vadd.f32 %v6558, 1.0
  %v6560 = vrcp.pop %v6559
  %v6561 = vmul.f32 1.0, %v6560
  %v6562 = vxor.u32 %v6510, 2147483648
  %v6563 = vmul.f32 %v6562, 1.442695
  %v6564 = vpow.pop %v6563
  %v6565 = vadd.f32 %v6564, 1.0
  %v6566 = vrcp.pop %v6565
  %v6567 = vmul.f32 1.0, %v6566
  %v6568 = vtanh.pop %v6549
  %v6569 = vxor.u32 %v6551, 2147483648
  %v6570 = vmul.f32 %v6569, 1.442695
  %v6571 = vpow.pop %v6570
  %v6572 = vadd.f32 %v6571, 1.0
  %v6573 = vrcp.pop %v6572
  %v6574 = vmul.f32 1.0, %v6573
  %v6575 = vmul.f32 %v6567, %v6555
  %v6576 = vmul.f32 %v6561, %v6568
  %v6577 = vadd.f32 %v6575, %v6576
  %v6578 = vtanh.pop %v6577
  %v6579 = vmul.f32 %v6574, %v6578
  %6580 = vst [vmem:[#allocation4] sm:$0xff] %v6579
  %6581 = vst [vmem:[#allocation5] sm:$0xff] %v6577
  %v6582 = vld [vmem:[#allocation6] sm:$0xff]
  %v6583 = vpack.c.bf16 %v6579, %v6579
  %v6584 = vpack.c.bf16 %v6582, %v6582
  %v6585 = vld [vmem:[%s4] sm:$0xff]
  %v6586 = vld [vmem:[%s4 + $0x8] sm:$0xff]
  %v6587 = vld [vmem:[%s4 + $0x10] sm:$0xff]
  %v6588 = vld [vmem:[%s4 + $0x18] sm:$0xff]
  %v6589 = vld [vmem:[%s4 + $0x20] sm:$0xff]
  %v6590 = vld [vmem:[%s4 + $0x28] sm:$0xff]
  %v6591 = vld [vmem:[%s4 + $0x30] sm:$0xff]
  %v6592 = vld [vmem:[%s4 + $0x38] sm:$0xff]
  %v6593 = vld [vmem:[%s4 + $0x40] sm:$0xff]
  %v6594 = vld [vmem:[%s4 + $0x48] sm:$0xff]
  %v6595 = vld [vmem:[%s4 + $0x50] sm:$0xff]
  %v6596 = vld [vmem:[%s4 + $0x58] sm:$0xff]
  %v6597 = vld [vmem:[%s4 + $0x60] sm:$0xff]
  %v6598 = vld [vmem:[%s4 + $0x68] sm:$0xff]
  %v6599 = vld [vmem:[%s4 + $0x70] sm:$0xff]
  %v6600 = vld [vmem:[%s4 + $0x78] sm:$0xff]
  %v6601 = vld [vmem:[%s4 + $0x80] sm:$0xff]
  %v6602 = vld [vmem:[%s4 + $0x88] sm:$0xff]
  %v6603 = vld [vmem:[%s4 + $0x90] sm:$0xff]
  %v6604 = vld [vmem:[%s4 + $0x98] sm:$0xff]
  %v6605 = vld [vmem:[%s4 + $0xa0] sm:$0xff]
  %v6606 = vld [vmem:[%s4 + $0xa8] sm:$0xff]
  %v6607 = vld [vmem:[%s4 + $0xb0] sm:$0xff]
  %v6608 = vld [vmem:[%s4 + $0xb8] sm:$0xff]
  %v6609 = vld [vmem:[%s4 + $0xc0] sm:$0xff]
  %v6610 = vld [vmem:[%s4 + $0xc8] sm:$0xff]
  %v6611 = vld [vmem:[%s4 + $0xd0] sm:$0xff]
  %v6612 = vld [vmem:[%s4 + $0xd8] sm:$0xff]
  %v6613 = vld [vmem:[%s4 + $0xe0] sm:$0xff]
  %v6614 = vld [vmem:[%s4 + $0xe8] sm:$0xff]
  %v6615 = vld [vmem:[%s4 + $0xf0] sm:$0xff]
  %v6616 = vld [vmem:[%s4 + $0xf8] sm:$0xff]
  %v6617 = vld [vmem:[%s4 + $0x100] sm:$0xff]
  %v6618 = vld [vmem:[%s4 + $0x108] sm:$0xff]
  %v6619 = vld [vmem:[%s4 + $0x110] sm:$0xff]
  %v6620 = vld [vmem:[%s4 + $0x118] sm:$0xff]
  %v6621 = vld [vmem:[%s4 + $0x120] sm:$0xff]
  %v6622 = vld [vmem:[%s4 + $0x128] sm:$0xff]
  %v6623 = vld [vmem:[%s4 + $0x130] sm:$0xff]
  %v6624 = vld [vmem:[%s4 + $0x138] sm:$0xff]
  %v6625 = vld [vmem:[%s4 + $0x140] sm:$0xff]
  %v6626 = vld [vmem:[%s4 + $0x148] sm:$0xff]
  %v6627 = vld [vmem:[%s4 + $0x150] sm:$0xff]
  %v6628 = vld [vmem:[%s4 + $0x158] sm:$0xff]
  %v6629 = vld [vmem:[%s4 + $0x160] sm:$0xff]
  %v6630 = vld [vmem:[%s4 + $0x168] sm:$0xff]
  %v6631 = vld [vmem:[%s4 + $0x170] sm:$0xff]
  %v6632 = vld [vmem:[%s4 + $0x178] sm:$0xff]
  %v6633 = vld [vmem:[%s4 + $0x180] sm:$0xff]
  %v6634 = vld [vmem:[%s4 + $0x188] sm:$0xff]
  %v6635 = vld [vmem:[%s4 + $0x190] sm:$0xff]
  %v6636 = vld [vmem:[%s4 + $0x198] sm:$0xff]
  %v6637 = vld [vmem:[%s4 + $0x1a0] sm:$0xff]
  %v6638 = vld [vmem:[%s4 + $0x1a8] sm:$0xff]
  %v6639 = vld [vmem:[%s4 + $0x1b0] sm:$0xff]
  %v6640 = vld [vmem:[%s4 + $0x1b8] sm:$0xff]
  %v6641 = vld [vmem:[%s4 + $0x1c0] sm:$0xff]
  %v6642 = vld [vmem:[%s4 + $0x1c8] sm:$0xff]
  %v6643 = vld [vmem:[%s4 + $0x1d0] sm:$0xff]
  %v6644 = vld [vmem:[%s4 + $0x1d8] sm:$0xff]
  %v6645 = vld [vmem:[%s4 + $0x1e0] sm:$0xff]
  %v6646 = vld [vmem:[%s4 + $0x1e8] sm:$0xff]
  %v6647 = vld [vmem:[%s4 + $0x1f0] sm:$0xff]
  %v6648 = vld [vmem:[%s4 + $0x1f8] sm:$0xff]
  %v6649 = vld [vmem:[%s5] sm:$0xf]
  %v6651 = vlaneseq
  %v6652 = vshrl.u32 %v6651, 7
  %v6653 = vsub.s32 0, %v6652
  %v6654 = vrot.slane %v6649, %v6653
  %v6655 = vlaneseq
  %v6656 = vshrl.u32 %v6655, 7
  %v6657 = vsub.s32 1, %v6656
  %v6658 = vrot.slane %v6649, %v6657
  %v6659 = vlaneseq
  %v6660 = vshrl.u32 %v6659, 7
  %v6661 = vsub.s32 2, %v6660
  %v6662 = vrot.slane %v6649, %v6661
  %v6663 = vlaneseq
  %v6664 = vshrl.u32 %v6663, 7
  %v6665 = vsub.s32 3, %v6664
  %v6666 = vrot.slane %v6649, %v6665
  %v6735 = vunpack.c.l.b16 %v6585
  %v6736 = vunpack.c.h.b16 %v6585
  %v6737 = vunpack.c.l.b16 %v6586
  %v6738 = vunpack.c.h.b16 %v6586
  %v6739 = vunpack.c.l.b16 %v6587
  %v6740 = vunpack.c.h.b16 %v6587
  %v6741 = vunpack.c.l.b16 %v6588
  %v6742 = vunpack.c.h.b16 %v6588
  %v6743 = vunpack.c.l.b16 %v6589
  %v6744 = vunpack.c.h.b16 %v6589
  %v6745 = vunpack.c.l.b16 %v6590
  %v6746 = vunpack.c.h.b16 %v6590
  %v6747 = vunpack.c.l.b16 %v6591
  %v6748 = vunpack.c.h.b16 %v6591
  %v6749 = vunpack.c.l.b16 %v6592
  %v6750 = vunpack.c.h.b16 %v6592
  %v6751 = vunpack.c.l.b16 %v6593
  %v6752 = vunpack.c.h.b16 %v6593
  %v6753 = vunpack.c.l.b16 %v6594
  %v6754 = vunpack.c.h.b16 %v6594
  %v6755 = vunpack.c.l.b16 %v6595
  %v6756 = vunpack.c.h.b16 %v6595
  %v6757 = vunpack.c.l.b16 %v6596
  %v6758 = vunpack.c.h.b16 %v6596
  %v6759 = vunpack.c.l.b16 %v6597
  %v6760 = vunpack.c.h.b16 %v6597
  %v6761 = vunpack.c.l.b16 %v6598
  %v6762 = vunpack.c.h.b16 %v6598
  %v6763 = vunpack.c.l.b16 %v6599
  %v6764 = vunpack.c.h.b16 %v6599
  %v6765 = vunpack.c.l.b16 %v6600
  %v6766 = vunpack.c.h.b16 %v6600
  %v6767 = vunpack.c.l.b16 %v6601
  %v6768 = vunpack.c.h.b16 %v6601
  %v6769 = vunpack.c.l.b16 %v6602
  %v6770 = vunpack.c.h.b16 %v6602
  %v6771 = vunpack.c.l.b16 %v6603
  %v6772 = vunpack.c.h.b16 %v6603
  %v6773 = vunpack.c.l.b16 %v6604
  %v6774 = vunpack.c.h.b16 %v6604
  %v6775 = vunpack.c.l.b16 %v6605
  %v6776 = vunpack.c.h.b16 %v6605
  %v6777 = vunpack.c.l.b16 %v6606
  %v6778 = vunpack.c.h.b16 %v6606
  %v6779 = vunpack.c.l.b16 %v6607
  %v6780 = vunpack.c.h.b16 %v6607
  %v6781 = vunpack.c.l.b16 %v6608
  %v6782 = vunpack.c.h.b16 %v6608
  %v6783 = vunpack.c.l.b16 %v6609
  %v6784 = vunpack.c.h.b16 %v6609
  %v6785 = vunpack.c.l.b16 %v6610
  %v6786 = vunpack.c.h.b16 %v6610
  %v6787 = vunpack.c.l.b16 %v6611
  %v6788 = vunpack.c.h.b16 %v6611
  %v6789 = vunpack.c.l.b16 %v6612
  %v6790 = vunpack.c.h.b16 %v6612
  %v6791 = vunpack.c.l.b16 %v6613
  %v6792 = vunpack.c.h.b16 %v6613
  %v6793 = vunpack.c.l.b16 %v6614
  %v6794 = vunpack.c.h.b16 %v6614
  %v6795 = vunpack.c.l.b16 %v6615
  %v6796 = vunpack.c.h.b16 %v6615
  %v6797 = vunpack.c.l.b16 %v6616
  %v6798 = vunpack.c.h.b16 %v6616
  %v6799 = vunpack.c.l.b16 %v6617
  %v6800 = vunpack.c.h.b16 %v6617
  %v6801 = vunpack.c.l.b16 %v6618
  %v6802 = vunpack.c.h.b16 %v6618
  %v6803 = vunpack.c.l.b16 %v6619
  %v6804 = vunpack.c.h.b16 %v6619
  %v6805 = vunpack.c.l.b16 %v6620
  %v6806 = vunpack.c.h.b16 %v6620
  %v6807 = vunpack.c.l.b16 %v6621
  %v6808 = vunpack.c.h.b16 %v6621
  %v6809 = vunpack.c.l.b16 %v6622
  %v6810 = vunpack.c.h.b16 %v6622
  %v6811 = vunpack.c.l.b16 %v6623
  %v6812 = vunpack.c.h.b16 %v6623
  %v6813 = vunpack.c.l.b16 %v6624
  %v6814 = vunpack.c.h.b16 %v6624
  %v6815 = vunpack.c.l.b16 %v6625
  %v6816 = vunpack.c.h.b16 %v6625
  %v6817 = vunpack.c.l.b16 %v6626
  %v6818 = vunpack.c.h.b16 %v6626
  %v6819 = vunpack.c.l.b16 %v6627
  %v6820 = vunpack.c.h.b16 %v6627
  %v6821 = vunpack.c.l.b16 %v6628
  %v6822 = vunpack.c.h.b16 %v6628
  %v6823 = vunpack.c.l.b16 %v6629
  %v6824 = vunpack.c.h.b16 %v6629
  %v6825 = vunpack.c.l.b16 %v6630
  %v6826 = vunpack.c.h.b16 %v6630
  %v6827 = vunpack.c.l.b16 %v6631
  %v6828 = vunpack.c.h.b16 %v6631
  %v6829 = vunpack.c.l.b16 %v6632
  %v6830 = vunpack.c.h.b16 %v6632
  %v6831 = vunpack.c.l.b16 %v6633
  %v6832 = vunpack.c.h.b16 %v6633
  %v6833 = vunpack.c.l.b16 %v6634
  %v6834 = vunpack.c.h.b16 %v6634
  %v6835 = vunpack.c.l.b16 %v6635
  %v6836 = vunpack.c.h.b16 %v6635
  %v6837 = vunpack.c.l.b16 %v6636
  %v6838 = vunpack.c.h.b16 %v6636
  %v6839 = vunpack.c.l.b16 %v6637
  %v6840 = vunpack.c.h.b16 %v6637
  %v6841 = vunpack.c.l.b16 %v6638
  %v6842 = vunpack.c.h.b16 %v6638
  %v6843 = vunpack.c.l.b16 %v6639
  %v6844 = vunpack.c.h.b16 %v6639
  %v6845 = vunpack.c.l.b16 %v6640
  %v6846 = vunpack.c.h.b16 %v6640
  %v6847 = vunpack.c.l.b16 %v6641
  %v6848 = vunpack.c.h.b16 %v6641
  %v6849 = vunpack.c.l.b16 %v6642
  %v6850 = vunpack.c.h.b16 %v6642
  %v6851 = vunpack.c.l.b16 %v6643
  %v6852 = vunpack.c.h.b16 %v6643
  %v6853 = vunpack.c.l.b16 %v6644
  %v6854 = vunpack.c.h.b16 %v6644
  %v6855 = vunpack.c.l.b16 %v6645
  %v6856 = vunpack.c.h.b16 %v6645
  %v6857 = vunpack.c.l.b16 %v6646
  %v6858 = vunpack.c.h.b16 %v6646
  %v6859 = vunpack.c.l.b16 %v6647
  %v6860 = vunpack.c.h.b16 %v6647
  %v6861 = vunpack.c.l.b16 %v6648
  %v6862 = vunpack.c.h.b16 %v6648
  %v6863 = vpack.c.b16 %v6737, %v6735
  %v6864 = vpack.c.b16 %v6738, %v6736
  %v6865 = vpack.c.b16 %v6741, %v6739
  %v6866 = vpack.c.b16 %v6742, %v6740
  %v6867 = vpack.c.b16 %v6745, %v6743
  %v6868 = vpack.c.b16 %v6746, %v6744
  %v6869 = vpack.c.b16 %v6749, %v6747
  %v6870 = vpack.c.b16 %v6750, %v6748
  %v6871 = vpack.c.b16 %v6753, %v6751
  %v6872 = vpack.c.b16 %v6754, %v6752
  %v6873 = vpack.c.b16 %v6757, %v6755
  %v6874 = vpack.c.b16 %v6758, %v6756
  %v6875 = vpack.c.b16 %v6761, %v6759
  %v6876 = vpack.c.b16 %v6762, %v6760
  %v6877 = vpack.c.b16 %v6765, %v6763
  %v6878 = vpack.c.b16 %v6766, %v6764
  %v6879 = vpack.c.b16 %v6769, %v6767
  %v6880 = vpack.c.b16 %v6770, %v6768
  %v6881 = vpack.c.b16 %v6773, %v6771
  %v6882 = vpack.c.b16 %v6774, %v6772
  %v6883 = vpack.c.b16 %v6777, %v6775
  %v6884 = vpack.c.b16 %v6778, %v6776
  %v6885 = vpack.c.b16 %v6781, %v6779
  %v6886 = vpack.c.b16 %v6782, %v6780
  %v6887 = vpack.c.b16 %v6785, %v6783
  %v6888 = vpack.c.b16 %v6786, %v6784
  %v6889 = vpack.c.b16 %v6789, %v6787
  %v6890 = vpack.c.b16 %v6790, %v6788
  %v6891 = vpack.c.b16 %v6793, %v6791
  %v6892 = vpack.c.b16 %v6794, %v6792
  %v6893 = vpack.c.b16 %v6797, %v6795
  %v6894 = vpack.c.b16 %v6798, %v6796
  %v6895 = vpack.c.b16 %v6801, %v6799
  %v6896 = vpack.c.b16 %v6802, %v6800
  %v6897 = vpack.c.b16 %v6805, %v6803
  %v6898 = vpack.c.b16 %v6806, %v6804
  %v6899 = vpack.c.b16 %v6809, %v6807
  %v6900 = vpack.c.b16 %v6810, %v6808
  %v6901 = vpack.c.b16 %v6813, %v6811
  %v6902 = vpack.c.b16 %v6814, %v6812
  %v6903 = vpack.c.b16 %v6817, %v6815
  %v6904 = vpack.c.b16 %v6818, %v6816
  %v6905 = vpack.c.b16 %v6821, %v6819
  %v6906 = vpack.c.b16 %v6822, %v6820
  %v6907 = vpack.c.b16 %v6825, %v6823
  %v6908 = vpack.c.b16 %v6826, %v6824
  %v6909 = vpack.c.b16 %v6829, %v6827
  %v6910 = vpack.c.b16 %v6830, %v6828
  %v6911 = vpack.c.b16 %v6833, %v6831
  %v6912 = vpack.c.b16 %v6834, %v6832
  %v6913 = vpack.c.b16 %v6837, %v6835
  %v6914 = vpack.c.b16 %v6838, %v6836
  %v6915 = vpack.c.b16 %v6841, %v6839
  %v6916 = vpack.c.b16 %v6842, %v6840
  %v6917 = vpack.c.b16 %v6845, %v6843
  %v6918 = vpack.c.b16 %v6846, %v6844
  %v6919 = vpack.c.b16 %v6849, %v6847
  %v6920 = vpack.c.b16 %v6850, %v6848
  %v6921 = vpack.c.b16 %v6853, %v6851
  %v6922 = vpack.c.b16 %v6854, %v6852
  %v6923 = vpack.c.b16 %v6857, %v6855
  %v6924 = vpack.c.b16 %v6858, %v6856
  %v6925 = vpack.c.b16 %v6861, %v6859
  %v6926 = vpack.c.b16 %v6862, %v6860
  %6991 = vmatprep.subr.bf16.mxu0 %v6864
  %6992 = vmatpush1.bf16.xpose.msra.mxu0 %v6863
  %6993 = vmatprep.subr.bf16.mxu0 %v6866
  %6994 = vmatpush1.bf16.xpose.msra.mxu0 %v6865
  %6995 = vmatprep.subr.bf16.mxu0 %v6868
  %6996 = vmatpush1.bf16.xpose.msra.mxu0 %v6867
  %6997 = vmatprep.subr.bf16.mxu0 %v6870
  %6998 = vmatpush1.bf16.xpose.msra.mxu0 %v6869
  %6999 = vmatprep.subr.bf16.mxu0 %v6872
  %7000 = vmatpush1.bf16.xpose.msra.mxu0 %v6871
  %7001 = vmatprep.subr.bf16.mxu0 %v6874
  %7002 = vmatpush1.bf16.xpose.msra.mxu0 %v6873
  %7003 = vmatprep.subr.bf16.mxu0 %v6876
  %7004 = vmatpush1.bf16.xpose.msra.mxu0 %v6875
  %7005 = vmatprep.subr.bf16.mxu0 %v6878
  %7006 = vmatpush1.bf16.xpose.msra.mxu0 %v6877
  %7007 = vmatprep.subr.bf16.mxu0 %v6880
  %7008 = vmatpush1.bf16.xpose.msra.mxu0 %v6879
  %7009 = vmatprep.subr.bf16.mxu0 %v6882
  %7010 = vmatpush1.bf16.xpose.msra.mxu0 %v6881
  %7011 = vmatprep.subr.bf16.mxu0 %v6884
  %7012 = vmatpush1.bf16.xpose.msra.mxu0 %v6883
  %7013 = vmatprep.subr.bf16.mxu0 %v6886
  %7014 = vmatpush1.bf16.xpose.msra.mxu0 %v6885
  %7015 = vmatprep.subr.bf16.mxu0 %v6888
  %7016 = vmatpush1.bf16.xpose.msra.mxu0 %v6887
  %7017 = vmatprep.subr.bf16.mxu0 %v6890
  %7018 = vmatpush1.bf16.xpose.msra.mxu0 %v6889
  %7019 = vmatprep.subr.bf16.mxu0 %v6892
  %7020 = vmatpush1.bf16.xpose.msra.mxu0 %v6891
  %7021 = vmatprep.subr.bf16.mxu0 %v6894
  %7022 = vmatpush1.bf16.xpose.msra.mxu0 %v6893
  %7023 = vmatprep.mubr.bf16.mxu0 %v6584
  %7024 = vmatmul.mubr.bf16.gmra.mrb[0].mxu0 %v6583
  %v7025 = vpop.f32.mrb[0].mxu0
  %v7026 = vadd.f32 %v6654, %v7025
  %v7027 = vpop.f32.mrb[0].mxu0
  %v7028 = vadd.f32 %v6658, %v7027
  %v7029 = vpop.f32.mrb[0].mxu0
  %v7030 = vpop.f32.mrb[0].mxu0
  %7031 = vdwg.mxu0
  %7032 = vmatprep.subr.bf16.mxu0 %v6896
  %7033 = vmatpush1.bf16.xpose.msra.mxu0 %v6895
  %7034 = vmatprep.subr.bf16.mxu0 %v6898
  %7035 = vmatpush1.bf16.xpose.msra.mxu0 %v6897
  %7036 = vmatprep.subr.bf16.mxu0 %v6900
  %7037 = vmatpush1.bf16.xpose.msra.mxu0 %v6899
  %7038 = vmatprep.subr.bf16.mxu0 %v6902
  %7039 = vmatpush1.bf16.xpose.msra.mxu0 %v6901
  %7040 = vmatprep.subr.bf16.mxu0 %v6904
  %7041 = vmatpush1.bf16.xpose.msra.mxu0 %v6903
  %7042 = vmatprep.subr.bf16.mxu0 %v6906
  %7043 = vmatpush1.bf16.xpose.msra.mxu0 %v6905
  %7044 = vmatprep.subr.bf16.mxu0 %v6908
  %7045 = vmatpush1.bf16.xpose.msra.mxu0 %v6907
  %7046 = vmatprep.subr.bf16.mxu0 %v6910
  %7047 = vmatpush1.bf16.xpose.msra.mxu0 %v6909
  %7048 = vmatprep.subr.bf16.mxu0 %v6912
  %7049 = vmatpush1.bf16.xpose.msra.mxu0 %v6911
  %7050 = vmatprep.subr.bf16.mxu0 %v6914
  %7051 = vmatpush1.bf16.xpose.msra.mxu0 %v6913
  %7052 = vmatprep.subr.bf16.mxu0 %v6916
  %7053 = vmatpush1.bf16.xpose.msra.mxu0 %v6915
  %7054 = vmatprep.subr.bf16.mxu0 %v6918
  %7055 = vmatpush1.bf16.xpose.msra.mxu0 %v6917
  %7056 = vmatprep.subr.bf16.mxu0 %v6920
  %7057 = vmatpush1.bf16.xpose.msra.mxu0 %v6919
  %7058 = vmatprep.subr.bf16.mxu0 %v6922
  %7059 = vmatpush1.bf16.xpose.msra.mxu0 %v6921
  %7060 = vmatprep.subr.bf16.mxu0 %v6924
  %7061 = vmatpush1.bf16.xpose.msra.mxu0 %v6923
  %7062 = vmatprep.subr.bf16.mxu0 %v6926
  %7063 = vmatpush1.bf16.xpose.msra.mxu0 %v6925
  %7064 = vmatprep.mubr.bf16.mxu0 %v6584
  %7065 = vmatmul.mubr.bf16.gmra.mrb[0].mxu0 %v6583
  %v7066 = vpop.f32.mrb[0].mxu0
  %v7067 = vadd.f32 %v6662, %v7066
  %v7068 = vpop.f32.mrb[0].mxu0
  %v7069 = vadd.f32 %v6666, %v7068
  %v7070 = vpop.f32.mrb[0].mxu0
  %v7071 = vpop.f32.mrb[0].mxu0
  %7072 = vdwg.mxu0
  %v7073 = vld [vmem:[#allocation7] sm:$0xff]
  %v7074 = vxor.u32 %v7026, 2147483648
  %v7075 = vmul.f32 %v7074, 1.442695
  %v7076 = vpow.pop %v7075
  %v7077 = vadd.f32 %v7076, 1.0
  %v7078 = vrcp.pop %v7077
  %v7079 = vmul.f32 1.0, %v7078
  %v7080 = vxor.u32 %v7028, 2147483648
  %v7081 = vmul.f32 %v7080, 1.442695
  %v7082 = vpow.pop %v7081
  %v7083 = vadd.f32 %v7082, 1.0
  %v7084 = vrcp.pop %v7083
  %v7085 = vmul.f32 1.0, %v7084
  %v7086 = vtanh.pop %v7067
  %v7087 = vxor.u32 %v7069, 2147483648
  %v7088 = vmul.f32 %v7087, 1.442695
  %v7089 = vpow.pop %v7088
  %v7090 = vadd.f32 %v7089, 1.0
  %v7091 = vrcp.pop %v7090
  %v7092 = vmul.f32 1.0, %v7091
  %v7093 = vmul.f32 %v7085, %v7073
  %v7094 = vmul.f32 %v7079, %v7086
  %v7095 = vadd.f32 %v7093, %v7094
  %v7096 = vtanh.pop %v7095
  %v7097 = vmul.f32 %v7092, %v7096
  %7098 = vst [vmem:[#allocation6] sm:$0xff] %v7097
  %7099 = vst [vmem:[#allocation7] sm:$0xff] %v7095
  %s7100 = scalar_lea.vmem %s6, 32
  %7101 = vst [vmem:[%s7100] sm:$0xff] %v7097
  %s7102 = scalar_lea.vmem %s0, 160
  %v7103 = vld [vmem:[%s7102] sm:$0xff]
  %v7104 = vld [vmem:[%s7102 + $0x8] sm:$0xff]
  %v7105 = vld [vmem:[%s7102 + $0x10] sm:$0xff]
  %v7106 = vld [vmem:[%s7102 + $0x18] sm:$0xff]
  %v7107 = vld [vmem:[#allocation2] sm:$0xff]
  %v7108 = vpack.c.bf16 %v7107, %v7107
  %v7109 = vld [vmem:[%s1] sm:$0xf]
  %v7110 = vld [vmem:[%s1 + $0x4] sm:$0xf]
  %v7111 = vld [vmem:[%s1 + $0x8] sm:$0xf]
  %v7112 = vld [vmem:[%s1 + $0xc] sm:$0xf]
  %v7113 = vld [vmem:[%s1 + $0x10] sm:$0xf]
  %v7114 = vld [vmem:[%s1 + $0x14] sm:$0xf]
  %v7115 = vld [vmem:[%s1 + $0x18] sm:$0xf]
  %v7116 = vld [vmem:[%s1 + $0x1c] sm:$0xf]
  %v7117 = vld [vmem:[%s1 + $0x20] sm:$0xf]
  %v7118 = vld [vmem:[%s1 + $0x24] sm:$0xf]
  %v7119 = vld [vmem:[%s1 + $0x28] sm:$0xf]
  %v7120 = vld [vmem:[%s1 + $0x2c] sm:$0xf]
  %v7121 = vld [vmem:[%s1 + $0x30] sm:$0xf]
  %v7122 = vld [vmem:[%s1 + $0x34] sm:$0xf]
  %v7123 = vld [vmem:[%s1 + $0x38] sm:$0xf]
  %v7124 = vld [vmem:[%s1 + $0x3c] sm:$0xf]
  %v7125 = vld [vmem:[%s1 + $0x40] sm:$0xf]
  %v7126 = vld [vmem:[%s1 + $0x44] sm:$0xf]
  %v7127 = vld [vmem:[%s1 + $0x48] sm:$0xf]
  %v7128 = vld [vmem:[%s1 + $0x4c] sm:$0xf]
  %v7129 = vld [vmem:[%s1 + $0x50] sm:$0xf]
  %v7130 = vld [vmem:[%s1 + $0x54] sm:$0xf]
  %v7131 = vld [vmem:[%s1 + $0x58] sm:$0xf]
  %v7132 = vld [vmem:[%s1 + $0x5c] sm:$0xf]
  %v7133 = vld [vmem:[%s1 + $0x60] sm:$0xf]
  %v7134 = vld [vmem:[%s1 + $0x64] sm:$0xf]
  %v7135 = vld [vmem:[%s1 + $0x68] sm:$0xf]
  %v7136 = vld [vmem:[%s1 + $0x6c] sm:$0xf]
  %v7137 = vld [vmem:[%s1 + $0x70] sm:$0xf]
  %v7138 = vld [vmem:[%s1 + $0x74] sm:$0xf]
  %v7139 = vld [vmem:[%s1 + $0x78] sm:$0xf]
  %v7140 = vld [vmem:[%s1 + $0x7c] sm:$0xf]
  %v7141 = vld [vmem:[%s1 + $0x80] sm:$0xf]
  %v7142 = vld [vmem:[%s1 + $0x84] sm:$0xf]
  %v7143 = vld [vmem:[%s1 + $0x88] sm:$0xf]
  %v7144 = vld [vmem:[%s1 + $0x8c] sm:$0xf]
  %v7145 = vld [vmem:[%s1 + $0x90] sm:$0xf]
  %v7146 = vld [vmem:[%s1 + $0x94] sm:$0xf]
  %v7147 = vld [vmem:[%s1 + $0x98] sm:$0xf]
  %v7148 = vld [vmem:[%s1 + $0x9c] sm:$0xf]
  %v7149 = vld [vmem:[%s1 + $0xa0] sm:$0xf]
  %v7150 = vld [vmem:[%s1 + $0xa4] sm:$0xf]
  %v7151 = vld [vmem:[%s1 + $0xa8] sm:$0xf]
  %v7152 = vld [vmem:[%s1 + $0xac] sm:$0xf]
  %v7153 = vld [vmem:[%s1 + $0xb0] sm:$0xf]
  %v7154 = vld [vmem:[%s1 + $0xb4] sm:$0xf]
  %v7155 = vld [vmem:[%s1 + $0xb8] sm:$0xf]
  %v7156 = vld [vmem:[%s1 + $0xbc] sm:$0xf]
  %v7157 = vld [vmem:[%s1 + $0xc0] sm:$0xf]
  %v7158 = vld [vmem:[%s1 + $0xc4] sm:$0xf]
  %v7159 = vld [vmem:[%s1 + $0xc8] sm:$0xf]
  %v7160 = vld [vmem:[%s1 + $0xcc] sm:$0xf]
  %v7161 = vld [vmem:[%s1 + $0xd0] sm:$0xf]
  %v7162 = vld [vmem:[%s1 + $0xd4] sm:$0xf]
  %v7163 = vld [vmem:[%s1 + $0xd8] sm:$0xf]
  %v7164 = vld [vmem:[%s1 + $0xdc] sm:$0xf]
  %v7165 = vld [vmem:[%s1 + $0xe0] sm:$0xf]
  %v7166 = vld [vmem:[%s1 + $0xe4] sm:$0xf]
  %v7167 = vld [vmem:[%s1 + $0xe8] sm:$0xf]
  %v7168 = vld [vmem:[%s1 + $0xec] sm:$0xf]
  %v7169 = vld [vmem:[%s1 + $0xf0] sm:$0xf]
  %v7170 = vld [vmem:[%s1 + $0xf4] sm:$0xf]
  %v7171 = vld [vmem:[%s1 + $0xf8] sm:$0xf]
  %v7172 = vld [vmem:[%s1 + $0xfc] sm:$0xf]
  %v7237 = vunpack.c.l.b16 %v7109
  %v7238 = vunpack.c.l.b16 %v7110
  %v7239 = vunpack.c.l.b16 %v7111
  %v7240 = vunpack.c.l.b16 %v7112
  %v7241 = vunpack.c.l.b16 %v7113
  %v7242 = vunpack.c.l.b16 %v7114
  %v7243 = vunpack.c.l.b16 %v7115
  %v7244 = vunpack.c.l.b16 %v7116
  %v7245 = vunpack.c.l.b16 %v7117
  %v7246 = vunpack.c.l.b16 %v7118
  %v7247 = vunpack.c.l.b16 %v7119
  %v7248 = vunpack.c.l.b16 %v7120
  %v7249 = vunpack.c.l.b16 %v7121
  %v7250 = vunpack.c.l.b16 %v7122
  %v7251 = vunpack.c.l.b16 %v7123
  %v7252 = vunpack.c.l.b16 %v7124
  %v7253 = vunpack.c.l.b16 %v7125
  %v7254 = vunpack.c.l.b16 %v7126
  %v7255 = vunpack.c.l.b16 %v7127
  %v7256 = vunpack.c.l.b16 %v7128
  %v7257 = vunpack.c.l.b16 %v7129
  %v7258 = vunpack.c.l.b16 %v7130
  %v7259 = vunpack.c.l.b16 %v7131
  %v7260 = vunpack.c.l.b16 %v7132
  %v7261 = vunpack.c.l.b16 %v7133
  %v7262 = vunpack.c.l.b16 %v7134
  %v7263 = vunpack.c.l.b16 %v7135
  %v7264 = vunpack.c.l.b16 %v7136
  %v7265 = vunpack.c.l.b16 %v7137
  %v7266 = vunpack.c.l.b16 %v7138
  %v7267 = vunpack.c.l.b16 %v7139
  %v7268 = vunpack.c.l.b16 %v7140
  %v7269 = vunpack.c.l.b16 %v7141
  %v7270 = vunpack.c.l.b16 %v7142
  %v7271 = vunpack.c.l.b16 %v7143
  %v7272 = vunpack.c.l.b16 %v7144
  %v7273 = vunpack.c.l.b16 %v7145
  %v7274 = vunpack.c.l.b16 %v7146
  %v7275 = vunpack.c.l.b16 %v7147
  %v7276 = vunpack.c.l.b16 %v7148
  %v7277 = vunpack.c.l.b16 %v7149
  %v7278 = vunpack.c.l.b16 %v7150
  %v7279 = vunpack.c.l.b16 %v7151
  %v7280 = vunpack.c.l.b16 %v7152
  %v7281 = vunpack.c.l.b16 %v7153
  %v7282 = vunpack.c.l.b16 %v7154
  %v7283 = vunpack.c.l.b16 %v7155
  %v7284 = vunpack.c.l.b16 %v7156
  %v7285 = vunpack.c.l.b16 %v7157
  %v7286 = vunpack.c.l.b16 %v7158
  %v7287 = vunpack.c.l.b16 %v7159
  %v7288 = vunpack.c.l.b16 %v7160
  %v7289 = vunpack.c.l.b16 %v7161
  %v7290 = vunpack.c.l.b16 %v7162
  %v7291 = vunpack.c.l.b16 %v7163
  %v7292 = vunpack.c.l.b16 %v7164
  %v7293 = vunpack.c.l.b16 %v7165
  %v7294 = vunpack.c.l.b16 %v7166
  %v7295 = vunpack.c.l.b16 %v7167
  %v7296 = vunpack.c.l.b16 %v7168
  %v7297 = vunpack.c.l.b16 %v7169
  %v7298 = vunpack.c.l.b16 %v7170
  %v7299 = vunpack.c.l.b16 %v7171
  %v7300 = vunpack.c.l.b16 %v7172
  %v7301 = vpack.c.b16 %v7238, %v7237
  %v7302 = vpack.c.b16 %v7240, %v7239
  %v7303 = vpack.c.b16 %v7242, %v7241
  %v7304 = vpack.c.b16 %v7244, %v7243
  %v7305 = vpack.c.b16 %v7246, %v7245
  %v7306 = vpack.c.b16 %v7248, %v7247
  %v7307 = vpack.c.b16 %v7250, %v7249
  %v7308 = vpack.c.b16 %v7252, %v7251
  %v7309 = vpack.c.b16 %v7254, %v7253
  %v7310 = vpack.c.b16 %v7256, %v7255
  %v7311 = vpack.c.b16 %v7258, %v7257
  %v7312 = vpack.c.b16 %v7260, %v7259
  %v7313 = vpack.c.b16 %v7262, %v7261
  %v7314 = vpack.c.b16 %v7264, %v7263
  %v7315 = vpack.c.b16 %v7266, %v7265
  %v7316 = vpack.c.b16 %v7268, %v7267
  %v7317 = vpack.c.b16 %v7270, %v7269
  %v7318 = vpack.c.b16 %v7272, %v7271
  %v7319 = vpack.c.b16 %v7274, %v7273
  %v7320 = vpack.c.b16 %v7276, %v7275
  %v7321 = vpack.c.b16 %v7278, %v7277
  %v7322 = vpack.c.b16 %v7280, %v7279
  %v7323 = vpack.c.b16 %v7282, %v7281
  %v7324 = vpack.c.b16 %v7284, %v7283
  %v7325 = vpack.c.b16 %v7286, %v7285
  %v7326 = vpack.c.b16 %v7288, %v7287
  %v7327 = vpack.c.b16 %v7290, %v7289
  %v7328 = vpack.c.b16 %v7292, %v7291
  %v7329 = vpack.c.b16 %v7294, %v7293
  %v7330 = vpack.c.b16 %v7296, %v7295
  %v7331 = vpack.c.b16 %v7298, %v7297
  %v7332 = vpack.c.b16 %v7300, %v7299
  %7365 = vmatprep.subr.bf16.mxu0 0
  %7366 = vmatpush1.bf16.xpose.msra.mxu0 %v7301
  %7367 = vmatprep.subr.bf16.mxu0 0
  %7368 = vmatpush1.bf16.xpose.msra.mxu0 %v7302
  %7369 = vmatprep.subr.bf16.mxu0 0
  %7370 = vmatpush1.bf16.xpose.msra.mxu0 %v7303
  %7371 = vmatprep.subr.bf16.mxu0 0
  %7372 = vmatpush1.bf16.xpose.msra.mxu0 %v7304
  %7373 = vmatprep.subr.bf16.mxu0 0
  %7374 = vmatpush1.bf16.xpose.msra.mxu0 %v7305
  %7375 = vmatprep.subr.bf16.mxu0 0
  %7376 = vmatpush1.bf16.xpose.msra.mxu0 %v7306
  %7377 = vmatprep.subr.bf16.mxu0 0
  %7378 = vmatpush1.bf16.xpose.msra.mxu0 %v7307
  %7379 = vmatprep.subr.bf16.mxu0 0
  %7380 = vmatpush1.bf16.xpose.msra.mxu0 %v7308
  %7381 = vmatprep.subr.bf16.mxu0 0
  %7382 = vmatpush1.bf16.xpose.msra.mxu0 %v7309
  %7383 = vmatprep.subr.bf16.mxu0 0
  %7384 = vmatpush1.bf16.xpose.msra.mxu0 %v7310
  %7385 = vmatprep.subr.bf16.mxu0 0
  %7386 = vmatpush1.bf16.xpose.msra.mxu0 %v7311
  %7387 = vmatprep.subr.bf16.mxu0 0
  %7388 = vmatpush1.bf16.xpose.msra.mxu0 %v7312
  %7389 = vmatprep.subr.bf16.mxu0 0
  %7390 = vmatpush1.bf16.xpose.msra.mxu0 %v7313
  %7391 = vmatprep.subr.bf16.mxu0 0
  %7392 = vmatpush1.bf16.xpose.msra.mxu0 %v7314
  %7393 = vmatprep.subr.bf16.mxu0 0
  %7394 = vmatpush1.bf16.xpose.msra.mxu0 %v7315
  %7395 = vmatprep.subr.bf16.mxu0 0
  %7396 = vmatpush1.bf16.xpose.msra.mxu0 %v7316
  %7397 = vmatprep.mubr.bf16.mxu0 0
  %7398 = vmatmul.mubr.bf16.gmra.mrb[0].mxu0 %v7108
  %v7399 = vpop.f32.mrb[0].mxu0
  %v7400 = vadd.f32 0.0, %v7399
  %v7401 = vpop.f32.mrb[0].mxu0
  %v7402 = vadd.f32 0.0, %v7401
  %v7403 = vpop.f32.mrb[0].mxu0
  %v7404 = vpop.f32.mrb[0].mxu0
  %7405 = vdwg.mxu0
  %7406 = vmatprep.subr.bf16.mxu0 0
  %7407 = vmatpush1.bf16.xpose.msra.mxu0 %v7317
  %7408 = vmatprep.subr.bf16.mxu0 0
  %7409 = vmatpush1.bf16.xpose.msra.mxu0 %v7318
  %7410 = vmatprep.subr.bf16.mxu0 0
  %7411 = vmatpush1.bf16.xpose.msra.mxu0 %v7319
  %7412 = vmatprep.subr.bf16.mxu0 0
  %7413 = vmatpush1.bf16.xpose.msra.mxu0 %v7320
  %7414 = vmatprep.subr.bf16.mxu0 0
  %7415 = vmatpush1.bf16.xpose.msra.mxu0 %v7321
  %7416 = vmatprep.subr.bf16.mxu0 0
  %7417 = vmatpush1.bf16.xpose.msra.mxu0 %v7322
  %7418 = vmatprep.subr.bf16.mxu0 0
  %7419 = vmatpush1.bf16.xpose.msra.mxu0 %v7323
  %7420 = vmatprep.subr.bf16.mxu0 0
  %7421 = vmatpush1.bf16.xpose.msra.mxu0 %v7324
  %7422 = vmatprep.subr.bf16.mxu0 0
  %7423 = vmatpush1.bf16.xpose.msra.mxu0 %v7325
  %7424 = vmatprep.subr.bf16.mxu0 0
  %7425 = vmatpush1.bf16.xpose.msra.mxu0 %v7326
  %7426 = vmatprep.subr.bf16.mxu0 0
  %7427 = vmatpush1.bf16.xpose.msra.mxu0 %v7327
  %7428 = vmatprep.subr.bf16.mxu0 0
  %7429 = vmatpush1.bf16.xpose.msra.mxu0 %v7328
  %7430 = vmatprep.subr.bf16.mxu0 0
  %7431 = vmatpush1.bf16.xpose.msra.mxu0 %v7329
  %7432 = vmatprep.subr.bf16.mxu0 0
  %7433 = vmatpush1.bf16.xpose.msra.mxu0 %v7330
  %7434 = vmatprep.subr.bf16.mxu0 0
  %7435 = vmatpush1.bf16.xpose.msra.mxu0 %v7331
  %7436 = vmatprep.subr.bf16.mxu0 0
  %7437 = vmatpush1.bf16.xpose.msra.mxu0 %v7332
  %7438 = vmatprep.mubr.bf16.mxu0 0
  %7439 = vmatmul.mubr.bf16.gmra.mrb[0].mxu0 %v7108
  %v7440 = vpop.f32.mrb[0].mxu0
  %v7441 = vadd.f32 0.0, %v7440
  %v7442 = vpop.f32.mrb[0].mxu0
  %v7443 = vadd.f32 0.0, %v7442
  %v7444 = vpop.f32.mrb[0].mxu0
  %v7445 = vpop.f32.mrb[0].mxu0
  %7446 = vdwg.mxu0
  %v7447 = vadd.f32 %v7103, %v7400
  %v7448 = vadd.f32 %v7104, %v7402
  %v7449 = vadd.f32 %v7105, %v7441
  %v7450 = vadd.f32 %v7106, %v7443
  %v7451 = vld [vmem:[#allocation3] sm:$0xff]
  %v7452 = vxor.u32 %v7447, 2147483648
  %v7453 = vmul.f32 %v7452, 1.442695
  %v7454 = vpow.pop %v7453
  %v7455 = vadd.f32 %v7454, 1.0
  %v7456 = vrcp.pop %v7455
  %v7457 = vmul.f32 1.0, %v7456
  %v7458 = vxor.u32 %v7448, 2147483648
  %v7459 = vmul.f32 %v7458, 1.442695
  %v7460 = vpow.pop %v7459
  %v7461 = vadd.f32 %v7460, 1.0
  %v7462 = vrcp.pop %v7461
  %v7463 = vmul.f32 1.0, %v7462
  %v7464 = vtanh.pop %v7449
  %v7465 = vxor.u32 %v7450, 2147483648
  %v7466 = vmul.f32 %v7465, 1.442695
  %v7467 = vpow.pop %v7466
  %v7468 = vadd.f32 %v7467, 1.0
  %v7469 = vrcp.pop %v7468
  %v7470 = vmul.f32 1.0, %v7469
  %v7471 = vmul.f32 %v7463, %v7451
  %v7472 = vmul.f32 %v7457, %v7464
  %v7473 = vadd.f32 %v7471, %v7472
  %v7474 = vtanh.pop %v7473
  %v7475 = vmul.f32 %v7470, %v7474
  %7476 = vst [vmem:[#allocation2] sm:$0xff] %v7475
  %7477 = vst [vmem:[#allocation3] sm:$0xff] %v7473
  %v7478 = vld [vmem:[#allocation4] sm:$0xff]
  %v7479 = vpack.c.bf16 %v7475, %v7475
  %v7480 = vpack.c.bf16 %v7478, %v7478
  %v7481 = vld [vmem:[%s2] sm:$0xff]
  %v7482 = vld [vmem:[%s2 + $0x8] sm:$0xff]
  %v7483 = vld [vmem:[%s2 + $0x10] sm:$0xff]
  %v7484 = vld [vmem:[%s2 + $0x18] sm:$0xff]
  %v7485 = vld [vmem:[%s2 + $0x20] sm:$0xff]
  %v7486 = vld [vmem:[%s2 + $0x28] sm:$0xff]
  %v7487 = vld [vmem:[%s2 + $0x30] sm:$0xff]
  %v7488 = vld [vmem:[%s2 + $0x38] sm:$0xff]
  %v7489 = vld [vmem:[%s2 + $0x40] sm:$0xff]
  %v7490 = vld [vmem:[%s2 + $0x48] sm:$0xff]
  %v7491 = vld [vmem:[%s2 + $0x50] sm:$0xff]
  %v7492 = vld [vmem:[%s2 + $0x58] sm:$0xff]
  %v7493 = vld [vmem:[%s2 + $0x60] sm:$0xff]
  %v7494 = vld [vmem:[%s2 + $0x68] sm:$0xff]
  %v7495 = vld [vmem:[%s2 + $0x70] sm:$0xff]
  %v7496 = vld [vmem:[%s2 + $0x78] sm:$0xff]
  %v7497 = vld [vmem:[%s2 + $0x80] sm:$0xff]
  %v7498 = vld [vmem:[%s2 + $0x88] sm:$0xff]
  %v7499 = vld [vmem:[%s2 + $0x90] sm:$0xff]
  %v7500 = vld [vmem:[%s2 + $0x98] sm:$0xff]
  %v7501 = vld [vmem:[%s2 + $0xa0] sm:$0xff]
  %v7502 = vld [vmem:[%s2 + $0xa8] sm:$0xff]
  %v7503 = vld [vmem:[%s2 + $0xb0] sm:$0xff]
  %v7504 = vld [vmem:[%s2 + $0xb8] sm:$0xff]
  %v7505 = vld [vmem:[%s2 + $0xc0] sm:$0xff]
  %v7506 = vld [vmem:[%s2 + $0xc8] sm:$0xff]
  %v7507 = vld [vmem:[%s2 + $0xd0] sm:$0xff]
  %v7508 = vld [vmem:[%s2 + $0xd8] sm:$0xff]
  %v7509 = vld [vmem:[%s2 + $0xe0] sm:$0xff]
  %v7510 = vld [vmem:[%s2 + $0xe8] sm:$0xff]
  %v7511 = vld [vmem:[%s2 + $0xf0] sm:$0xff]
  %v7512 = vld [vmem:[%s2 + $0xf8] sm:$0xff]
  %v7513 = vld [vmem:[%s2 + $0x100] sm:$0xff]
  %v7514 = vld [vmem:[%s2 + $0x108] sm:$0xff]
  %v7515 = vld [vmem:[%s2 + $0x110] sm:$0xff]
  %v7516 = vld [vmem:[%s2 + $0x118] sm:$0xff]
  %v7517 = vld [vmem:[%s2 + $0x120] sm:$0xff]
  %v7518 = vld [vmem:[%s2 + $0x128] sm:$0xff]
  %v7519 = vld [vmem:[%s2 + $0x130] sm:$0xff]
  %v7520 = vld [vmem:[%s2 + $0x138] sm:$0xff]
  %v7521 = vld [vmem:[%s2 + $0x140] sm:$0xff]
  %v7522 = vld [vmem:[%s2 + $0x148] sm:$0xff]
  %v7523 = vld [vmem:[%s2 + $0x150] sm:$0xff]
  %v7524 = vld [vmem:[%s2 + $0x158] sm:$0xff]
  %v7525 = vld [vmem:[%s2 + $0x160] sm:$0xff]
  %v7526 = vld [vmem:[%s2 + $0x168] sm:$0xff]
  %v7527 = vld [vmem:[%s2 + $0x170] sm:$0xff]
  %v7528 = vld [vmem:[%s2 + $0x178] sm:$0xff]
  %v7529 = vld [vmem:[%s2 + $0x180] sm:$0xff]
  %v7530 = vld [vmem:[%s2 + $0x188] sm:$0xff]
  %v7531 = vld [vmem:[%s2 + $0x190] sm:$0xff]
  %v7532 = vld [vmem:[%s2 + $0x198] sm:$0xff]
  %v7533 = vld [vmem:[%s2 + $0x1a0] sm:$0xff]
  %v7534 = vld [vmem:[%s2 + $0x1a8] sm:$0xff]
  %v7535 = vld [vmem:[%s2 + $0x1b0] sm:$0xff]
  %v7536 = vld [vmem:[%s2 + $0x1b8] sm:$0xff]
  %v7537 = vld [vmem:[%s2 + $0x1c0] sm:$0xff]
  %v7538 = vld [vmem:[%s2 + $0x1c8] sm:$0xff]
  %v7539 = vld [vmem:[%s2 + $0x1d0] sm:$0xff]
  %v7540 = vld [vmem:[%s2 + $0x1d8] sm:$0xff]
  %v7541 = vld [vmem:[%s2 + $0x1e0] sm:$0xff]
  %v7542 = vld [vmem:[%s2 + $0x1e8] sm:$0xff]
  %v7543 = vld [vmem:[%s2 + $0x1f0] sm:$0xff]
  %v7544 = vld [vmem:[%s2 + $0x1f8] sm:$0xff]
  %v7545 = vld [vmem:[%s3] sm:$0xf]
  %v7547 = vlaneseq
  %v7548 = vshrl.u32 %v7547, 7
  %v7549 = vsub.s32 0, %v7548
  %v7550 = vrot.slane %v7545, %v7549
  %v7551 = vlaneseq
  %v7552 = vshrl.u32 %v7551, 7
  %v7553 = vsub.s32 1, %v7552
  %v7554 = vrot.slane %v7545, %v7553
  %v7555 = vlaneseq
  %v7556 = vshrl.u32 %v7555, 7
  %v7557 = vsub.s32 2, %v7556
  %v7558 = vrot.slane %v7545, %v7557
  %v7559 = vlaneseq
  %v7560 = vshrl.u32 %v7559, 7
  %v7561 = vsub.s32 3, %v7560
  %v7562 = vrot.slane %v7545, %v7561
  %v7631 = vunpack.c.l.b16 %v7481
  %v7632 = vunpack.c.h.b16 %v7481
  %v7633 = vunpack.c.l.b16 %v7482
  %v7634 = vunpack.c.h.b16 %v7482
  %v7635 = vunpack.c.l.b16 %v7483
  %v7636 = vunpack.c.h.b16 %v7483
  %v7637 = vunpack.c.l.b16 %v7484
  %v7638 = vunpack.c.h.b16 %v7484
  %v7639 = vunpack.c.l.b16 %v7485
  %v7640 = vunpack.c.h.b16 %v7485
  %v7641 = vunpack.c.l.b16 %v7486
  %v7642 = vunpack.c.h.b16 %v7486
  %v7643 = vunpack.c.l.b16 %v7487
  %v7644 = vunpack.c.h.b16 %v7487
  %v7645 = vunpack.c.l.b16 %v7488
  %v7646 = vunpack.c.h.b16 %v7488
  %v7647 = vunpack.c.l.b16 %v7489
  %v7648 = vunpack.c.h.b16 %v7489
  %v7649 = vunpack.c.l.b16 %v7490
  %v7650 = vunpack.c.h.b16 %v7490
  %v7651 = vunpack.c.l.b16 %v7491
  %v7652 = vunpack.c.h.b16 %v7491
  %v7653 = vunpack.c.l.b16 %v7492
  %v7654 = vunpack.c.h.b16 %v7492
  %v7655 = vunpack.c.l.b16 %v7493
  %v7656 = vunpack.c.h.b16 %v7493
  %v7657 = vunpack.c.l.b16 %v7494
  %v7658 = vunpack.c.h.b16 %v7494
  %v7659 = vunpack.c.l.b16 %v7495
  %v7660 = vunpack.c.h.b16 %v7495
  %v7661 = vunpack.c.l.b16 %v7496
  %v7662 = vunpack.c.h.b16 %v7496
  %v7663 = vunpack.c.l.b16 %v7497
  %v7664 = vunpack.c.h.b16 %v7497
  %v7665 = vunpack.c.l.b16 %v7498
  %v7666 = vunpack.c.h.b16 %v7498
  %v7667 = vunpack.c.l.b16 %v7499
  %v7668 = vunpack.c.h.b16 %v7499
  %v7669 = vunpack.c.l.b16 %v7500
  %v7670 = vunpack.c.h.b16 %v7500
  %v7671 = vunpack.c.l.b16 %v7501
  %v7672 = vunpack.c.h.b16 %v7501
  %v7673 = vunpack.c.l.b16 %v7502
  %v7674 = vunpack.c.h.b16 %v7502
  %v7675 = vunpack.c.l.b16 %v7503
  %v7676 = vunpack.c.h.b16 %v7503
  %v7677 = vunpack.c.l.b16 %v7504
  %v7678 = vunpack.c.h.b16 %v7504
  %v7679 = vunpack.c.l.b16 %v7505
  %v7680 = vunpack.c.h.b16 %v7505
  %v7681 = vunpack.c.l.b16 %v7506
  %v7682 = vunpack.c.h.b16 %v7506
  %v7683 = vunpack.c.l.b16 %v7507
  %v7684 = vunpack.c.h.b16 %v7507
  %v7685 = vunpack.c.l.b16 %v7508
  %v7686 = vunpack.c.h.b16 %v7508
  %v7687 = vunpack.c.l.b16 %v7509
  %v7688 = vunpack.c.h.b16 %v7509
  %v7689 = vunpack.c.l.b16 %v7510
  %v7690 = vunpack.c.h.b16 %v7510
  %v7691 = vunpack.c.l.b16 %v7511
  %v7692 = vunpack.c.h.b16 %v7511
  %v7693 = vunpack.c.l.b16 %v7512
  %v7694 = vunpack.c.h.b16 %v7512
  %v7695 = vunpack.c.l.b16 %v7513
  %v7696 = vunpack.c.h.b16 %v7513
  %v7697 = vunpack.c.l.b16 %v7514
  %v7698 = vunpack.c.h.b16 %v7514
  %v7699 = vunpack.c.l.b16 %v7515
  %v7700 = vunpack.c.h.b16 %v7515
  %v7701 = vunpack.c.l.b16 %v7516
  %v7702 = vunpack.c.h.b16 %v7516
  %v7703 = vunpack.c.l.b16 %v7517
  %v7704 = vunpack.c.h.b16 %v7517
  %v7705 = vunpack.c.l.b16 %v7518
  %v7706 = vunpack.c.h.b16 %v7518
  %v7707 = vunpack.c.l.b16 %v7519
  %v7708 = vunpack.c.h.b16 %v7519
  %v7709 = vunpack.c.l.b16 %v7520
  %v7710 = vunpack.c.h.b16 %v7520
  %v7711 = vunpack.c.l.b16 %v7521
  %v7712 = vunpack.c.h.b16 %v7521
  %v7713 = vunpack.c.l.b16 %v7522
  %v7714 = vunpack.c.h.b16 %v7522
  %v7715 = vunpack.c.l.b16 %v7523
  %v7716 = vunpack.c.h.b16 %v7523
  %v7717 = vunpack.c.l.b16 %v7524
  %v7718 = vunpack.c.h.b16 %v7524
  %v7719 = vunpack.c.l.b16 %v7525
  %v7720 = vunpack.c.h.b16 %v7525
  %v7721 = vunpack.c.l.b16 %v7526
  %v7722 = vunpack.c.h.b16 %v7526
  %v7723 = vunpack.c.l.b16 %v7527
  %v7724 = vunpack.c.h.b16 %v7527
  %v7725 = vunpack.c.l.b16 %v7528
  %v7726 = vunpack.c.h.b16 %v7528
  %v7727 = vunpack.c.l.b16 %v7529
  %v7728 = vunpack.c.h.b16 %v7529
  %v7729 = vunpack.c.l.b16 %v7530
  %v7730 = vunpack.c.h.b16 %v7530
  %v7731 = vunpack.c.l.b16 %v7531
  %v7732 = vunpack.c.h.b16 %v7531
  %v7733 = vunpack.c.l.b16 %v7532
  %v7734 = vunpack.c.h.b16 %v7532
  %v7735 = vunpack.c.l.b16 %v7533
  %v7736 = vunpack.c.h.b16 %v7533
  %v7737 = vunpack.c.l.b16 %v7534
  %v7738 = vunpack.c.h.b16 %v7534
  %v7739 = vunpack.c.l.b16 %v7535
  %v7740 = vunpack.c.h.b16 %v7535
  %v7741 = vunpack.c.l.b16 %v7536
  %v7742 = vunpack.c.h.b16 %v7536
  %v7743 = vunpack.c.l.b16 %v7537
  %v7744 = vunpack.c.h.b16 %v7537
  %v7745 = vunpack.c.l.b16 %v7538
  %v7746 = vunpack.c.h.b16 %v7538
  %v7747 = vunpack.c.l.b16 %v7539
  %v7748 = vunpack.c.h.b16 %v7539
  %v7749 = vunpack.c.l.b16 %v7540
  %v7750 = vunpack.c.h.b16 %v7540
  %v7751 = vunpack.c.l.b16 %v7541
  %v7752 = vunpack.c.h.b16 %v7541
  %v7753 = vunpack.c.l.b16 %v7542
  %v7754 = vunpack.c.h.b16 %v7542
  %v7755 = vunpack.c.l.b16 %v7543
  %v7756 = vunpack.c.h.b16 %v7543
  %v7757 = vunpack.c.l.b16 %v7544
  %v7758 = vunpack.c.h.b16 %v7544
  %v7759 = vpack.c.b16 %v7633, %v7631
  %v7760 = vpack.c.b16 %v7634, %v7632
  %v7761 = vpack.c.b16 %v7637, %v7635
  %v7762 = vpack.c.b16 %v7638, %v7636
  %v7763 = vpack.c.b16 %v7641, %v7639
  %v7764 = vpack.c.b16 %v7642, %v7640
  %v7765 = vpack.c.b16 %v7645, %v7643
  %v7766 = vpack.c.b16 %v7646, %v7644
  %v7767 = vpack.c.b16 %v7649, %v7647
  %v7768 = vpack.c.b16 %v7650, %v7648
  %v7769 = vpack.c.b16 %v7653, %v7651
  %v7770 = vpack.c.b16 %v7654, %v7652
  %v7771 = vpack.c.b16 %v7657, %v7655
  %v7772 = vpack.c.b16 %v7658, %v7656
  %v7773 = vpack.c.b16 %v7661, %v7659
  %v7774 = vpack.c.b16 %v7662, %v7660
  %v7775 = vpack.c.b16 %v7665, %v7663
  %v7776 = vpack.c.b16 %v7666, %v7664
  %v7777 = vpack.c.b16 %v7669, %v7667
  %v7778 = vpack.c.b16 %v7670, %v7668
  %v7779 = vpack.c.b16 %v7673, %v7671
  %v7780 = vpack.c.b16 %v7674, %v7672
  %v7781 = vpack.c.b16 %v7677, %v7675
  %v7782 = vpack.c.b16 %v7678, %v7676
  %v7783 = vpack.c.b16 %v7681, %v7679
  %v7784 = vpack.c.b16 %v7682, %v7680
  %v7785 = vpack.c.b16 %v7685, %v7683
  %v7786 = vpack.c.b16 %v7686, %v7684
  %v7787 = vpack.c.b16 %v7689, %v7687
  %v7788 = vpack.c.b16 %v7690, %v7688
  %v7789 = vpack.c.b16 %v7693, %v7691
  %v7790 = vpack.c.b16 %v7694, %v7692
  %v7791 = vpack.c.b16 %v7697, %v7695
  %v7792 = vpack.c.b16 %v7698, %v7696
  %v7793 = vpack.c.b16 %v7701, %v7699
  %v7794 = vpack.c.b16 %v7702, %v7700
  %v7795 = vpack.c.b16 %v7705, %v7703
  %v7796 = vpack.c.b16 %v7706, %v7704
  %v7797 = vpack.c.b16 %v7709, %v7707
  %v7798 = vpack.c.b16 %v7710, %v7708
  %v7799 = vpack.c.b16 %v7713, %v7711
  %v7800 = vpack.c.b16 %v7714, %v7712
  %v7801 = vpack.c.b16 %v7717, %v7715
  %v7802 = vpack.c.b16 %v7718, %v7716
  %v7803 = vpack.c.b16 %v7721, %v7719
  %v7804 = vpack.c.b16 %v7722, %v7720
  %v7805 = vpack.c.b16 %v7725, %v7723
  %v7806 = vpack.c.b16 %v7726, %v7724
  %v7807 = vpack.c.b16 %v7729, %v7727
  %v7808 = vpack.c.b16 %v7730, %v7728
  %v7809 = vpack.c.b16 %v7733, %v7731
  %v7810 = vpack.c.b16 %v7734, %v7732
  %v7811 = vpack.c.b16 %v7737, %v7735
  %v7812 = vpack.c.b16 %v7738, %v7736
  %v7813 = vpack.c.b16 %v7741, %v7739
  %v7814 = vpack.c.b16 %v7742, %v7740
  %v7815 = vpack.c.b16 %v7745, %v7743
  %v7816 = vpack.c.b16 %v7746, %v7744
  %v7817 = vpack.c.b16 %v7749, %v7747
  %v7818 = vpack.c.b16 %v7750, %v7748
  %v7819 = vpack.c.b16 %v7753, %v7751
  %v7820 = vpack.c.b16 %v7754, %v7752
  %v7821 = vpack.c.b16 %v7757, %v7755
  %v7822 = vpack.c.b16 %v7758, %v7756
  %7887 = vmatprep.subr.bf16.mxu0 %v7760
  %7888 = vmatpush1.bf16.xpose.msra.mxu0 %v7759
  %7889 = vmatprep.subr.bf16.mxu0 %v7762
  %7890 = vmatpush1.bf16.xpose.msra.mxu0 %v7761
  %7891 = vmatprep.subr.bf16.mxu0 %v7764
  %7892 = vmatpush1.bf16.xpose.msra.mxu0 %v7763
  %7893 = vmatprep.subr.bf16.mxu0 %v7766
  %7894 = vmatpush1.bf16.xpose.msra.mxu0 %v7765
  %7895 = vmatprep.subr.bf16.mxu0 %v7768
  %7896 = vmatpush1.bf16.xpose.msra.mxu0 %v7767
  %7897 = vmatprep.subr.bf16.mxu0 %v7770
  %7898 = vmatpush1.bf16.xpose.msra.mxu0 %v7769
  %7899 = vmatprep.subr.bf16.mxu0 %v7772
  %7900 = vmatpush1.bf16.xpose.msra.mxu0 %v7771
  %7901 = vmatprep.subr.bf16.mxu0 %v7774
  %7902 = vmatpush1.bf16.xpose.msra.mxu0 %v7773
  %7903 = vmatprep.subr.bf16.mxu0 %v7776
  %7904 = vmatpush1.bf16.xpose.msra.mxu0 %v7775
  %7905 = vmatprep.subr.bf16.mxu0 %v7778
  %7906 = vmatpush1.bf16.xpose.msra.mxu0 %v7777
  %7907 = vmatprep.subr.bf16.mxu0 %v7780
  %7908 = vmatpush1.bf16.xpose.msra.mxu0 %v7779
  %7909 = vmatprep.subr.bf16.mxu0 %v7782
  %7910 = vmatpush1.bf16.xpose.msra.mxu0 %v7781
  %7911 = vmatprep.subr.bf16.mxu0 %v7784
  %7912 = vmatpush1.bf16.xpose.msra.mxu0 %v7783
  %7913 = vmatprep.subr.bf16.mxu0 %v7786
  %7914 = vmatpush1.bf16.xpose.msra.mxu0 %v7785
  %7915 = vmatprep.subr.bf16.mxu0 %v7788
  %7916 = vmatpush1.bf16.xpose.msra.mxu0 %v7787
  %7917 = vmatprep.subr.bf16.mxu0 %v7790
  %7918 = vmatpush1.bf16.xpose.msra.mxu0 %v7789
  %7919 = vmatprep.mubr.bf16.mxu0 %v7480
  %7920 = vmatmul.mubr.bf16.gmra.mrb[0].mxu0 %v7479
  %v7921 = vpop.f32.mrb[0].mxu0
  %v7922 = vadd.f32 %v7550, %v7921
  %v7923 = vpop.f32.mrb[0].mxu0
  %v7924 = vadd.f32 %v7554, %v7923
  %v7925 = vpop.f32.mrb[0].mxu0
  %v7926 = vpop.f32.mrb[0].mxu0
  %7927 = vdwg.mxu0
  %7928 = vmatprep.subr.bf16.mxu0 %v7792
  %7929 = vmatpush1.bf16.xpose.msra.mxu0 %v7791
  %7930 = vmatprep.subr.bf16.mxu0 %v7794
  %7931 = vmatpush1.bf16.xpose.msra.mxu0 %v7793
  %7932 = vmatprep.subr.bf16.mxu0 %v7796
  %7933 = vmatpush1.bf16.xpose.msra.mxu0 %v7795
  %7934 = vmatprep.subr.bf16.mxu0 %v7798
  %7935 = vmatpush1.bf16.xpose.msra.mxu0 %v7797
  %7936 = vmatprep.subr.bf16.mxu0 %v7800
  %7937 = vmatpush1.bf16.xpose.msra.mxu0 %v7799
  %7938 = vmatprep.subr.bf16.mxu0 %v7802
  %7939 = vmatpush1.bf16.xpose.msra.mxu0 %v7801
  %7940 = vmatprep.subr.bf16.mxu0 %v7804
  %7941 = vmatpush1.bf16.xpose.msra.mxu0 %v7803
  %7942 = vmatprep.subr.bf16.mxu0 %v7806
  %7943 = vmatpush1.bf16.xpose.msra.mxu0 %v7805
  %7944 = vmatprep.subr.bf16.mxu0 %v7808
  %7945 = vmatpush1.bf16.xpose.msra.mxu0 %v7807
  %7946 = vmatprep.subr.bf16.mxu0 %v7810
  %7947 = vmatpush1.bf16.xpose.msra.mxu0 %v7809
  %7948 = vmatprep.subr.bf16.mxu0 %v7812
  %7949 = vmatpush1.bf16.xpose.msra.mxu0 %v7811
  %7950 = vmatprep.subr.bf16.mxu0 %v7814
  %7951 = vmatpush1.bf16.xpose.msra.mxu0 %v7813
  %7952 = vmatprep.subr.bf16.mxu0 %v7816
  %7953 = vmatpush1.bf16.xpose.msra.mxu0 %v7815
  %7954 = vmatprep.subr.bf16.mxu0 %v7818
  %7955 = vmatpush1.bf16.xpose.msra.mxu0 %v7817
  %7956 = vmatprep.subr.bf16.mxu0 %v7820
  %7957 = vmatpush1.bf16.xpose.msra.mxu0 %v7819
  %7958 = vmatprep.subr.bf16.mxu0 %v7822
  %7959 = vmatpush1.bf16.xpose.msra.mxu0 %v7821
  %7960 = vmatprep.mubr.bf16.mxu0 %v7480
  %7961 = vmatmul.mubr.bf16.gmra.mrb[0].mxu0 %v7479
  %v7962 = vpop.f32.mrb[0].mxu0
  %v7963 = vadd.f32 %v7558, %v7962
  %v7964 = vpop.f32.mrb[0].mxu0
  %v7965 = vadd.f32 %v7562, %v7964
  %v7966 = vpop.f32.mrb[0].mxu0
  %v7967 = vpop.f32.mrb[0].mxu0
  %7968 = vdwg.mxu0
  %v7969 = vld [vmem:[#allocation5] sm:$0xff]
  %v7970 = vxor.u32 %v7922, 2147483648
  %v7971 = vmul.f32 %v7970, 1.442695
  %v7972 = vpow.pop %v7971
  %v7973 = vadd.f32 %v7972, 1.0
  %v7974 = vrcp.pop %v7973
  %v7975 = vmul.f32 1.0, %v7974
  %v7976 = vxor.u32 %v7924, 2147483648
  %v7977 = vmul.f32 %v7976, 1.442695
  %v7978 = vpow.pop %v7977
  %v7979 = vadd.f32 %v7978, 1.0
  %v7980 = vrcp.pop %v7979
  %v7981 = vmul.f32 1.0, %v7980
  %v7982 = vtanh.pop %v7963
  %v7983 = vxor.u32 %v7965, 2147483648
  %v7984 = vmul.f32 %v7983, 1.442695
  %v7985 = vpow.pop %v7984
  %v7986 = vadd.f32 %v7985, 1.0
  %v7987 = vrcp.pop %v7986
  %v7988 = vmul.f32 1.0, %v7987
  %v7989 = vmul.f32 %v7981, %v7969
  %v7990 = vmul.f32 %v7975, %v7982
  %v7991 = vadd.f32 %v7989, %v7990
  %v7992 = vtanh.pop %v7991
  %v7993 = vmul.f32 %v7988, %v7992
  %7994 = vst [vmem:[#allocation4] sm:$0xff] %v7993
  %7995 = vst [vmem:[#allocation5] sm:$0xff] %v7991
  %v7996 = vld [vmem:[#allocation6] sm:$0xff]
  %v7997 = vpack.c.bf16 %v7993, %v7993
  %v7998 = vpack.c.bf16 %v7996, %v7996
  %v7999 = vld [vmem:[%s4] sm:$0xff]
  %v8000 = vld [vmem:[%s4 + $0x8] sm:$0xff]
  %v8001 = vld [vmem:[%s4 + $0x10] sm:$0xff]
  %v8002 = vld [vmem:[%s4 + $0x18] sm:$0xff]
  %v8003 = vld [vmem:[%s4 + $0x20] sm:$0xff]
  %v8004 = vld [vmem:[%s4 + $0x28] sm:$0xff]
  %v8005 = vld [vmem:[%s4 + $0x30] sm:$0xff]
  %v8006 = vld [vmem:[%s4 + $0x38] sm:$0xff]
  %v8007 = vld [vmem:[%s4 + $0x40] sm:$0xff]
  %v8008 = vld [vmem:[%s4 + $0x48] sm:$0xff]
  %v8009 = vld [vmem:[%s4 + $0x50] sm:$0xff]
  %v8010 = vld [vmem:[%s4 + $0x58] sm:$0xff]
  %v8011 = vld [vmem:[%s4 + $0x60] sm:$0xff]
  %v8012 = vld [vmem:[%s4 + $0x68] sm:$0xff]
  %v8013 = vld [vmem:[%s4 + $0x70] sm:$0xff]
  %v8014 = vld [vmem:[%s4 + $0x78] sm:$0xff]
  %v8015 = vld [vmem:[%s4 + $0x80] sm:$0xff]
  %v8016 = vld [vmem:[%s4 + $0x88] sm:$0xff]
  %v8017 = vld [vmem:[%s4 + $0x90] sm:$0xff]
  %v8018 = vld [vmem:[%s4 + $0x98] sm:$0xff]
  %v8019 = vld [vmem:[%s4 + $0xa0] sm:$0xff]
  %v8020 = vld [vmem:[%s4 + $0xa8] sm:$0xff]
  %v8021 = vld [vmem:[%s4 + $0xb0] sm:$0xff]
  %v8022 = vld [vmem:[%s4 + $0xb8] sm:$0xff]
  %v8023 = vld [vmem:[%s4 + $0xc0] sm:$0xff]
  %v8024 = vld [vmem:[%s4 + $0xc8] sm:$0xff]
  %v8025 = vld [vmem:[%s4 + $0xd0] sm:$0xff]
  %v8026 = vld [vmem:[%s4 + $0xd8] sm:$0xff]
  %v8027 = vld [vmem:[%s4 + $0xe0] sm:$0xff]
  %v8028 = vld [vmem:[%s4 + $0xe8] sm:$0xff]
  %v8029 = vld [vmem:[%s4 + $0xf0] sm:$0xff]
  %v8030 = vld [vmem:[%s4 + $0xf8] sm:$0xff]
  %v8031 = vld [vmem:[%s4 + $0x100] sm:$0xff]
  %v8032 = vld [vmem:[%s4 + $0x108] sm:$0xff]
  %v8033 = vld [vmem:[%s4 + $0x110] sm:$0xff]
  %v8034 = vld [vmem:[%s4 + $0x118] sm:$0xff]
  %v8035 = vld [vmem:[%s4 + $0x120] sm:$0xff]
  %v8036 = vld [vmem:[%s4 + $0x128] sm:$0xff]
  %v8037 = vld [vmem:[%s4 + $0x130] sm:$0xff]
  %v8038 = vld [vmem:[%s4 + $0x138] sm:$0xff]
  %v8039 = vld [vmem:[%s4 + $0x140] sm:$0xff]
  %v8040 = vld [vmem:[%s4 + $0x148] sm:$0xff]
  %v8041 = vld [vmem:[%s4 + $0x150] sm:$0xff]
  %v8042 = vld [vmem:[%s4 + $0x158] sm:$0xff]
  %v8043 = vld [vmem:[%s4 + $0x160] sm:$0xff]
  %v8044 = vld [vmem:[%s4 + $0x168] sm:$0xff]
  %v8045 = vld [vmem:[%s4 + $0x170] sm:$0xff]
  %v8046 = vld [vmem:[%s4 + $0x178] sm:$0xff]
  %v8047 = vld [vmem:[%s4 + $0x180] sm:$0xff]
  %v8048 = vld [vmem:[%s4 + $0x188] sm:$0xff]
  %v8049 = vld [vmem:[%s4 + $0x190] sm:$0xff]
  %v8050 = vld [vmem:[%s4 + $0x198] sm:$0xff]
  %v8051 = vld [vmem:[%s4 + $0x1a0] sm:$0xff]
  %v8052 = vld [vmem:[%s4 + $0x1a8] sm:$0xff]
  %v8053 = vld [vmem:[%s4 + $0x1b0] sm:$0xff]
  %v8054 = vld [vmem:[%s4 + $0x1b8] sm:$0xff]
  %v8055 = vld [vmem:[%s4 + $0x1c0] sm:$0xff]
  %v8056 = vld [vmem:[%s4 + $0x1c8] sm:$0xff]
  %v8057 = vld [vmem:[%s4 + $0x1d0] sm:$0xff]
  %v8058 = vld [vmem:[%s4 + $0x1d8] sm:$0xff]
  %v8059 = vld [vmem:[%s4 + $0x1e0] sm:$0xff]
  %v8060 = vld [vmem:[%s4 + $0x1e8] sm:$0xff]
  %v8061 = vld [vmem:[%s4 + $0x1f0] sm:$0xff]
  %v8062 = vld [vmem:[%s4 + $0x1f8] sm:$0xff]
  %v8063 = vld [vmem:[%s5] sm:$0xf]
  %v8065 = vlaneseq
  %v8066 = vshrl.u32 %v8065, 7
  %v8067 = vsub.s32 0, %v8066
  %v8068 = vrot.slane %v8063, %v8067
  %v8069 = vlaneseq
  %v8070 = vshrl.u32 %v8069, 7
  %v8071 = vsub.s32 1, %v8070
  %v8072 = vrot.slane %v8063, %v8071
  %v8073 = vlaneseq
  %v8074 = vshrl.u32 %v8073, 7
  %v8075 = vsub.s32 2, %v8074
  %v8076 = vrot.slane %v8063, %v8075
  %v8077 = vlaneseq
  %v8078 = vshrl.u32 %v8077, 7
  %v8079 = vsub.s32 3, %v8078
  %v8080 = vrot.slane %v8063, %v8079
  %v8149 = vunpack.c.l.b16 %v7999
  %v8150 = vunpack.c.h.b16 %v7999
  %v8151 = vunpack.c.l.b16 %v8000
  %v8152 = vunpack.c.h.b16 %v8000
  %v8153 = vunpack.c.l.b16 %v8001
  %v8154 = vunpack.c.h.b16 %v8001
  %v8155 = vunpack.c.l.b16 %v8002
  %v8156 = vunpack.c.h.b16 %v8002
  %v8157 = vunpack.c.l.b16 %v8003
  %v8158 = vunpack.c.h.b16 %v8003
  %v8159 = vunpack.c.l.b16 %v8004
  %v8160 = vunpack.c.h.b16 %v8004
  %v8161 = vunpack.c.l.b16 %v8005
  %v8162 = vunpack.c.h.b16 %v8005
  %v8163 = vunpack.c.l.b16 %v8006
  %v8164 = vunpack.c.h.b16 %v8006
  %v8165 = vunpack.c.l.b16 %v8007
  %v8166 = vunpack.c.h.b16 %v8007
  %v8167 = vunpack.c.l.b16 %v8008
  %v8168 = vunpack.c.h.b16 %v8008
  %v8169 = vunpack.c.l.b16 %v8009
  %v8170 = vunpack.c.h.b16 %v8009
  %v8171 = vunpack.c.l.b16 %v8010
  %v8172 = vunpack.c.h.b16 %v8010
  %v8173 = vunpack.c.l.b16 %v8011
  %v8174 = vunpack.c.h.b16 %v8011
  %v8175 = vunpack.c.l.b16 %v8012
  %v8176 = vunpack.c.h.b16 %v8012
  %v8177 = vunpack.c.l.b16 %v8013
  %v8178 = vunpack.c.h.b16 %v8013
  %v8179 = vunpack.c.l.b16 %v8014
  %v8180 = vunpack.c.h.b16 %v8014
  %v8181 = vunpack.c.l.b16 %v8015
  %v8182 = vunpack.c.h.b16 %v8015
  %v8183 = vunpack.c.l.b16 %v8016
  %v8184 = vunpack.c.h.b16 %v8016
  %v8185 = vunpack.c.l.b16 %v8017
  %v8186 = vunpack.c.h.b16 %v8017
  %v8187 = vunpack.c.l.b16 %v8018
  %v8188 = vunpack.c.h.b16 %v8018
  %v8189 = vunpack.c.l.b16 %v8019
  %v8190 = vunpack.c.h.b16 %v8019
  %v8191 = vunpack.c.l.b16 %v8020
  %v8192 = vunpack.c.h.b16 %v8020
  %v8193 = vunpack.c.l.b16 %v8021
  %v8194 = vunpack.c.h.b16 %v8021
  %v8195 = vunpack.c.l.b16 %v8022
  %v8196 = vunpack.c.h.b16 %v8022
  %v8197 = vunpack.c.l.b16 %v8023
  %v8198 = vunpack.c.h.b16 %v8023
  %v8199 = vunpack.c.l.b16 %v8024
  %v8200 = vunpack.c.h.b16 %v8024
  %v8201 = vunpack.c.l.b16 %v8025
  %v8202 = vunpack.c.h.b16 %v8025
  %v8203 = vunpack.c.l.b16 %v8026
  %v8204 = vunpack.c.h.b16 %v8026
  %v8205 = vunpack.c.l.b16 %v8027
  %v8206 = vunpack.c.h.b16 %v8027
  %v8207 = vunpack.c.l.b16 %v8028
  %v8208 = vunpack.c.h.b16 %v8028
  %v8209 = vunpack.c.l.b16 %v8029
  %v8210 = vunpack.c.h.b16 %v8029
  %v8211 = vunpack.c.l.b16 %v8030
  %v8212 = vunpack.c.h.b16 %v8030
  %v8213 = vunpack.c.l.b16 %v8031
  %v8214 = vunpack.c.h.b16 %v8031
  %v8215 = vunpack.c.l.b16 %v8032
  %v8216 = vunpack.c.h.b16 %v8032
  %v8217 = vunpack.c.l.b16 %v8033
  %v8218 = vunpack.c.h.b16 %v8033
  %v8219 = vunpack.c.l.b16 %v8034
  %v8220 = vunpack.c.h.b16 %v8034
  %v8221 = vunpack.c.l.b16 %v8035
  %v8222 = vunpack.c.h.b16 %v8035
  %v8223 = vunpack.c.l.b16 %v8036
  %v8224 = vunpack.c.h.b16 %v8036
  %v8225 = vunpack.c.l.b16 %v8037
  %v8226 = vunpack.c.h.b16 %v8037
  %v8227 = vunpack.c.l.b16 %v8038
  %v8228 = vunpack.c.h.b16 %v8038
  %v8229 = vunpack.c.l.b16 %v8039
  %v8230 = vunpack.c.h.b16 %v8039
  %v8231 = vunpack.c.l.b16 %v8040
  %v8232 = vunpack.c.h.b16 %v8040
  %v8233 = vunpack.c.l.b16 %v8041
  %v8234 = vunpack.c.h.b16 %v8041
  %v8235 = vunpack.c.l.b16 %v8042
  %v8236 = vunpack.c.h.b16 %v8042
  %v8237 = vunpack.c.l.b16 %v8043
  %v8238 = vunpack.c.h.b16 %v8043
  %v8239 = vunpack.c.l.b16 %v8044
  %v8240 = vunpack.c.h.b16 %v8044
  %v8241 = vunpack.c.l.b16 %v8045
  %v8242 = vunpack.c.h.b16 %v8045
  %v8243 = vunpack.c.l.b16 %v8046
  %v8244 = vunpack.c.h.b16 %v8046
  %v8245 = vunpack.c.l.b16 %v8047
  %v8246 = vunpack.c.h.b16 %v8047
  %v8247 = vunpack.c.l.b16 %v8048
  %v8248 = vunpack.c.h.b16 %v8048
  %v8249 = vunpack.c.l.b16 %v8049
  %v8250 = vunpack.c.h.b16 %v8049
  %v8251 = vunpack.c.l.b16 %v8050
  %v8252 = vunpack.c.h.b16 %v8050
  %v8253 = vunpack.c.l.b16 %v8051
  %v8254 = vunpack.c.h.b16 %v8051
  %v8255 = vunpack.c.l.b16 %v8052
  %v8256 = vunpack.c.h.b16 %v8052
  %v8257 = vunpack.c.l.b16 %v8053
  %v8258 = vunpack.c.h.b16 %v8053
  %v8259 = vunpack.c.l.b16 %v8054
  %v8260 = vunpack.c.h.b16 %v8054
  %v8261 = vunpack.c.l.b16 %v8055
  %v8262 = vunpack.c.h.b16 %v8055
  %v8263 = vunpack.c.l.b16 %v8056
  %v8264 = vunpack.c.h.b16 %v8056
  %v8265 = vunpack.c.l.b16 %v8057
  %v8266 = vunpack.c.h.b16 %v8057
  %v8267 = vunpack.c.l.b16 %v8058
  %v8268 = vunpack.c.h.b16 %v8058
  %v8269 = vunpack.c.l.b16 %v8059
  %v8270 = vunpack.c.h.b16 %v8059
  %v8271 = vunpack.c.l.b16 %v8060
  %v8272 = vunpack.c.h.b16 %v8060
  %v8273 = vunpack.c.l.b16 %v8061
  %v8274 = vunpack.c.h.b16 %v8061
  %v8275 = vunpack.c.l.b16 %v8062
  %v8276 = vunpack.c.h.b16 %v8062
  %v8277 = vpack.c.b16 %v8151, %v8149
  %v8278 = vpack.c.b16 %v8152, %v8150
  %v8279 = vpack.c.b16 %v8155, %v8153
  %v8280 = vpack.c.b16 %v8156, %v8154
  %v8281 = vpack.c.b16 %v8159, %v8157
  %v8282 = vpack.c.b16 %v8160, %v8158
  %v8283 = vpack.c.b16 %v8163, %v8161
  %v8284 = vpack.c.b16 %v8164, %v8162
  %v8285 = vpack.c.b16 %v8167, %v8165
  %v8286 = vpack.c.b16 %v8168, %v8166
  %v8287 = vpack.c.b16 %v8171, %v8169
  %v8288 = vpack.c.b16 %v8172, %v8170
  %v8289 = vpack.c.b16 %v8175, %v8173
  %v8290 = vpack.c.b16 %v8176, %v8174
  %v8291 = vpack.c.b16 %v8179, %v8177
  %v8292 = vpack.c.b16 %v8180, %v8178
  %v8293 = vpack.c.b16 %v8183, %v8181
  %v8294 = vpack.c.b16 %v8184, %v8182
  %v8295 = vpack.c.b16 %v8187, %v8185
  %v8296 = vpack.c.b16 %v8188, %v8186
  %v8297 = vpack.c.b16 %v8191, %v8189
  %v8298 = vpack.c.b16 %v8192, %v8190
  %v8299 = vpack.c.b16 %v8195, %v8193
  %v8300 = vpack.c.b16 %v8196, %v8194
  %v8301 = vpack.c.b16 %v8199, %v8197
  %v8302 = vpack.c.b16 %v8200, %v8198
  %v8303 = vpack.c.b16 %v8203, %v8201
  %v8304 = vpack.c.b16 %v8204, %v8202
  %v8305 = vpack.c.b16 %v8207, %v8205
  %v8306 = vpack.c.b16 %v8208, %v8206
  %v8307 = vpack.c.b16 %v8211, %v8209
  %v8308 = vpack.c.b16 %v8212, %v8210
  %v8309 = vpack.c.b16 %v8215, %v8213
  %v8310 = vpack.c.b16 %v8216, %v8214
  %v8311 = vpack.c.b16 %v8219, %v8217
  %v8312 = vpack.c.b16 %v8220, %v8218
  %v8313 = vpack.c.b16 %v8223, %v8221
  %v8314 = vpack.c.b16 %v8224, %v8222
  %v8315 = vpack.c.b16 %v8227, %v8225
  %v8316 = vpack.c.b16 %v8228, %v8226
  %v8317 = vpack.c.b16 %v8231, %v8229
  %v8318 = vpack.c.b16 %v8232, %v8230
  %v8319 = vpack.c.b16 %v8235, %v8233
  %v8320 = vpack.c.b16 %v8236, %v8234
  %v8321 = vpack.c.b16 %v8239, %v8237
  %v8322 = vpack.c.b16 %v8240, %v8238
  %v8323 = vpack.c.b16 %v8243, %v8241
  %v8324 = vpack.c.b16 %v8244, %v8242
  %v8325 = vpack.c.b16 %v8247, %v8245
  %v8326 = vpack.c.b16 %v8248, %v8246
  %v8327 = vpack.c.b16 %v8251, %v8249
  %v8328 = vpack.c.b16 %v8252, %v8250
  %v8329 = vpack.c.b16 %v8255, %v8253
  %v8330 = vpack.c.b16 %v8256, %v8254
  %v8331 = vpack.c.b16 %v8259, %v8257
  %v8332 = vpack.c.b16 %v8260, %v8258
  %v8333 = vpack.c.b16 %v8263, %v8261
  %v8334 = vpack.c.b16 %v8264, %v8262
  %v8335 = vpack.c.b16 %v8267, %v8265
  %v8336 = vpack.c.b16 %v8268, %v8266
  %v8337 = vpack.c.b16 %v8271, %v8269
  %v8338 = vpack.c.b16 %v8272, %v8270
  %v8339 = vpack.c.b16 %v8275, %v8273
  %v8340 = vpack.c.b16 %v8276, %v8274
  %8405 = vmatprep.subr.bf16.mxu0 %v8278
  %8406 = vmatpush1.bf16.xpose.msra.mxu0 %v8277
  %8407 = vmatprep.subr.bf16.mxu0 %v8280
  %8408 = vmatpush1.bf16.xpose.msra.mxu0 %v8279
  %8409 = vmatprep.subr.bf16.mxu0 %v8282
  %8410 = vmatpush1.bf16.xpose.msra.mxu0 %v8281
  %8411 = vmatprep.subr.bf16.mxu0 %v8284
  %8412 = vmatpush1.bf16.xpose.msra.mxu0 %v8283
  %8413 = vmatprep.subr.bf16.mxu0 %v8286
  %8414 = vmatpush1.bf16.xpose.msra.mxu0 %v8285
  %8415 = vmatprep.subr.bf16.mxu0 %v8288
  %8416 = vmatpush1.bf16.xpose.msra.mxu0 %v8287
  %8417 = vmatprep.subr.bf16.mxu0 %v8290
  %8418 = vmatpush1.bf16.xpose.msra.mxu0 %v8289
  %8419 = vmatprep.subr.bf16.mxu0 %v8292
  %8420 = vmatpush1.bf16.xpose.msra.mxu0 %v8291
  %8421 = vmatprep.subr.bf16.mxu0 %v8294
  %8422 = vmatpush1.bf16.xpose.msra.mxu0 %v8293
  %8423 = vmatprep.subr.bf16.mxu0 %v8296
  %8424 = vmatpush1.bf16.xpose.msra.mxu0 %v8295
  %8425 = vmatprep.subr.bf16.mxu0 %v8298
  %8426 = vmatpush1.bf16.xpose.msra.mxu0 %v8297
  %8427 = vmatprep.subr.bf16.mxu0 %v8300
  %8428 = vmatpush1.bf16.xpose.msra.mxu0 %v8299
  %8429 = vmatprep.subr.bf16.mxu0 %v8302
  %8430 = vmatpush1.bf16.xpose.msra.mxu0 %v8301
  %8431 = vmatprep.subr.bf16.mxu0 %v8304
  %8432 = vmatpush1.bf16.xpose.msra.mxu0 %v8303
  %8433 = vmatprep.subr.bf16.mxu0 %v8306
  %8434 = vmatpush1.bf16.xpose.msra.mxu0 %v8305
  %8435 = vmatprep.subr.bf16.mxu0 %v8308
  %8436 = vmatpush1.bf16.xpose.msra.mxu0 %v8307
  %8437 = vmatprep.mubr.bf16.mxu0 %v7998
  %8438 = vmatmul.mubr.bf16.gmra.mrb[0].mxu0 %v7997
  %v8439 = vpop.f32.mrb[0].mxu0
  %v8440 = vadd.f32 %v8068, %v8439
  %v8441 = vpop.f32.mrb[0].mxu0
  %v8442 = vadd.f32 %v8072, %v8441
  %v8443 = vpop.f32.mrb[0].mxu0
  %v8444 = vpop.f32.mrb[0].mxu0
  %8445 = vdwg.mxu0
  %8446 = vmatprep.subr.bf16.mxu0 %v8310
  %8447 = vmatpush1.bf16.xpose.msra.mxu0 %v8309
  %8448 = vmatprep.subr.bf16.mxu0 %v8312
  %8449 = vmatpush1.bf16.xpose.msra.mxu0 %v8311
  %8450 = vmatprep.subr.bf16.mxu0 %v8314
  %8451 = vmatpush1.bf16.xpose.msra.mxu0 %v8313
  %8452 = vmatprep.subr.bf16.mxu0 %v8316
  %8453 = vmatpush1.bf16.xpose.msra.mxu0 %v8315
  %8454 = vmatprep.subr.bf16.mxu0 %v8318
  %8455 = vmatpush1.bf16.xpose.msra.mxu0 %v8317
  %8456 = vmatprep.subr.bf16.mxu0 %v8320
  %8457 = vmatpush1.bf16.xpose.msra.mxu0 %v8319
  %8458 = vmatprep.subr.bf16.mxu0 %v8322
  %8459 = vmatpush1.bf16.xpose.msra.mxu0 %v8321
  %8460 = vmatprep.subr.bf16.mxu0 %v8324
  %8461 = vmatpush1.bf16.xpose.msra.mxu0 %v8323
  %8462 = vmatprep.subr.bf16.mxu0 %v8326
  %8463 = vmatpush1.bf16.xpose.msra.mxu0 %v8325
  %8464 = vmatprep.subr.bf16.mxu0 %v8328
  %8465 = vmatpush1.bf16.xpose.msra.mxu0 %v8327
  %8466 = vmatprep.subr.bf16.mxu0 %v8330
  %8467 = vmatpush1.bf16.xpose.msra.mxu0 %v8329
  %8468 = vmatprep.subr.bf16.mxu0 %v8332
  %8469 = vmatpush1.bf16.xpose.msra.mxu0 %v8331
  %8470 = vmatprep.subr.bf16.mxu0 %v8334
  %8471 = vmatpush1.bf16.xpose.msra.mxu0 %v8333
  %8472 = vmatprep.subr.bf16.mxu0 %v8336
  %8473 = vmatpush1.bf16.xpose.msra.mxu0 %v8335
  %8474 = vmatprep.subr.bf16.mxu0 %v8338
  %8475 = vmatpush1.bf16.xpose.msra.mxu0 %v8337
  %8476 = vmatprep.subr.bf16.mxu0 %v8340
  %8477 = vmatpush1.bf16.xpose.msra.mxu0 %v8339
  %8478 = vmatprep.mubr.bf16.mxu0 %v7998
  %8479 = vmatmul.mubr.bf16.gmra.mrb[0].mxu0 %v7997
  %v8480 = vpop.f32.mrb[0].mxu0
  %v8481 = vadd.f32 %v8076, %v8480
  %v8482 = vpop.f32.mrb[0].mxu0
  %v8483 = vadd.f32 %v8080, %v8482
  %v8484 = vpop.f32.mrb[0].mxu0
  %v8485 = vpop.f32.mrb[0].mxu0
  %8486 = vdwg.mxu0
  %v8487 = vld [vmem:[#allocation7] sm:$0xff]
  %v8488 = vxor.u32 %v8440, 2147483648
  %v8489 = vmul.f32 %v8488, 1.442695
  %v8490 = vpow.pop %v8489
  %v8491 = vadd.f32 %v8490, 1.0
  %v8492 = vrcp.pop %v8491
  %v8493 = vmul.f32 1.0, %v8492
  %v8494 = vxor.u32 %v8442, 2147483648
  %v8495 = vmul.f32 %v8494, 1.442695
  %v8496 = vpow.pop %v8495
  %v8497 = vadd.f32 %v8496, 1.0
  %v8498 = vrcp.pop %v8497
  %v8499 = vmul.f32 1.0, %v8498
  %v8500 = vtanh.pop %v8481
  %v8501 = vxor.u32 %v8483, 2147483648
  %v8502 = vmul.f32 %v8501, 1.442695
  %v8503 = vpow.pop %v8502
  %v8504 = vadd.f32 %v8503, 1.0
  %v8505 = vrcp.pop %v8504
  %v8506 = vmul.f32 1.0, %v8505
  %v8507 = vmul.f32 %v8499, %v8487
  %v8508 = vmul.f32 %v8493, %v8500
  %v8509 = vadd.f32 %v8507, %v8508
  %v8510 = vtanh.pop %v8509
  %v8511 = vmul.f32 %v8506, %v8510
  %8512 = vst [vmem:[#allocation6] sm:$0xff] %v8511
  %8513 = vst [vmem:[#allocation7] sm:$0xff] %v8509
  %s8514 = scalar_lea.vmem %s6, 40
  %8515 = vst [vmem:[%s8514] sm:$0xff] %v8511
  %s8516 = scalar_lea.vmem %s0, 192
  %v8517 = vld [vmem:[%s8516] sm:$0xff]
  %v8518 = vld [vmem:[%s8516 + $0x8] sm:$0xff]
  %v8519 = vld [vmem:[%s8516 + $0x10] sm:$0xff]
  %v8520 = vld [vmem:[%s8516 + $0x18] sm:$0xff]
  %v8521 = vld [vmem:[#allocation2] sm:$0xff]
  %v8522 = vpack.c.bf16 %v8521, %v8521
  %v8523 = vld [vmem:[%s1] sm:$0xf]
  %v8524 = vld [vmem:[%s1 + $0x4] sm:$0xf]
  %v8525 = vld [vmem:[%s1 + $0x8] sm:$0xf]
  %v8526 = vld [vmem:[%s1 + $0xc] sm:$0xf]
  %v8527 = vld [vmem:[%s1 + $0x10] sm:$0xf]
  %v8528 = vld [vmem:[%s1 + $0x14] sm:$0xf]
  %v8529 = vld [vmem:[%s1 + $0x18] sm:$0xf]
  %v8530 = vld [vmem:[%s1 + $0x1c] sm:$0xf]
  %v8531 = vld [vmem:[%s1 + $0x20] sm:$0xf]
  %v8532 = vld [vmem:[%s1 + $0x24] sm:$0xf]
  %v8533 = vld [vmem:[%s1 + $0x28] sm:$0xf]
  %v8534 = vld [vmem:[%s1 + $0x2c] sm:$0xf]
  %v8535 = vld [vmem:[%s1 + $0x30] sm:$0xf]
  %v8536 = vld [vmem:[%s1 + $0x34] sm:$0xf]
  %v8537 = vld [vmem:[%s1 + $0x38] sm:$0xf]
  %v8538 = vld [vmem:[%s1 + $0x3c] sm:$0xf]
  %v8539 = vld [vmem:[%s1 + $0x40] sm:$0xf]
  %v8540 = vld [vmem:[%s1 + $0x44] sm:$0xf]
  %v8541 = vld [vmem:[%s1 + $0x48] sm:$0xf]
  %v8542 = vld [vmem:[%s1 + $0x4c] sm:$0xf]
  %v8543 = vld [vmem:[%s1 + $0x50] sm:$0xf]
  %v8544 = vld [vmem:[%s1 + $0x54] sm:$0xf]
  %v8545 = vld [vmem:[%s1 + $0x58] sm:$0xf]
  %v8546 = vld [vmem:[%s1 + $0x5c] sm:$0xf]
  %v8547 = vld [vmem:[%s1 + $0x60] sm:$0xf]
  %v8548 = vld [vmem:[%s1 + $0x64] sm:$0xf]
  %v8549 = vld [vmem:[%s1 + $0x68] sm:$0xf]
  %v8550 = vld [vmem:[%s1 + $0x6c] sm:$0xf]
  %v8551 = vld [vmem:[%s1 + $0x70] sm:$0xf]
  %v8552 = vld [vmem:[%s1 + $0x74] sm:$0xf]
  %v8553 = vld [vmem:[%s1 + $0x78] sm:$0xf]
  %v8554 = vld [vmem:[%s1 + $0x7c] sm:$0xf]
  %v8555 = vld [vmem:[%s1 + $0x80] sm:$0xf]
  %v8556 = vld [vmem:[%s1 + $0x84] sm:$0xf]
  %v8557 = vld [vmem:[%s1 + $0x88] sm:$0xf]
  %v8558 = vld [vmem:[%s1 + $0x8c] sm:$0xf]
  %v8559 = vld [vmem:[%s1 + $0x90] sm:$0xf]
  %v8560 = vld [vmem:[%s1 + $0x94] sm:$0xf]
  %v8561 = vld [vmem:[%s1 + $0x98] sm:$0xf]
  %v8562 = vld [vmem:[%s1 + $0x9c] sm:$0xf]
  %v8563 = vld [vmem:[%s1 + $0xa0] sm:$0xf]
  %v8564 = vld [vmem:[%s1 + $0xa4] sm:$0xf]
  %v8565 = vld [vmem:[%s1 + $0xa8] sm:$0xf]
  %v8566 = vld [vmem:[%s1 + $0xac] sm:$0xf]
  %v8567 = vld [vmem:[%s1 + $0xb0] sm:$0xf]
  %v8568 = vld [vmem:[%s1 + $0xb4] sm:$0xf]
  %v8569 = vld [vmem:[%s1 + $0xb8] sm:$0xf]
  %v8570 = vld [vmem:[%s1 + $0xbc] sm:$0xf]
  %v8571 = vld [vmem:[%s1 + $0xc0] sm:$0xf]
  %v8572 = vld [vmem:[%s1 + $0xc4] sm:$0xf]
  %v8573 = vld [vmem:[%s1 + $0xc8] sm:$0xf]
  %v8574 = vld [vmem:[%s1 + $0xcc] sm:$0xf]
  %v8575 = vld [vmem:[%s1 + $0xd0] sm:$0xf]
  %v8576 = vld [vmem:[%s1 + $0xd4] sm:$0xf]
  %v8577 = vld [vmem:[%s1 + $0xd8] sm:$0xf]
  %v8578 = vld [vmem:[%s1 + $0xdc] sm:$0xf]
  %v8579 = vld [vmem:[%s1 + $0xe0] sm:$0xf]
  %v8580 = vld [vmem:[%s1 + $0xe4] sm:$0xf]
  %v8581 = vld [vmem:[%s1 + $0xe8] sm:$0xf]
  %v8582 = vld [vmem:[%s1 + $0xec] sm:$0xf]
  %v8583 = vld [vmem:[%s1 + $0xf0] sm:$0xf]
  %v8584 = vld [vmem:[%s1 + $0xf4] sm:$0xf]
  %v8585 = vld [vmem:[%s1 + $0xf8] sm:$0xf]
  %v8586 = vld [vmem:[%s1 + $0xfc] sm:$0xf]
  %v8651 = vunpack.c.l.b16 %v8523
  %v8652 = vunpack.c.l.b16 %v8524
  %v8653 = vunpack.c.l.b16 %v8525
  %v8654 = vunpack.c.l.b16 %v8526
  %v8655 = vunpack.c.l.b16 %v8527
  %v8656 = vunpack.c.l.b16 %v8528
  %v8657 = vunpack.c.l.b16 %v8529
  %v8658 = vunpack.c.l.b16 %v8530
  %v8659 = vunpack.c.l.b16 %v8531
  %v8660 = vunpack.c.l.b16 %v8532
  %v8661 = vunpack.c.l.b16 %v8533
  %v8662 = vunpack.c.l.b16 %v8534
  %v8663 = vunpack.c.l.b16 %v8535
  %v8664 = vunpack.c.l.b16 %v8536
  %v8665 = vunpack.c.l.b16 %v8537
  %v8666 = vunpack.c.l.b16 %v8538
  %v8667 = vunpack.c.l.b16 %v8539
  %v8668 = vunpack.c.l.b16 %v8540
  %v8669 = vunpack.c.l.b16 %v8541
  %v8670 = vunpack.c.l.b16 %v8542
  %v8671 = vunpack.c.l.b16 %v8543
  %v8672 = vunpack.c.l.b16 %v8544
  %v8673 = vunpack.c.l.b16 %v8545
  %v8674 = vunpack.c.l.b16 %v8546
  %v8675 = vunpack.c.l.b16 %v8547
  %v8676 = vunpack.c.l.b16 %v8548
  %v8677 = vunpack.c.l.b16 %v8549
  %v8678 = vunpack.c.l.b16 %v8550
  %v8679 = vunpack.c.l.b16 %v8551
  %v8680 = vunpack.c.l.b16 %v8552
  %v8681 = vunpack.c.l.b16 %v8553
  %v8682 = vunpack.c.l.b16 %v8554
  %v8683 = vunpack.c.l.b16 %v8555
  %v8684 = vunpack.c.l.b16 %v8556
  %v8685 = vunpack.c.l.b16 %v8557
  %v8686 = vunpack.c.l.b16 %v8558
  %v8687 = vunpack.c.l.b16 %v8559
  %v8688 = vunpack.c.l.b16 %v8560
  %v8689 = vunpack.c.l.b16 %v8561
  %v8690 = vunpack.c.l.b16 %v8562
  %v8691 = vunpack.c.l.b16 %v8563
  %v8692 = vunpack.c.l.b16 %v8564
  %v8693 = vunpack.c.l.b16 %v8565
  %v8694 = vunpack.c.l.b16 %v8566
  %v8695 = vunpack.c.l.b16 %v8567
  %v8696 = vunpack.c.l.b16 %v8568
  %v8697 = vunpack.c.l.b16 %v8569
  %v8698 = vunpack.c.l.b16 %v8570
  %v8699 = vunpack.c.l.b16 %v8571
  %v8700 = vunpack.c.l.b16 %v8572
  %v8701 = vunpack.c.l.b16 %v8573
  %v8702 = vunpack.c.l.b16 %v8574
  %v8703 = vunpack.c.l.b16 %v8575
  %v8704 = vunpack.c.l.b16 %v8576
  %v8705 = vunpack.c.l.b16 %v8577
  %v8706 = vunpack.c.l.b16 %v8578
  %v8707 = vunpack.c.l.b16 %v8579
  %v8708 = vunpack.c.l.b16 %v8580
  %v8709 = vunpack.c.l.b16 %v8581
  %v8710 = vunpack.c.l.b16 %v8582
  %v8711 = vunpack.c.l.b16 %v8583
  %v8712 = vunpack.c.l.b16 %v8584
  %v8713 = vunpack.c.l.b16 %v8585
  %v8714 = vunpack.c.l.b16 %v8586
  %v8715 = vpack.c.b16 %v8652, %v8651
  %v8716 = vpack.c.b16 %v8654, %v8653
  %v8717 = vpack.c.b16 %v8656, %v8655
  %v8718 = vpack.c.b16 %v8658, %v8657
  %v8719 = vpack.c.b16 %v8660, %v8659
  %v8720 = vpack.c.b16 %v8662, %v8661
  %v8721 = vpack.c.b16 %v8664, %v8663
  %v8722 = vpack.c.b16 %v8666, %v8665
  %v8723 = vpack.c.b16 %v8668, %v8667
  %v8724 = vpack.c.b16 %v8670, %v8669
  %v8725 = vpack.c.b16 %v8672, %v8671
  %v8726 = vpack.c.b16 %v8674, %v8673
  %v8727 = vpack.c.b16 %v8676, %v8675
  %v8728 = vpack.c.b16 %v8678, %v8677
  %v8729 = vpack.c.b16 %v8680, %v8679
  %v8730 = vpack.c.b16 %v8682, %v8681
  %v8731 = vpack.c.b16 %v8684, %v8683
  %v8732 = vpack.c.b16 %v8686, %v8685
  %v8733 = vpack.c.b16 %v8688, %v8687
  %v8734 = vpack.c.b16 %v8690, %v8689
  %v8735 = vpack.c.b16 %v8692, %v8691
  %v8736 = vpack.c.b16 %v8694, %v8693
  %v8737 = vpack.c.b16 %v8696, %v8695
  %v8738 = vpack.c.b16 %v8698, %v8697
  %v8739 = vpack.c.b16 %v8700, %v8699
  %v8740 = vpack.c.b16 %v8702, %v8701
  %v8741 = vpack.c.b16 %v8704, %v8703
  %v8742 = vpack.c.b16 %v8706, %v8705
  %v8743 = vpack.c.b16 %v8708, %v8707
  %v8744 = vpack.c.b16 %v8710, %v8709
  %v8745 = vpack.c.b16 %v8712, %v8711
  %v8746 = vpack.c.b16 %v8714, %v8713
  %8779 = vmatprep.subr.bf16.mxu0 0
  %8780 = vmatpush1.bf16.xpose.msra.mxu0 %v8715
  %8781 = vmatprep.subr.bf16.mxu0 0
  %8782 = vmatpush1.bf16.xpose.msra.mxu0 %v8716
  %8783 = vmatprep.subr.bf16.mxu0 0
  %8784 = vmatpush1.bf16.xpose.msra.mxu0 %v8717
  %8785 = vmatprep.subr.bf16.mxu0 0
  %8786 = vmatpush1.bf16.xpose.msra.mxu0 %v8718
  %8787 = vmatprep.subr.bf16.mxu0 0
  %8788 = vmatpush1.bf16.xpose.msra.mxu0 %v8719
  %8789 = vmatprep.subr.bf16.mxu0 0
  %8790 = vmatpush1.bf16.xpose.msra.mxu0 %v8720
  %8791 = vmatprep.subr.bf16.mxu0 0
  %8792 = vmatpush1.bf16.xpose.msra.mxu0 %v8721
  %8793 = vmatprep.subr.bf16.mxu0 0
  %8794 = vmatpush1.bf16.xpose.msra.mxu0 %v8722
  %8795 = vmatprep.subr.bf16.mxu0 0
  %8796 = vmatpush1.bf16.xpose.msra.mxu0 %v8723
  %8797 = vmatprep.subr.bf16.mxu0 0
  %8798 = vmatpush1.bf16.xpose.msra.mxu0 %v8724
  %8799 = vmatprep.subr.bf16.mxu0 0
  %8800 = vmatpush1.bf16.xpose.msra.mxu0 %v8725
  %8801 = vmatprep.subr.bf16.mxu0 0
  %8802 = vmatpush1.bf16.xpose.msra.mxu0 %v8726
  %8803 = vmatprep.subr.bf16.mxu0 0
  %8804 = vmatpush1.bf16.xpose.msra.mxu0 %v8727
  %8805 = vmatprep.subr.bf16.mxu0 0
  %8806 = vmatpush1.bf16.xpose.msra.mxu0 %v8728
  %8807 = vmatprep.subr.bf16.mxu0 0
  %8808 = vmatpush1.bf16.xpose.msra.mxu0 %v8729
  %8809 = vmatprep.subr.bf16.mxu0 0
  %8810 = vmatpush1.bf16.xpose.msra.mxu0 %v8730
  %8811 = vmatprep.mubr.bf16.mxu0 0
  %8812 = vmatmul.mubr.bf16.gmra.mrb[0].mxu0 %v8522
  %v8813 = vpop.f32.mrb[0].mxu0
  %v8814 = vadd.f32 0.0, %v8813
  %v8815 = vpop.f32.mrb[0].mxu0
  %v8816 = vadd.f32 0.0, %v8815
  %v8817 = vpop.f32.mrb[0].mxu0
  %v8818 = vpop.f32.mrb[0].mxu0
  %8819 = vdwg.mxu0
  %8820 = vmatprep.subr.bf16.mxu0 0
  %8821 = vmatpush1.bf16.xpose.msra.mxu0 %v8731
  %8822 = vmatprep.subr.bf16.mxu0 0
  %8823 = vmatpush1.bf16.xpose.msra.mxu0 %v8732
  %8824 = vmatprep.subr.bf16.mxu0 0
  %8825 = vmatpush1.bf16.xpose.msra.mxu0 %v8733
  %8826 = vmatprep.subr.bf16.mxu0 0
  %8827 = vmatpush1.bf16.xpose.msra.mxu0 %v8734
  %8828 = vmatprep.subr.bf16.mxu0 0
  %8829 = vmatpush1.bf16.xpose.msra.mxu0 %v8735
  %8830 = vmatprep.subr.bf16.mxu0 0
  %8831 = vmatpush1.bf16.xpose.msra.mxu0 %v8736
  %8832 = vmatprep.subr.bf16.mxu0 0
  %8833 = vmatpush1.bf16.xpose.msra.mxu0 %v8737
  %8834 = vmatprep.subr.bf16.mxu0 0
  %8835 = vmatpush1.bf16.xpose.msra.mxu0 %v8738
  %8836 = vmatprep.subr.bf16.mxu0 0
  %8837 = vmatpush1.bf16.xpose.msra.mxu0 %v8739
  %8838 = vmatprep.subr.bf16.mxu0 0
  %8839 = vmatpush1.bf16.xpose.msra.mxu0 %v8740
  %8840 = vmatprep.subr.bf16.mxu0 0
  %8841 = vmatpush1.bf16.xpose.msra.mxu0 %v8741
  %8842 = vmatprep.subr.bf16.mxu0 0
  %8843 = vmatpush1.bf16.xpose.msra.mxu0 %v8742
  %8844 = vmatprep.subr.bf16.mxu0 0
  %8845 = vmatpush1.bf16.xpose.msra.mxu0 %v8743
  %8846 = vmatprep.subr.bf16.mxu0 0
  %8847 = vmatpush1.bf16.xpose.msra.mxu0 %v8744
  %8848 = vmatprep.subr.bf16.mxu0 0
  %8849 = vmatpush1.bf16.xpose.msra.mxu0 %v8745
  %8850 = vmatprep.subr.bf16.mxu0 0
  %8851 = vmatpush1.bf16.xpose.msra.mxu0 %v8746
  %8852 = vmatprep.mubr.bf16.mxu0 0
  %8853 = vmatmul.mubr.bf16.gmra.mrb[0].mxu0 %v8522
  %v8854 = vpop.f32.mrb[0].mxu0
  %v8855 = vadd.f32 0.0, %v8854
  %v8856 = vpop.f32.mrb[0].mxu0
  %v8857 = vadd.f32 0.0, %v8856
  %v8858 = vpop.f32.mrb[0].mxu0
  %v8859 = vpop.f32.mrb[0].mxu0
  %8860 = vdwg.mxu0
  %v8861 = vadd.f32 %v8517, %v8814
  %v8862 = vadd.f32 %v8518, %v8816
  %v8863 = vadd.f32 %v8519, %v8855
  %v8864 = vadd.f32 %v8520, %v8857
  %v8865 = vld [vmem:[#allocation3] sm:$0xff]
  %v8866 = vxor.u32 %v8861, 2147483648
  %v8867 = vmul.f32 %v8866, 1.442695
  %v8868 = vpow.pop %v8867
  %v8869 = vadd.f32 %v8868, 1.0
  %v8870 = vrcp.pop %v8869
  %v8871 = vmul.f32 1.0, %v8870
  %v8872 = vxor.u32 %v8862, 2147483648
  %v8873 = vmul.f32 %v8872, 1.442695
  %v8874 = vpow.pop %v8873
  %v8875 = vadd.f32 %v8874, 1.0
  %v8876 = vrcp.pop %v8875
  %v8877 = vmul.f32 1.0, %v8876
  %v8878 = vtanh.pop %v8863
  %v8879 = vxor.u32 %v8864, 2147483648
  %v8880 = vmul.f32 %v8879, 1.442695
  %v8881 = vpow.pop %v8880
  %v8882 = vadd.f32 %v8881, 1.0
  %v8883 = vrcp.pop %v8882
  %v8884 = vmul.f32 1.0, %v8883
  %v8885 = vmul.f32 %v8877, %v8865
  %v8886 = vmul.f32 %v8871, %v8878
  %v8887 = vadd.f32 %v8885, %v8886
  %v8888 = vtanh.pop %v8887
  %v8889 = vmul.f32 %v8884, %v8888
  %8890 = vst [vmem:[#allocation2] sm:$0xff] %v8889
  %8891 = vst [vmem:[#allocation3] sm:$0xff] %v8887
  %v8892 = vld [vmem:[#allocation4] sm:$0xff]
  %v8893 = vpack.c.bf16 %v8889, %v8889
  %v8894 = vpack.c.bf16 %v8892, %v8892
  %v8895 = vld [vmem:[%s2] sm:$0xff]
  %v8896 = vld [vmem:[%s2 + $0x8] sm:$0xff]
  %v8897 = vld [vmem:[%s2 + $0x10] sm:$0xff]
  %v8898 = vld [vmem:[%s2 + $0x18] sm:$0xff]
  %v8899 = vld [vmem:[%s2 + $0x20] sm:$0xff]
  %v8900 = vld [vmem:[%s2 + $0x28] sm:$0xff]
  %v8901 = vld [vmem:[%s2 + $0x30] sm:$0xff]
  %v8902 = vld [vmem:[%s2 + $0x38] sm:$0xff]
  %v8903 = vld [vmem:[%s2 + $0x40] sm:$0xff]
  %v8904 = vld [vmem:[%s2 + $0x48] sm:$0xff]
  %v8905 = vld [vmem:[%s2 + $0x50] sm:$0xff]
  %v8906 = vld [vmem:[%s2 + $0x58] sm:$0xff]
  %v8907 = vld [vmem:[%s2 + $0x60] sm:$0xff]
  %v8908 = vld [vmem:[%s2 + $0x68] sm:$0xff]
  %v8909 = vld [vmem:[%s2 + $0x70] sm:$0xff]
  %v8910 = vld [vmem:[%s2 + $0x78] sm:$0xff]
  %v8911 = vld [vmem:[%s2 + $0x80] sm:$0xff]
  %v8912 = vld [vmem:[%s2 + $0x88] sm:$0xff]
  %v8913 = vld [vmem:[%s2 + $0x90] sm:$0xff]
  %v8914 = vld [vmem:[%s2 + $0x98] sm:$0xff]
  %v8915 = vld [vmem:[%s2 + $0xa0] sm:$0xff]
  %v8916 = vld [vmem:[%s2 + $0xa8] sm:$0xff]
  %v8917 = vld [vmem:[%s2 + $0xb0] sm:$0xff]
  %v8918 = vld [vmem:[%s2 + $0xb8] sm:$0xff]
  %v8919 = vld [vmem:[%s2 + $0xc0] sm:$0xff]
  %v8920 = vld [vmem:[%s2 + $0xc8] sm:$0xff]
  %v8921 = vld [vmem:[%s2 + $0xd0] sm:$0xff]
  %v8922 = vld [vmem:[%s2 + $0xd8] sm:$0xff]
  %v8923 = vld [vmem:[%s2 + $0xe0] sm:$0xff]
  %v8924 = vld [vmem:[%s2 + $0xe8] sm:$0xff]
  %v8925 = vld [vmem:[%s2 + $0xf0] sm:$0xff]
  %v8926 = vld [vmem:[%s2 + $0xf8] sm:$0xff]
  %v8927 = vld [vmem:[%s2 + $0x100] sm:$0xff]
  %v8928 = vld [vmem:[%s2 + $0x108] sm:$0xff]
  %v8929 = vld [vmem:[%s2 + $0x110] sm:$0xff]
  %v8930 = vld [vmem:[%s2 + $0x118] sm:$0xff]
  %v8931 = vld [vmem:[%s2 + $0x120] sm:$0xff]
  %v8932 = vld [vmem:[%s2 + $0x128] sm:$0xff]
  %v8933 = vld [vmem:[%s2 + $0x130] sm:$0xff]
  %v8934 = vld [vmem:[%s2 + $0x138] sm:$0xff]
  %v8935 = vld [vmem:[%s2 + $0x140] sm:$0xff]
  %v8936 = vld [vmem:[%s2 + $0x148] sm:$0xff]
  %v8937 = vld [vmem:[%s2 + $0x150] sm:$0xff]
  %v8938 = vld [vmem:[%s2 + $0x158] sm:$0xff]
  %v8939 = vld [vmem:[%s2 + $0x160] sm:$0xff]
  %v8940 = vld [vmem:[%s2 + $0x168] sm:$0xff]
  %v8941 = vld [vmem:[%s2 + $0x170] sm:$0xff]
  %v8942 = vld [vmem:[%s2 + $0x178] sm:$0xff]
  %v8943 = vld [vmem:[%s2 + $0x180] sm:$0xff]
  %v8944 = vld [vmem:[%s2 + $0x188] sm:$0xff]
  %v8945 = vld [vmem:[%s2 + $0x190] sm:$0xff]
  %v8946 = vld [vmem:[%s2 + $0x198] sm:$0xff]
  %v8947 = vld [vmem:[%s2 + $0x1a0] sm:$0xff]
  %v8948 = vld [vmem:[%s2 + $0x1a8] sm:$0xff]
  %v8949 = vld [vmem:[%s2 + $0x1b0] sm:$0xff]
  %v8950 = vld [vmem:[%s2 + $0x1b8] sm:$0xff]
  %v8951 = vld [vmem:[%s2 + $0x1c0] sm:$0xff]
  %v8952 = vld [vmem:[%s2 + $0x1c8] sm:$0xff]
  %v8953 = vld [vmem:[%s2 + $0x1d0] sm:$0xff]
  %v8954 = vld [vmem:[%s2 + $0x1d8] sm:$0xff]
  %v8955 = vld [vmem:[%s2 + $0x1e0] sm:$0xff]
  %v8956 = vld [vmem:[%s2 + $0x1e8] sm:$0xff]
  %v8957 = vld [vmem:[%s2 + $0x1f0] sm:$0xff]
  %v8958 = vld [vmem:[%s2 + $0x1f8] sm:$0xff]
  %v8959 = vld [vmem:[%s3] sm:$0xf]
  %v8961 = vlaneseq
  %v8962 = vshrl.u32 %v8961, 7
  %v8963 = vsub.s32 0, %v8962
  %v8964 = vrot.slane %v8959, %v8963
  %v8965 = vlaneseq
  %v8966 = vshrl.u32 %v8965, 7
  %v8967 = vsub.s32 1, %v8966
  %v8968 = vrot.slane %v8959, %v8967
  %v8969 = vlaneseq
  %v8970 = vshrl.u32 %v8969, 7
  %v8971 = vsub.s32 2, %v8970
  %v8972 = vrot.slane %v8959, %v8971
  %v8973 = vlaneseq
  %v8974 = vshrl.u32 %v8973, 7
  %v8975 = vsub.s32 3, %v8974
  %v8976 = vrot.slane %v8959, %v8975
  %v9045 = vunpack.c.l.b16 %v8895
  %v9046 = vunpack.c.h.b16 %v8895
  %v9047 = vunpack.c.l.b16 %v8896
  %v9048 = vunpack.c.h.b16 %v8896
  %v9049 = vunpack.c.l.b16 %v8897
  %v9050 = vunpack.c.h.b16 %v8897
  %v9051 = vunpack.c.l.b16 %v8898
  %v9052 = vunpack.c.h.b16 %v8898
  %v9053 = vunpack.c.l.b16 %v8899
  %v9054 = vunpack.c.h.b16 %v8899
  %v9055 = vunpack.c.l.b16 %v8900
  %v9056 = vunpack.c.h.b16 %v8900
  %v9057 = vunpack.c.l.b16 %v8901
  %v9058 = vunpack.c.h.b16 %v8901
  %v9059 = vunpack.c.l.b16 %v8902
  %v9060 = vunpack.c.h.b16 %v8902
  %v9061 = vunpack.c.l.b16 %v8903
  %v9062 = vunpack.c.h.b16 %v8903
  %v9063 = vunpack.c.l.b16 %v8904
  %v9064 = vunpack.c.h.b16 %v8904
  %v9065 = vunpack.c.l.b16 %v8905
  %v9066 = vunpack.c.h.b16 %v8905
  %v9067 = vunpack.c.l.b16 %v8906
  %v9068 = vunpack.c.h.b16 %v8906
  %v9069 = vunpack.c.l.b16 %v8907
  %v9070 = vunpack.c.h.b16 %v8907
  %v9071 = vunpack.c.l.b16 %v8908
  %v9072 = vunpack.c.h.b16 %v8908
  %v9073 = vunpack.c.l.b16 %v8909
  %v9074 = vunpack.c.h.b16 %v8909
  %v9075 = vunpack.c.l.b16 %v8910
  %v9076 = vunpack.c.h.b16 %v8910
  %v9077 = vunpack.c.l.b16 %v8911
  %v9078 = vunpack.c.h.b16 %v8911
  %v9079 = vunpack.c.l.b16 %v8912
  %v9080 = vunpack.c.h.b16 %v8912
  %v9081 = vunpack.c.l.b16 %v8913
  %v9082 = vunpack.c.h.b16 %v8913
  %v9083 = vunpack.c.l.b16 %v8914
  %v9084 = vunpack.c.h.b16 %v8914
  %v9085 = vunpack.c.l.b16 %v8915
  %v9086 = vunpack.c.h.b16 %v8915
  %v9087 = vunpack.c.l.b16 %v8916
  %v9088 = vunpack.c.h.b16 %v8916
  %v9089 = vunpack.c.l.b16 %v8917
  %v9090 = vunpack.c.h.b16 %v8917
  %v9091 = vunpack.c.l.b16 %v8918
  %v9092 = vunpack.c.h.b16 %v8918
  %v9093 = vunpack.c.l.b16 %v8919
  %v9094 = vunpack.c.h.b16 %v8919
  %v9095 = vunpack.c.l.b16 %v8920
  %v9096 = vunpack.c.h.b16 %v8920
  %v9097 = vunpack.c.l.b16 %v8921
  %v9098 = vunpack.c.h.b16 %v8921
  %v9099 = vunpack.c.l.b16 %v8922
  %v9100 = vunpack.c.h.b16 %v8922
  %v9101 = vunpack.c.l.b16 %v8923
  %v9102 = vunpack.c.h.b16 %v8923
  %v9103 = vunpack.c.l.b16 %v8924
  %v9104 = vunpack.c.h.b16 %v8924
  %v9105 = vunpack.c.l.b16 %v8925
  %v9106 = vunpack.c.h.b16 %v8925
  %v9107 = vunpack.c.l.b16 %v8926
  %v9108 = vunpack.c.h.b16 %v8926
  %v9109 = vunpack.c.l.b16 %v8927
  %v9110 = vunpack.c.h.b16 %v8927
  %v9111 = vunpack.c.l.b16 %v8928
  %v9112 = vunpack.c.h.b16 %v8928
  %v9113 = vunpack.c.l.b16 %v8929
  %v9114 = vunpack.c.h.b16 %v8929
  %v9115 = vunpack.c.l.b16 %v8930
  %v9116 = vunpack.c.h.b16 %v8930
  %v9117 = vunpack.c.l.b16 %v8931
  %v9118 = vunpack.c.h.b16 %v8931
  %v9119 = vunpack.c.l.b16 %v8932
  %v9120 = vunpack.c.h.b16 %v8932
  %v9121 = vunpack.c.l.b16 %v8933
  %v9122 = vunpack.c.h.b16 %v8933
  %v9123 = vunpack.c.l.b16 %v8934
  %v9124 = vunpack.c.h.b16 %v8934
  %v9125 = vunpack.c.l.b16 %v8935
  %v9126 = vunpack.c.h.b16 %v8935
  %v9127 = vunpack.c.l.b16 %v8936
  %v9128 = vunpack.c.h.b16 %v8936
  %v9129 = vunpack.c.l.b16 %v8937
  %v9130 = vunpack.c.h.b16 %v8937
  %v9131 = vunpack.c.l.b16 %v8938
  %v9132 = vunpack.c.h.b16 %v8938
  %v9133 = vunpack.c.l.b16 %v8939
  %v9134 = vunpack.c.h.b16 %v8939
  %v9135 = vunpack.c.l.b16 %v8940
  %v9136 = vunpack.c.h.b16 %v8940
  %v9137 = vunpack.c.l.b16 %v8941
  %v9138 = vunpack.c.h.b16 %v8941
  %v9139 = vunpack.c.l.b16 %v8942
  %v9140 = vunpack.c.h.b16 %v8942
  %v9141 = vunpack.c.l.b16 %v8943
  %v9142 = vunpack.c.h.b16 %v8943
  %v9143 = vunpack.c.l.b16 %v8944
  %v9144 = vunpack.c.h.b16 %v8944
  %v9145 = vunpack.c.l.b16 %v8945
  %v9146 = vunpack.c.h.b16 %v8945
  %v9147 = vunpack.c.l.b16 %v8946
  %v9148 = vunpack.c.h.b16 %v8946
  %v9149 = vunpack.c.l.b16 %v8947
  %v9150 = vunpack.c.h.b16 %v8947
  %v9151 = vunpack.c.l.b16 %v8948
  %v9152 = vunpack.c.h.b16 %v8948
  %v9153 = vunpack.c.l.b16 %v8949
  %v9154 = vunpack.c.h.b16 %v8949
  %v9155 = vunpack.c.l.b16 %v8950
  %v9156 = vunpack.c.h.b16 %v8950
  %v9157 = vunpack.c.l.b16 %v8951
  %v9158 = vunpack.c.h.b16 %v8951
  %v9159 = vunpack.c.l.b16 %v8952
  %v9160 = vunpack.c.h.b16 %v8952
  %v9161 = vunpack.c.l.b16 %v8953
  %v9162 = vunpack.c.h.b16 %v8953
  %v9163 = vunpack.c.l.b16 %v8954
  %v9164 = vunpack.c.h.b16 %v8954
  %v9165 = vunpack.c.l.b16 %v8955
  %v9166 = vunpack.c.h.b16 %v8955
  %v9167 = vunpack.c.l.b16 %v8956
  %v9168 = vunpack.c.h.b16 %v8956
  %v9169 = vunpack.c.l.b16 %v8957
  %v9170 = vunpack.c.h.b16 %v8957
  %v9171 = vunpack.c.l.b16 %v8958
  %v9172 = vunpack.c.h.b16 %v8958
  %v9173 = vpack.c.b16 %v9047, %v9045
  %v9174 = vpack.c.b16 %v9048, %v9046
  %v9175 = vpack.c.b16 %v9051, %v9049
  %v9176 = vpack.c.b16 %v9052, %v9050
  %v9177 = vpack.c.b16 %v9055, %v9053
  %v9178 = vpack.c.b16 %v9056, %v9054
  %v9179 = vpack.c.b16 %v9059, %v9057
  %v9180 = vpack.c.b16 %v9060, %v9058
  %v9181 = vpack.c.b16 %v9063, %v9061
  %v9182 = vpack.c.b16 %v9064, %v9062
  %v9183 = vpack.c.b16 %v9067, %v9065
  %v9184 = vpack.c.b16 %v9068, %v9066
  %v9185 = vpack.c.b16 %v9071, %v9069
  %v9186 = vpack.c.b16 %v9072, %v9070
  %v9187 = vpack.c.b16 %v9075, %v9073
  %v9188 = vpack.c.b16 %v9076, %v9074
  %v9189 = vpack.c.b16 %v9079, %v9077
  %v9190 = vpack.c.b16 %v9080, %v9078
  %v9191 = vpack.c.b16 %v9083, %v9081
  %v9192 = vpack.c.b16 %v9084, %v9082
  %v9193 = vpack.c.b16 %v9087, %v9085
  %v9194 = vpack.c.b16 %v9088, %v9086
  %v9195 = vpack.c.b16 %v9091, %v9089
  %v9196 = vpack.c.b16 %v9092, %v9090
  %v9197 = vpack.c.b16 %v9095, %v9093
  %v9198 = vpack.c.b16 %v9096, %v9094
  %v9199 = vpack.c.b16 %v9099, %v9097
  %v9200 = vpack.c.b16 %v9100, %v9098
  %v9201 = vpack.c.b16 %v9103, %v9101
  %v9202 = vpack.c.b16 %v9104, %v9102
  %v9203 = vpack.c.b16 %v9107, %v9105
  %v9204 = vpack.c.b16 %v9108, %v9106
  %v9205 = vpack.c.b16 %v9111, %v9109
  %v9206 = vpack.c.b16 %v9112, %v9110
  %v9207 = vpack.c.b16 %v9115, %v9113
  %v9208 = vpack.c.b16 %v9116, %v9114
  %v9209 = vpack.c.b16 %v9119, %v9117
  %v9210 = vpack.c.b16 %v9120, %v9118
  %v9211 = vpack.c.b16 %v9123, %v9121
  %v9212 = vpack.c.b16 %v9124, %v9122
  %v9213 = vpack.c.b16 %v9127, %v9125
  %v9214 = vpack.c.b16 %v9128, %v9126
  %v9215 = vpack.c.b16 %v9131, %v9129
  %v9216 = vpack.c.b16 %v9132, %v9130
  %v9217 = vpack.c.b16 %v9135, %v9133
  %v9218 = vpack.c.b16 %v9136, %v9134
  %v9219 = vpack.c.b16 %v9139, %v9137
  %v9220 = vpack.c.b16 %v9140, %v9138
  %v9221 = vpack.c.b16 %v9143, %v9141
  %v9222 = vpack.c.b16 %v9144, %v9142
  %v9223 = vpack.c.b16 %v9147, %v9145
  %v9224 = vpack.c.b16 %v9148, %v9146
  %v9225 = vpack.c.b16 %v9151, %v9149
  %v9226 = vpack.c.b16 %v9152, %v9150
  %v9227 = vpack.c.b16 %v9155, %v9153
  %v9228 = vpack.c.b16 %v9156, %v9154
  %v9229 = vpack.c.b16 %v9159, %v9157
  %v9230 = vpack.c.b16 %v9160, %v9158
  %v9231 = vpack.c.b16 %v9163, %v9161
  %v9232 = vpack.c.b16 %v9164, %v9162
  %v9233 = vpack.c.b16 %v9167, %v9165
  %v9234 = vpack.c.b16 %v9168, %v9166
  %v9235 = vpack.c.b16 %v9171, %v9169
  %v9236 = vpack.c.b16 %v9172, %v9170
  %9301 = vmatprep.subr.bf16.mxu0 %v9174
  %9302 = vmatpush1.bf16.xpose.msra.mxu0 %v9173
  %9303 = vmatprep.subr.bf16.mxu0 %v9176
  %9304 = vmatpush1.bf16.xpose.msra.mxu0 %v9175
  %9305 = vmatprep.subr.bf16.mxu0 %v9178
  %9306 = vmatpush1.bf16.xpose.msra.mxu0 %v9177
  %9307 = vmatprep.subr.bf16.mxu0 %v9180
  %9308 = vmatpush1.bf16.xpose.msra.mxu0 %v9179
  %9309 = vmatprep.subr.bf16.mxu0 %v9182
  %9310 = vmatpush1.bf16.xpose.msra.mxu0 %v9181
  %9311 = vmatprep.subr.bf16.mxu0 %v9184
  %9312 = vmatpush1.bf16.xpose.msra.mxu0 %v9183
  %9313 = vmatprep.subr.bf16.mxu0 %v9186
  %9314 = vmatpush1.bf16.xpose.msra.mxu0 %v9185
  %9315 = vmatprep.subr.bf16.mxu0 %v9188
  %9316 = vmatpush1.bf16.xpose.msra.mxu0 %v9187
  %9317 = vmatprep.subr.bf16.mxu0 %v9190
  %9318 = vmatpush1.bf16.xpose.msra.mxu0 %v9189
  %9319 = vmatprep.subr.bf16.mxu0 %v9192
  %9320 = vmatpush1.bf16.xpose.msra.mxu0 %v9191
  %9321 = vmatprep.subr.bf16.mxu0 %v9194
  %9322 = vmatpush1.bf16.xpose.msra.mxu0 %v9193
  %9323 = vmatprep.subr.bf16.mxu0 %v9196
  %9324 = vmatpush1.bf16.xpose.msra.mxu0 %v9195
  %9325 = vmatprep.subr.bf16.mxu0 %v9198
  %9326 = vmatpush1.bf16.xpose.msra.mxu0 %v9197
  %9327 = vmatprep.subr.bf16.mxu0 %v9200
  %9328 = vmatpush1.bf16.xpose.msra.mxu0 %v9199
  %9329 = vmatprep.subr.bf16.mxu0 %v9202
  %9330 = vmatpush1.bf16.xpose.msra.mxu0 %v9201
  %9331 = vmatprep.subr.bf16.mxu0 %v9204
  %9332 = vmatpush1.bf16.xpose.msra.mxu0 %v9203
  %9333 = vmatprep.mubr.bf16.mxu0 %v8894
  %9334 = vmatmul.mubr.bf16.gmra.mrb[0].mxu0 %v8893
  %v9335 = vpop.f32.mrb[0].mxu0
  %v9336 = vadd.f32 %v8964, %v9335
  %v9337 = vpop.f32.mrb[0].mxu0
  %v9338 = vadd.f32 %v8968, %v9337
  %v9339 = vpop.f32.mrb[0].mxu0
  %v9340 = vpop.f32.mrb[0].mxu0
  %9341 = vdwg.mxu0
  %9342 = vmatprep.subr.bf16.mxu0 %v9206
  %9343 = vmatpush1.bf16.xpose.msra.mxu0 %v9205
  %9344 = vmatprep.subr.bf16.mxu0 %v9208
  %9345 = vmatpush1.bf16.xpose.msra.mxu0 %v9207
  %9346 = vmatprep.subr.bf16.mxu0 %v9210
  %9347 = vmatpush1.bf16.xpose.msra.mxu0 %v9209
  %9348 = vmatprep.subr.bf16.mxu0 %v9212
  %9349 = vmatpush1.bf16.xpose.msra.mxu0 %v9211
  %9350 = vmatprep.subr.bf16.mxu0 %v9214
  %9351 = vmatpush1.bf16.xpose.msra.mxu0 %v9213
  %9352 = vmatprep.subr.bf16.mxu0 %v9216
  %9353 = vmatpush1.bf16.xpose.msra.mxu0 %v9215
  %9354 = vmatprep.subr.bf16.mxu0 %v9218
  %9355 = vmatpush1.bf16.xpose.msra.mxu0 %v9217
  %9356 = vmatprep.subr.bf16.mxu0 %v9220
  %9357 = vmatpush1.bf16.xpose.msra.mxu0 %v9219
  %9358 = vmatprep.subr.bf16.mxu0 %v9222
  %9359 = vmatpush1.bf16.xpose.msra.mxu0 %v9221
  %9360 = vmatprep.subr.bf16.mxu0 %v9224
  %9361 = vmatpush1.bf16.xpose.msra.mxu0 %v9223
  %9362 = vmatprep.subr.bf16.mxu0 %v9226
  %9363 = vmatpush1.bf16.xpose.msra.mxu0 %v9225
  %9364 = vmatprep.subr.bf16.mxu0 %v9228
  %9365 = vmatpush1.bf16.xpose.msra.mxu0 %v9227
  %9366 = vmatprep.subr.bf16.mxu0 %v9230
  %9367 = vmatpush1.bf16.xpose.msra.mxu0 %v9229
  %9368 = vmatprep.subr.bf16.mxu0 %v9232
  %9369 = vmatpush1.bf16.xpose.msra.mxu0 %v9231
  %9370 = vmatprep.subr.bf16.mxu0 %v9234
  %9371 = vmatpush1.bf16.xpose.msra.mxu0 %v9233
  %9372 = vmatprep.subr.bf16.mxu0 %v9236
  %9373 = vmatpush1.bf16.xpose.msra.mxu0 %v9235
  %9374 = vmatprep.mubr.bf16.mxu0 %v8894
  %9375 = vmatmul.mubr.bf16.gmra.mrb[0].mxu0 %v8893
  %v9376 = vpop.f32.mrb[0].mxu0
  %v9377 = vadd.f32 %v8972, %v9376
  %v9378 = vpop.f32.mrb[0].mxu0
  %v9379 = vadd.f32 %v8976, %v9378
  %v9380 = vpop.f32.mrb[0].mxu0
  %v9381 = vpop.f32.mrb[0].mxu0
  %9382 = vdwg.mxu0
  %v9383 = vld [vmem:[#allocation5] sm:$0xff]
  %v9384 = vxor.u32 %v9336, 2147483648
  %v9385 = vmul.f32 %v9384, 1.442695
  %v9386 = vpow.pop %v9385
  %v9387 = vadd.f32 %v9386, 1.0
  %v9388 = vrcp.pop %v9387
  %v9389 = vmul.f32 1.0, %v9388
  %v9390 = vxor.u32 %v9338, 2147483648
  %v9391 = vmul.f32 %v9390, 1.442695
  %v9392 = vpow.pop %v9391
  %v9393 = vadd.f32 %v9392, 1.0
  %v9394 = vrcp.pop %v9393
  %v9395 = vmul.f32 1.0, %v9394
  %v9396 = vtanh.pop %v9377
  %v9397 = vxor.u32 %v9379, 2147483648
  %v9398 = vmul.f32 %v9397, 1.442695
  %v9399 = vpow.pop %v9398
  %v9400 = vadd.f32 %v9399, 1.0
  %v9401 = vrcp.pop %v9400
  %v9402 = vmul.f32 1.0, %v9401
  %v9403 = vmul.f32 %v9395, %v9383
  %v9404 = vmul.f32 %v9389, %v9396
  %v9405 = vadd.f32 %v9403, %v9404
  %v9406 = vtanh.pop %v9405
  %v9407 = vmul.f32 %v9402, %v9406
  %9408 = vst [vmem:[#allocation4] sm:$0xff] %v9407
  %9409 = vst [vmem:[#allocation5] sm:$0xff] %v9405
  %v9410 = vld [vmem:[#allocation6] sm:$0xff]
  %v9411 = vpack.c.bf16 %v9407, %v9407
  %v9412 = vpack.c.bf16 %v9410, %v9410
  %v9413 = vld [vmem:[%s4] sm:$0xff]
  %v9414 = vld [vmem:[%s4 + $0x8] sm:$0xff]
  %v9415 = vld [vmem:[%s4 + $0x10] sm:$0xff]
  %v9416 = vld [vmem:[%s4 + $0x18] sm:$0xff]
  %v9417 = vld [vmem:[%s4 + $0x20] sm:$0xff]
  %v9418 = vld [vmem:[%s4 + $0x28] sm:$0xff]
  %v9419 = vld [vmem:[%s4 + $0x30] sm:$0xff]
  %v9420 = vld [vmem:[%s4 + $0x38] sm:$0xff]
  %v9421 = vld [vmem:[%s4 + $0x40] sm:$0xff]
  %v9422 = vld [vmem:[%s4 + $0x48] sm:$0xff]
  %v9423 = vld [vmem:[%s4 + $0x50] sm:$0xff]
  %v9424 = vld [vmem:[%s4 + $0x58] sm:$0xff]
  %v9425 = vld [vmem:[%s4 + $0x60] sm:$0xff]
  %v9426 = vld [vmem:[%s4 + $0x68] sm:$0xff]
  %v9427 = vld [vmem:[%s4 + $0x70] sm:$0xff]
  %v9428 = vld [vmem:[%s4 + $0x78] sm:$0xff]
  %v9429 = vld [vmem:[%s4 + $0x80] sm:$0xff]
  %v9430 = vld [vmem:[%s4 + $0x88] sm:$0xff]
  %v9431 = vld [vmem:[%s4 + $0x90] sm:$0xff]
  %v9432 = vld [vmem:[%s4 + $0x98] sm:$0xff]
  %v9433 = vld [vmem:[%s4 + $0xa0] sm:$0xff]
  %v9434 = vld [vmem:[%s4 + $0xa8] sm:$0xff]
  %v9435 = vld [vmem:[%s4 + $0xb0] sm:$0xff]
  %v9436 = vld [vmem:[%s4 + $0xb8] sm:$0xff]
  %v9437 = vld [vmem:[%s4 + $0xc0] sm:$0xff]
  %v9438 = vld [vmem:[%s4 + $0xc8] sm:$0xff]
  %v9439 = vld [vmem:[%s4 + $0xd0] sm:$0xff]
  %v9440 = vld [vmem:[%s4 + $0xd8] sm:$0xff]
  %v9441 = vld [vmem:[%s4 + $0xe0] sm:$0xff]
  %v9442 = vld [vmem:[%s4 + $0xe8] sm:$0xff]
  %v9443 = vld [vmem:[%s4 + $0xf0] sm:$0xff]
  %v9444 = vld [vmem:[%s4 + $0xf8] sm:$0xff]
  %v9445 = vld [vmem:[%s4 + $0x100] sm:$0xff]
  %v9446 = vld [vmem:[%s4 + $0x108] sm:$0xff]
  %v9447 = vld [vmem:[%s4 + $0x110] sm:$0xff]
  %v9448 = vld [vmem:[%s4 + $0x118] sm:$0xff]
  %v9449 = vld [vmem:[%s4 + $0x120] sm:$0xff]
  %v9450 = vld [vmem:[%s4 + $0x128] sm:$0xff]
  %v9451 = vld [vmem:[%s4 + $0x130] sm:$0xff]
  %v9452 = vld [vmem:[%s4 + $0x138] sm:$0xff]
  %v9453 = vld [vmem:[%s4 + $0x140] sm:$0xff]
  %v9454 = vld [vmem:[%s4 + $0x148] sm:$0xff]
  %v9455 = vld [vmem:[%s4 + $0x150] sm:$0xff]
  %v9456 = vld [vmem:[%s4 + $0x158] sm:$0xff]
  %v9457 = vld [vmem:[%s4 + $0x160] sm:$0xff]
  %v9458 = vld [vmem:[%s4 + $0x168] sm:$0xff]
  %v9459 = vld [vmem:[%s4 + $0x170] sm:$0xff]
  %v9460 = vld [vmem:[%s4 + $0x178] sm:$0xff]
  %v9461 = vld [vmem:[%s4 + $0x180] sm:$0xff]
  %v9462 = vld [vmem:[%s4 + $0x188] sm:$0xff]
  %v9463 = vld [vmem:[%s4 + $0x190] sm:$0xff]
  %v9464 = vld [vmem:[%s4 + $0x198] sm:$0xff]
  %v9465 = vld [vmem:[%s4 + $0x1a0] sm:$0xff]
  %v9466 = vld [vmem:[%s4 + $0x1a8] sm:$0xff]
  %v9467 = vld [vmem:[%s4 + $0x1b0] sm:$0xff]
  %v9468 = vld [vmem:[%s4 + $0x1b8] sm:$0xff]
  %v9469 = vld [vmem:[%s4 + $0x1c0] sm:$0xff]
  %v9470 = vld [vmem:[%s4 + $0x1c8] sm:$0xff]
  %v9471 = vld [vmem:[%s4 + $0x1d0] sm:$0xff]
  %v9472 = vld [vmem:[%s4 + $0x1d8] sm:$0xff]
  %v9473 = vld [vmem:[%s4 + $0x1e0] sm:$0xff]
  %v9474 = vld [vmem:[%s4 + $0x1e8] sm:$0xff]
  %v9475 = vld [vmem:[%s4 + $0x1f0] sm:$0xff]
  %v9476 = vld [vmem:[%s4 + $0x1f8] sm:$0xff]
  %v9477 = vld [vmem:[%s5] sm:$0xf]
  %v9479 = vlaneseq
  %v9480 = vshrl.u32 %v9479, 7
  %v9481 = vsub.s32 0, %v9480
  %v9482 = vrot.slane %v9477, %v9481
  %v9483 = vlaneseq
  %v9484 = vshrl.u32 %v9483, 7
  %v9485 = vsub.s32 1, %v9484
  %v9486 = vrot.slane %v9477, %v9485
  %v9487 = vlaneseq
  %v9488 = vshrl.u32 %v9487, 7
  %v9489 = vsub.s32 2, %v9488
  %v9490 = vrot.slane %v9477, %v9489
  %v9491 = vlaneseq
  %v9492 = vshrl.u32 %v9491, 7
  %v9493 = vsub.s32 3, %v9492
  %v9494 = vrot.slane %v9477, %v9493
  %v9563 = vunpack.c.l.b16 %v9413
  %v9564 = vunpack.c.h.b16 %v9413
  %v9565 = vunpack.c.l.b16 %v9414
  %v9566 = vunpack.c.h.b16 %v9414
  %v9567 = vunpack.c.l.b16 %v9415
  %v9568 = vunpack.c.h.b16 %v9415
  %v9569 = vunpack.c.l.b16 %v9416
  %v9570 = vunpack.c.h.b16 %v9416
  %v9571 = vunpack.c.l.b16 %v9417
  %v9572 = vunpack.c.h.b16 %v9417
  %v9573 = vunpack.c.l.b16 %v9418
  %v9574 = vunpack.c.h.b16 %v9418
  %v9575 = vunpack.c.l.b16 %v9419
  %v9576 = vunpack.c.h.b16 %v9419
  %v9577 = vunpack.c.l.b16 %v9420
  %v9578 = vunpack.c.h.b16 %v9420
  %v9579 = vunpack.c.l.b16 %v9421
  %v9580 = vunpack.c.h.b16 %v9421
  %v9581 = vunpack.c.l.b16 %v9422
  %v9582 = vunpack.c.h.b16 %v9422
  %v9583 = vunpack.c.l.b16 %v9423
  %v9584 = vunpack.c.h.b16 %v9423
  %v9585 = vunpack.c.l.b16 %v9424
  %v9586 = vunpack.c.h.b16 %v9424
  %v9587 = vunpack.c.l.b16 %v9425
  %v9588 = vunpack.c.h.b16 %v9425
  %v9589 = vunpack.c.l.b16 %v9426
  %v9590 = vunpack.c.h.b16 %v9426
  %v9591 = vunpack.c.l.b16 %v9427
  %v9592 = vunpack.c.h.b16 %v9427
  %v9593 = vunpack.c.l.b16 %v9428
  %v9594 = vunpack.c.h.b16 %v9428
  %v9595 = vunpack.c.l.b16 %v9429
  %v9596 = vunpack.c.h.b16 %v9429
  %v9597 = vunpack.c.l.b16 %v9430
  %v9598 = vunpack.c.h.b16 %v9430
  %v9599 = vunpack.c.l.b16 %v9431
  %v9600 = vunpack.c.h.b16 %v9431
  %v9601 = vunpack.c.l.b16 %v9432
  %v9602 = vunpack.c.h.b16 %v9432
  %v9603 = vunpack.c.l.b16 %v9433
  %v9604 = vunpack.c.h.b16 %v9433
  %v9605 = vunpack.c.l.b16 %v9434
  %v9606 = vunpack.c.h.b16 %v9434
  %v9607 = vunpack.c.l.b16 %v9435
  %v9608 = vunpack.c.h.b16 %v9435
  %v9609 = vunpack.c.l.b16 %v9436
  %v9610 = vunpack.c.h.b16 %v9436
  %v9611 = vunpack.c.l.b16 %v9437
  %v9612 = vunpack.c.h.b16 %v9437
  %v9613 = vunpack.c.l.b16 %v9438
  %v9614 = vunpack.c.h.b16 %v9438
  %v9615 = vunpack.c.l.b16 %v9439
  %v9616 = vunpack.c.h.b16 %v9439
  %v9617 = vunpack.c.l.b16 %v9440
  %v9618 = vunpack.c.h.b16 %v9440
  %v9619 = vunpack.c.l.b16 %v9441
  %v9620 = vunpack.c.h.b16 %v9441
  %v9621 = vunpack.c.l.b16 %v9442
  %v9622 = vunpack.c.h.b16 %v9442
  %v9623 = vunpack.c.l.b16 %v9443
  %v9624 = vunpack.c.h.b16 %v9443
  %v9625 = vunpack.c.l.b16 %v9444
  %v9626 = vunpack.c.h.b16 %v9444
  %v9627 = vunpack.c.l.b16 %v9445
  %v9628 = vunpack.c.h.b16 %v9445
  %v9629 = vunpack.c.l.b16 %v9446
  %v9630 = vunpack.c.h.b16 %v9446
  %v9631 = vunpack.c.l.b16 %v9447
  %v9632 = vunpack.c.h.b16 %v9447
  %v9633 = vunpack.c.l.b16 %v9448
  %v9634 = vunpack.c.h.b16 %v9448
  %v9635 = vunpack.c.l.b16 %v9449
  %v9636 = vunpack.c.h.b16 %v9449
  %v9637 = vunpack.c.l.b16 %v9450
  %v9638 = vunpack.c.h.b16 %v9450
  %v9639 = vunpack.c.l.b16 %v9451
  %v9640 = vunpack.c.h.b16 %v9451
  %v9641 = vunpack.c.l.b16 %v9452
  %v9642 = vunpack.c.h.b16 %v9452
  %v9643 = vunpack.c.l.b16 %v9453
  %v9644 = vunpack.c.h.b16 %v9453
  %v9645 = vunpack.c.l.b16 %v9454
  %v9646 = vunpack.c.h.b16 %v9454
  %v9647 = vunpack.c.l.b16 %v9455
  %v9648 = vunpack.c.h.b16 %v9455
  %v9649 = vunpack.c.l.b16 %v9456
  %v9650 = vunpack.c.h.b16 %v9456
  %v9651 = vunpack.c.l.b16 %v9457
  %v9652 = vunpack.c.h.b16 %v9457
  %v9653 = vunpack.c.l.b16 %v9458
  %v9654 = vunpack.c.h.b16 %v9458
  %v9655 = vunpack.c.l.b16 %v9459
  %v9656 = vunpack.c.h.b16 %v9459
  %v9657 = vunpack.c.l.b16 %v9460
  %v9658 = vunpack.c.h.b16 %v9460
  %v9659 = vunpack.c.l.b16 %v9461
  %v9660 = vunpack.c.h.b16 %v9461
  %v9661 = vunpack.c.l.b16 %v9462
  %v9662 = vunpack.c.h.b16 %v9462
  %v9663 = vunpack.c.l.b16 %v9463
  %v9664 = vunpack.c.h.b16 %v9463
  %v9665 = vunpack.c.l.b16 %v9464
  %v9666 = vunpack.c.h.b16 %v9464
  %v9667 = vunpack.c.l.b16 %v9465
  %v9668 = vunpack.c.h.b16 %v9465
  %v9669 = vunpack.c.l.b16 %v9466
  %v9670 = vunpack.c.h.b16 %v9466
  %v9671 = vunpack.c.l.b16 %v9467
  %v9672 = vunpack.c.h.b16 %v9467
  %v9673 = vunpack.c.l.b16 %v9468
  %v9674 = vunpack.c.h.b16 %v9468
  %v9675 = vunpack.c.l.b16 %v9469
  %v9676 = vunpack.c.h.b16 %v9469
  %v9677 = vunpack.c.l.b16 %v9470
  %v9678 = vunpack.c.h.b16 %v9470
  %v9679 = vunpack.c.l.b16 %v9471
  %v9680 = vunpack.c.h.b16 %v9471
  %v9681 = vunpack.c.l.b16 %v9472
  %v9682 = vunpack.c.h.b16 %v9472
  %v9683 = vunpack.c.l.b16 %v9473
  %v9684 = vunpack.c.h.b16 %v9473
  %v9685 = vunpack.c.l.b16 %v9474
  %v9686 = vunpack.c.h.b16 %v9474
  %v9687 = vunpack.c.l.b16 %v9475
  %v9688 = vunpack.c.h.b16 %v9475
  %v9689 = vunpack.c.l.b16 %v9476
  %v9690 = vunpack.c.h.b16 %v9476
  %v9691 = vpack.c.b16 %v9565, %v9563
  %v9692 = vpack.c.b16 %v9566, %v9564
  %v9693 = vpack.c.b16 %v9569, %v9567
  %v9694 = vpack.c.b16 %v9570, %v9568
  %v9695 = vpack.c.b16 %v9573, %v9571
  %v9696 = vpack.c.b16 %v9574, %v9572
  %v9697 = vpack.c.b16 %v9577, %v9575
  %v9698 = vpack.c.b16 %v9578, %v9576
  %v9699 = vpack.c.b16 %v9581, %v9579
  %v9700 = vpack.c.b16 %v9582, %v9580
  %v9701 = vpack.c.b16 %v9585, %v9583
  %v9702 = vpack.c.b16 %v9586, %v9584
  %v9703 = vpack.c.b16 %v9589, %v9587
  %v9704 = vpack.c.b16 %v9590, %v9588
  %v9705 = vpack.c.b16 %v9593, %v9591
  %v9706 = vpack.c.b16 %v9594, %v9592
  %v9707 = vpack.c.b16 %v9597, %v9595
  %v9708 = vpack.c.b16 %v9598, %v9596
  %v9709 = vpack.c.b16 %v9601, %v9599
  %v9710 = vpack.c.b16 %v9602, %v9600
  %v9711 = vpack.c.b16 %v9605, %v9603
  %v9712 = vpack.c.b16 %v9606, %v9604
  %v9713 = vpack.c.b16 %v9609, %v9607
  %v9714 = vpack.c.b16 %v9610, %v9608
  %v9715 = vpack.c.b16 %v9613, %v9611
  %v9716 = vpack.c.b16 %v9614, %v9612
  %v9717 = vpack.c.b16 %v9617, %v9615
  %v9718 = vpack.c.b16 %v9618, %v9616
  %v9719 = vpack.c.b16 %v9621, %v9619
  %v9720 = vpack.c.b16 %v9622, %v9620
  %v9721 = vpack.c.b16 %v9625, %v9623
  %v9722 = vpack.c.b16 %v9626, %v9624
  %v9723 = vpack.c.b16 %v9629, %v9627
  %v9724 = vpack.c.b16 %v9630, %v9628
  %v9725 = vpack.c.b16 %v9633, %v9631
  %v9726 = vpack.c.b16 %v9634, %v9632
  %v9727 = vpack.c.b16 %v9637, %v9635
  %v9728 = vpack.c.b16 %v9638, %v9636
  %v9729 = vpack.c.b16 %v9641, %v9639
  %v9730 = vpack.c.b16 %v9642, %v9640
  %v9731 = vpack.c.b16 %v9645, %v9643
  %v9732 = vpack.c.b16 %v9646, %v9644
  %v9733 = vpack.c.b16 %v9649, %v9647
  %v9734 = vpack.c.b16 %v9650, %v9648
  %v9735 = vpack.c.b16 %v9653, %v9651
  %v9736 = vpack.c.b16 %v9654, %v9652
  %v9737 = vpack.c.b16 %v9657, %v9655
  %v9738 = vpack.c.b16 %v9658, %v9656
  %v9739 = vpack.c.b16 %v9661, %v9659
  %v9740 = vpack.c.b16 %v9662, %v9660
  %v9741 = vpack.c.b16 %v9665, %v9663
  %v9742 = vpack.c.b16 %v9666, %v9664
  %v9743 = vpack.c.b16 %v9669, %v9667
  %v9744 = vpack.c.b16 %v9670, %v9668
  %v9745 = vpack.c.b16 %v9673, %v9671
  %v9746 = vpack.c.b16 %v9674, %v9672
  %v9747 = vpack.c.b16 %v9677, %v9675
  %v9748 = vpack.c.b16 %v9678, %v9676
  %v9749 = vpack.c.b16 %v9681, %v9679
  %v9750 = vpack.c.b16 %v9682, %v9680
  %v9751 = vpack.c.b16 %v9685, %v9683
  %v9752 = vpack.c.b16 %v9686, %v9684
  %v9753 = vpack.c.b16 %v9689, %v9687
  %v9754 = vpack.c.b16 %v9690, %v9688
  %9819 = vmatprep.subr.bf16.mxu0 %v9692
  %9820 = vmatpush1.bf16.xpose.msra.mxu0 %v9691
  %9821 = vmatprep.subr.bf16.mxu0 %v9694
  %9822 = vmatpush1.bf16.xpose.msra.mxu0 %v9693
  %9823 = vmatprep.subr.bf16.mxu0 %v9696
  %9824 = vmatpush1.bf16.xpose.msra.mxu0 %v9695
  %9825 = vmatprep.subr.bf16.mxu0 %v9698
  %9826 = vmatpush1.bf16.xpose.msra.mxu0 %v9697
  %9827 = vmatprep.subr.bf16.mxu0 %v9700
  %9828 = vmatpush1.bf16.xpose.msra.mxu0 %v9699
  %9829 = vmatprep.subr.bf16.mxu0 %v9702
  %9830 = vmatpush1.bf16.xpose.msra.mxu0 %v9701
  %9831 = vmatprep.subr.bf16.mxu0 %v9704
  %9832 = vmatpush1.bf16.xpose.msra.mxu0 %v9703
  %9833 = vmatprep.subr.bf16.mxu0 %v9706
  %9834 = vmatpush1.bf16.xpose.msra.mxu0 %v9705
  %9835 = vmatprep.subr.bf16.mxu0 %v9708
  %9836 = vmatpush1.bf16.xpose.msra.mxu0 %v9707
  %9837 = vmatprep.subr.bf16.mxu0 %v9710
  %9838 = vmatpush1.bf16.xpose.msra.mxu0 %v9709
  %9839 = vmatprep.subr.bf16.mxu0 %v9712
  %9840 = vmatpush1.bf16.xpose.msra.mxu0 %v9711
  %9841 = vmatprep.subr.bf16.mxu0 %v9714
  %9842 = vmatpush1.bf16.xpose.msra.mxu0 %v9713
  %9843 = vmatprep.subr.bf16.mxu0 %v9716
  %9844 = vmatpush1.bf16.xpose.msra.mxu0 %v9715
  %9845 = vmatprep.subr.bf16.mxu0 %v9718
  %9846 = vmatpush1.bf16.xpose.msra.mxu0 %v9717
  %9847 = vmatprep.subr.bf16.mxu0 %v9720
  %9848 = vmatpush1.bf16.xpose.msra.mxu0 %v9719
  %9849 = vmatprep.subr.bf16.mxu0 %v9722
  %9850 = vmatpush1.bf16.xpose.msra.mxu0 %v9721
  %9851 = vmatprep.mubr.bf16.mxu0 %v9412
  %9852 = vmatmul.mubr.bf16.gmra.mrb[0].mxu0 %v9411
  %v9853 = vpop.f32.mrb[0].mxu0
  %v9854 = vadd.f32 %v9482, %v9853
  %v9855 = vpop.f32.mrb[0].mxu0
  %v9856 = vadd.f32 %v9486, %v9855
  %v9857 = vpop.f32.mrb[0].mxu0
  %v9858 = vpop.f32.mrb[0].mxu0
  %9859 = vdwg.mxu0
  %9860 = vmatprep.subr.bf16.mxu0 %v9724
  %9861 = vmatpush1.bf16.xpose.msra.mxu0 %v9723
  %9862 = vmatprep.subr.bf16.mxu0 %v9726
  %9863 = vmatpush1.bf16.xpose.msra.mxu0 %v9725
  %9864 = vmatprep.subr.bf16.mxu0 %v9728
  %9865 = vmatpush1.bf16.xpose.msra.mxu0 %v9727
  %9866 = vmatprep.subr.bf16.mxu0 %v9730
  %9867 = vmatpush1.bf16.xpose.msra.mxu0 %v9729
  %9868 = vmatprep.subr.bf16.mxu0 %v9732
  %9869 = vmatpush1.bf16.xpose.msra.mxu0 %v9731
  %9870 = vmatprep.subr.bf16.mxu0 %v9734
  %9871 = vmatpush1.bf16.xpose.msra.mxu0 %v9733
  %9872 = vmatprep.subr.bf16.mxu0 %v9736
  %9873 = vmatpush1.bf16.xpose.msra.mxu0 %v9735
  %9874 = vmatprep.subr.bf16.mxu0 %v9738
  %9875 = vmatpush1.bf16.xpose.msra.mxu0 %v9737
  %9876 = vmatprep.subr.bf16.mxu0 %v9740
  %9877 = vmatpush1.bf16.xpose.msra.mxu0 %v9739
  %9878 = vmatprep.subr.bf16.mxu0 %v9742
  %9879 = vmatpush1.bf16.xpose.msra.mxu0 %v9741
  %9880 = vmatprep.subr.bf16.mxu0 %v9744
  %9881 = vmatpush1.bf16.xpose.msra.mxu0 %v9743
  %9882 = vmatprep.subr.bf16.mxu0 %v9746
  %9883 = vmatpush1.bf16.xpose.msra.mxu0 %v9745
  %9884 = vmatprep.subr.bf16.mxu0 %v9748
  %9885 = vmatpush1.bf16.xpose.msra.mxu0 %v9747
  %9886 = vmatprep.subr.bf16.mxu0 %v9750
  %9887 = vmatpush1.bf16.xpose.msra.mxu0 %v9749
  %9888 = vmatprep.subr.bf16.mxu0 %v9752
  %9889 = vmatpush1.bf16.xpose.msra.mxu0 %v9751
  %9890 = vmatprep.subr.bf16.mxu0 %v9754
  %9891 = vmatpush1.bf16.xpose.msra.mxu0 %v9753
  %9892 = vmatprep.mubr.bf16.mxu0 %v9412
  %9893 = vmatmul.mubr.bf16.gmra.mrb[0].mxu0 %v9411
  %v9894 = vpop.f32.mrb[0].mxu0
  %v9895 = vadd.f32 %v9490, %v9894
  %v9896 = vpop.f32.mrb[0].mxu0
  %v9897 = vadd.f32 %v9494, %v9896
  %v9898 = vpop.f32.mrb[0].mxu0
  %v9899 = vpop.f32.mrb[0].mxu0
  %9900 = vdwg.mxu0
  %v9901 = vld [vmem:[#allocation7] sm:$0xff]
  %v9902 = vxor.u32 %v9854, 2147483648
  %v9903 = vmul.f32 %v9902, 1.442695
  %v9904 = vpow.pop %v9903
  %v9905 = vadd.f32 %v9904, 1.0
  %v9906 = vrcp.pop %v9905
  %v9907 = vmul.f32 1.0, %v9906
  %v9908 = vxor.u32 %v9856, 2147483648
  %v9909 = vmul.f32 %v9908, 1.442695
  %v9910 = vpow.pop %v9909
  %v9911 = vadd.f32 %v9910, 1.0
  %v9912 = vrcp.pop %v9911
  %v9913 = vmul.f32 1.0, %v9912
  %v9914 = vtanh.pop %v9895
  %v9915 = vxor.u32 %v9897, 2147483648
  %v9916 = vmul.f32 %v9915, 1.442695
  %v9917 = vpow.pop %v9916
  %v9918 = vadd.f32 %v9917, 1.0
  %v9919 = vrcp.pop %v9918
  %v9920 = vmul.f32 1.0, %v9919
  %v9921 = vmul.f32 %v9913, %v9901
  %v9922 = vmul.f32 %v9907, %v9914
  %v9923 = vadd.f32 %v9921, %v9922
  %v9924 = vtanh.pop %v9923
  %v9925 = vmul.f32 %v9920, %v9924
  %9926 = vst [vmem:[#allocation6] sm:$0xff] %v9925
  %9927 = vst [vmem:[#allocation7] sm:$0xff] %v9923
  %s9928 = scalar_lea.vmem %s6, 48
  %9929 = vst [vmem:[%s9928] sm:$0xff] %v9925
  %s9930 = scalar_lea.vmem %s0, 224
  %v9931 = vld [vmem:[%s9930] sm:$0xff]
  %v9932 = vld [vmem:[%s9930 + $0x8] sm:$0xff]
  %v9933 = vld [vmem:[%s9930 + $0x10] sm:$0xff]
  %v9934 = vld [vmem:[%s9930 + $0x18] sm:$0xff]
  %v9935 = vld [vmem:[#allocation2] sm:$0xff]
  %v9936 = vpack.c.bf16 %v9935, %v9935
  %v9937 = vld [vmem:[%s1] sm:$0xf]
  %v9938 = vld [vmem:[%s1 + $0x4] sm:$0xf]
  %v9939 = vld [vmem:[%s1 + $0x8] sm:$0xf]
  %v9940 = vld [vmem:[%s1 + $0xc] sm:$0xf]
  %v9941 = vld [vmem:[%s1 + $0x10] sm:$0xf]
  %v9942 = vld [vmem:[%s1 + $0x14] sm:$0xf]
  %v9943 = vld [vmem:[%s1 + $0x18] sm:$0xf]
  %v9944 = vld [vmem:[%s1 + $0x1c] sm:$0xf]
  %v9945 = vld [vmem:[%s1 + $0x20] sm:$0xf]
  %v9946 = vld [vmem:[%s1 + $0x24] sm:$0xf]
  %v9947 = vld [vmem:[%s1 + $0x28] sm:$0xf]
  %v9948 = vld [vmem:[%s1 + $0x2c] sm:$0xf]
  %v9949 = vld [vmem:[%s1 + $0x30] sm:$0xf]
  %v9950 = vld [vmem:[%s1 + $0x34] sm:$0xf]
  %v9951 = vld [vmem:[%s1 + $0x38] sm:$0xf]
  %v9952 = vld [vmem:[%s1 + $0x3c] sm:$0xf]
  %v9953 = vld [vmem:[%s1 + $0x40] sm:$0xf]
  %v9954 = vld [vmem:[%s1 + $0x44] sm:$0xf]
  %v9955 = vld [vmem:[%s1 + $0x48] sm:$0xf]
  %v9956 = vld [vmem:[%s1 + $0x4c] sm:$0xf]
  %v9957 = vld [vmem:[%s1 + $0x50] sm:$0xf]
  %v9958 = vld [vmem:[%s1 + $0x54] sm:$0xf]
  %v9959 = vld [vmem:[%s1 + $0x58] sm:$0xf]
  %v9960 = vld [vmem:[%s1 + $0x5c] sm:$0xf]
  %v9961 = vld [vmem:[%s1 + $0x60] sm:$0xf]
  %v9962 = vld [vmem:[%s1 + $0x64] sm:$0xf]
  %v9963 = vld [vmem:[%s1 + $0x68] sm:$0xf]
  %v9964 = vld [vmem:[%s1 + $0x6c] sm:$0xf]
  %v9965 = vld [vmem:[%s1 + $0x70] sm:$0xf]
  %v9966 = vld [vmem:[%s1 + $0x74] sm:$0xf]
  %v9967 = vld [vmem:[%s1 + $0x78] sm:$0xf]
  %v9968 = vld [vmem:[%s1 + $0x7c] sm:$0xf]
  %v9969 = vld [vmem:[%s1 + $0x80] sm:$0xf]
  %v9970 = vld [vmem:[%s1 + $0x84] sm:$0xf]
  %v9971 = vld [vmem:[%s1 + $0x88] sm:$0xf]
  %v9972 = vld [vmem:[%s1 + $0x8c] sm:$0xf]
  %v9973 = vld [vmem:[%s1 + $0x90] sm:$0xf]
  %v9974 = vld [vmem:[%s1 + $0x94] sm:$0xf]
  %v9975 = vld [vmem:[%s1 + $0x98] sm:$0xf]
  %v9976 = vld [vmem:[%s1 + $0x9c] sm:$0xf]
  %v9977 = vld [vmem:[%s1 + $0xa0] sm:$0xf]
  %v9978 = vld [vmem:[%s1 + $0xa4] sm:$0xf]
  %v9979 = vld [vmem:[%s1 + $0xa8] sm:$0xf]
  %v9980 = vld [vmem:[%s1 + $0xac] sm:$0xf]
  %v9981 = vld [vmem:[%s1 + $0xb0] sm:$0xf]
  %v9982 = vld [vmem:[%s1 + $0xb4] sm:$0xf]
  %v9983 = vld [vmem:[%s1 + $0xb8] sm:$0xf]
  %v9984 = vld [vmem:[%s1 + $0xbc] sm:$0xf]
  %v9985 = vld [vmem:[%s1 + $0xc0] sm:$0xf]
  %v9986 = vld [vmem:[%s1 + $0xc4] sm:$0xf]
  %v9987 = vld [vmem:[%s1 + $0xc8] sm:$0xf]
  %v9988 = vld [vmem:[%s1 + $0xcc] sm:$0xf]
  %v9989 = vld [vmem:[%s1 + $0xd0] sm:$0xf]
  %v9990 = vld [vmem:[%s1 + $0xd4] sm:$0xf]
  %v9991 = vld [vmem:[%s1 + $0xd8] sm:$0xf]
  %v9992 = vld [vmem:[%s1 + $0xdc] sm:$0xf]
  %v9993 = vld [vmem:[%s1 + $0xe0] sm:$0xf]
  %v9994 = vld [vmem:[%s1 + $0xe4] sm:$0xf]
  %v9995 = vld [vmem:[%s1 + $0xe8] sm:$0xf]
  %v9996 = vld [vmem:[%s1 + $0xec] sm:$0xf]
  %v9997 = vld [vmem:[%s1 + $0xf0] sm:$0xf]
  %v9998 = vld [vmem:[%s1 + $0xf4] sm:$0xf]
  %v9999 = vld [vmem:[%s1 + $0xf8] sm:$0xf]
  %v10000 = vld [vmem:[%s1 + $0xfc] sm:$0xf]
  %v10065 = vunpack.c.l.b16 %v9937
  %v10066 = vunpack.c.l.b16 %v9938
  %v10067 = vunpack.c.l.b16 %v9939
  %v10068 = vunpack.c.l.b16 %v9940
  %v10069 = vunpack.c.l.b16 %v9941
  %v10070 = vunpack.c.l.b16 %v9942
  %v10071 = vunpack.c.l.b16 %v9943
  %v10072 = vunpack.c.l.b16 %v9944
  %v10073 = vunpack.c.l.b16 %v9945
  %v10074 = vunpack.c.l.b16 %v9946
  %v10075 = vunpack.c.l.b16 %v9947
  %v10076 = vunpack.c.l.b16 %v9948
  %v10077 = vunpack.c.l.b16 %v9949
  %v10078 = vunpack.c.l.b16 %v9950
  %v10079 = vunpack.c.l.b16 %v9951
  %v10080 = vunpack.c.l.b16 %v9952
  %v10081 = vunpack.c.l.b16 %v9953
  %v10082 = vunpack.c.l.b16 %v9954
  %v10083 = vunpack.c.l.b16 %v9955
  %v10084 = vunpack.c.l.b16 %v9956
  %v10085 = vunpack.c.l.b16 %v9957
  %v10086 = vunpack.c.l.b16 %v9958
  %v10087 = vunpack.c.l.b16 %v9959
  %v10088 = vunpack.c.l.b16 %v9960
  %v10089 = vunpack.c.l.b16 %v9961
  %v10090 = vunpack.c.l.b16 %v9962
  %v10091 = vunpack.c.l.b16 %v9963
  %v10092 = vunpack.c.l.b16 %v9964
  %v10093 = vunpack.c.l.b16 %v9965
  %v10094 = vunpack.c.l.b16 %v9966
  %v10095 = vunpack.c.l.b16 %v9967
  %v10096 = vunpack.c.l.b16 %v9968
  %v10097 = vunpack.c.l.b16 %v9969
  %v10098 = vunpack.c.l.b16 %v9970
  %v10099 = vunpack.c.l.b16 %v9971
  %v10100 = vunpack.c.l.b16 %v9972
  %v10101 = vunpack.c.l.b16 %v9973
  %v10102 = vunpack.c.l.b16 %v9974
  %v10103 = vunpack.c.l.b16 %v9975
  %v10104 = vunpack.c.l.b16 %v9976
  %v10105 = vunpack.c.l.b16 %v9977
  %v10106 = vunpack.c.l.b16 %v9978
  %v10107 = vunpack.c.l.b16 %v9979
  %v10108 = vunpack.c.l.b16 %v9980
  %v10109 = vunpack.c.l.b16 %v9981
  %v10110 = vunpack.c.l.b16 %v9982
  %v10111 = vunpack.c.l.b16 %v9983
  %v10112 = vunpack.c.l.b16 %v9984
  %v10113 = vunpack.c.l.b16 %v9985
  %v10114 = vunpack.c.l.b16 %v9986
  %v10115 = vunpack.c.l.b16 %v9987
  %v10116 = vunpack.c.l.b16 %v9988
  %v10117 = vunpack.c.l.b16 %v9989
  %v10118 = vunpack.c.l.b16 %v9990
  %v10119 = vunpack.c.l.b16 %v9991
  %v10120 = vunpack.c.l.b16 %v9992
  %v10121 = vunpack.c.l.b16 %v9993
  %v10122 = vunpack.c.l.b16 %v9994
  %v10123 = vunpack.c.l.b16 %v9995
  %v10124 = vunpack.c.l.b16 %v9996
  %v10125 = vunpack.c.l.b16 %v9997
  %v10126 = vunpack.c.l.b16 %v9998
  %v10127 = vunpack.c.l.b16 %v9999
  %v10128 = vunpack.c.l.b16 %v10000
  %v10129 = vpack.c.b16 %v10066, %v10065
  %v10130 = vpack.c.b16 %v10068, %v10067
  %v10131 = vpack.c.b16 %v10070, %v10069
  %v10132 = vpack.c.b16 %v10072, %v10071
  %v10133 = vpack.c.b16 %v10074, %v10073
  %v10134 = vpack.c.b16 %v10076, %v10075
  %v10135 = vpack.c.b16 %v10078, %v10077
  %v10136 = vpack.c.b16 %v10080, %v10079
  %v10137 = vpack.c.b16 %v10082, %v10081
  %v10138 = vpack.c.b16 %v10084, %v10083
  %v10139 = vpack.c.b16 %v10086, %v10085
  %v10140 = vpack.c.b16 %v10088, %v10087
  %v10141 = vpack.c.b16 %v10090, %v10089
  %v10142 = vpack.c.b16 %v10092, %v10091
  %v10143 = vpack.c.b16 %v10094, %v10093
  %v10144 = vpack.c.b16 %v10096, %v10095
  %v10145 = vpack.c.b16 %v10098, %v10097
  %v10146 = vpack.c.b16 %v10100, %v10099
  %v10147 = vpack.c.b16 %v10102, %v10101
  %v10148 = vpack.c.b16 %v10104, %v10103
  %v10149 = vpack.c.b16 %v10106, %v10105
  %v10150 = vpack.c.b16 %v10108, %v10107
  %v10151 = vpack.c.b16 %v10110, %v10109
  %v10152 = vpack.c.b16 %v10112, %v10111
  %v10153 = vpack.c.b16 %v10114, %v10113
  %v10154 = vpack.c.b16 %v10116, %v10115
  %v10155 = vpack.c.b16 %v10118, %v10117
  %v10156 = vpack.c.b16 %v10120, %v10119
  %v10157 = vpack.c.b16 %v10122, %v10121
  %v10158 = vpack.c.b16 %v10124, %v10123
  %v10159 = vpack.c.b16 %v10126, %v10125
  %v10160 = vpack.c.b16 %v10128, %v10127
  %10193 = vmatprep.subr.bf16.mxu0 0
  %10194 = vmatpush1.bf16.xpose.msra.mxu0 %v10129
  %10195 = vmatprep.subr.bf16.mxu0 0
  %10196 = vmatpush1.bf16.xpose.msra.mxu0 %v10130
  %10197 = vmatprep.subr.bf16.mxu0 0
  %10198 = vmatpush1.bf16.xpose.msra.mxu0 %v10131
  %10199 = vmatprep.subr.bf16.mxu0 0
  %10200 = vmatpush1.bf16.xpose.msra.mxu0 %v10132
  %10201 = vmatprep.subr.bf16.mxu0 0
  %10202 = vmatpush1.bf16.xpose.msra.mxu0 %v10133
  %10203 = vmatprep.subr.bf16.mxu0 0
  %10204 = vmatpush1.bf16.xpose.msra.mxu0 %v10134
  %10205 = vmatprep.subr.bf16.mxu0 0
  %10206 = vmatpush1.bf16.xpose.msra.mxu0 %v10135
  %10207 = vmatprep.subr.bf16.mxu0 0
  %10208 = vmatpush1.bf16.xpose.msra.mxu0 %v10136
  %10209 = vmatprep.subr.bf16.mxu0 0
  %10210 = vmatpush1.bf16.xpose.msra.mxu0 %v10137
  %10211 = vmatprep.subr.bf16.mxu0 0
  %10212 = vmatpush1.bf16.xpose.msra.mxu0 %v10138
  %10213 = vmatprep.subr.bf16.mxu0 0
  %10214 = vmatpush1.bf16.xpose.msra.mxu0 %v10139
  %10215 = vmatprep.subr.bf16.mxu0 0
  %10216 = vmatpush1.bf16.xpose.msra.mxu0 %v10140
  %10217 = vmatprep.subr.bf16.mxu0 0
  %10218 = vmatpush1.bf16.xpose.msra.mxu0 %v10141
  %10219 = vmatprep.subr.bf16.mxu0 0
  %10220 = vmatpush1.bf16.xpose.msra.mxu0 %v10142
  %10221 = vmatprep.subr.bf16.mxu0 0
  %10222 = vmatpush1.bf16.xpose.msra.mxu0 %v10143
  %10223 = vmatprep.subr.bf16.mxu0 0
  %10224 = vmatpush1.bf16.xpose.msra.mxu0 %v10144
  %10225 = vmatprep.mubr.bf16.mxu0 0
  %10226 = vmatmul.mubr.bf16.gmra.mrb[0].mxu0 %v9936
  %v10227 = vpop.f32.mrb[0].mxu0
  %v10228 = vadd.f32 0.0, %v10227
  %v10229 = vpop.f32.mrb[0].mxu0
  %v10230 = vadd.f32 0.0, %v10229
  %v10231 = vpop.f32.mrb[0].mxu0
  %v10232 = vpop.f32.mrb[0].mxu0
  %10233 = vdwg.mxu0
  %10234 = vmatprep.subr.bf16.mxu0 0
  %10235 = vmatpush1.bf16.xpose.msra.mxu0 %v10145
  %10236 = vmatprep.subr.bf16.mxu0 0
  %10237 = vmatpush1.bf16.xpose.msra.mxu0 %v10146
  %10238 = vmatprep.subr.bf16.mxu0 0
  %10239 = vmatpush1.bf16.xpose.msra.mxu0 %v10147
  %10240 = vmatprep.subr.bf16.mxu0 0
  %10241 = vmatpush1.bf16.xpose.msra.mxu0 %v10148
  %10242 = vmatprep.subr.bf16.mxu0 0
  %10243 = vmatpush1.bf16.xpose.msra.mxu0 %v10149
  %10244 = vmatprep.subr.bf16.mxu0 0
  %10245 = vmatpush1.bf16.xpose.msra.mxu0 %v10150
  %10246 = vmatprep.subr.bf16.mxu0 0
  %10247 = vmatpush1.bf16.xpose.msra.mxu0 %v10151
  %10248 = vmatprep.subr.bf16.mxu0 0
  %10249 = vmatpush1.bf16.xpose.msra.mxu0 %v10152
  %10250 = vmatprep.subr.bf16.mxu0 0
  %10251 = vmatpush1.bf16.xpose.msra.mxu0 %v10153
  %10252 = vmatprep.subr.bf16.mxu0 0
  %10253 = vmatpush1.bf16.xpose.msra.mxu0 %v10154
  %10254 = vmatprep.subr.bf16.mxu0 0
  %10255 = vmatpush1.bf16.xpose.msra.mxu0 %v10155
  %10256 = vmatprep.subr.bf16.mxu0 0
  %10257 = vmatpush1.bf16.xpose.msra.mxu0 %v10156
  %10258 = vmatprep.subr.bf16.mxu0 0
  %10259 = vmatpush1.bf16.xpose.msra.mxu0 %v10157
  %10260 = vmatprep.subr.bf16.mxu0 0
  %10261 = vmatpush1.bf16.xpose.msra.mxu0 %v10158
  %10262 = vmatprep.subr.bf16.mxu0 0
  %10263 = vmatpush1.bf16.xpose.msra.mxu0 %v10159
  %10264 = vmatprep.subr.bf16.mxu0 0
  %10265 = vmatpush1.bf16.xpose.msra.mxu0 %v10160
  %10266 = vmatprep.mubr.bf16.mxu0 0
  %10267 = vmatmul.mubr.bf16.gmra.mrb[0].mxu0 %v9936
  %v10268 = vpop.f32.mrb[0].mxu0
  %v10269 = vadd.f32 0.0, %v10268
  %v10270 = vpop.f32.mrb[0].mxu0
  %v10271 = vadd.f32 0.0, %v10270
  %v10272 = vpop.f32.mrb[0].mxu0
  %v10273 = vpop.f32.mrb[0].mxu0
  %10274 = vdwg.mxu0
  %v10275 = vadd.f32 %v9931, %v10228
  %v10276 = vadd.f32 %v9932, %v10230
  %v10277 = vadd.f32 %v9933, %v10269
  %v10278 = vadd.f32 %v9934, %v10271
  %v10279 = vld [vmem:[#allocation3] sm:$0xff]
  %v10280 = vxor.u32 %v10275, 2147483648
  %v10281 = vmul.f32 %v10280, 1.442695
  %v10282 = vpow.pop %v10281
  %v10283 = vadd.f32 %v10282, 1.0
  %v10284 = vrcp.pop %v10283
  %v10285 = vmul.f32 1.0, %v10284
  %v10286 = vxor.u32 %v10276, 2147483648
  %v10287 = vmul.f32 %v10286, 1.442695
  %v10288 = vpow.pop %v10287
  %v10289 = vadd.f32 %v10288, 1.0
  %v10290 = vrcp.pop %v10289
  %v10291 = vmul.f32 1.0, %v10290
  %v10292 = vtanh.pop %v10277
  %v10293 = vxor.u32 %v10278, 2147483648
  %v10294 = vmul.f32 %v10293, 1.442695
  %v10295 = vpow.pop %v10294
  %v10296 = vadd.f32 %v10295, 1.0
  %v10297 = vrcp.pop %v10296
  %v10298 = vmul.f32 1.0, %v10297
  %v10299 = vmul.f32 %v10291, %v10279
  %v10300 = vmul.f32 %v10285, %v10292
  %v10301 = vadd.f32 %v10299, %v10300
  %v10302 = vtanh.pop %v10301
  %v10303 = vmul.f32 %v10298, %v10302
  %10304 = vst [vmem:[#allocation2] sm:$0xff] %v10303
  %10305 = vst [vmem:[#allocation3] sm:$0xff] %v10301
  %v10306 = vld [vmem:[#allocation4] sm:$0xff]
  %v10307 = vpack.c.bf16 %v10303, %v10303
  %v10308 = vpack.c.bf16 %v10306, %v10306
  %v10309 = vld [vmem:[%s2] sm:$0xff]
  %v10310 = vld [vmem:[%s2 + $0x8] sm:$0xff]
  %v10311 = vld [vmem:[%s2 + $0x10] sm:$0xff]
  %v10312 = vld [vmem:[%s2 + $0x18] sm:$0xff]
  %v10313 = vld [vmem:[%s2 + $0x20] sm:$0xff]
  %v10314 = vld [vmem:[%s2 + $0x28] sm:$0xff]
  %v10315 = vld [vmem:[%s2 + $0x30] sm:$0xff]
  %v10316 = vld [vmem:[%s2 + $0x38] sm:$0xff]
  %v10317 = vld [vmem:[%s2 + $0x40] sm:$0xff]
  %v10318 = vld [vmem:[%s2 + $0x48] sm:$0xff]
  %v10319 = vld [vmem:[%s2 + $0x50] sm:$0xff]
  %v10320 = vld [vmem:[%s2 + $0x58] sm:$0xff]
  %v10321 = vld [vmem:[%s2 + $0x60] sm:$0xff]
  %v10322 = vld [vmem:[%s2 + $0x68] sm:$0xff]
  %v10323 = vld [vmem:[%s2 + $0x70] sm:$0xff]
  %v10324 = vld [vmem:[%s2 + $0x78] sm:$0xff]
  %v10325 = vld [vmem:[%s2 + $0x80] sm:$0xff]
  %v10326 = vld [vmem:[%s2 + $0x88] sm:$0xff]
  %v10327 = vld [vmem:[%s2 + $0x90] sm:$0xff]
  %v10328 = vld [vmem:[%s2 + $0x98] sm:$0xff]
  %v10329 = vld [vmem:[%s2 + $0xa0] sm:$0xff]
  %v10330 = vld [vmem:[%s2 + $0xa8] sm:$0xff]
  %v10331 = vld [vmem:[%s2 + $0xb0] sm:$0xff]
  %v10332 = vld [vmem:[%s2 + $0xb8] sm:$0xff]
  %v10333 = vld [vmem:[%s2 + $0xc0] sm:$0xff]
  %v10334 = vld [vmem:[%s2 + $0xc8] sm:$0xff]
  %v10335 = vld [vmem:[%s2 + $0xd0] sm:$0xff]
  %v10336 = vld [vmem:[%s2 + $0xd8] sm:$0xff]
  %v10337 = vld [vmem:[%s2 + $0xe0] sm:$0xff]
  %v10338 = vld [vmem:[%s2 + $0xe8] sm:$0xff]
  %v10339 = vld [vmem:[%s2 + $0xf0] sm:$0xff]
  %v10340 = vld [vmem:[%s2 + $0xf8] sm:$0xff]
  %v10341 = vld [vmem:[%s2 + $0x100] sm:$0xff]
  %v10342 = vld [vmem:[%s2 + $0x108] sm:$0xff]
  %v10343 = vld [vmem:[%s2 + $0x110] sm:$0xff]
  %v10344 = vld [vmem:[%s2 + $0x118] sm:$0xff]
  %v10345 = vld [vmem:[%s2 + $0x120] sm:$0xff]
  %v10346 = vld [vmem:[%s2 + $0x128] sm:$0xff]
  %v10347 = vld [vmem:[%s2 + $0x130] sm:$0xff]
  %v10348 = vld [vmem:[%s2 + $0x138] sm:$0xff]
  %v10349 = vld [vmem:[%s2 + $0x140] sm:$0xff]
  %v10350 = vld [vmem:[%s2 + $0x148] sm:$0xff]
  %v10351 = vld [vmem:[%s2 + $0x150] sm:$0xff]
  %v10352 = vld [vmem:[%s2 + $0x158] sm:$0xff]
  %v10353 = vld [vmem:[%s2 + $0x160] sm:$0xff]
  %v10354 = vld [vmem:[%s2 + $0x168] sm:$0xff]
  %v10355 = vld [vmem:[%s2 + $0x170] sm:$0xff]
  %v10356 = vld [vmem:[%s2 + $0x178] sm:$0xff]
  %v10357 = vld [vmem:[%s2 + $0x180] sm:$0xff]
  %v10358 = vld [vmem:[%s2 + $0x188] sm:$0xff]
  %v10359 = vld [vmem:[%s2 + $0x190] sm:$0xff]
  %v10360 = vld [vmem:[%s2 + $0x198] sm:$0xff]
  %v10361 = vld [vmem:[%s2 + $0x1a0] sm:$0xff]
  %v10362 = vld [vmem:[%s2 + $0x1a8] sm:$0xff]
  %v10363 = vld [vmem:[%s2 + $0x1b0] sm:$0xff]
  %v10364 = vld [vmem:[%s2 + $0x1b8] sm:$0xff]
  %v10365 = vld [vmem:[%s2 + $0x1c0] sm:$0xff]
  %v10366 = vld [vmem:[%s2 + $0x1c8] sm:$0xff]
  %v10367 = vld [vmem:[%s2 + $0x1d0] sm:$0xff]
  %v10368 = vld [vmem:[%s2 + $0x1d8] sm:$0xff]
  %v10369 = vld [vmem:[%s2 + $0x1e0] sm:$0xff]
  %v10370 = vld [vmem:[%s2 + $0x1e8] sm:$0xff]
  %v10371 = vld [vmem:[%s2 + $0x1f0] sm:$0xff]
  %v10372 = vld [vmem:[%s2 + $0x1f8] sm:$0xff]
  %v10373 = vld [vmem:[%s3] sm:$0xf]
  %v10375 = vlaneseq
  %v10376 = vshrl.u32 %v10375, 7
  %v10377 = vsub.s32 0, %v10376
  %v10378 = vrot.slane %v10373, %v10377
  %v10379 = vlaneseq
  %v10380 = vshrl.u32 %v10379, 7
  %v10381 = vsub.s32 1, %v10380
  %v10382 = vrot.slane %v10373, %v10381
  %v10383 = vlaneseq
  %v10384 = vshrl.u32 %v10383, 7
  %v10385 = vsub.s32 2, %v10384
  %v10386 = vrot.slane %v10373, %v10385
  %v10387 = vlaneseq
  %v10388 = vshrl.u32 %v10387, 7
  %v10389 = vsub.s32 3, %v10388
  %v10390 = vrot.slane %v10373, %v10389
  %v10459 = vunpack.c.l.b16 %v10309
  %v10460 = vunpack.c.h.b16 %v10309
  %v10461 = vunpack.c.l.b16 %v10310
  %v10462 = vunpack.c.h.b16 %v10310
  %v10463 = vunpack.c.l.b16 %v10311
  %v10464 = vunpack.c.h.b16 %v10311
  %v10465 = vunpack.c.l.b16 %v10312
  %v10466 = vunpack.c.h.b16 %v10312
  %v10467 = vunpack.c.l.b16 %v10313
  %v10468 = vunpack.c.h.b16 %v10313
  %v10469 = vunpack.c.l.b16 %v10314
  %v10470 = vunpack.c.h.b16 %v10314
  %v10471 = vunpack.c.l.b16 %v10315
  %v10472 = vunpack.c.h.b16 %v10315
  %v10473 = vunpack.c.l.b16 %v10316
  %v10474 = vunpack.c.h.b16 %v10316
  %v10475 = vunpack.c.l.b16 %v10317
  %v10476 = vunpack.c.h.b16 %v10317
  %v10477 = vunpack.c.l.b16 %v10318
  %v10478 = vunpack.c.h.b16 %v10318
  %v10479 = vunpack.c.l.b16 %v10319
  %v10480 = vunpack.c.h.b16 %v10319
  %v10481 = vunpack.c.l.b16 %v10320
  %v10482 = vunpack.c.h.b16 %v10320
  %v10483 = vunpack.c.l.b16 %v10321
  %v10484 = vunpack.c.h.b16 %v10321
  %v10485 = vunpack.c.l.b16 %v10322
  %v10486 = vunpack.c.h.b16 %v10322
  %v10487 = vunpack.c.l.b16 %v10323
  %v10488 = vunpack.c.h.b16 %v10323
  %v10489 = vunpack.c.l.b16 %v10324
  %v10490 = vunpack.c.h.b16 %v10324
  %v10491 = vunpack.c.l.b16 %v10325
  %v10492 = vunpack.c.h.b16 %v10325
  %v10493 = vunpack.c.l.b16 %v10326
  %v10494 = vunpack.c.h.b16 %v10326
  %v10495 = vunpack.c.l.b16 %v10327
  %v10496 = vunpack.c.h.b16 %v10327
  %v10497 = vunpack.c.l.b16 %v10328
  %v10498 = vunpack.c.h.b16 %v10328
  %v10499 = vunpack.c.l.b16 %v10329
  %v10500 = vunpack.c.h.b16 %v10329
  %v10501 = vunpack.c.l.b16 %v10330
  %v10502 = vunpack.c.h.b16 %v10330
  %v10503 = vunpack.c.l.b16 %v10331
  %v10504 = vunpack.c.h.b16 %v10331
  %v10505 = vunpack.c.l.b16 %v10332
  %v10506 = vunpack.c.h.b16 %v10332
  %v10507 = vunpack.c.l.b16 %v10333
  %v10508 = vunpack.c.h.b16 %v10333
  %v10509 = vunpack.c.l.b16 %v10334
  %v10510 = vunpack.c.h.b16 %v10334
  %v10511 = vunpack.c.l.b16 %v10335
  %v10512 = vunpack.c.h.b16 %v10335
  %v10513 = vunpack.c.l.b16 %v10336
  %v10514 = vunpack.c.h.b16 %v10336
  %v10515 = vunpack.c.l.b16 %v10337
  %v10516 = vunpack.c.h.b16 %v10337
  %v10517 = vunpack.c.l.b16 %v10338
  %v10518 = vunpack.c.h.b16 %v10338
  %v10519 = vunpack.c.l.b16 %v10339
  %v10520 = vunpack.c.h.b16 %v10339
  %v10521 = vunpack.c.l.b16 %v10340
  %v10522 = vunpack.c.h.b16 %v10340
  %v10523 = vunpack.c.l.b16 %v10341
  %v10524 = vunpack.c.h.b16 %v10341
  %v10525 = vunpack.c.l.b16 %v10342
  %v10526 = vunpack.c.h.b16 %v10342
  %v10527 = vunpack.c.l.b16 %v10343
  %v10528 = vunpack.c.h.b16 %v10343
  %v10529 = vunpack.c.l.b16 %v10344
  %v10530 = vunpack.c.h.b16 %v10344
  %v10531 = vunpack.c.l.b16 %v10345
  %v10532 = vunpack.c.h.b16 %v10345
  %v10533 = vunpack.c.l.b16 %v10346
  %v10534 = vunpack.c.h.b16 %v10346
  %v10535 = vunpack.c.l.b16 %v10347
  %v10536 = vunpack.c.h.b16 %v10347
  %v10537 = vunpack.c.l.b16 %v10348
  %v10538 = vunpack.c.h.b16 %v10348
  %v10539 = vunpack.c.l.b16 %v10349
  %v10540 = vunpack.c.h.b16 %v10349
  %v10541 = vunpack.c.l.b16 %v10350
  %v10542 = vunpack.c.h.b16 %v10350
  %v10543 = vunpack.c.l.b16 %v10351
  %v10544 = vunpack.c.h.b16 %v10351
  %v10545 = vunpack.c.l.b16 %v10352
  %v10546 = vunpack.c.h.b16 %v10352
  %v10547 = vunpack.c.l.b16 %v10353
  %v10548 = vunpack.c.h.b16 %v10353
  %v10549 = vunpack.c.l.b16 %v10354
  %v10550 = vunpack.c.h.b16 %v10354
  %v10551 = vunpack.c.l.b16 %v10355
  %v10552 = vunpack.c.h.b16 %v10355
  %v10553 = vunpack.c.l.b16 %v10356
  %v10554 = vunpack.c.h.b16 %v10356
  %v10555 = vunpack.c.l.b16 %v10357
  %v10556 = vunpack.c.h.b16 %v10357
  %v10557 = vunpack.c.l.b16 %v10358
  %v10558 = vunpack.c.h.b16 %v10358
  %v10559 = vunpack.c.l.b16 %v10359
  %v10560 = vunpack.c.h.b16 %v10359
  %v10561 = vunpack.c.l.b16 %v10360
  %v10562 = vunpack.c.h.b16 %v10360
  %v10563 = vunpack.c.l.b16 %v10361
  %v10564 = vunpack.c.h.b16 %v10361
  %v10565 = vunpack.c.l.b16 %v10362
  %v10566 = vunpack.c.h.b16 %v10362
  %v10567 = vunpack.c.l.b16 %v10363
  %v10568 = vunpack.c.h.b16 %v10363
  %v10569 = vunpack.c.l.b16 %v10364
  %v10570 = vunpack.c.h.b16 %v10364
  %v10571 = vunpack.c.l.b16 %v10365
  %v10572 = vunpack.c.h.b16 %v10365
  %v10573 = vunpack.c.l.b16 %v10366
  %v10574 = vunpack.c.h.b16 %v10366
  %v10575 = vunpack.c.l.b16 %v10367
  %v10576 = vunpack.c.h.b16 %v10367
  %v10577 = vunpack.c.l.b16 %v10368
  %v10578 = vunpack.c.h.b16 %v10368
  %v10579 = vunpack.c.l.b16 %v10369
  %v10580 = vunpack.c.h.b16 %v10369
  %v10581 = vunpack.c.l.b16 %v10370
  %v10582 = vunpack.c.h.b16 %v10370
  %v10583 = vunpack.c.l.b16 %v10371
  %v10584 = vunpack.c.h.b16 %v10371
  %v10585 = vunpack.c.l.b16 %v10372
  %v10586 = vunpack.c.h.b16 %v10372
  %v10587 = vpack.c.b16 %v10461, %v10459
  %v10588 = vpack.c.b16 %v10462, %v10460
  %v10589 = vpack.c.b16 %v10465, %v10463
  %v10590 = vpack.c.b16 %v10466, %v10464
  %v10591 = vpack.c.b16 %v10469, %v10467
  %v10592 = vpack.c.b16 %v10470, %v10468
  %v10593 = vpack.c.b16 %v10473, %v10471
  %v10594 = vpack.c.b16 %v10474, %v10472
  %v10595 = vpack.c.b16 %v10477, %v10475
  %v10596 = vpack.c.b16 %v10478, %v10476
  %v10597 = vpack.c.b16 %v10481, %v10479
  %v10598 = vpack.c.b16 %v10482, %v10480
  %v10599 = vpack.c.b16 %v10485, %v10483
  %v10600 = vpack.c.b16 %v10486, %v10484
  %v10601 = vpack.c.b16 %v10489, %v10487
  %v10602 = vpack.c.b16 %v10490, %v10488
  %v10603 = vpack.c.b16 %v10493, %v10491
  %v10604 = vpack.c.b16 %v10494, %v10492
  %v10605 = vpack.c.b16 %v10497, %v10495
  %v10606 = vpack.c.b16 %v10498, %v10496
  %v10607 = vpack.c.b16 %v10501, %v10499
  %v10608 = vpack.c.b16 %v10502, %v10500
  %v10609 = vpack.c.b16 %v10505, %v10503
  %v10610 = vpack.c.b16 %v10506, %v10504
  %v10611 = vpack.c.b16 %v10509, %v10507
  %v10612 = vpack.c.b16 %v10510, %v10508
  %v10613 = vpack.c.b16 %v10513, %v10511
  %v10614 = vpack.c.b16 %v10514, %v10512
  %v10615 = vpack.c.b16 %v10517, %v10515
  %v10616 = vpack.c.b16 %v10518, %v10516
  %v10617 = vpack.c.b16 %v10521, %v10519
  %v10618 = vpack.c.b16 %v10522, %v10520
  %v10619 = vpack.c.b16 %v10525, %v10523
  %v10620 = vpack.c.b16 %v10526, %v10524
  %v10621 = vpack.c.b16 %v10529, %v10527
  %v10622 = vpack.c.b16 %v10530, %v10528
  %v10623 = vpack.c.b16 %v10533, %v10531
  %v10624 = vpack.c.b16 %v10534, %v10532
  %v10625 = vpack.c.b16 %v10537, %v10535
  %v10626 = vpack.c.b16 %v10538, %v10536
  %v10627 = vpack.c.b16 %v10541, %v10539
  %v10628 = vpack.c.b16 %v10542, %v10540
  %v10629 = vpack.c.b16 %v10545, %v10543
  %v10630 = vpack.c.b16 %v10546, %v10544
  %v10631 = vpack.c.b16 %v10549, %v10547
  %v10632 = vpack.c.b16 %v10550, %v10548
  %v10633 = vpack.c.b16 %v10553, %v10551
  %v10634 = vpack.c.b16 %v10554, %v10552
  %v10635 = vpack.c.b16 %v10557, %v10555
  %v10636 = vpack.c.b16 %v10558, %v10556
  %v10637 = vpack.c.b16 %v10561, %v10559
  %v10638 = vpack.c.b16 %v10562, %v10560
  %v10639 = vpack.c.b16 %v10565, %v10563
  %v10640 = vpack.c.b16 %v10566, %v10564
  %v10641 = vpack.c.b16 %v10569, %v10567
  %v10642 = vpack.c.b16 %v10570, %v10568
  %v10643 = vpack.c.b16 %v10573, %v10571
  %v10644 = vpack.c.b16 %v10574, %v10572
  %v10645 = vpack.c.b16 %v10577, %v10575
  %v10646 = vpack.c.b16 %v10578, %v10576
  %v10647 = vpack.c.b16 %v10581, %v10579
  %v10648 = vpack.c.b16 %v10582, %v10580
  %v10649 = vpack.c.b16 %v10585, %v10583
  %v10650 = vpack.c.b16 %v10586, %v10584
  %10715 = vmatprep.subr.bf16.mxu0 %v10588
  %10716 = vmatpush1.bf16.xpose.msra.mxu0 %v10587
  %10717 = vmatprep.subr.bf16.mxu0 %v10590
  %10718 = vmatpush1.bf16.xpose.msra.mxu0 %v10589
  %10719 = vmatprep.subr.bf16.mxu0 %v10592
  %10720 = vmatpush1.bf16.xpose.msra.mxu0 %v10591
  %10721 = vmatprep.subr.bf16.mxu0 %v10594
  %10722 = vmatpush1.bf16.xpose.msra.mxu0 %v10593
  %10723 = vmatprep.subr.bf16.mxu0 %v10596
  %10724 = vmatpush1.bf16.xpose.msra.mxu0 %v10595
  %10725 = vmatprep.subr.bf16.mxu0 %v10598
  %10726 = vmatpush1.bf16.xpose.msra.mxu0 %v10597
  %10727 = vmatprep.subr.bf16.mxu0 %v10600
  %10728 = vmatpush1.bf16.xpose.msra.mxu0 %v10599
  %10729 = vmatprep.subr.bf16.mxu0 %v10602
  %10730 = vmatpush1.bf16.xpose.msra.mxu0 %v10601
  %10731 = vmatprep.subr.bf16.mxu0 %v10604
  %10732 = vmatpush1.bf16.xpose.msra.mxu0 %v10603
  %10733 = vmatprep.subr.bf16.mxu0 %v10606
  %10734 = vmatpush1.bf16.xpose.msra.mxu0 %v10605
  %10735 = vmatprep.subr.bf16.mxu0 %v10608
  %10736 = vmatpush1.bf16.xpose.msra.mxu0 %v10607
  %10737 = vmatprep.subr.bf16.mxu0 %v10610
  %10738 = vmatpush1.bf16.xpose.msra.mxu0 %v10609
  %10739 = vmatprep.subr.bf16.mxu0 %v10612
  %10740 = vmatpush1.bf16.xpose.msra.mxu0 %v10611
  %10741 = vmatprep.subr.bf16.mxu0 %v10614
  %10742 = vmatpush1.bf16.xpose.msra.mxu0 %v10613
  %10743 = vmatprep.subr.bf16.mxu0 %v10616
  %10744 = vmatpush1.bf16.xpose.msra.mxu0 %v10615
  %10745 = vmatprep.subr.bf16.mxu0 %v10618
  %10746 = vmatpush1.bf16.xpose.msra.mxu0 %v10617
  %10747 = vmatprep.mubr.bf16.mxu0 %v10308
  %10748 = vmatmul.mubr.bf16.gmra.mrb[0].mxu0 %v10307
  %v10749 = vpop.f32.mrb[0].mxu0
  %v10750 = vadd.f32 %v10378, %v10749
  %v10751 = vpop.f32.mrb[0].mxu0
  %v10752 = vadd.f32 %v10382, %v10751
  %v10753 = vpop.f32.mrb[0].mxu0
  %v10754 = vpop.f32.mrb[0].mxu0
  %10755 = vdwg.mxu0
  %10756 = vmatprep.subr.bf16.mxu0 %v10620
  %10757 = vmatpush1.bf16.xpose.msra.mxu0 %v10619
  %10758 = vmatprep.subr.bf16.mxu0 %v10622
  %10759 = vmatpush1.bf16.xpose.msra.mxu0 %v10621
  %10760 = vmatprep.subr.bf16.mxu0 %v10624
  %10761 = vmatpush1.bf16.xpose.msra.mxu0 %v10623
  %10762 = vmatprep.subr.bf16.mxu0 %v10626
  %10763 = vmatpush1.bf16.xpose.msra.mxu0 %v10625
  %10764 = vmatprep.subr.bf16.mxu0 %v10628
  %10765 = vmatpush1.bf16.xpose.msra.mxu0 %v10627
  %10766 = vmatprep.subr.bf16.mxu0 %v10630
  %10767 = vmatpush1.bf16.xpose.msra.mxu0 %v10629
  %10768 = vmatprep.subr.bf16.mxu0 %v10632
  %10769 = vmatpush1.bf16.xpose.msra.mxu0 %v10631
  %10770 = vmatprep.subr.bf16.mxu0 %v10634
  %10771 = vmatpush1.bf16.xpose.msra.mxu0 %v10633
  %10772 = vmatprep.subr.bf16.mxu0 %v10636
  %10773 = vmatpush1.bf16.xpose.msra.mxu0 %v10635
  %10774 = vmatprep.subr.bf16.mxu0 %v10638
  %10775 = vmatpush1.bf16.xpose.msra.mxu0 %v10637
  %10776 = vmatprep.subr.bf16.mxu0 %v10640
  %10777 = vmatpush1.bf16.xpose.msra.mxu0 %v10639
  %10778 = vmatprep.subr.bf16.mxu0 %v10642
  %10779 = vmatpush1.bf16.xpose.msra.mxu0 %v10641
  %10780 = vmatprep.subr.bf16.mxu0 %v10644
  %10781 = vmatpush1.bf16.xpose.msra.mxu0 %v10643
  %10782 = vmatprep.subr.bf16.mxu0 %v10646
  %10783 = vmatpush1.bf16.xpose.msra.mxu0 %v10645
  %10784 = vmatprep.subr.bf16.mxu0 %v10648
  %10785 = vmatpush1.bf16.xpose.msra.mxu0 %v10647
  %10786 = vmatprep.subr.bf16.mxu0 %v10650
  %10787 = vmatpush1.bf16.xpose.msra.mxu0 %v10649
  %10788 = vmatprep.mubr.bf16.mxu0 %v10308
  %10789 = vmatmul.mubr.bf16.gmra.mrb[0].mxu0 %v10307
  %v10790 = vpop.f32.mrb[0].mxu0
  %v10791 = vadd.f32 %v10386, %v10790
  %v10792 = vpop.f32.mrb[0].mxu0
  %v10793 = vadd.f32 %v10390, %v10792
  %v10794 = vpop.f32.mrb[0].mxu0
  %v10795 = vpop.f32.mrb[0].mxu0
  %10796 = vdwg.mxu0
  %v10797 = vld [vmem:[#allocation5] sm:$0xff]
  %v10798 = vxor.u32 %v10750, 2147483648
  %v10799 = vmul.f32 %v10798, 1.442695
  %v10800 = vpow.pop %v10799
  %v10801 = vadd.f32 %v10800, 1.0
  %v10802 = vrcp.pop %v10801
  %v10803 = vmul.f32 1.0, %v10802
  %v10804 = vxor.u32 %v10752, 2147483648
  %v10805 = vmul.f32 %v10804, 1.442695
  %v10806 = vpow.pop %v10805
  %v10807 = vadd.f32 %v10806, 1.0
  %v10808 = vrcp.pop %v10807
  %v10809 = vmul.f32 1.0, %v10808
  %v10810 = vtanh.pop %v10791
  %v10811 = vxor.u32 %v10793, 2147483648
  %v10812 = vmul.f32 %v10811, 1.442695
  %v10813 = vpow.pop %v10812
  %v10814 = vadd.f32 %v10813, 1.0
  %v10815 = vrcp.pop %v10814
  %v10816 = vmul.f32 1.0, %v10815
  %v10817 = vmul.f32 %v10809, %v10797
  %v10818 = vmul.f32 %v10803, %v10810
  %v10819 = vadd.f32 %v10817, %v10818
  %v10820 = vtanh.pop %v10819
  %v10821 = vmul.f32 %v10816, %v10820
  %10822 = vst [vmem:[#allocation4] sm:$0xff] %v10821
  %10823 = vst [vmem:[#allocation5] sm:$0xff] %v10819
  %v10824 = vld [vmem:[#allocation6] sm:$0xff]
  %v10825 = vpack.c.bf16 %v10821, %v10821
  %v10826 = vpack.c.bf16 %v10824, %v10824
  %v10827 = vld [vmem:[%s4] sm:$0xff]
  %v10828 = vld [vmem:[%s4 + $0x8] sm:$0xff]
  %v10829 = vld [vmem:[%s4 + $0x10] sm:$0xff]
  %v10830 = vld [vmem:[%s4 + $0x18] sm:$0xff]
  %v10831 = vld [vmem:[%s4 + $0x20] sm:$0xff]
  %v10832 = vld [vmem:[%s4 + $0x28] sm:$0xff]
  %v10833 = vld [vmem:[%s4 + $0x30] sm:$0xff]
  %v10834 = vld [vmem:[%s4 + $0x38] sm:$0xff]
  %v10835 = vld [vmem:[%s4 + $0x40] sm:$0xff]
  %v10836 = vld [vmem:[%s4 + $0x48] sm:$0xff]
  %v10837 = vld [vmem:[%s4 + $0x50] sm:$0xff]
  %v10838 = vld [vmem:[%s4 + $0x58] sm:$0xff]
  %v10839 = vld [vmem:[%s4 + $0x60] sm:$0xff]
  %v10840 = vld [vmem:[%s4 + $0x68] sm:$0xff]
  %v10841 = vld [vmem:[%s4 + $0x70] sm:$0xff]
  %v10842 = vld [vmem:[%s4 + $0x78] sm:$0xff]
  %v10843 = vld [vmem:[%s4 + $0x80] sm:$0xff]
  %v10844 = vld [vmem:[%s4 + $0x88] sm:$0xff]
  %v10845 = vld [vmem:[%s4 + $0x90] sm:$0xff]
  %v10846 = vld [vmem:[%s4 + $0x98] sm:$0xff]
  %v10847 = vld [vmem:[%s4 + $0xa0] sm:$0xff]
  %v10848 = vld [vmem:[%s4 + $0xa8] sm:$0xff]
  %v10849 = vld [vmem:[%s4 + $0xb0] sm:$0xff]
  %v10850 = vld [vmem:[%s4 + $0xb8] sm:$0xff]
  %v10851 = vld [vmem:[%s4 + $0xc0] sm:$0xff]
  %v10852 = vld [vmem:[%s4 + $0xc8] sm:$0xff]
  %v10853 = vld [vmem:[%s4 + $0xd0] sm:$0xff]
  %v10854 = vld [vmem:[%s4 + $0xd8] sm:$0xff]
  %v10855 = vld [vmem:[%s4 + $0xe0] sm:$0xff]
  %v10856 = vld [vmem:[%s4 + $0xe8] sm:$0xff]
  %v10857 = vld [vmem:[%s4 + $0xf0] sm:$0xff]
  %v10858 = vld [vmem:[%s4 + $0xf8] sm:$0xff]
  %v10859 = vld [vmem:[%s4 + $0x100] sm:$0xff]
  %v10860 = vld [vmem:[%s4 + $0x108] sm:$0xff]
  %v10861 = vld [vmem:[%s4 + $0x110] sm:$0xff]
  %v10862 = vld [vmem:[%s4 + $0x118] sm:$0xff]
  %v10863 = vld [vmem:[%s4 + $0x120] sm:$0xff]
  %v10864 = vld [vmem:[%s4 + $0x128] sm:$0xff]
  %v10865 = vld [vmem:[%s4 + $0x130] sm:$0xff]
  %v10866 = vld [vmem:[%s4 + $0x138] sm:$0xff]
  %v10867 = vld [vmem:[%s4 + $0x140] sm:$0xff]
  %v10868 = vld [vmem:[%s4 + $0x148] sm:$0xff]
  %v10869 = vld [vmem:[%s4 + $0x150] sm:$0xff]
  %v10870 = vld [vmem:[%s4 + $0x158] sm:$0xff]
  %v10871 = vld [vmem:[%s4 + $0x160] sm:$0xff]
  %v10872 = vld [vmem:[%s4 + $0x168] sm:$0xff]
  %v10873 = vld [vmem:[%s4 + $0x170] sm:$0xff]
  %v10874 = vld [vmem:[%s4 + $0x178] sm:$0xff]
  %v10875 = vld [vmem:[%s4 + $0x180] sm:$0xff]
  %v10876 = vld [vmem:[%s4 + $0x188] sm:$0xff]
  %v10877 = vld [vmem:[%s4 + $0x190] sm:$0xff]
  %v10878 = vld [vmem:[%s4 + $0x198] sm:$0xff]
  %v10879 = vld [vmem:[%s4 + $0x1a0] sm:$0xff]
  %v10880 = vld [vmem:[%s4 + $0x1a8] sm:$0xff]
  %v10881 = vld [vmem:[%s4 + $0x1b0] sm:$0xff]
  %v10882 = vld [vmem:[%s4 + $0x1b8] sm:$0xff]
  %v10883 = vld [vmem:[%s4 + $0x1c0] sm:$0xff]
  %v10884 = vld [vmem:[%s4 + $0x1c8] sm:$0xff]
  %v10885 = vld [vmem:[%s4 + $0x1d0] sm:$0xff]
  %v10886 = vld [vmem:[%s4 + $0x1d8] sm:$0xff]
  %v10887 = vld [vmem:[%s4 + $0x1e0] sm:$0xff]
  %v10888 = vld [vmem:[%s4 + $0x1e8] sm:$0xff]
  %v10889 = vld [vmem:[%s4 + $0x1f0] sm:$0xff]
  %v10890 = vld [vmem:[%s4 + $0x1f8] sm:$0xff]
  %v10891 = vld [vmem:[%s5] sm:$0xf]
  %v10893 = vlaneseq
  %v10894 = vshrl.u32 %v10893, 7
  %v10895 = vsub.s32 0, %v10894
  %v10896 = vrot.slane %v10891, %v10895
  %v10897 = vlaneseq
  %v10898 = vshrl.u32 %v10897, 7
  %v10899 = vsub.s32 1, %v10898
  %v10900 = vrot.slane %v10891, %v10899
  %v10901 = vlaneseq
  %v10902 = vshrl.u32 %v10901, 7
  %v10903 = vsub.s32 2, %v10902
  %v10904 = vrot.slane %v10891, %v10903
  %v10905 = vlaneseq
  %v10906 = vshrl.u32 %v10905, 7
  %v10907 = vsub.s32 3, %v10906
  %v10908 = vrot.slane %v10891, %v10907
  %v10977 = vunpack.c.l.b16 %v10827
  %v10978 = vunpack.c.h.b16 %v10827
  %v10979 = vunpack.c.l.b16 %v10828
  %v10980 = vunpack.c.h.b16 %v10828
  %v10981 = vunpack.c.l.b16 %v10829
  %v10982 = vunpack.c.h.b16 %v10829
  %v10983 = vunpack.c.l.b16 %v10830
  %v10984 = vunpack.c.h.b16 %v10830
  %v10985 = vunpack.c.l.b16 %v10831
  %v10986 = vunpack.c.h.b16 %v10831
  %v10987 = vunpack.c.l.b16 %v10832
  %v10988 = vunpack.c.h.b16 %v10832
  %v10989 = vunpack.c.l.b16 %v10833
  %v10990 = vunpack.c.h.b16 %v10833
  %v10991 = vunpack.c.l.b16 %v10834
  %v10992 = vunpack.c.h.b16 %v10834
  %v10993 = vunpack.c.l.b16 %v10835
  %v10994 = vunpack.c.h.b16 %v10835
  %v10995 = vunpack.c.l.b16 %v10836
  %v10996 = vunpack.c.h.b16 %v10836
  %v10997 = vunpack.c.l.b16 %v10837
  %v10998 = vunpack.c.h.b16 %v10837
  %v10999 = vunpack.c.l.b16 %v10838
  %v11000 = vunpack.c.h.b16 %v10838
  %v11001 = vunpack.c.l.b16 %v10839
  %v11002 = vunpack.c.h.b16 %v10839
  %v11003 = vunpack.c.l.b16 %v10840
  %v11004 = vunpack.c.h.b16 %v10840
  %v11005 = vunpack.c.l.b16 %v10841
  %v11006 = vunpack.c.h.b16 %v10841
  %v11007 = vunpack.c.l.b16 %v10842
  %v11008 = vunpack.c.h.b16 %v10842
  %v11009 = vunpack.c.l.b16 %v10843
  %v11010 = vunpack.c.h.b16 %v10843
  %v11011 = vunpack.c.l.b16 %v10844
  %v11012 = vunpack.c.h.b16 %v10844
  %v11013 = vunpack.c.l.b16 %v10845
  %v11014 = vunpack.c.h.b16 %v10845
  %v11015 = vunpack.c.l.b16 %v10846
  %v11016 = vunpack.c.h.b16 %v10846
  %v11017 = vunpack.c.l.b16 %v10847
  %v11018 = vunpack.c.h.b16 %v10847
  %v11019 = vunpack.c.l.b16 %v10848
  %v11020 = vunpack.c.h.b16 %v10848
  %v11021 = vunpack.c.l.b16 %v10849
  %v11022 = vunpack.c.h.b16 %v10849
  %v11023 = vunpack.c.l.b16 %v10850
  %v11024 = vunpack.c.h.b16 %v10850
  %v11025 = vunpack.c.l.b16 %v10851
  %v11026 = vunpack.c.h.b16 %v10851
  %v11027 = vunpack.c.l.b16 %v10852
  %v11028 = vunpack.c.h.b16 %v10852
  %v11029 = vunpack.c.l.b16 %v10853
  %v11030 = vunpack.c.h.b16 %v10853
  %v11031 = vunpack.c.l.b16 %v10854
  %v11032 = vunpack.c.h.b16 %v10854
  %v11033 = vunpack.c.l.b16 %v10855
  %v11034 = vunpack.c.h.b16 %v10855
  %v11035 = vunpack.c.l.b16 %v10856
  %v11036 = vunpack.c.h.b16 %v10856
  %v11037 = vunpack.c.l.b16 %v10857
  %v11038 = vunpack.c.h.b16 %v10857
  %v11039 = vunpack.c.l.b16 %v10858
  %v11040 = vunpack.c.h.b16 %v10858
  %v11041 = vunpack.c.l.b16 %v10859
  %v11042 = vunpack.c.h.b16 %v10859
  %v11043 = vunpack.c.l.b16 %v10860
  %v11044 = vunpack.c.h.b16 %v10860
  %v11045 = vunpack.c.l.b16 %v10861
  %v11046 = vunpack.c.h.b16 %v10861
  %v11047 = vunpack.c.l.b16 %v10862
  %v11048 = vunpack.c.h.b16 %v10862
  %v11049 = vunpack.c.l.b16 %v10863
  %v11050 = vunpack.c.h.b16 %v10863
  %v11051 = vunpack.c.l.b16 %v10864
  %v11052 = vunpack.c.h.b16 %v10864
  %v11053 = vunpack.c.l.b16 %v10865
  %v11054 = vunpack.c.h.b16 %v10865
  %v11055 = vunpack.c.l.b16 %v10866
  %v11056 = vunpack.c.h.b16 %v10866
  %v11057 = vunpack.c.l.b16 %v10867
  %v11058 = vunpack.c.h.b16 %v10867
  %v11059 = vunpack.c.l.b16 %v10868
  %v11060 = vunpack.c.h.b16 %v10868
  %v11061 = vunpack.c.l.b16 %v10869
  %v11062 = vunpack.c.h.b16 %v10869
  %v11063 = vunpack.c.l.b16 %v10870
  %v11064 = vunpack.c.h.b16 %v10870
  %v11065 = vunpack.c.l.b16 %v10871
  %v11066 = vunpack.c.h.b16 %v10871
  %v11067 = vunpack.c.l.b16 %v10872
  %v11068 = vunpack.c.h.b16 %v10872
  %v11069 = vunpack.c.l.b16 %v10873
  %v11070 = vunpack.c.h.b16 %v10873
  %v11071 = vunpack.c.l.b16 %v10874
  %v11072 = vunpack.c.h.b16 %v10874
  %v11073 = vunpack.c.l.b16 %v10875
  %v11074 = vunpack.c.h.b16 %v10875
  %v11075 = vunpack.c.l.b16 %v10876
  %v11076 = vunpack.c.h.b16 %v10876
  %v11077 = vunpack.c.l.b16 %v10877
  %v11078 = vunpack.c.h.b16 %v10877
  %v11079 = vunpack.c.l.b16 %v10878
  %v11080 = vunpack.c.h.b16 %v10878
  %v11081 = vunpack.c.l.b16 %v10879
  %v11082 = vunpack.c.h.b16 %v10879
  %v11083 = vunpack.c.l.b16 %v10880
  %v11084 = vunpack.c.h.b16 %v10880
  %v11085 = vunpack.c.l.b16 %v10881
  %v11086 = vunpack.c.h.b16 %v10881
  %v11087 = vunpack.c.l.b16 %v10882
  %v11088 = vunpack.c.h.b16 %v10882
  %v11089 = vunpack.c.l.b16 %v10883
  %v11090 = vunpack.c.h.b16 %v10883
  %v11091 = vunpack.c.l.b16 %v10884
  %v11092 = vunpack.c.h.b16 %v10884
  %v11093 = vunpack.c.l.b16 %v10885
  %v11094 = vunpack.c.h.b16 %v10885
  %v11095 = vunpack.c.l.b16 %v10886
  %v11096 = vunpack.c.h.b16 %v10886
  %v11097 = vunpack.c.l.b16 %v10887
  %v11098 = vunpack.c.h.b16 %v10887
  %v11099 = vunpack.c.l.b16 %v10888
  %v11100 = vunpack.c.h.b16 %v10888
  %v11101 = vunpack.c.l.b16 %v10889
  %v11102 = vunpack.c.h.b16 %v10889
  %v11103 = vunpack.c.l.b16 %v10890
  %v11104 = vunpack.c.h.b16 %v10890
  %v11105 = vpack.c.b16 %v10979, %v10977
  %v11106 = vpack.c.b16 %v10980, %v10978
  %v11107 = vpack.c.b16 %v10983, %v10981
  %v11108 = vpack.c.b16 %v10984, %v10982
  %v11109 = vpack.c.b16 %v10987, %v10985
  %v11110 = vpack.c.b16 %v10988, %v10986
  %v11111 = vpack.c.b16 %v10991, %v10989
  %v11112 = vpack.c.b16 %v10992, %v10990
  %v11113 = vpack.c.b16 %v10995, %v10993
  %v11114 = vpack.c.b16 %v10996, %v10994
  %v11115 = vpack.c.b16 %v10999, %v10997
  %v11116 = vpack.c.b16 %v11000, %v10998
  %v11117 = vpack.c.b16 %v11003, %v11001
  %v11118 = vpack.c.b16 %v11004, %v11002
  %v11119 = vpack.c.b16 %v11007, %v11005
  %v11120 = vpack.c.b16 %v11008, %v11006
  %v11121 = vpack.c.b16 %v11011, %v11009
  %v11122 = vpack.c.b16 %v11012, %v11010
  %v11123 = vpack.c.b16 %v11015, %v11013
  %v11124 = vpack.c.b16 %v11016, %v11014
  %v11125 = vpack.c.b16 %v11019, %v11017
  %v11126 = vpack.c.b16 %v11020, %v11018
  %v11127 = vpack.c.b16 %v11023, %v11021
  %v11128 = vpack.c.b16 %v11024, %v11022
  %v11129 = vpack.c.b16 %v11027, %v11025
  %v11130 = vpack.c.b16 %v11028, %v11026
  %v11131 = vpack.c.b16 %v11031, %v11029
  %v11132 = vpack.c.b16 %v11032, %v11030
  %v11133 = vpack.c.b16 %v11035, %v11033
  %v11134 = vpack.c.b16 %v11036, %v11034
  %v11135 = vpack.c.b16 %v11039, %v11037
  %v11136 = vpack.c.b16 %v11040, %v11038
  %v11137 = vpack.c.b16 %v11043, %v11041
  %v11138 = vpack.c.b16 %v11044, %v11042
  %v11139 = vpack.c.b16 %v11047, %v11045
  %v11140 = vpack.c.b16 %v11048, %v11046
  %v11141 = vpack.c.b16 %v11051, %v11049
  %v11142 = vpack.c.b16 %v11052, %v11050
  %v11143 = vpack.c.b16 %v11055, %v11053
  %v11144 = vpack.c.b16 %v11056, %v11054
  %v11145 = vpack.c.b16 %v11059, %v11057
  %v11146 = vpack.c.b16 %v11060, %v11058
  %v11147 = vpack.c.b16 %v11063, %v11061
  %v11148 = vpack.c.b16 %v11064, %v11062
  %v11149 = vpack.c.b16 %v11067, %v11065
  %v11150 = vpack.c.b16 %v11068, %v11066
  %v11151 = vpack.c.b16 %v11071, %v11069
  %v11152 = vpack.c.b16 %v11072, %v11070
  %v11153 = vpack.c.b16 %v11075, %v11073
  %v11154 = vpack.c.b16 %v11076, %v11074
  %v11155 = vpack.c.b16 %v11079, %v11077
  %v11156 = vpack.c.b16 %v11080, %v11078
  %v11157 = vpack.c.b16 %v11083, %v11081
  %v11158 = vpack.c.b16 %v11084, %v11082
  %v11159 = vpack.c.b16 %v11087, %v11085
  %v11160 = vpack.c.b16 %v11088, %v11086
  %v11161 = vpack.c.b16 %v11091, %v11089
  %v11162 = vpack.c.b16 %v11092, %v11090
  %v11163 = vpack.c.b16 %v11095, %v11093
  %v11164 = vpack.c.b16 %v11096, %v11094
  %v11165 = vpack.c.b16 %v11099, %v11097
  %v11166 = vpack.c.b16 %v11100, %v11098
  %v11167 = vpack.c.b16 %v11103, %v11101
  %v11168 = vpack.c.b16 %v11104, %v11102
  %11233 = vmatprep.subr.bf16.mxu0 %v11106
  %11234 = vmatpush1.bf16.xpose.msra.mxu0 %v11105
  %11235 = vmatprep.subr.bf16.mxu0 %v11108
  %11236 = vmatpush1.bf16.xpose.msra.mxu0 %v11107
  %11237 = vmatprep.subr.bf16.mxu0 %v11110
  %11238 = vmatpush1.bf16.xpose.msra.mxu0 %v11109
  %11239 = vmatprep.subr.bf16.mxu0 %v11112
  %11240 = vmatpush1.bf16.xpose.msra.mxu0 %v11111
  %11241 = vmatprep.subr.bf16.mxu0 %v11114
  %11242 = vmatpush1.bf16.xpose.msra.mxu0 %v11113
  %11243 = vmatprep.subr.bf16.mxu0 %v11116
  %11244 = vmatpush1.bf16.xpose.msra.mxu0 %v11115
  %11245 = vmatprep.subr.bf16.mxu0 %v11118
  %11246 = vmatpush1.bf16.xpose.msra.mxu0 %v11117
  %11247 = vmatprep.subr.bf16.mxu0 %v11120
  %11248 = vmatpush1.bf16.xpose.msra.mxu0 %v11119
  %11249 = vmatprep.subr.bf16.mxu0 %v11122
  %11250 = vmatpush1.bf16.xpose.msra.mxu0 %v11121
  %11251 = vmatprep.subr.bf16.mxu0 %v11124
  %11252 = vmatpush1.bf16.xpose.msra.mxu0 %v11123
  %11253 = vmatprep.subr.bf16.mxu0 %v11126
  %11254 = vmatpush1.bf16.xpose.msra.mxu0 %v11125
  %11255 = vmatprep.subr.bf16.mxu0 %v11128
  %11256 = vmatpush1.bf16.xpose.msra.mxu0 %v11127
  %11257 = vmatprep.subr.bf16.mxu0 %v11130
  %11258 = vmatpush1.bf16.xpose.msra.mxu0 %v11129
  %11259 = vmatprep.subr.bf16.mxu0 %v11132
  %11260 = vmatpush1.bf16.xpose.msra.mxu0 %v11131
  %11261 = vmatprep.subr.bf16.mxu0 %v11134
  %11262 = vmatpush1.bf16.xpose.msra.mxu0 %v11133
  %11263 = vmatprep.subr.bf16.mxu0 %v11136
  %11264 = vmatpush1.bf16.xpose.msra.mxu0 %v11135
  %11265 = vmatprep.mubr.bf16.mxu0 %v10826
  %11266 = vmatmul.mubr.bf16.gmra.mrb[0].mxu0 %v10825
  %v11267 = vpop.f32.mrb[0].mxu0
  %v11268 = vadd.f32 %v10896, %v11267
  %v11269 = vpop.f32.mrb[0].mxu0
  %v11270 = vadd.f32 %v10900, %v11269
  %v11271 = vpop.f32.mrb[0].mxu0
  %v11272 = vpop.f32.mrb[0].mxu0
  %11273 = vdwg.mxu0
  %11274 = vmatprep.subr.bf16.mxu0 %v11138
  %11275 = vmatpush1.bf16.xpose.msra.mxu0 %v11137
  %11276 = vmatprep.subr.bf16.mxu0 %v11140
  %11277 = vmatpush1.bf16.xpose.msra.mxu0 %v11139
  %11278 = vmatprep.subr.bf16.mxu0 %v11142
  %11279 = vmatpush1.bf16.xpose.msra.mxu0 %v11141
  %11280 = vmatprep.subr.bf16.mxu0 %v11144
  %11281 = vmatpush1.bf16.xpose.msra.mxu0 %v11143
  %11282 = vmatprep.subr.bf16.mxu0 %v11146
  %11283 = vmatpush1.bf16.xpose.msra.mxu0 %v11145
  %11284 = vmatprep.subr.bf16.mxu0 %v11148
  %11285 = vmatpush1.bf16.xpose.msra.mxu0 %v11147
  %11286 = vmatprep.subr.bf16.mxu0 %v11150
  %11287 = vmatpush1.bf16.xpose.msra.mxu0 %v11149
  %11288 = vmatprep.subr.bf16.mxu0 %v11152
  %11289 = vmatpush1.bf16.xpose.msra.mxu0 %v11151
  %11290 = vmatprep.subr.bf16.mxu0 %v11154
  %11291 = vmatpush1.bf16.xpose.msra.mxu0 %v11153
  %11292 = vmatprep.subr.bf16.mxu0 %v11156
  %11293 = vmatpush1.bf16.xpose.msra.mxu0 %v11155
  %11294 = vmatprep.subr.bf16.mxu0 %v11158
  %11295 = vmatpush1.bf16.xpose.msra.mxu0 %v11157
  %11296 = vmatprep.subr.bf16.mxu0 %v11160
  %11297 = vmatpush1.bf16.xpose.msra.mxu0 %v11159
  %11298 = vmatprep.subr.bf16.mxu0 %v11162
  %11299 = vmatpush1.bf16.xpose.msra.mxu0 %v11161
  %11300 = vmatprep.subr.bf16.mxu0 %v11164
  %11301 = vmatpush1.bf16.xpose.msra.mxu0 %v11163
  %11302 = vmatprep.subr.bf16.mxu0 %v11166
  %11303 = vmatpush1.bf16.xpose.msra.mxu0 %v11165
  %11304 = vmatprep.subr.bf16.mxu0 %v11168
  %11305 = vmatpush1.bf16.xpose.msra.mxu0 %v11167
  %11306 = vmatprep.mubr.bf16.mxu0 %v10826
  %11307 = vmatmul.mubr.bf16.gmra.mrb[0].mxu0 %v10825
  %v11308 = vpop.f32.mrb[0].mxu0
  %v11309 = vadd.f32 %v10904, %v11308
  %v11310 = vpop.f32.mrb[0].mxu0
  %v11311 = vadd.f32 %v10908, %v11310
  %v11312 = vpop.f32.mrb[0].mxu0
  %v11313 = vpop.f32.mrb[0].mxu0
  %11314 = vdwg.mxu0
  %v11315 = vld [vmem:[#allocation7] sm:$0xff]
  %v11316 = vxor.u32 %v11268, 2147483648
  %v11317 = vmul.f32 %v11316, 1.442695
  %v11318 = vpow.pop %v11317
  %v11319 = vadd.f32 %v11318, 1.0
  %v11320 = vrcp.pop %v11319
  %v11321 = vmul.f32 1.0, %v11320
  %v11322 = vxor.u32 %v11270, 2147483648
  %v11323 = vmul.f32 %v11322, 1.442695
  %v11324 = vpow.pop %v11323
  %v11325 = vadd.f32 %v11324, 1.0
  %v11326 = vrcp.pop %v11325
  %v11327 = vmul.f32 1.0, %v11326
  %v11328 = vtanh.pop %v11309
  %v11329 = vxor.u32 %v11311, 2147483648
  %v11330 = vmul.f32 %v11329, 1.442695
  %v11331 = vpow.pop %v11330
  %v11332 = vadd.f32 %v11331, 1.0
  %v11333 = vrcp.pop %v11332
  %v11334 = vmul.f32 1.0, %v11333
  %v11335 = vmul.f32 %v11327, %v11315
  %v11336 = vmul.f32 %v11321, %v11328
  %v11337 = vadd.f32 %v11335, %v11336
  %v11338 = vtanh.pop %v11337
  %v11339 = vmul.f32 %v11334, %v11338
  %11340 = vst [vmem:[#allocation6] sm:$0xff] %v11339
  %11341 = vst [vmem:[#allocation7] sm:$0xff] %v11337
  %s11342 = scalar_lea.vmem %s6, 56
  %11343 = vst [vmem:[%s11342] sm:$0xff] %v11339
  // Predicated region
  $region30: #{rnn_model_forward.4} parent=0 // pred_check
    _
  $region31: #{rnn_model_forward.4} parent=0 // pred_check_branch
    %11345 = sbr.rel (0) target = $region33
  $region32: #{rnn_model_forward.4} parent=0 // pred_region
    _
  $region33: #{rnn_model_forward.4} parent=0 // pred_fallthru
    _
  // Predicated region
  $region34: #{rnn_model_forward.4} parent=0 // pred_check
    _
  $region35: #{rnn_model_forward.4} parent=0 // pred_check_branch
    %11347 = sbr.rel (0) target = $region37
  $region36: #{rnn_model_forward.4} parent=0 // pred_region
    _
  $region37: #{rnn_model_forward.4} parent=0 // pred_fallthru
    _

</llo_original>
